<compile_context>
chip_gen: v5e
topology: v5e:2x2
jax: 0.10.0
libtpu: 0.0.40
codegen_flags: <defaults>
</compile_context>

<pallas_src>
import jax
import jax.numpy as jnp
from jax import lax
from jax.experimental import pallas as pl
from jax.experimental.pallas import tpu as pltpu

EPS = 1e-5
LANE = 128
SUB = 8


def _round_up(v, m):
    return ((v + m - 1) // m) * m


def _pad_last(a, to):
    pad = to - a.shape[-1]
    if pad == 0:
        return a
    return jnp.pad(a, [(0, 0)] * (a.ndim - 1) + [(0, pad)])


def bottleneck_forward(x_nchw, params, *, use_bf16=False):
    N, Cin, H, W = x_nchw.shape
    P = params["w1"].shape[1]
    assert Cin == 4 * P, "identity-residual Bottleneck needs inplanes == planes*4"
    Cpad = _round_up(Cin, LANE)
    Ppad = _round_up(P, LANE)
    Hp, Wp = H + 2, W + 2
    R = N * Hp * Wp            # rows of the spatially-padded, flattened layout
    NHW = N * H * W            # number of valid (interior) rows
    G = _round_up(W + 3, SUB)  # guard rows so every conv2 tap slice is in-bounds
    inv_n = 1.0 / NHW
    cdt = jnp.bfloat16 if use_bf16 else jnp.float32

    # ---- lane-dense, halo-padded layout (wrapper-side XLA plumbing) --------
    x_nhwc = jnp.transpose(x_nchw, (0, 2, 3, 1))
    x_pad = jnp.pad(x_nhwc, ((0, 0), (1, 1), (1, 1), (0, Cpad - Cin))
                    ).reshape(R, Cpad).astype(jnp.float32)

    # Row-validity mask: 1.0 on interior (real pixel) rows, 0.0 on halo rows.
    ys = (jnp.arange(Hp) >= 1) & (jnp.arange(Hp) <= H)
    xs = (jnp.arange(Wp) >= 1) & (jnp.arange(Wp) <= W)
    valid = jnp.tile((ys[:, None] & xs[None, :]).reshape(-1), (N,)
                     ).astype(jnp.float32)
    mask_row = valid.reshape(1, R)   # MXU stats-dot LHS (masked reduction)
    mask_col = valid.reshape(R, 1)   # re-zeroes h1 halo rows after BN1's shift

    # ---- weights / BN params, zero-padded to lane-aligned channel dims -----
    # Padded gamma/beta are zero, so padded channels stay exactly zero through
    # every stage (conv -> BN -> relu -> residual) and are sliced off below.
    w1 = _pad_last(jnp.pad(params["w1"], ((0, Cpad - Cin), (0, 0))), Ppad).astype(cdt)
    w2 = jnp.pad(params["w2"], ((0, 0), (0, 0), (0, Ppad - P), (0, Ppad - P))
                 ).reshape(9, Ppad, Ppad).astype(cdt)
    w3 = _pad_last(jnp.pad(params["w3"], ((0, Ppad - P), (0, 0))), Cpad).astype(cdt)
    g1, b1 = _pad_last(params["g1"], Ppad), _pad_last(params["b1"], Ppad)
    g2, b2 = _pad_last(params["g2"], Ppad), _pad_last(params["b2"], Ppad)
    g3, b3 = _pad_last(params["g3"], Cpad), _pad_last(params["b3"], Cpad)

    def kernel(x_ref, mrow_ref, mcol_ref, w1_ref, g1_ref, b1_ref,
               w2_ref, g2_ref, b2_ref, w3_ref, g3_ref, b3_ref,
               out_ref, h1_ref):
        f32 = jnp.float32
        mrow = mrow_ref[...]                               # (1, R)

        def bn(h, g_ref, b_ref, relu):
            # Training-mode BN.  Masked reductions run on the MXU (mask row as
            # the dot LHS); variance is the two-pass E[(h-mean)^2] form.
            mean = jnp.dot(mrow, h, preferred_element_type=f32) * inv_n
            d = h - mean
            var = jnp.dot(mrow, d * d, preferred_element_type=f32) * inv_n
            scale = g_ref[...] * lax.rsqrt(var + EPS)
            y = d * scale + b_ref[...]
            return jnp.maximum(y, 0.0) if relu else y

        # ---- conv1 (1x1) + bn1 + relu --------------------------------------
        h1 = bn(jnp.dot(x_ref[...].astype(w1_ref.dtype), w1_ref[...],
                        preferred_element_type=f32),
                g1_ref, b1_ref, relu=True)                 # (R, Ppad) f32

        # Guarded h1 scratch: zero the guard rows (they only feed discarded
        # halo outputs, but must be finite), then one sublane-aligned store of
        # h1 with its halo rows re-zeroed so conv2 sees true zero padding.
        h1_ref[pl.ds(0, G), :] = jnp.zeros((G, Ppad), h1_ref.dtype)
        h1_ref[pl.ds(G + R, G), :] = jnp.zeros((G, Ppad), h1_ref.dtype)
        h1_ref[pl.ds(G, R), :] = (h1 * mcol_ref[...]).astype(h1_ref.dtype)

        # ---- conv2 (3x3, pad=1, stride=1): 9 accumulating MXU dots ---------
        # Each tap is a contiguous row-window of the guarded 2D scratch at a
        # static offset; accumulation stays in f32 (MRB-friendly on v7x).
        acc = None
        for ky in range(3):
            for kx in range(3):
                start = G + (ky - 1) * Wp + (kx - 1)       # static, >= 0
                part = jnp.dot(h1_ref[pl.ds(start, R), :], w2_ref[ky * 3 + kx],
                               preferred_element_type=f32)
                acc = part if acc is None else acc + part
        h2 = bn(acc, g2_ref, b2_ref, relu=True)            # (R, Ppad) f32

        # ---- conv3 (1x1) + bn3 + residual add + relu ------------------------
        h3 = bn(jnp.dot(h2.astype(w3_ref.dtype), w3_ref[...],
                        preferred_element_type=f32),
                g3_ref, b3_ref, relu=False)                # (R, Cpad) f32
        out_ref[...] = jnp.maximum(h3 + x_ref[...], 0.0)

    args = (x_pad, mask_row, mask_col, w1, g1, b1, w2, g2, b2, w3, g3, b3)
    vmem = pl.BlockSpec(memory_space=pltpu.MemorySpace.VMEM)

    # VMEM budget derived from the actual footprint (inputs + output + scratch
    # + transient temporaries) with headroom, instead of a hard-coded cap.
    isz = 2 if use_bf16 else 4
    est = (2 * R * Cpad * 4                                 # x_pad + out
           + (R + 2 * G) * Ppad * isz                       # h1 scratch
           + (9 + 2) * Ppad * max(Ppad, Cpad) * isz         # weights
           + R * LANE * 4 + SUB * R * 4                     # masks (tile-padded)
           + 6 * R * max(Cpad, Ppad) * 4)                   # transient temps
    vmem_limit = int(min(max(2 * est, 32 * 2**20), 100 * 2**20))

    flops = 2 * R * (Cpad * Ppad + 9 * Ppad * Ppad + Ppad * Cpad) \
        + 3 * 4 * R * max(Cpad, Ppad)                       # convs + BN stats dots
    bytes_accessed = 4 * (2 * R * Cpad + R * (LANE + SUB)) \
        + isz * (Cpad * Ppad + 9 * Ppad * Ppad + Ppad * Cpad) \
        + 4 * (4 * Ppad + 2 * Cpad)

    out_pad = pl.pallas_call(
        kernel,
        out_shape=jax.ShapeDtypeStruct((R, Cpad), jnp.float32),
        in_specs=[vmem] * len(args),
        out_specs=vmem,
        scratch_shapes=[pltpu.VMEM((R + 2 * G, Ppad), cdt)],
        compiler_params=pltpu.CompilerParams(vmem_limit_bytes=vmem_limit),
        cost_estimate=pl.CostEstimate(
            flops=flops, transcendentals=6 * max(Cpad, Ppad),
            bytes_accessed=bytes_accessed),
    )(*args)

    # Strip halo rows and channel padding, back to NCHW (PyTorch convention).
    out = out_pad.reshape(N, Hp, Wp, Cpad)[:, 1:H + 1, 1:W + 1, :Cin]
    return jnp.transpose(out, (0, 3, 1, 2))


def reference_forward(x_nchw, params):
    """Plain-JAX reference mirroring the PyTorch forward (training-mode BN)."""
    dn = ("NHWC", "HWIO", "NHWC")
    x = jnp.transpose(x_nchw, (0, 2, 3, 1))
    Cin = x.shape[-1]
    P = params["w1"].shape[1]

    def bn(h, g, b):
        mean = h.mean(axis=(0, 1, 2), keepdims=True)
        var = ((h - mean) ** 2).mean(axis=(0, 1, 2), keepdims=True)
        return (h - mean) / jnp.sqrt(var + EPS) * g.reshape(1, 1, 1, -1) \
            + b.reshape(1, 1, 1, -1)

    h = lax.conv_general_dilated(x, params["w1"].reshape(1, 1, Cin, P),
                                 (1, 1), "VALID", dimension_numbers=dn)
    h = jax.nn.relu(bn(h, params["g1"].ravel(), params["b1"].ravel()))
    h = lax.conv_general_dilated(h, params["w2"], (1, 1), "SAME",
                                 dimension_numbers=dn)
    h = jax.nn.relu(bn(h, params["g2"].ravel(), params["b2"].ravel()))
    h = lax.conv_general_dilated(h, params["w3"].reshape(1, 1, P, Cin),
                                 (1, 1), "VALID", dimension_numbers=dn)
    h = bn(h, params["g3"].ravel(), params["b3"].ravel())
    out = jax.nn.relu(h + x)
    return jnp.transpose(out, (0, 3, 1, 2))


def init_params(key, inplanes, planes):
    c3 = planes * 4
    assert c3 == inplanes, "identity-residual Bottleneck needs inplanes == planes*4"
    ks = jax.random.split(key, 9)
    return {
        # conv weights in kernel-friendly layouts:
        #   w1: (Cin, P)       == torch conv1.weight (P, Cin, 1, 1) transposed
        #   w2: (3, 3, P, P)   [kh, kw, Cin, Cout] == torch (Cout, Cin, kh, kw) permuted
        #   w3: (P, 4P)        == torch conv3.weight (4P, P, 1, 1) transposed
        "w1": jax.random.normal(ks[0], (inplanes, planes), jnp.float32) * 0.2,
        "w2": jax.random.normal(ks[1], (3, 3, planes, planes), jnp.float32) * 0.2,
        "w3": jax.random.normal(ks[2], (planes, c3), jnp.float32) * 0.2,
        # BatchNorm affine params stored as (1, C) for in-kernel broadcasting.
        "g1": 1.0 + 0.1 * jax.random.normal(ks[3], (1, planes), jnp.float32),
        "b1": 0.1 * jax.random.normal(ks[4], (1, planes), jnp.float32),
        "g2": 1.0 + 0.1 * jax.random.normal(ks[5], (1, planes), jnp.float32),
        "b2": 0.1 * jax.random.normal(ks[6], (1, planes), jnp.float32),
        "g3": 1.0 + 0.1 * jax.random.normal(ks[7], (1, c3), jnp.float32),
        "b3": 0.1 * jax.random.normal(ks[8], (1, c3), jnp.float32),
    }


if __name__ == "__main__":
    key = jax.random.PRNGKey(0)
    k_x, k_p = jax.random.split(key)

    N, inplanes, H, W = 2, 64, 16, 16
    planes = 16                 # expansion=4 -> output channels = 64 = inplanes

    # PyTorch-style NCHW input.
    x_nchw = jax.random.normal(k_x, (N, inplanes, H, W), jnp.float32)
    params = init_params(k_p, inplanes, planes)

    ref = reference_forward(x_nchw, params)

    # f32 path: must match the reference tightly.
    out = jax.block_until_ready(bottleneck_forward(x_nchw, params, use_bf16=False))
    assert out.shape == (N, inplanes, H, W)
    assert jnp.allclose(out, ref, atol=1e-4, rtol=1e-4), \
        f"f32 mismatch: max err {jnp.max(jnp.abs(out - ref))}"

    # bf16 matmul path (f32 accumulation / BN / residual): loose sanity bound.
    out_bf16 = jax.block_until_ready(bottleneck_forward(x_nchw, params, use_bf16=True))
    assert jnp.allclose(out_bf16, ref, atol=1e-1, rtol=1e-1), \
        f"bf16 mismatch: max err {jnp.max(jnp.abs(out_bf16 - ref))}"

    print("KERNEL_OK")
</pallas_src>

<mosaic_0001>
module attributes {stable_mosaic.version = 11 : i64} {
  func.func @kernel(%arg0: memref<648x128xf32, #tpu.memory_space<vmem>>, %arg1: memref<1x648xf32, #tpu.memory_space<vmem>>, %arg2: memref<648x1xf32, #tpu.memory_space<vmem>>, %arg3: memref<128x128xf32, #tpu.memory_space<vmem>>, %arg4: memref<1x128xf32, #tpu.memory_space<vmem>>, %arg5: memref<1x128xf32, #tpu.memory_space<vmem>>, %arg6: memref<9x128x128xf32, #tpu.memory_space<vmem>>, %arg7: memref<1x128xf32, #tpu.memory_space<vmem>>, %arg8: memref<1x128xf32, #tpu.memory_space<vmem>>, %arg9: memref<128x128xf32, #tpu.memory_space<vmem>>, %arg10: memref<1x128xf32, #tpu.memory_space<vmem>>, %arg11: memref<1x128xf32, #tpu.memory_space<vmem>>, %arg12: memref<648x128xf32, #tpu.memory_space<vmem>>, %arg13: memref<696x128xf32, #tpu.memory_space<vmem>>) attributes {dimension_semantics = [], scalar_prefetch = 0 : i64, scratch_operands = 1 : i64, tpu.core_type = #tpu.core_type<tc>} {
    %c0 = arith.constant 0 : index
    %c0_0 = arith.constant 0 : index
    %0 = vector.load %arg1[%c0, %c0_0] : memref<1x648xf32, #tpu.memory_space<vmem>>, vector<1x648xf32>
    %c0_1 = arith.constant 0 : index
    %c0_2 = arith.constant 0 : index
    %1 = vector.load %arg0[%c0_1, %c0_2] : memref<648x128xf32, #tpu.memory_space<vmem>>, vector<648x128xf32>
    %c0_3 = arith.constant 0 : index
    %c0_4 = arith.constant 0 : index
    %2 = vector.load %arg3[%c0_3, %c0_4] : memref<128x128xf32, #tpu.memory_space<vmem>>, vector<128x128xf32>
    %cst = arith.constant dense<0.000000e+00> : vector<648x128xf32>
    %3 = tpu.matmul %1, %2, %cst {dimension_numbers = #tpu.dot_dimension_numbers<[1], [0], [0], [1], [0, 0, 1, 1], [], []>} : vector<648x128xf32>, vector<128x128xf32>, vector<648x128xf32> -> vector<648x128xf32>
    %cst_5 = arith.constant dense<0.000000e+00> : vector<1x128xf32>
    %4 = tpu.matmul %0, %3, %cst_5 {dimension_numbers = #tpu.dot_dimension_numbers<[1], [0], [0], [1], [0, 0, 1, 1], [], []>} : vector<1x648xf32>, vector<648x128xf32>, vector<1x128xf32> -> vector<1x128xf32>
    %cst_6 = arith.constant 0.001953125 : f32
    %5 = vector.broadcast %cst_6 : f32 to vector<1x128xf32>
    %6 = arith.mulf %4, %5 : vector<1x128xf32>
    %7 = vector.broadcast %6 : vector<1x128xf32> to vector<648x128xf32>
    %8 = arith.subf %3, %7 : vector<648x128xf32>
    %9 = arith.mulf %8, %8 : vector<648x128xf32>
    %cst_7 = arith.constant dense<0.000000e+00> : vector<1x128xf32>
    %10 = tpu.matmul %0, %9, %cst_7 {dimension_numbers = #tpu.dot_dimension_numbers<[1], [0], [0], [1], [0, 0, 1, 1], [], []>} : vector<1x648xf32>, vector<648x128xf32>, vector<1x128xf32> -> vector<1x128xf32>
    %cst_8 = arith.constant 0.001953125 : f32
    %11 = vector.broadcast %cst_8 : f32 to vector<1x128xf32>
    %12 = arith.mulf %10, %11 : vector<1x128xf32>
    %c0_9 = arith.constant 0 : index
    %c0_10 = arith.constant 0 : index
    %13 = vector.load %arg4[%c0_9, %c0_10] : memref<1x128xf32, #tpu.memory_space<vmem>>, vector<1x128xf32>
    %cst_11 = arith.constant 9.99999974E-6 : f32
    %14 = vector.broadcast %cst_11 : f32 to vector<1x128xf32>
    %15 = arith.addf %12, %14 : vector<1x128xf32>
    %16 = math.rsqrt %15 : vector<1x128xf32>
    %17 = arith.mulf %13, %16 : vector<1x128xf32>
    %18 = vector.broadcast %17 : vector<1x128xf32> to vector<648x128xf32>
    %19 = arith.mulf %8, %18 : vector<648x128xf32>
    %c0_12 = arith.constant 0 : index
    %c0_13 = arith.constant 0 : index
    %20 = vector.load %arg5[%c0_12, %c0_13] : memref<1x128xf32, #tpu.memory_space<vmem>>, vector<1x128xf32>
    %21 = vector.broadcast %20 : vector<1x128xf32> to vector<648x128xf32>
    %22 = arith.addf %19, %21 : vector<648x128xf32>
    %cst_14 = arith.constant 0.000000e+00 : f32
    %23 = vector.broadcast %cst_14 : f32 to vector<648x128xf32>
    %24 = arith.maximumf %22, %23 : vector<648x128xf32>
    %cst_15 = arith.constant 0.000000e+00 : f32
    %25 = vector.broadcast %cst_15 : f32 to vector<24x128xf32>
    %c0_16 = arith.constant 0 : index
    %c0_17 = arith.constant 0 : index
    %26 = vector.load %arg13[%c0_16, %c0_17] : memref<696x128xf32, #tpu.memory_space<vmem>>, vector<24x128xf32>
    tpu.vector_store %arg13[%c0_16, %c0_17], %25 {strides = array<i32>} : memref<696x128xf32, #tpu.memory_space<vmem>>, vector<24x128xf32>,
    %cst_18 = arith.constant 0.000000e+00 : f32
    %27 = vector.broadcast %cst_18 : f32 to vector<24x128xf32>
    %c672 = arith.constant 672 : index
    %c0_19 = arith.constant 0 : index
    %28 = vector.load %arg13[%c672, %c0_19] : memref<696x128xf32, #tpu.memory_space<vmem>>, vector<24x128xf32>
    tpu.vector_store %arg13[%c672, %c0_19], %27 {strides = array<i32>} : memref<696x128xf32, #tpu.memory_space<vmem>>, vector<24x128xf32>,
    %c0_20 = arith.constant 0 : index
    %c0_21 = arith.constant 0 : index
    %29 = vector.load %arg2[%c0_20, %c0_21] : memref<648x1xf32, #tpu.memory_space<vmem>>, vector<648x1xf32>
    %30 = vector.broadcast %29 : vector<648x1xf32> to vector<648x128xf32>
    %31 = arith.mulf %24, %30 : vector<648x128xf32>
    %c24 = arith.constant 24 : index
    %c0_22 = arith.constant 0 : index
    %32 = vector.load %arg13[%c24, %c0_22] : memref<696x128xf32, #tpu.memory_space<vmem>>, vector<648x128xf32>
    tpu.vector_store %arg13[%c24, %c0_22], %31 {strides = array<i32>} : memref<696x128xf32, #tpu.memory_space<vmem>>, vector<648x128xf32>,
    %c5 = arith.constant 5 : index
    %c0_23 = arith.constant 0 : index
    %33 = vector.load %arg13[%c5, %c0_23] : memref<696x128xf32, #tpu.memory_space<vmem>>, vector<648x128xf32>
    %c0_24 = arith.constant 0 : index
    %c0_25 = arith.constant 0 : index
    %c0_26 = arith.constant 0 : index
    %34 = vector.load %arg6[%c0_24, %c0_25, %c0_26] : memref<9x128x128xf32, #tpu.memory_space<vmem>>, vector<1x128x128xf32>
    %35 = vector.shape_cast %34 : vector<1x128x128xf32> to vector<128x128xf32>
    %cst_27 = arith.constant dense<0.000000e+00> : vector<648x128xf32>
    %36 = tpu.matmul %33, %35, %cst_27 {dimension_numbers = #tpu.dot_dimension_numbers<[1], [0], [0], [1], [0, 0, 1, 1], [], []>} : vector<648x128xf32>, vector<128x128xf32>, vector<648x128xf32> -> vector<648x128xf32>
    %c6 = arith.constant 6 : index
    %c0_28 = arith.constant 0 : index
    %37 = vector.load %arg13[%c6, %c0_28] : memref<696x128xf32, #tpu.memory_space<vmem>>, vector<648x128xf32>
    %c1 = arith.constant 1 : index
    %c0_29 = arith.constant 0 : index
    %c0_30 = arith.constant 0 : index
    %38 = vector.load %arg6[%c1, %c0_29, %c0_30] : memref<9x128x128xf32, #tpu.memory_space<vmem>>, vector<1x128x128xf32>
    %39 = vector.shape_cast %38 : vector<1x128x128xf32> to vector<128x128xf32>
    %cst_31 = arith.constant dense<0.000000e+00> : vector<648x128xf32>
    %40 = tpu.matmul %37, %39, %cst_31 {dimension_numbers = #tpu.dot_dimension_numbers<[1], [0], [0], [1], [0, 0, 1, 1], [], []>} : vector<648x128xf32>, vector<128x128xf32>, vector<648x128xf32> -> vector<648x128xf32>
    %41 = arith.addf %36, %40 : vector<648x128xf32>
    %c7 = arith.constant 7 : index
    %c0_32 = arith.constant 0 : index
    %42 = vector.load %arg13[%c7, %c0_32] : memref<696x128xf32, #tpu.memory_space<vmem>>, vector<648x128xf32>
    %c2 = arith.constant 2 : index
    %c0_33 = arith.constant 0 : index
    %c0_34 = arith.constant 0 : index
    %43 = vector.load %arg6[%c2, %c0_33, %c0_34] : memref<9x128x128xf32, #tpu.memory_space<vmem>>, vector<1x128x128xf32>
    %44 = vector.shape_cast %43 : vector<1x128x128xf32> to vector<128x128xf32>
    %cst_35 = arith.constant dense<0.000000e+00> : vector<648x128xf32>
    %45 = tpu.matmul %42, %44, %cst_35 {dimension_numbers = #tpu.dot_dimension_numbers<[1], [0], [0], [1], [0, 0, 1, 1], [], []>} : vector<648x128xf32>, vector<128x128xf32>, vector<648x128xf32> -> vector<648x128xf32>
    %46 = arith.addf %41, %45 : vector<648x128xf32>
    %c23 = arith.constant 23 : index
    %c0_36 = arith.constant 0 : index
    %47 = vector.load %arg13[%c23, %c0_36] : memref<696x128xf32, #tpu.memory_space<vmem>>, vector<648x128xf32>
    %c3 = arith.constant 3 : index
    %c0_37 = arith.constant 0 : index
    %c0_38 = arith.constant 0 : index
    %48 = vector.load %arg6[%c3, %c0_37, %c0_38] : memref<9x128x128xf32, #tpu.memory_space<vmem>>, vector<1x128x128xf32>
    %49 = vector.shape_cast %48 : vector<1x128x128xf32> to vector<128x128xf32>
    %cst_39 = arith.constant dense<0.000000e+00> : vector<648x128xf32>
    %50 = tpu.matmul %47, %49, %cst_39 {dimension_numbers = #tpu.dot_dimension_numbers<[1], [0], [0], [1], [0, 0, 1, 1], [], []>} : vector<648x128xf32>, vector<128x128xf32>, vector<648x128xf32> -> vector<648x128xf32>
    %51 = arith.addf %46, %50 : vector<648x128xf32>
    %c24_40 = arith.constant 24 : index
    %c0_41 = arith.constant 0 : index
    %52 = vector.load %arg13[%c24_40, %c0_41] : memref<696x128xf32, #tpu.memory_space<vmem>>, vector<648x128xf32>
    %c4 = arith.constant 4 : index
    %c0_42 = arith.constant 0 : index
    %c0_43 = arith.constant 0 : index
    %53 = vector.load %arg6[%c4, %c0_42, %c0_43] : memref<9x128x128xf32, #tpu.memory_space<vmem>>, vector<1x128x128xf32>
    %54 = vector.shape_cast %53 : vector<1x128x128xf32> to vector<128x128xf32>
    %cst_44 = arith.constant dense<0.000000e+00> : vector<648x128xf32>
    %55 = tpu.matmul %52, %54, %cst_44 {dimension_numbers = #tpu.dot_dimension_numbers<[1], [0], [0], [1], [0, 0, 1, 1], [], []>} : vector<648x128xf32>, vector<128x128xf32>, vector<648x128xf32> -> vector<648x128xf32>
    %56 = arith.addf %51, %55 : vector<648x128xf32>
    %c25 = arith.constant 25 : index
    %c0_45 = arith.constant 0 : index
    %57 = vector.load %arg13[%c25, %c0_45] : memref<696x128xf32, #tpu.memory_space<vmem>>, vector<648x128xf32>
    %c5_46 = arith.constant 5 : index
    %c0_47 = arith.constant 0 : index
    %c0_48 = arith.constant 0 : index
    %58 = vector.load %arg6[%c5_46, %c0_47, %c0_48] : memref<9x128x128xf32, #tpu.memory_space<vmem>>, vector<1x128x128xf32>
    %59 = vector.shape_cast %58 : vector<1x128x128xf32> to vector<128x128xf32>
    %cst_49 = arith.constant dense<0.000000e+00> : vector<648x128xf32>
    %60 = tpu.matmul %57, %59, %cst_49 {dimension_numbers = #tpu.dot_dimension_numbers<[1], [0], [0], [1], [0, 0, 1, 1], [], []>} : vector<648x128xf32>, vector<128x128xf32>, vector<648x128xf32> -> vector<648x128xf32>
    %61 = arith.addf %56, %60 : vector<648x128xf32>
    %c41 = arith.constant 41 : index
    %c0_50 = arith.constant 0 : index
    %62 = vector.load %arg13[%c41, %c0_50] : memref<696x128xf32, #tpu.memory_space<vmem>>, vector<648x128xf32>
    %c6_51 = arith.constant 6 : index
    %c0_52 = arith.constant 0 : index
    %c0_53 = arith.constant 0 : index
    %63 = vector.load %arg6[%c6_51, %c0_52, %c0_53] : memref<9x128x128xf32, #tpu.memory_space<vmem>>, vector<1x128x128xf32>
    %64 = vector.shape_cast %63 : vector<1x128x128xf32> to vector<128x128xf32>
    %cst_54 = arith.constant dense<0.000000e+00> : vector<648x128xf32>
    %65 = tpu.matmul %62, %64, %cst_54 {dimension_numbers = #tpu.dot_dimension_numbers<[1], [0], [0], [1], [0, 0, 1, 1], [], []>} : vector<648x128xf32>, vector<128x128xf32>, vector<648x128xf32> -> vector<648x128xf32>
    %66 = arith.addf %61, %65 : vector<648x128xf32>
    %c42 = arith.constant 42 : index
    %c0_55 = arith.constant 0 : index
    %67 = vector.load %arg13[%c42, %c0_55] : memref<696x128xf32, #tpu.memory_space<vmem>>, vector<648x128xf32>
    %c7_56 = arith.constant 7 : index
    %c0_57 = arith.constant 0 : index
    %c0_58 = arith.constant 0 : index
    %68 = vector.load %arg6[%c7_56, %c0_57, %c0_58] : memref<9x128x128xf32, #tpu.memory_space<vmem>>, vector<1x128x128xf32>
    %69 = vector.shape_cast %68 : vector<1x128x128xf32> to vector<128x128xf32>
    %cst_59 = arith.constant dense<0.000000e+00> : vector<648x128xf32>
    %70 = tpu.matmul %67, %69, %cst_59 {dimension_numbers = #tpu.dot_dimension_numbers<[1], [0], [0], [1], [0, 0, 1, 1], [], []>} : vector<648x128xf32>, vector<128x128xf32>, vector<648x128xf32> -> vector<648x128xf32>
    %71 = arith.addf %66, %70 : vector<648x128xf32>
    %c43 = arith.constant 43 : index
    %c0_60 = arith.constant 0 : index
    %72 = vector.load %arg13[%c43, %c0_60] : memref<696x128xf32, #tpu.memory_space<vmem>>, vector<648x128xf32>
    %c8 = arith.constant 8 : index
    %c0_61 = arith.constant 0 : index
    %c0_62 = arith.constant 0 : index
    %73 = vector.load %arg6[%c8, %c0_61, %c0_62] : memref<9x128x128xf32, #tpu.memory_space<vmem>>, vector<1x128x128xf32>
    %74 = vector.shape_cast %73 : vector<1x128x128xf32> to vector<128x128xf32>
    %cst_63 = arith.constant dense<0.000000e+00> : vector<648x128xf32>
    %75 = tpu.matmul %72, %74, %cst_63 {dimension_numbers = #tpu.dot_dimension_numbers<[1], [0], [0], [1], [0, 0, 1, 1], [], []>} : vector<648x128xf32>, vector<128x128xf32>, vector<648x128xf32> -> vector<648x128xf32>
    %76 = arith.addf %71, %75 : vector<648x128xf32>
    %cst_64 = arith.constant dense<0.000000e+00> : vector<1x128xf32>
    %77 = tpu.matmul %0, %76, %cst_64 {dimension_numbers = #tpu.dot_dimension_numbers<[1], [0], [0], [1], [0, 0, 1, 1], [], []>} : vector<1x648xf32>, vector<648x128xf32>, vector<1x128xf32> -> vector<1x128xf32>
    %cst_65 = arith.constant 0.001953125 : f32
    %78 = vector.broadcast %cst_65 : f32 to vector<1x128xf32>
    %79 = arith.mulf %77, %78 : vector<1x128xf32>
    %80 = vector.broadcast %79 : vector<1x128xf32> to vector<648x128xf32>
    %81 = arith.subf %76, %80 : vector<648x128xf32>
    %82 = arith.mulf %81, %81 : vector<648x128xf32>
    %cst_66 = arith.constant dense<0.000000e+00> : vector<1x128xf32>
    %83 = tpu.matmul %0, %82, %cst_66 {dimension_numbers = #tpu.dot_dimension_numbers<[1], [0], [0], [1], [0, 0, 1, 1], [], []>} : vector<1x648xf32>, vector<648x128xf32>, vector<1x128xf32> -> vector<1x128xf32>
    %cst_67 = arith.constant 0.001953125 : f32
    %84 = vector.broadcast %cst_67 : f32 to vector<1x128xf32>
    %85 = arith.mulf %83, %84 : vector<1x128xf32>
    %c0_68 = arith.constant 0 : index
    %c0_69 = arith.constant 0 : index
    %86 = vector.load %arg7[%c0_68, %c0_69] : memref<1x128xf32, #tpu.memory_space<vmem>>, vector<1x128xf32>
    %cst_70 = arith.constant 9.99999974E-6 : f32
    %87 = vector.broadcast %cst_70 : f32 to vector<1x128xf32>
    %88 = arith.addf %85, %87 : vector<1x128xf32>
    %89 = math.rsqrt %88 : vector<1x128xf32>
    %90 = arith.mulf %86, %89 : vector<1x128xf32>
    %91 = vector.broadcast %90 : vector<1x128xf32> to vector<648x128xf32>
    %92 = arith.mulf %81, %91 : vector<648x128xf32>
    %c0_71 = arith.constant 0 : index
    %c0_72 = arith.constant 0 : index
    %93 = vector.load %arg8[%c0_71, %c0_72] : memref<1x128xf32, #tpu.memory_space<vmem>>, vector<1x128xf32>
    %94 = vector.broadcast %93 : vector<1x128xf32> to vector<648x128xf32>
    %95 = arith.addf %92, %94 : vector<648x128xf32>
    %cst_73 = arith.constant 0.000000e+00 : f32
    %96 = vector.broadcast %cst_73 : f32 to vector<648x128xf32>
    %97 = arith.maximumf %95, %96 : vector<648x128xf32>
    %c0_74 = arith.constant 0 : index
    %c0_75 = arith.constant 0 : index
    %98 = vector.load %arg9[%c0_74, %c0_75] : memref<128x128xf32, #tpu.memory_space<vmem>>, vector<128x128xf32>
    %cst_76 = arith.constant dense<0.000000e+00> : vector<648x128xf32>
    %99 = tpu.matmul %97, %98, %cst_76 {dimension_numbers = #tpu.dot_dimension_numbers<[1], [0], [0], [1], [0, 0, 1, 1], [], []>} : vector<648x128xf32>, vector<128x128xf32>, vector<648x128xf32> -> vector<648x128xf32>
    %cst_77 = arith.constant dense<0.000000e+00> : vector<1x128xf32>
    %100 = tpu.matmul %0, %99, %cst_77 {dimension_numbers = #tpu.dot_dimension_numbers<[1], [0], [0], [1], [0, 0, 1, 1], [], []>} : vector<1x648xf32>, vector<648x128xf32>, vector<1x128xf32> -> vector<1x128xf32>
    %cst_78 = arith.constant 0.001953125 : f32
    %101 = vector.broadcast %cst_78 : f32 to vector<1x128xf32>
    %102 = arith.mulf %100, %101 : vector<1x128xf32>
    %103 = vector.broadcast %102 : vector<1x128xf32> to vector<648x128xf32>
    %104 = arith.subf %99, %103 : vector<648x128xf32>
    %105 = arith.mulf %104, %104 : vector<648x128xf32>
    %cst_79 = arith.constant dense<0.000000e+00> : vector<1x128xf32>
    %106 = tpu.matmul %0, %105, %cst_79 {dimension_numbers = #tpu.dot_dimension_numbers<[1], [0], [0], [1], [0, 0, 1, 1], [], []>} : vector<1x648xf32>, vector<648x128xf32>, vector<1x128xf32> -> vector<1x128xf32>
    %cst_80 = arith.constant 0.001953125 : f32
    %107 = vector.broadcast %cst_80 : f32 to vector<1x128xf32>
    %108 = arith.mulf %106, %107 : vector<1x128xf32>
    %c0_81 = arith.constant 0 : index
    %c0_82 = arith.constant 0 : index
    %109 = vector.load %arg10[%c0_81, %c0_82] : memref<1x128xf32, #tpu.memory_space<vmem>>, vector<1x128xf32>
    %cst_83 = arith.constant 9.99999974E-6 : f32
    %110 = vector.broadcast %cst_83 : f32 to vector<1x128xf32>
    %111 = arith.addf %108, %110 : vector<1x128xf32>
    %112 = math.rsqrt %111 : vector<1x128xf32>
    %113 = arith.mulf %109, %112 : vector<1x128xf32>
    %114 = vector.broadcast %113 : vector<1x128xf32> to vector<648x128xf32>
    %115 = arith.mulf %104, %114 : vector<648x128xf32>
    %c0_84 = arith.constant 0 : index
    %c0_85 = arith.constant 0 : index
    %116 = vector.load %arg11[%c0_84, %c0_85] : memref<1x128xf32, #tpu.memory_space<vmem>>, vector<1x128xf32>
    %117 = vector.broadcast %116 : vector<1x128xf32> to vector<648x128xf32>
    %118 = arith.addf %115, %117 : vector<648x128xf32>
    %c0_86 = arith.constant 0 : index
    %c0_87 = arith.constant 0 : index
    %119 = vector.load %arg0[%c0_86, %c0_87] : memref<648x128xf32, #tpu.memory_space<vmem>>, vector<648x128xf32>
    %120 = arith.addf %118, %119 : vector<648x128xf32>
    %cst_88 = arith.constant 0.000000e+00 : f32
    %121 = vector.broadcast %cst_88 : f32 to vector<648x128xf32>
    %122 = arith.maximumf %120, %121 : vector<648x128xf32>
    %c0_89 = arith.constant 0 : index
    %c0_90 = arith.constant 0 : index
    %123 = vector.load %arg12[%c0_89, %c0_90] : memref<648x128xf32, #tpu.memory_space<vmem>>, vector<648x128xf32>
    tpu.vector_store %arg12[%c0_89, %c0_90], %122 {strides = array<i32>} : memref<648x128xf32, #tpu.memory_space<vmem>>, vector<648x128xf32>,
    return
  }
}

</mosaic_0001>

<llo_original>
// kernel: tpu_custom_call.1
$region0: #{tpu_custom_call.1}
  #allocation0 [shape = 'u32[]', space=smem, size = 0x4, offset = 0x4, fixed_abs, tag = 'smem constant byte address 0x4 - core index']
  #allocation1 [shape = 'u32[72,128]{1,0:T(1,128)}', space=vmem, size = 0x9000, scoped, tag = 'internal scratch']
  #allocation2 [shape = 'f32[696,128]{1,0:T(8,128)}', space=vmem, size = 0x57000, scoped, tag = 'scratch operand']
  %s0 = inlined_call_operand.vmem [shape: f32[648,128], index: 0, kind: input, shape index: {}]
  %s1 = inlined_call_operand.vmem [shape: f32[1,648], index: 1, kind: input, shape index: {}]
  %s2 = inlined_call_operand.vmem [shape: f32[648,1], index: 2, kind: input, shape index: {}]
  %s3 = inlined_call_operand.hbm [shape: f32[128,128], index: 3, kind: input, shape index: {}]
  %s4 = inlined_call_operand.hbm [shape: f32[1,128], index: 4, kind: input, shape index: {}]
  %s5 = inlined_call_operand.hbm [shape: f32[1,128], index: 5, kind: input, shape index: {}]
  %s6 = inlined_call_operand.hbm [shape: f32[9,128,128], index: 6, kind: input, shape index: {}]
  %s7 = inlined_call_operand.vmem [shape: f32[1,128], index: 7, kind: input, shape index: {}]
  %s8 = inlined_call_operand.vmem [shape: f32[1,128], index: 8, kind: input, shape index: {}]
  %s9 = inlined_call_operand.hbm [shape: f32[128,128], index: 9, kind: input, shape index: {}]
  %s10 = inlined_call_operand.vmem [shape: f32[1,128], index: 10, kind: input, shape index: {}]
  %s11 = inlined_call_operand.vmem [shape: f32[1,128], index: 11, kind: input, shape index: {}]
  %s12 = inlined_call_operand.hbm [shape: f32[648,128], index: 12, kind: output, shape index: {}]
  %s13 = sld [smem:[#allocation0]]
  $region78: #{tpu_custom_call.1} parent=0
    _
  %s15 = ssub.s32 1, %s13
  %s16 = scalar_select 0, %s15, %s13
  $region1: #{tpu_custom_call.1} parent=0
    #allocation3 [shape = 'u8[65536]{0}', space=vmem, size = 0x10000, scoped, tag = 'input window, operand 3, single buffered']
    #allocation4 [shape = 's32[1]{0}', space=sflag, size = 0x4, scoped, tag = 'scoped memory for tpu_custom_call.1']
    #allocation5 [shape = 's32[1]{0}', space=sflag, size = 0x4, scoped, tag = 'scoped memory for tpu_custom_call.1']
    #allocation6 [shape = 'u8[512]{0}', space=vmem, size = 0x400, scoped, tag = 'input window, operand 4, single buffered']
    #allocation7 [shape = 's32[1]{0}', space=sflag, size = 0x4, scoped, tag = 'scoped memory for tpu_custom_call.1']
    #allocation8 [shape = 'u8[512]{0}', space=vmem, size = 0x400, scoped, tag = 'input window, operand 5, single buffered']
    #allocation9 [shape = 'u8[589824]{0}', space=vmem, size = 0x90000, scoped, tag = 'input window, operand 6, single buffered']
    #allocation10 [shape = 's32[1]{0}', space=sflag, size = 0x4, scoped, tag = 'scoped memory for tpu_custom_call.1']
    #allocation11 [shape = 'u8[65536]{0}', space=vmem, size = 0x10000, scoped, tag = 'input window, operand 9, single buffered']
    #allocation12 [shape = 'u8[331776]{0}', space=vmem, size = 0x51000, scoped, tag = 'output window, operand 0, single buffered']
    %17 = vsyncpa [#allocation4], 0
    %18 = vsyncpa [#allocation7], 0
    %19 = vsyncpa [#allocation10], 0
    %20 = vsyncpa [#allocation5], 0
    // Predicated region
    $region2: #{tpu_custom_call.1} parent=1 // pred_check
      _
    $region3: #{tpu_custom_call.1} parent=1 // pred_check_branch
      %22 = sbr.rel (0) target = $region5
    $region4: #{tpu_custom_call.1} parent=1 // pred_region
      _
    $region5: #{tpu_custom_call.1} parent=1 // pred_fallthru
      _
    // Predicated region
    $region6: #{tpu_custom_call.1} parent=1 // pred_check
      _
    $region7: #{tpu_custom_call.1} parent=1 // pred_check_branch
      %24 = sbr.rel (0) target = $region9
    $region8: #{tpu_custom_call.1} parent=1 // pred_region
      _
    $region9: #{tpu_custom_call.1} parent=1 // pred_fallthru
      _
    // Predicated region
    $region10: #{tpu_custom_call.1} parent=1 // pred_check
      _
    $region11: #{tpu_custom_call.1} parent=1 // pred_check_branch
      %26 = sbr.rel (0) target = $region13
    $region12: #{tpu_custom_call.1} parent=1 // pred_region
      _
    $region13: #{tpu_custom_call.1} parent=1 // pred_fallthru
      _
    // Predicated region
    $region14: #{tpu_custom_call.1} parent=1 // pred_check
      _
    $region15: #{tpu_custom_call.1} parent=1 // pred_check_branch
      %28 = sbr.rel (0) target = $region17
    $region16: #{tpu_custom_call.1} parent=1 // pred_region
      %30 = vsyncadd [#allocation4], 0
      %s31 = sshll.u32 %s3, 4
      %s32 = int_to_ptr.hbm [resolvable:$true] %s31
      %s33 = sshll.u32 [#allocation3], 4
      %s34 = int_to_ptr.vmem [resolvable:$true] %s33
      %39 = dma.hbm_to_vmem [thread:$0]  %s32, 2048, %s34, [#allocation4], 128, 128, 8
    $region17: #{tpu_custom_call.1} parent=1 // pred_fallthru
      _
    // Predicated region
    $region18: #{tpu_custom_call.1} parent=1 // pred_check
      _
    $region19: #{tpu_custom_call.1} parent=1 // pred_check_branch
      %41 = sbr.rel (0) target = $region21
    $region20: #{tpu_custom_call.1} parent=1 // pred_region
      %43 = vsyncadd [#allocation7], 0
      %s45 = sshll.u32 %s4, 4
      %s46 = int_to_ptr.hbm [resolvable:$true] %s45
      %s47 = sshll.u32 [#allocation6], 4
      %s48 = int_to_ptr.vmem [resolvable:$true] %s47
      %50 = dma.hbm_to_vmem [thread:$0]  %s46, 16, %s48, [#allocation7]
    $region21: #{tpu_custom_call.1} parent=1 // pred_fallthru
      _
    // Predicated region
    $region22: #{tpu_custom_call.1} parent=1 // pred_check
      _
    $region23: #{tpu_custom_call.1} parent=1 // pred_check_branch
      %52 = sbr.rel (0) target = $region25
    $region24: #{tpu_custom_call.1} parent=1 // pred_region
      %54 = vsyncadd [#allocation7], 0
      %s56 = sshll.u32 %s5, 4
      %s57 = int_to_ptr.hbm [resolvable:$true] %s56
      %s58 = sshll.u32 [#allocation8], 4
      %s59 = int_to_ptr.vmem [resolvable:$true] %s58
      %61 = dma.hbm_to_vmem [thread:$0]  %s57, 16, %s59, [#allocation7]
    $region25: #{tpu_custom_call.1} parent=1 // pred_fallthru
      _
    // Predicated region
    $region26: #{tpu_custom_call.1} parent=1 // pred_check
      _
    $region27: #{tpu_custom_call.1} parent=1 // pred_check_branch
      %63 = sbr.rel (0) target = $region29
    $region28: #{tpu_custom_call.1} parent=1 // pred_region
      %65 = vsyncadd [#allocation10], 0
      %s66 = sshll.u32 %s6, 4
      %s67 = int_to_ptr.hbm [resolvable:$true] %s66
      %s68 = sshll.u32 [#allocation9], 4
      %s69 = int_to_ptr.vmem [resolvable:$true] %s68
      %74 = dma.hbm_to_vmem [thread:$0]  %s67, 18432, %s69, [#allocation10], 128, 128, 8
    $region29: #{tpu_custom_call.1} parent=1 // pred_fallthru
      _
    // Predicated region
    $region30: #{tpu_custom_call.1} parent=1 // pred_check
      _
    $region31: #{tpu_custom_call.1} parent=1 // pred_check_branch
      %76 = sbr.rel (0) target = $region33
    $region32: #{tpu_custom_call.1} parent=1 // pred_region
      _
    $region33: #{tpu_custom_call.1} parent=1 // pred_fallthru
      _
    // Predicated region
    $region34: #{tpu_custom_call.1} parent=1 // pred_check
      _
    $region35: #{tpu_custom_call.1} parent=1 // pred_check_branch
      %78 = sbr.rel (0) target = $region37
    $region36: #{tpu_custom_call.1} parent=1 // pred_region
      _
    $region37: #{tpu_custom_call.1} parent=1 // pred_fallthru
      _
    // Predicated region
    $region38: #{tpu_custom_call.1} parent=1 // pred_check
      _
    $region39: #{tpu_custom_call.1} parent=1 // pred_check_branch
      %80 = sbr.rel (0) target = $region41
    $region40: #{tpu_custom_call.1} parent=1 // pred_region
      %82 = vsyncadd [#allocation10], 0
      %s83 = sshll.u32 %s9, 4
      %s84 = int_to_ptr.hbm [resolvable:$true] %s83
      %s85 = sshll.u32 [#allocation11], 4
      %s86 = int_to_ptr.vmem [resolvable:$true] %s85
      %91 = dma.hbm_to_vmem [thread:$0]  %s84, 2048, %s86, [#allocation10], 128, 128, 8
    $region41: #{tpu_custom_call.1} parent=1 // pred_fallthru
      _
    // Predicated region
    $region42: #{tpu_custom_call.1} parent=1 // pred_check
      _
    $region43: #{tpu_custom_call.1} parent=1 // pred_check_branch
      %93 = sbr.rel (0) target = $region45
    $region44: #{tpu_custom_call.1} parent=1 // pred_region
      _
    $region45: #{tpu_custom_call.1} parent=1 // pred_fallthru
      _
    // Predicated region
    $region46: #{tpu_custom_call.1} parent=1 // pred_check
      _
    $region47: #{tpu_custom_call.1} parent=1 // pred_check_branch
      %95 = sbr.rel (0) target = $region49
    $region48: #{tpu_custom_call.1} parent=1 // pred_region
      _
    $region49: #{tpu_custom_call.1} parent=1 // pred_fallthru
      _
    // Predicated region
    $region50: #{tpu_custom_call.1} parent=1 // pred_check
      _
    $region51: #{tpu_custom_call.1} parent=1 // pred_check_branch
      %97 = sbr.rel (0) target = $region53
    $region52: #{tpu_custom_call.1} parent=1 // pred_region
      %99 = dma.done [#allocation4], 2048
    $region53: #{tpu_custom_call.1} parent=1 // pred_fallthru
      _
    // Predicated region
    $region54: #{tpu_custom_call.1} parent=1 // pred_check
      _
    $region55: #{tpu_custom_call.1} parent=1 // pred_check_branch
      %101 = sbr.rel (0) target = $region57
    $region56: #{tpu_custom_call.1} parent=1 // pred_region
      %103 = dma.done [#allocation7], 16
    $region57: #{tpu_custom_call.1} parent=1 // pred_fallthru
      _
    // Predicated region
    $region58: #{tpu_custom_call.1} parent=1 // pred_check
      _
    $region59: #{tpu_custom_call.1} parent=1 // pred_check_branch
      %105 = sbr.rel (0) target = $region61
    $region60: #{tpu_custom_call.1} parent=1 // pred_region
      %107 = dma.done [#allocation7], 16
    $region61: #{tpu_custom_call.1} parent=1 // pred_fallthru
      _
    // Predicated region
    $region62: #{tpu_custom_call.1} parent=1 // pred_check
      _
    $region63: #{tpu_custom_call.1} parent=1 // pred_check_branch
      %109 = sbr.rel (0) target = $region65
    $region64: #{tpu_custom_call.1} parent=1 // pred_region
      %111 = dma.done [#allocation10], 18432
    $region65: #{tpu_custom_call.1} parent=1 // pred_fallthru
      _
    // Predicated region
    $region66: #{tpu_custom_call.1} parent=1 // pred_check
      _
    $region67: #{tpu_custom_call.1} parent=1 // pred_check_branch
      %113 = sbr.rel (0) target = $region69
    $region68: #{tpu_custom_call.1} parent=1 // pred_region
      %115 = dma.done [#allocation10], 2048
    $region69: #{tpu_custom_call.1} parent=1 // pred_fallthru
      _
    %v116 = vld [vmem:[%s1] sm:$0x3f]
    %v117 = vld [vmem:[%s0] sm:$0xff]
    %v118 = vld [vmem:[%s0 + $0x8] sm:$0xff]
    %v119 = vld [vmem:[%s0 + $0x10] sm:$0xff]
    %v120 = vld [vmem:[%s0 + $0x18] sm:$0xff]
    %v121 = vld [vmem:[%s0 + $0x20] sm:$0xff]
    %v122 = vld [vmem:[%s0 + $0x28] sm:$0xff]
    %v123 = vld [vmem:[%s0 + $0x30] sm:$0xff]
    %v124 = vld [vmem:[%s0 + $0x38] sm:$0xff]
    %v125 = vld [vmem:[%s0 + $0x40] sm:$0xff]
    %v126 = vld [vmem:[%s0 + $0x48] sm:$0xff]
    %v127 = vld [vmem:[%s0 + $0x50] sm:$0xff]
    %v128 = vld [vmem:[%s0 + $0x58] sm:$0xff]
    %v129 = vld [vmem:[%s0 + $0x60] sm:$0xff]
    %v130 = vld [vmem:[%s0 + $0x68] sm:$0xff]
    %v131 = vld [vmem:[%s0 + $0x70] sm:$0xff]
    %v132 = vld [vmem:[%s0 + $0x78] sm:$0xff]
    %v133 = vld [vmem:[%s0 + $0x80] sm:$0xff]
    %v134 = vld [vmem:[%s0 + $0x88] sm:$0xff]
    %v135 = vld [vmem:[%s0 + $0x90] sm:$0xff]
    %v136 = vld [vmem:[%s0 + $0x98] sm:$0xff]
    %v137 = vld [vmem:[%s0 + $0xa0] sm:$0xff]
    %v138 = vld [vmem:[%s0 + $0xa8] sm:$0xff]
    %v139 = vld [vmem:[%s0 + $0xb0] sm:$0xff]
    %v140 = vld [vmem:[%s0 + $0xb8] sm:$0xff]
    %v141 = vld [vmem:[%s0 + $0xc0] sm:$0xff]
    %v142 = vld [vmem:[%s0 + $0xc8] sm:$0xff]
    %v143 = vld [vmem:[%s0 + $0xd0] sm:$0xff]
    %v144 = vld [vmem:[%s0 + $0xd8] sm:$0xff]
    %v145 = vld [vmem:[%s0 + $0xe0] sm:$0xff]
    %v146 = vld [vmem:[%s0 + $0xe8] sm:$0xff]
    %v147 = vld [vmem:[%s0 + $0xf0] sm:$0xff]
    %v148 = vld [vmem:[%s0 + $0xf8] sm:$0xff]
    %v149 = vld [vmem:[%s0 + $0x100] sm:$0xff]
    %v150 = vld [vmem:[%s0 + $0x108] sm:$0xff]
    %v151 = vld [vmem:[%s0 + $0x110] sm:$0xff]
    %v152 = vld [vmem:[%s0 + $0x118] sm:$0xff]
    %v153 = vld [vmem:[%s0 + $0x120] sm:$0xff]
    %v154 = vld [vmem:[%s0 + $0x128] sm:$0xff]
    %v155 = vld [vmem:[%s0 + $0x130] sm:$0xff]
    %v156 = vld [vmem:[%s0 + $0x138] sm:$0xff]
    %v157 = vld [vmem:[%s0 + $0x140] sm:$0xff]
    %v158 = vld [vmem:[%s0 + $0x148] sm:$0xff]
    %v159 = vld [vmem:[%s0 + $0x150] sm:$0xff]
    %v160 = vld [vmem:[%s0 + $0x158] sm:$0xff]
    %v161 = vld [vmem:[%s0 + $0x160] sm:$0xff]
    %v162 = vld [vmem:[%s0 + $0x168] sm:$0xff]
    %v163 = vld [vmem:[%s0 + $0x170] sm:$0xff]
    %v164 = vld [vmem:[%s0 + $0x178] sm:$0xff]
    %v165 = vld [vmem:[%s0 + $0x180] sm:$0xff]
    %v166 = vld [vmem:[%s0 + $0x188] sm:$0xff]
    %v167 = vld [vmem:[%s0 + $0x190] sm:$0xff]
    %v168 = vld [vmem:[%s0 + $0x198] sm:$0xff]
    %v169 = vld [vmem:[%s0 + $0x1a0] sm:$0xff]
    %v170 = vld [vmem:[%s0 + $0x1a8] sm:$0xff]
    %v171 = vld [vmem:[%s0 + $0x1b0] sm:$0xff]
    %v172 = vld [vmem:[%s0 + $0x1b8] sm:$0xff]
    %v173 = vld [vmem:[%s0 + $0x1c0] sm:$0xff]
    %v174 = vld [vmem:[%s0 + $0x1c8] sm:$0xff]
    %v175 = vld [vmem:[%s0 + $0x1d0] sm:$0xff]
    %v176 = vld [vmem:[%s0 + $0x1d8] sm:$0xff]
    %v177 = vld [vmem:[%s0 + $0x1e0] sm:$0xff]
    %v178 = vld [vmem:[%s0 + $0x1e8] sm:$0xff]
    %v179 = vld [vmem:[%s0 + $0x1f0] sm:$0xff]
    %v180 = vld [vmem:[%s0 + $0x1f8] sm:$0xff]
    %v181 = vld [vmem:[%s0 + $0x200] sm:$0xff]
    %v182 = vld [vmem:[%s0 + $0x208] sm:$0xff]
    %v183 = vld [vmem:[%s0 + $0x210] sm:$0xff]
    %v184 = vld [vmem:[%s0 + $0x218] sm:$0xff]
    %v185 = vld [vmem:[%s0 + $0x220] sm:$0xff]
    %v186 = vld [vmem:[%s0 + $0x228] sm:$0xff]
    %v187 = vld [vmem:[%s0 + $0x230] sm:$0xff]
    %v188 = vld [vmem:[%s0 + $0x238] sm:$0xff]
    %v189 = vld [vmem:[%s0 + $0x240] sm:$0xff]
    %v190 = vld [vmem:[%s0 + $0x248] sm:$0xff]
    %v191 = vld [vmem:[%s0 + $0x250] sm:$0xff]
    %v192 = vld [vmem:[%s0 + $0x258] sm:$0xff]
    %v193 = vld [vmem:[%s0 + $0x260] sm:$0xff]
    %v194 = vld [vmem:[%s0 + $0x268] sm:$0xff]
    %v195 = vld [vmem:[%s0 + $0x270] sm:$0xff]
    %v196 = vld [vmem:[%s0 + $0x278] sm:$0xff]
    %v197 = vld [vmem:[%s0 + $0x280] sm:$0xff]
    %v198 = vld [vmem:[#allocation3] sm:$0xff]
    %v199 = vld [vmem:[#allocation3 + $0x8] sm:$0xff]
    %v200 = vld [vmem:[#allocation3 + $0x10] sm:$0xff]
    %v201 = vld [vmem:[#allocation3 + $0x18] sm:$0xff]
    %v202 = vld [vmem:[#allocation3 + $0x20] sm:$0xff]
    %v203 = vld [vmem:[#allocation3 + $0x28] sm:$0xff]
    %v204 = vld [vmem:[#allocation3 + $0x30] sm:$0xff]
    %v205 = vld [vmem:[#allocation3 + $0x38] sm:$0xff]
    %v206 = vld [vmem:[#allocation3 + $0x40] sm:$0xff]
    %v207 = vld [vmem:[#allocation3 + $0x48] sm:$0xff]
    %v208 = vld [vmem:[#allocation3 + $0x50] sm:$0xff]
    %v209 = vld [vmem:[#allocation3 + $0x58] sm:$0xff]
    %v210 = vld [vmem:[#allocation3 + $0x60] sm:$0xff]
    %v211 = vld [vmem:[#allocation3 + $0x68] sm:$0xff]
    %v212 = vld [vmem:[#allocation3 + $0x70] sm:$0xff]
    %v213 = vld [vmem:[#allocation3 + $0x78] sm:$0xff]
    %214 = vmatpush.msra.mxu0 %v213
    %215 = vmatpush.msra.mxu0 %v212
    %216 = vmatpush.msra.mxu0 %v211
    %217 = vmatpush.msra.mxu0 %v210
    %218 = vmatpush.msra.mxu0 %v209
    %219 = vmatpush.msra.mxu0 %v208
    %220 = vmatpush.msra.mxu0 %v207
    %221 = vmatpush.msra.mxu0 %v206
    %222 = vmatpush.msra.mxu0 %v205
    %223 = vmatpush.msra.mxu0 %v204
    %224 = vmatpush.msra.mxu0 %v203
    %225 = vmatpush.msra.mxu0 %v202
    %226 = vmatpush.msra.mxu0 %v201
    %227 = vmatpush.msra.mxu0 %v200
    %228 = vmatpush.msra.mxu0 %v199
    %229 = vmatpush.msra.mxu0 %v198
    %230 = vmatmul.f32.gmra.mxu0 %v117
    %v231 = vpop.f32.mrf.mxu0
    %v232 = vadd.f32 0.0, %v231
    %233 = vmatmul.f32.gmra.mxu0 %v118
    %v234 = vpop.f32.mrf.mxu0
    %v235 = vadd.f32 0.0, %v234
    %236 = vmatmul.f32.gmra.mxu0 %v119
    %v237 = vpop.f32.mrf.mxu0
    %v238 = vadd.f32 0.0, %v237
    %239 = vmatmul.f32.gmra.mxu0 %v120
    %v240 = vpop.f32.mrf.mxu0
    %v241 = vadd.f32 0.0, %v240
    %242 = vmatmul.f32.gmra.mxu0 %v121
    %v243 = vpop.f32.mrf.mxu0
    %v244 = vadd.f32 0.0, %v243
    %245 = vmatmul.f32.gmra.mxu0 %v122
    %v246 = vpop.f32.mrf.mxu0
    %v247 = vadd.f32 0.0, %v246
    %248 = vmatmul.f32.gmra.mxu0 %v123
    %v249 = vpop.f32.mrf.mxu0
    %v250 = vadd.f32 0.0, %v249
    %251 = vmatmul.f32.gmra.mxu0 %v124
    %v252 = vpop.f32.mrf.mxu0
    %v253 = vadd.f32 0.0, %v252
    %254 = vmatmul.f32.gmra.mxu0 %v125
    %v255 = vpop.f32.mrf.mxu0
    %v256 = vadd.f32 0.0, %v255
    %257 = vmatmul.f32.gmra.mxu0 %v126
    %v258 = vpop.f32.mrf.mxu0
    %v259 = vadd.f32 0.0, %v258
    %260 = vmatmul.f32.gmra.mxu0 %v127
    %v261 = vpop.f32.mrf.mxu0
    %v262 = vadd.f32 0.0, %v261
    %263 = vmatmul.f32.gmra.mxu0 %v128
    %v264 = vpop.f32.mrf.mxu0
    %v265 = vadd.f32 0.0, %v264
    %266 = vmatmul.f32.gmra.mxu0 %v129
    %v267 = vpop.f32.mrf.mxu0
    %v268 = vadd.f32 0.0, %v267
    %269 = vmatmul.f32.gmra.mxu0 %v130
    %v270 = vpop.f32.mrf.mxu0
    %v271 = vadd.f32 0.0, %v270
    %272 = vmatmul.f32.gmra.mxu0 %v131
    %v273 = vpop.f32.mrf.mxu0
    %v274 = vadd.f32 0.0, %v273
    %275 = vmatmul.f32.gmra.mxu0 %v132
    %v276 = vpop.f32.mrf.mxu0
    %v277 = vadd.f32 0.0, %v276
    %278 = vmatmul.f32.gmra.mxu0 %v133
    %v279 = vpop.f32.mrf.mxu0
    %v280 = vadd.f32 0.0, %v279
    %281 = vmatmul.f32.gmra.mxu0 %v134
    %v282 = vpop.f32.mrf.mxu0
    %v283 = vadd.f32 0.0, %v282
    %284 = vmatmul.f32.gmra.mxu0 %v135
    %v285 = vpop.f32.mrf.mxu0
    %v286 = vadd.f32 0.0, %v285
    %287 = vmatmul.f32.gmra.mxu0 %v136
    %v288 = vpop.f32.mrf.mxu0
    %v289 = vadd.f32 0.0, %v288
    %290 = vmatmul.f32.gmra.mxu0 %v137
    %v291 = vpop.f32.mrf.mxu0
    %v292 = vadd.f32 0.0, %v291
    %293 = vmatmul.f32.gmra.mxu0 %v138
    %v294 = vpop.f32.mrf.mxu0
    %v295 = vadd.f32 0.0, %v294
    %296 = vmatmul.f32.gmra.mxu0 %v139
    %v297 = vpop.f32.mrf.mxu0
    %v298 = vadd.f32 0.0, %v297
    %299 = vmatmul.f32.gmra.mxu0 %v140
    %v300 = vpop.f32.mrf.mxu0
    %v301 = vadd.f32 0.0, %v300
    %302 = vmatmul.f32.gmra.mxu0 %v141
    %v303 = vpop.f32.mrf.mxu0
    %v304 = vadd.f32 0.0, %v303
    %305 = vmatmul.f32.gmra.mxu0 %v142
    %v306 = vpop.f32.mrf.mxu0
    %v307 = vadd.f32 0.0, %v306
    %308 = vmatmul.f32.gmra.mxu0 %v143
    %v309 = vpop.f32.mrf.mxu0
    %v310 = vadd.f32 0.0, %v309
    %311 = vmatmul.f32.gmra.mxu0 %v144
    %v312 = vpop.f32.mrf.mxu0
    %v313 = vadd.f32 0.0, %v312
    %314 = vmatmul.f32.gmra.mxu0 %v145
    %v315 = vpop.f32.mrf.mxu0
    %v316 = vadd.f32 0.0, %v315
    %317 = vmatmul.f32.gmra.mxu0 %v146
    %v318 = vpop.f32.mrf.mxu0
    %v319 = vadd.f32 0.0, %v318
    %320 = vmatmul.f32.gmra.mxu0 %v147
    %v321 = vpop.f32.mrf.mxu0
    %v322 = vadd.f32 0.0, %v321
    %323 = vmatmul.f32.gmra.mxu0 %v148
    %v324 = vpop.f32.mrf.mxu0
    %v325 = vadd.f32 0.0, %v324
    %326 = vmatmul.f32.gmra.mxu0 %v149
    %v327 = vpop.f32.mrf.mxu0
    %v328 = vadd.f32 0.0, %v327
    %329 = vmatmul.f32.gmra.mxu0 %v150
    %v330 = vpop.f32.mrf.mxu0
    %v331 = vadd.f32 0.0, %v330
    %332 = vmatmul.f32.gmra.mxu0 %v151
    %v333 = vpop.f32.mrf.mxu0
    %v334 = vadd.f32 0.0, %v333
    %335 = vmatmul.f32.gmra.mxu0 %v152
    %v336 = vpop.f32.mrf.mxu0
    %v337 = vadd.f32 0.0, %v336
    %338 = vmatmul.f32.gmra.mxu0 %v153
    %v339 = vpop.f32.mrf.mxu0
    %v340 = vadd.f32 0.0, %v339
    %341 = vmatmul.f32.gmra.mxu0 %v154
    %v342 = vpop.f32.mrf.mxu0
    %v343 = vadd.f32 0.0, %v342
    %344 = vmatmul.f32.gmra.mxu0 %v155
    %v345 = vpop.f32.mrf.mxu0
    %v346 = vadd.f32 0.0, %v345
    %347 = vmatmul.f32.gmra.mxu0 %v156
    %v348 = vpop.f32.mrf.mxu0
    %v349 = vadd.f32 0.0, %v348
    %350 = vmatmul.f32.gmra.mxu0 %v157
    %v351 = vpop.f32.mrf.mxu0
    %v352 = vadd.f32 0.0, %v351
    %353 = vmatmul.f32.gmra.mxu0 %v158
    %v354 = vpop.f32.mrf.mxu0
    %v355 = vadd.f32 0.0, %v354
    %356 = vmatmul.f32.gmra.mxu0 %v159
    %v357 = vpop.f32.mrf.mxu0
    %v358 = vadd.f32 0.0, %v357
    %359 = vmatmul.f32.gmra.mxu0 %v160
    %v360 = vpop.f32.mrf.mxu0
    %v361 = vadd.f32 0.0, %v360
    %362 = vmatmul.f32.gmra.mxu0 %v161
    %v363 = vpop.f32.mrf.mxu0
    %v364 = vadd.f32 0.0, %v363
    %365 = vmatmul.f32.gmra.mxu0 %v162
    %v366 = vpop.f32.mrf.mxu0
    %v367 = vadd.f32 0.0, %v366
    %368 = vmatmul.f32.gmra.mxu0 %v163
    %v369 = vpop.f32.mrf.mxu0
    %v370 = vadd.f32 0.0, %v369
    %371 = vmatmul.f32.gmra.mxu0 %v164
    %v372 = vpop.f32.mrf.mxu0
    %v373 = vadd.f32 0.0, %v372
    %374 = vmatmul.f32.gmra.mxu0 %v165
    %v375 = vpop.f32.mrf.mxu0
    %v376 = vadd.f32 0.0, %v375
    %377 = vmatmul.f32.gmra.mxu0 %v166
    %v378 = vpop.f32.mrf.mxu0
    %v379 = vadd.f32 0.0, %v378
    %380 = vmatmul.f32.gmra.mxu0 %v167
    %v381 = vpop.f32.mrf.mxu0
    %v382 = vadd.f32 0.0, %v381
    %383 = vmatmul.f32.gmra.mxu0 %v168
    %v384 = vpop.f32.mrf.mxu0
    %v385 = vadd.f32 0.0, %v384
    %386 = vmatmul.f32.gmra.mxu0 %v169
    %v387 = vpop.f32.mrf.mxu0
    %v388 = vadd.f32 0.0, %v387
    %389 = vmatmul.f32.gmra.mxu0 %v170
    %v390 = vpop.f32.mrf.mxu0
    %v391 = vadd.f32 0.0, %v390
    %392 = vmatmul.f32.gmra.mxu0 %v171
    %v393 = vpop.f32.mrf.mxu0
    %v394 = vadd.f32 0.0, %v393
    %395 = vmatmul.f32.gmra.mxu0 %v172
    %v396 = vpop.f32.mrf.mxu0
    %v397 = vadd.f32 0.0, %v396
    %398 = vmatmul.f32.gmra.mxu0 %v173
    %v399 = vpop.f32.mrf.mxu0
    %v400 = vadd.f32 0.0, %v399
    %401 = vmatmul.f32.gmra.mxu0 %v174
    %v402 = vpop.f32.mrf.mxu0
    %v403 = vadd.f32 0.0, %v402
    %404 = vmatmul.f32.gmra.mxu0 %v175
    %v405 = vpop.f32.mrf.mxu0
    %v406 = vadd.f32 0.0, %v405
    %407 = vmatmul.f32.gmra.mxu0 %v176
    %v408 = vpop.f32.mrf.mxu0
    %v409 = vadd.f32 0.0, %v408
    %410 = vmatmul.f32.gmra.mxu0 %v177
    %v411 = vpop.f32.mrf.mxu0
    %v412 = vadd.f32 0.0, %v411
    %413 = vmatmul.f32.gmra.mxu0 %v178
    %v414 = vpop.f32.mrf.mxu0
    %v415 = vadd.f32 0.0, %v414
    %416 = vmatmul.f32.gmra.mxu0 %v179
    %v417 = vpop.f32.mrf.mxu0
    %v418 = vadd.f32 0.0, %v417
    %419 = vmatmul.f32.gmra.mxu0 %v180
    %v420 = vpop.f32.mrf.mxu0
    %v421 = vadd.f32 0.0, %v420
    %422 = vmatmul.f32.gmra.mxu0 %v181
    %v423 = vpop.f32.mrf.mxu0
    %v424 = vadd.f32 0.0, %v423
    %425 = vmatmul.f32.gmra.mxu0 %v182
    %v426 = vpop.f32.mrf.mxu0
    %v427 = vadd.f32 0.0, %v426
    %428 = vmatmul.f32.gmra.mxu0 %v183
    %v429 = vpop.f32.mrf.mxu0
    %v430 = vadd.f32 0.0, %v429
    %431 = vmatmul.f32.gmra.mxu0 %v184
    %v432 = vpop.f32.mrf.mxu0
    %v433 = vadd.f32 0.0, %v432
    %434 = vmatmul.f32.gmra.mxu0 %v185
    %v435 = vpop.f32.mrf.mxu0
    %v436 = vadd.f32 0.0, %v435
    %437 = vmatmul.f32.gmra.mxu0 %v186
    %v438 = vpop.f32.mrf.mxu0
    %v439 = vadd.f32 0.0, %v438
    %440 = vmatmul.f32.gmra.mxu0 %v187
    %v441 = vpop.f32.mrf.mxu0
    %v442 = vadd.f32 0.0, %v441
    %443 = vmatmul.f32.gmra.mxu0 %v188
    %v444 = vpop.f32.mrf.mxu0
    %v445 = vadd.f32 0.0, %v444
    %446 = vmatmul.f32.gmra.mxu0 %v189
    %v447 = vpop.f32.mrf.mxu0
    %v448 = vadd.f32 0.0, %v447
    %449 = vmatmul.f32.gmra.mxu0 %v190
    %v450 = vpop.f32.mrf.mxu0
    %v451 = vadd.f32 0.0, %v450
    %452 = vmatmul.f32.gmra.mxu0 %v191
    %v453 = vpop.f32.mrf.mxu0
    %v454 = vadd.f32 0.0, %v453
    %455 = vmatmul.f32.gmra.mxu0 %v192
    %v456 = vpop.f32.mrf.mxu0
    %v457 = vadd.f32 0.0, %v456
    %458 = vmatmul.f32.gmra.mxu0 %v193
    %v459 = vpop.f32.mrf.mxu0
    %v460 = vadd.f32 0.0, %v459
    %461 = vmatmul.f32.gmra.mxu0 %v194
    %v462 = vpop.f32.mrf.mxu0
    %v463 = vadd.f32 0.0, %v462
    %464 = vmatmul.f32.gmra.mxu0 %v195
    %v465 = vpop.f32.mrf.mxu0
    %v466 = vadd.f32 0.0, %v465
    %467 = vmatmul.f32.gmra.mxu0 %v196
    %v468 = vpop.f32.mrf.mxu0
    %v469 = vadd.f32 0.0, %v468
    %470 = vmatmul.f32.gmra.mxu0 %v197
    %v471 = vpop.f32.mrf.mxu0
    %v472 = vadd.f32 0.0, %v471
    %473 = vdwg.mxu0
    %v475 = vperm.slane %v116, 0
    %v476 = vperm.slane %v116, 1
    %v477 = vperm.slane %v116, 2
    %v478 = vperm.slane %v116, 3
    %v479 = vperm.slane %v116, 4
    %v480 = vperm.slane %v116, 5
    %vm486 = vcmask 64512
    %v487 = vsel %vm486, %v480, 0
    %489 = vmatpush.msra.mxu0 %v277
    %490 = vmatpush.msra.mxu0 %v274
    %491 = vmatpush.msra.mxu0 %v271
    %492 = vmatpush.msra.mxu0 %v268
    %493 = vmatpush.msra.mxu0 %v265
    %494 = vmatpush.msra.mxu0 %v262
    %495 = vmatpush.msra.mxu0 %v259
    %496 = vmatpush.msra.mxu0 %v256
    %497 = vmatpush.msra.mxu0 %v253
    %498 = vmatpush.msra.mxu0 %v250
    %499 = vmatpush.msra.mxu0 %v247
    %500 = vmatpush.msra.mxu0 %v244
    %501 = vmatpush.msra.mxu0 %v241
    %502 = vmatpush.msra.mxu0 %v238
    %503 = vmatpush.msra.mxu0 %v235
    %504 = vmatpush.msra.mxu0 %v232
    %505 = vmatmul.f32.gmra.mxu0 %v475
    %v506 = vpop.f32.mrf.mxu0
    %v507 = vadd.f32 0.0, %v506
    %508 = vdwg.mxu0
    %509 = vmatpush.msra.mxu0 %v325
    %510 = vmatpush.msra.mxu0 %v322
    %511 = vmatpush.msra.mxu0 %v319
    %512 = vmatpush.msra.mxu0 %v316
    %513 = vmatpush.msra.mxu0 %v313
    %514 = vmatpush.msra.mxu0 %v310
    %515 = vmatpush.msra.mxu0 %v307
    %516 = vmatpush.msra.mxu0 %v304
    %517 = vmatpush.msra.mxu0 %v301
    %518 = vmatpush.msra.mxu0 %v298
    %519 = vmatpush.msra.mxu0 %v295
    %520 = vmatpush.msra.mxu0 %v292
    %521 = vmatpush.msra.mxu0 %v289
    %522 = vmatpush.msra.mxu0 %v286
    %523 = vmatpush.msra.mxu0 %v283
    %524 = vmatpush.msra.mxu0 %v280
    %525 = vmatmul.f32.gmra.mxu0 %v476
    %v526 = vpop.f32.mrf.mxu0
    %v527 = vadd.f32 %v507, %v526
    %528 = vdwg.mxu0
    %529 = vmatpush.msra.mxu0 %v373
    %530 = vmatpush.msra.mxu0 %v370
    %531 = vmatpush.msra.mxu0 %v367
    %532 = vmatpush.msra.mxu0 %v364
    %533 = vmatpush.msra.mxu0 %v361
    %534 = vmatpush.msra.mxu0 %v358
    %535 = vmatpush.msra.mxu0 %v355
    %536 = vmatpush.msra.mxu0 %v352
    %537 = vmatpush.msra.mxu0 %v349
    %538 = vmatpush.msra.mxu0 %v346
    %539 = vmatpush.msra.mxu0 %v343
    %540 = vmatpush.msra.mxu0 %v340
    %541 = vmatpush.msra.mxu0 %v337
    %542 = vmatpush.msra.mxu0 %v334
    %543 = vmatpush.msra.mxu0 %v331
    %544 = vmatpush.msra.mxu0 %v328
    %545 = vmatmul.f32.gmra.mxu0 %v477
    %v546 = vpop.f32.mrf.mxu0
    %v547 = vadd.f32 %v527, %v546
    %548 = vdwg.mxu0
    %549 = vmatpush.msra.mxu0 %v421
    %550 = vmatpush.msra.mxu0 %v418
    %551 = vmatpush.msra.mxu0 %v415
    %552 = vmatpush.msra.mxu0 %v412
    %553 = vmatpush.msra.mxu0 %v409
    %554 = vmatpush.msra.mxu0 %v406
    %555 = vmatpush.msra.mxu0 %v403
    %556 = vmatpush.msra.mxu0 %v400
    %557 = vmatpush.msra.mxu0 %v397
    %558 = vmatpush.msra.mxu0 %v394
    %559 = vmatpush.msra.mxu0 %v391
    %560 = vmatpush.msra.mxu0 %v388
    %561 = vmatpush.msra.mxu0 %v385
    %562 = vmatpush.msra.mxu0 %v382
    %563 = vmatpush.msra.mxu0 %v379
    %564 = vmatpush.msra.mxu0 %v376
    %565 = vmatmul.f32.gmra.mxu0 %v478
    %v566 = vpop.f32.mrf.mxu0
    %v567 = vadd.f32 %v547, %v566
    %568 = vdwg.mxu0
    %569 = vmatpush.msra.mxu0 %v469
    %570 = vmatpush.msra.mxu0 %v466
    %571 = vmatpush.msra.mxu0 %v463
    %572 = vmatpush.msra.mxu0 %v460
    %573 = vmatpush.msra.mxu0 %v457
    %574 = vmatpush.msra.mxu0 %v454
    %575 = vmatpush.msra.mxu0 %v451
    %576 = vmatpush.msra.mxu0 %v448
    %577 = vmatpush.msra.mxu0 %v445
    %578 = vmatpush.msra.mxu0 %v442
    %579 = vmatpush.msra.mxu0 %v439
    %580 = vmatpush.msra.mxu0 %v436
    %581 = vmatpush.msra.mxu0 %v433
    %582 = vmatpush.msra.mxu0 %v430
    %583 = vmatpush.msra.mxu0 %v427
    %584 = vmatpush.msra.mxu0 %v424
    %585 = vmatmul.f32.gmra.mxu0 %v479
    %v586 = vpop.f32.mrf.mxu0
    %v587 = vadd.f32 %v567, %v586
    %588 = vdwg.mxu0
    %589 = vmatpush.msra.mxu0 0.0
    %590 = vmatpush.msra.mxu0 0.0
    %591 = vmatpush.msra.mxu0 0.0
    %592 = vmatpush.msra.mxu0 0.0
    %593 = vmatpush.msra.mxu0 0.0
    %594 = vmatpush.msra.mxu0 0.0
    %595 = vmatpush.msra.mxu0 0.0
    %596 = vmatpush.msra.mxu0 0.0
    %597 = vmatpush.msra.mxu0 0.0
    %598 = vmatpush.msra.mxu0 0.0
    %599 = vmatpush.msra.mxu0 0.0
    %600 = vmatpush.msra.mxu0 0.0
    %601 = vmatpush.msra.mxu0 0.0
    %602 = vmatpush.msra.mxu0 0.0
    %603 = vmatpush.msra.mxu0 0.0
    %604 = vmatpush.msra.mxu0 %v472
    %605 = vmatmul.f32.gmra.mxu0 %v487
    %v606 = vpop.f32.mrf.mxu0
    %v607 = vadd.f32 %v587, %v606
    %608 = vdwg.mxu0
    %v609 = vmul.f32 %v607, 0.001953125
    %v610 = vperm.slane %v609, 0
    %v611 = vsub.f32 %v232, %v610
    %v612 = vsub.f32 %v235, %v610
    %v613 = vsub.f32 %v238, %v610
    %v614 = vsub.f32 %v241, %v610
    %v615 = vsub.f32 %v244, %v610
    %v616 = vsub.f32 %v247, %v610
    %v617 = vsub.f32 %v250, %v610
    %v618 = vsub.f32 %v253, %v610
    %v619 = vsub.f32 %v256, %v610
    %v620 = vsub.f32 %v259, %v610
    %v621 = vsub.f32 %v262, %v610
    %v622 = vsub.f32 %v265, %v610
    %v623 = vsub.f32 %v268, %v610
    %v624 = vsub.f32 %v271, %v610
    %v625 = vsub.f32 %v274, %v610
    %v626 = vsub.f32 %v277, %v610
    %v627 = vsub.f32 %v280, %v610
    %v628 = vsub.f32 %v283, %v610
    %v629 = vsub.f32 %v286, %v610
    %v630 = vsub.f32 %v289, %v610
    %v631 = vsub.f32 %v292, %v610
    %v632 = vsub.f32 %v295, %v610
    %v633 = vsub.f32 %v298, %v610
    %v634 = vsub.f32 %v301, %v610
    %v635 = vsub.f32 %v304, %v610
    %v636 = vsub.f32 %v307, %v610
    %v637 = vsub.f32 %v310, %v610
    %v638 = vsub.f32 %v313, %v610
    %v639 = vsub.f32 %v316, %v610
    %v640 = vsub.f32 %v319, %v610
    %v641 = vsub.f32 %v322, %v610
    %v642 = vsub.f32 %v325, %v610
    %v643 = vsub.f32 %v328, %v610
    %v644 = vsub.f32 %v331, %v610
    %v645 = vsub.f32 %v334, %v610
    %v646 = vsub.f32 %v337, %v610
    %v647 = vsub.f32 %v340, %v610
    %v648 = vsub.f32 %v343, %v610
    %v649 = vsub.f32 %v346, %v610
    %v650 = vsub.f32 %v349, %v610
    %v651 = vsub.f32 %v352, %v610
    %v652 = vsub.f32 %v355, %v610
    %v653 = vsub.f32 %v358, %v610
    %v654 = vsub.f32 %v361, %v610
    %v655 = vsub.f32 %v364, %v610
    %v656 = vsub.f32 %v367, %v610
    %v657 = vsub.f32 %v370, %v610
    %v658 = vsub.f32 %v373, %v610
    %v659 = vsub.f32 %v376, %v610
    %v660 = vsub.f32 %v379, %v610
    %v661 = vsub.f32 %v382, %v610
    %v662 = vsub.f32 %v385, %v610
    %v663 = vsub.f32 %v388, %v610
    %v664 = vsub.f32 %v391, %v610
    %v665 = vsub.f32 %v394, %v610
    %v666 = vsub.f32 %v397, %v610
    %v667 = vsub.f32 %v400, %v610
    %v668 = vsub.f32 %v403, %v610
    %v669 = vsub.f32 %v406, %v610
    %v670 = vsub.f32 %v409, %v610
    %v671 = vsub.f32 %v412, %v610
    %v672 = vsub.f32 %v415, %v610
    %v673 = vsub.f32 %v418, %v610
    %v674 = vsub.f32 %v421, %v610
    %v675 = vsub.f32 %v424, %v610
    %v676 = vsub.f32 %v427, %v610
    %v677 = vsub.f32 %v430, %v610
    %v678 = vsub.f32 %v433, %v610
    %v679 = vsub.f32 %v436, %v610
    %v680 = vsub.f32 %v439, %v610
    %v681 = vsub.f32 %v442, %v610
    %v682 = vsub.f32 %v445, %v610
    %v683 = vsub.f32 %v448, %v610
    %v684 = vsub.f32 %v451, %v610
    %v685 = vsub.f32 %v454, %v610
    %v686 = vsub.f32 %v457, %v610
    %v687 = vsub.f32 %v460, %v610
    %v688 = vsub.f32 %v463, %v610
    %v689 = vsub.f32 %v466, %v610
    %v690 = vsub.f32 %v469, %v610
    %v691 = vsub.f32 %v472, %v610
    %v692 = vmul.f32 %v611, %v611
    %v693 = vmul.f32 %v612, %v612
    %v694 = vmul.f32 %v613, %v613
    %v695 = vmul.f32 %v614, %v614
    %v696 = vmul.f32 %v615, %v615
    %v697 = vmul.f32 %v616, %v616
    %v698 = vmul.f32 %v617, %v617
    %v699 = vmul.f32 %v618, %v618
    %v700 = vmul.f32 %v619, %v619
    %v701 = vmul.f32 %v620, %v620
    %v702 = vmul.f32 %v621, %v621
    %v703 = vmul.f32 %v622, %v622
    %v704 = vmul.f32 %v623, %v623
    %v705 = vmul.f32 %v624, %v624
    %v706 = vmul.f32 %v625, %v625
    %v707 = vmul.f32 %v626, %v626
    %v708 = vmul.f32 %v627, %v627
    %v709 = vmul.f32 %v628, %v628
    %v710 = vmul.f32 %v629, %v629
    %v711 = vmul.f32 %v630, %v630
    %v712 = vmul.f32 %v631, %v631
    %v713 = vmul.f32 %v632, %v632
    %v714 = vmul.f32 %v633, %v633
    %v715 = vmul.f32 %v634, %v634
    %v716 = vmul.f32 %v635, %v635
    %v717 = vmul.f32 %v636, %v636
    %v718 = vmul.f32 %v637, %v637
    %v719 = vmul.f32 %v638, %v638
    %v720 = vmul.f32 %v639, %v639
    %v721 = vmul.f32 %v640, %v640
    %v722 = vmul.f32 %v641, %v641
    %v723 = vmul.f32 %v642, %v642
    %v724 = vmul.f32 %v643, %v643
    %v725 = vmul.f32 %v644, %v644
    %v726 = vmul.f32 %v645, %v645
    %v727 = vmul.f32 %v646, %v646
    %v728 = vmul.f32 %v647, %v647
    %v729 = vmul.f32 %v648, %v648
    %v730 = vmul.f32 %v649, %v649
    %v731 = vmul.f32 %v650, %v650
    %v732 = vmul.f32 %v651, %v651
    %v733 = vmul.f32 %v652, %v652
    %v734 = vmul.f32 %v653, %v653
    %v735 = vmul.f32 %v654, %v654
    %v736 = vmul.f32 %v655, %v655
    %v737 = vmul.f32 %v656, %v656
    %v738 = vmul.f32 %v657, %v657
    %v739 = vmul.f32 %v658, %v658
    %v740 = vmul.f32 %v659, %v659
    %v741 = vmul.f32 %v660, %v660
    %v742 = vmul.f32 %v661, %v661
    %v743 = vmul.f32 %v662, %v662
    %v744 = vmul.f32 %v663, %v663
    %v745 = vmul.f32 %v664, %v664
    %v746 = vmul.f32 %v665, %v665
    %v747 = vmul.f32 %v666, %v666
    %v748 = vmul.f32 %v667, %v667
    %v749 = vmul.f32 %v668, %v668
    %v750 = vmul.f32 %v669, %v669
    %v751 = vmul.f32 %v670, %v670
    %v752 = vmul.f32 %v671, %v671
    %v753 = vmul.f32 %v672, %v672
    %v754 = vmul.f32 %v673, %v673
    %v755 = vmul.f32 %v674, %v674
    %v756 = vmul.f32 %v675, %v675
    %v757 = vmul.f32 %v676, %v676
    %v758 = vmul.f32 %v677, %v677
    %v759 = vmul.f32 %v678, %v678
    %v760 = vmul.f32 %v679, %v679
    %v761 = vmul.f32 %v680, %v680
    %v762 = vmul.f32 %v681, %v681
    %v763 = vmul.f32 %v682, %v682
    %v764 = vmul.f32 %v683, %v683
    %v765 = vmul.f32 %v684, %v684
    %v766 = vmul.f32 %v685, %v685
    %v767 = vmul.f32 %v686, %v686
    %v768 = vmul.f32 %v687, %v687
    %v769 = vmul.f32 %v688, %v688
    %v770 = vmul.f32 %v689, %v689
    %v771 = vmul.f32 %v690, %v690
    %v772 = vmul.f32 %v691, %v691
    %773 = vmatpush.msra.mxu0 %v707
    %774 = vmatpush.msra.mxu0 %v706
    %775 = vmatpush.msra.mxu0 %v705
    %776 = vmatpush.msra.mxu0 %v704
    %777 = vmatpush.msra.mxu0 %v703
    %778 = vmatpush.msra.mxu0 %v702
    %779 = vmatpush.msra.mxu0 %v701
    %780 = vmatpush.msra.mxu0 %v700
    %781 = vmatpush.msra.mxu0 %v699
    %782 = vmatpush.msra.mxu0 %v698
    %783 = vmatpush.msra.mxu0 %v697
    %784 = vmatpush.msra.mxu0 %v696
    %785 = vmatpush.msra.mxu0 %v695
    %786 = vmatpush.msra.mxu0 %v694
    %787 = vmatpush.msra.mxu0 %v693
    %788 = vmatpush.msra.mxu0 %v692
    %789 = vmatmul.f32.gmra.mxu0 %v475
    %v790 = vpop.f32.mrf.mxu0
    %v791 = vadd.f32 0.0, %v790
    %792 = vdwg.mxu0
    %793 = vmatpush.msra.mxu0 %v723
    %794 = vmatpush.msra.mxu0 %v722
    %795 = vmatpush.msra.mxu0 %v721
    %796 = vmatpush.msra.mxu0 %v720
    %797 = vmatpush.msra.mxu0 %v719
    %798 = vmatpush.msra.mxu0 %v718
    %799 = vmatpush.msra.mxu0 %v717
    %800 = vmatpush.msra.mxu0 %v716
    %801 = vmatpush.msra.mxu0 %v715
    %802 = vmatpush.msra.mxu0 %v714
    %803 = vmatpush.msra.mxu0 %v713
    %804 = vmatpush.msra.mxu0 %v712
    %805 = vmatpush.msra.mxu0 %v711
    %806 = vmatpush.msra.mxu0 %v710
    %807 = vmatpush.msra.mxu0 %v709
    %808 = vmatpush.msra.mxu0 %v708
    %809 = vmatmul.f32.gmra.mxu0 %v476
    %v810 = vpop.f32.mrf.mxu0
    %v811 = vadd.f32 %v791, %v810
    %812 = vdwg.mxu0
    %813 = vmatpush.msra.mxu0 %v739
    %814 = vmatpush.msra.mxu0 %v738
    %815 = vmatpush.msra.mxu0 %v737
    %816 = vmatpush.msra.mxu0 %v736
    %817 = vmatpush.msra.mxu0 %v735
    %818 = vmatpush.msra.mxu0 %v734
    %819 = vmatpush.msra.mxu0 %v733
    %820 = vmatpush.msra.mxu0 %v732
    %821 = vmatpush.msra.mxu0 %v731
    %822 = vmatpush.msra.mxu0 %v730
    %823 = vmatpush.msra.mxu0 %v729
    %824 = vmatpush.msra.mxu0 %v728
    %825 = vmatpush.msra.mxu0 %v727
    %826 = vmatpush.msra.mxu0 %v726
    %827 = vmatpush.msra.mxu0 %v725
    %828 = vmatpush.msra.mxu0 %v724
    %829 = vmatmul.f32.gmra.mxu0 %v477
    %v830 = vpop.f32.mrf.mxu0
    %v831 = vadd.f32 %v811, %v830
    %832 = vdwg.mxu0
    %833 = vmatpush.msra.mxu0 %v755
    %834 = vmatpush.msra.mxu0 %v754
    %835 = vmatpush.msra.mxu0 %v753
    %836 = vmatpush.msra.mxu0 %v752
    %837 = vmatpush.msra.mxu0 %v751
    %838 = vmatpush.msra.mxu0 %v750
    %839 = vmatpush.msra.mxu0 %v749
    %840 = vmatpush.msra.mxu0 %v748
    %841 = vmatpush.msra.mxu0 %v747
    %842 = vmatpush.msra.mxu0 %v746
    %843 = vmatpush.msra.mxu0 %v745
    %844 = vmatpush.msra.mxu0 %v744
    %845 = vmatpush.msra.mxu0 %v743
    %846 = vmatpush.msra.mxu0 %v742
    %847 = vmatpush.msra.mxu0 %v741
    %848 = vmatpush.msra.mxu0 %v740
    %849 = vmatmul.f32.gmra.mxu0 %v478
    %v850 = vpop.f32.mrf.mxu0
    %v851 = vadd.f32 %v831, %v850
    %852 = vdwg.mxu0
    %853 = vmatpush.msra.mxu0 %v771
    %854 = vmatpush.msra.mxu0 %v770
    %855 = vmatpush.msra.mxu0 %v769
    %856 = vmatpush.msra.mxu0 %v768
    %857 = vmatpush.msra.mxu0 %v767
    %858 = vmatpush.msra.mxu0 %v766
    %859 = vmatpush.msra.mxu0 %v765
    %860 = vmatpush.msra.mxu0 %v764
    %861 = vmatpush.msra.mxu0 %v763
    %862 = vmatpush.msra.mxu0 %v762
    %863 = vmatpush.msra.mxu0 %v761
    %864 = vmatpush.msra.mxu0 %v760
    %865 = vmatpush.msra.mxu0 %v759
    %866 = vmatpush.msra.mxu0 %v758
    %867 = vmatpush.msra.mxu0 %v757
    %868 = vmatpush.msra.mxu0 %v756
    %869 = vmatmul.f32.gmra.mxu0 %v479
    %v870 = vpop.f32.mrf.mxu0
    %v871 = vadd.f32 %v851, %v870
    %872 = vdwg.mxu0
    %873 = vmatpush.msra.mxu0 0.0
    %874 = vmatpush.msra.mxu0 0.0
    %875 = vmatpush.msra.mxu0 0.0
    %876 = vmatpush.msra.mxu0 0.0
    %877 = vmatpush.msra.mxu0 0.0
    %878 = vmatpush.msra.mxu0 0.0
    %879 = vmatpush.msra.mxu0 0.0
    %880 = vmatpush.msra.mxu0 0.0
    %881 = vmatpush.msra.mxu0 0.0
    %882 = vmatpush.msra.mxu0 0.0
    %883 = vmatpush.msra.mxu0 0.0
    %884 = vmatpush.msra.mxu0 0.0
    %885 = vmatpush.msra.mxu0 0.0
    %886 = vmatpush.msra.mxu0 0.0
    %887 = vmatpush.msra.mxu0 0.0
    %888 = vmatpush.msra.mxu0 %v772
    %889 = vmatmul.f32.gmra.mxu0 %v487
    %v890 = vpop.f32.mrf.mxu0
    %v891 = vadd.f32 %v871, %v890
    %892 = vdwg.mxu0
    %v893 = vmul.f32 %v891, 0.001953125
    %v894 = vld [vmem:[#allocation6] sm:$0x1]
    %v895 = vadd.f32 %v893, 1e-05
    %v896 = vrsqrt.pop %v895
    %v897 = vmul.f32 %v896, %v895
    %v898 = vmul.f32 %v897, %v896
    %v899 = vmul.f32 0.5, %v898
    %v900 = vsub.f32 1.5, %v899
    %v901 = vmul.f32 %v896, %v900
    %vm902 = vweird.f32 %v895
    %vm903 = vweird.f32 %v896
    %vm904 = vmor %vm902, %vm903
    %v905 = vsel %vm904, %v896, %v901
    %v906 = vmul.f32 %v894, %v905
    %v908 = vperm.slane %v906, 0
    %v910 = vmul.f32 %v611, %v908
    %v911 = vmul.f32 %v612, %v908
    %v912 = vmul.f32 %v613, %v908
    %v913 = vmul.f32 %v614, %v908
    %v914 = vmul.f32 %v615, %v908
    %v915 = vmul.f32 %v616, %v908
    %v916 = vmul.f32 %v617, %v908
    %v917 = vmul.f32 %v618, %v908
    %v918 = vmul.f32 %v619, %v908
    %v919 = vmul.f32 %v620, %v908
    %v920 = vmul.f32 %v621, %v908
    %v921 = vmul.f32 %v622, %v908
    %v922 = vmul.f32 %v623, %v908
    %v923 = vmul.f32 %v624, %v908
    %v924 = vmul.f32 %v625, %v908
    %v925 = vmul.f32 %v626, %v908
    %v926 = vmul.f32 %v627, %v908
    %v927 = vmul.f32 %v628, %v908
    %v928 = vmul.f32 %v629, %v908
    %v929 = vmul.f32 %v630, %v908
    %v930 = vmul.f32 %v631, %v908
    %v931 = vmul.f32 %v632, %v908
    %v932 = vmul.f32 %v633, %v908
    %v933 = vmul.f32 %v634, %v908
    %v934 = vmul.f32 %v635, %v908
    %v935 = vmul.f32 %v636, %v908
    %v936 = vmul.f32 %v637, %v908
    %v937 = vmul.f32 %v638, %v908
    %v938 = vmul.f32 %v639, %v908
    %v939 = vmul.f32 %v640, %v908
    %v940 = vmul.f32 %v641, %v908
    %v941 = vmul.f32 %v642, %v908
    %v942 = vmul.f32 %v643, %v908
    %v943 = vmul.f32 %v644, %v908
    %v944 = vmul.f32 %v645, %v908
    %v945 = vmul.f32 %v646, %v908
    %v946 = vmul.f32 %v647, %v908
    %v947 = vmul.f32 %v648, %v908
    %v948 = vmul.f32 %v649, %v908
    %v949 = vmul.f32 %v650, %v908
    %v950 = vmul.f32 %v651, %v908
    %v951 = vmul.f32 %v652, %v908
    %v952 = vmul.f32 %v653, %v908
    %v953 = vmul.f32 %v654, %v908
    %v954 = vmul.f32 %v655, %v908
    %v955 = vmul.f32 %v656, %v908
    %v956 = vmul.f32 %v657, %v908
    %v957 = vmul.f32 %v658, %v908
    %v958 = vmul.f32 %v659, %v908
    %v959 = vmul.f32 %v660, %v908
    %v960 = vmul.f32 %v661, %v908
    %v961 = vmul.f32 %v662, %v908
    %v962 = vmul.f32 %v663, %v908
    %v963 = vmul.f32 %v664, %v908
    %v964 = vmul.f32 %v665, %v908
    %v965 = vmul.f32 %v666, %v908
    %v966 = vmul.f32 %v667, %v908
    %v967 = vmul.f32 %v668, %v908
    %v968 = vmul.f32 %v669, %v908
    %v969 = vmul.f32 %v670, %v908
    %v970 = vmul.f32 %v671, %v908
    %v971 = vmul.f32 %v672, %v908
    %v972 = vmul.f32 %v673, %v908
    %v973 = vmul.f32 %v674, %v908
    %v974 = vmul.f32 %v675, %v908
    %v975 = vmul.f32 %v676, %v908
    %v976 = vmul.f32 %v677, %v908
    %v977 = vmul.f32 %v678, %v908
    %v978 = vmul.f32 %v679, %v908
    %v979 = vmul.f32 %v680, %v908
    %v980 = vmul.f32 %v681, %v908
    %v981 = vmul.f32 %v682, %v908
    %v982 = vmul.f32 %v683, %v908
    %v983 = vmul.f32 %v684, %v908
    %v984 = vmul.f32 %v685, %v908
    %v985 = vmul.f32 %v686, %v908
    %v986 = vmul.f32 %v687, %v908
    %v987 = vmul.f32 %v688, %v908
    %v988 = vmul.f32 %v689, %v908
    %v989 = vmul.f32 %v690, %v908
    %v990 = vmul.f32 %v691, %v908
    %v991 = vld [vmem:[#allocation8] sm:$0x1]
    %v993 = vperm.slane %v991, 0
    %v995 = vadd.f32 %v910, %v993
    %v996 = vadd.f32 %v911, %v993
    %v997 = vadd.f32 %v912, %v993
    %v998 = vadd.f32 %v913, %v993
    %v999 = vadd.f32 %v914, %v993
    %v1000 = vadd.f32 %v915, %v993
    %v1001 = vadd.f32 %v916, %v993
    %v1002 = vadd.f32 %v917, %v993
    %v1003 = vadd.f32 %v918, %v993
    %v1004 = vadd.f32 %v919, %v993
    %v1005 = vadd.f32 %v920, %v993
    %v1006 = vadd.f32 %v921, %v993
    %v1007 = vadd.f32 %v922, %v993
    %v1008 = vadd.f32 %v923, %v993
    %v1009 = vadd.f32 %v924, %v993
    %v1010 = vadd.f32 %v925, %v993
    %v1011 = vadd.f32 %v926, %v993
    %v1012 = vadd.f32 %v927, %v993
    %v1013 = vadd.f32 %v928, %v993
    %v1014 = vadd.f32 %v929, %v993
    %v1015 = vadd.f32 %v930, %v993
    %v1016 = vadd.f32 %v931, %v993
    %v1017 = vadd.f32 %v932, %v993
    %v1018 = vadd.f32 %v933, %v993
    %v1019 = vadd.f32 %v934, %v993
    %v1020 = vadd.f32 %v935, %v993
    %v1021 = vadd.f32 %v936, %v993
    %v1022 = vadd.f32 %v937, %v993
    %v1023 = vadd.f32 %v938, %v993
    %v1024 = vadd.f32 %v939, %v993
    %v1025 = vadd.f32 %v940, %v993
    %v1026 = vadd.f32 %v941, %v993
    %v1027 = vadd.f32 %v942, %v993
    %v1028 = vadd.f32 %v943, %v993
    %v1029 = vadd.f32 %v944, %v993
    %v1030 = vadd.f32 %v945, %v993
    %v1031 = vadd.f32 %v946, %v993
    %v1032 = vadd.f32 %v947, %v993
    %v1033 = vadd.f32 %v948, %v993
    %v1034 = vadd.f32 %v949, %v993
    %v1035 = vadd.f32 %v950, %v993
    %v1036 = vadd.f32 %v951, %v993
    %v1037 = vadd.f32 %v952, %v993
    %v1038 = vadd.f32 %v953, %v993
    %v1039 = vadd.f32 %v954, %v993
    %v1040 = vadd.f32 %v955, %v993
    %v1041 = vadd.f32 %v956, %v993
    %v1042 = vadd.f32 %v957, %v993
    %v1043 = vadd.f32 %v958, %v993
    %v1044 = vadd.f32 %v959, %v993
    %v1045 = vadd.f32 %v960, %v993
    %v1046 = vadd.f32 %v961, %v993
    %v1047 = vadd.f32 %v962, %v993
    %v1048 = vadd.f32 %v963, %v993
    %v1049 = vadd.f32 %v964, %v993
    %v1050 = vadd.f32 %v965, %v993
    %v1051 = vadd.f32 %v966, %v993
    %v1052 = vadd.f32 %v967, %v993
    %v1053 = vadd.f32 %v968, %v993
    %v1054 = vadd.f32 %v969, %v993
    %v1055 = vadd.f32 %v970, %v993
    %v1056 = vadd.f32 %v971, %v993
    %v1057 = vadd.f32 %v972, %v993
    %v1058 = vadd.f32 %v973, %v993
    %v1059 = vadd.f32 %v974, %v993
    %v1060 = vadd.f32 %v975, %v993
    %v1061 = vadd.f32 %v976, %v993
    %v1062 = vadd.f32 %v977, %v993
    %v1063 = vadd.f32 %v978, %v993
    %v1064 = vadd.f32 %v979, %v993
    %v1065 = vadd.f32 %v980, %v993
    %v1066 = vadd.f32 %v981, %v993
    %v1067 = vadd.f32 %v982, %v993
    %v1068 = vadd.f32 %v983, %v993
    %v1069 = vadd.f32 %v984, %v993
    %v1070 = vadd.f32 %v985, %v993
    %v1071 = vadd.f32 %v986, %v993
    %v1072 = vadd.f32 %v987, %v993
    %v1073 = vadd.f32 %v988, %v993
    %v1074 = vadd.f32 %v989, %v993
    %v1075 = vadd.f32 %v990, %v993
    %v1076 = vmax.f32 %v995, 0.0
    %v1077 = vmax.f32 %v996, 0.0
    %v1078 = vmax.f32 %v997, 0.0
    %v1079 = vmax.f32 %v998, 0.0
    %v1080 = vmax.f32 %v999, 0.0
    %v1081 = vmax.f32 %v1000, 0.0
    %v1082 = vmax.f32 %v1001, 0.0
    %v1083 = vmax.f32 %v1002, 0.0
    %v1084 = vmax.f32 %v1003, 0.0
    %v1085 = vmax.f32 %v1004, 0.0
    %v1086 = vmax.f32 %v1005, 0.0
    %v1087 = vmax.f32 %v1006, 0.0
    %v1088 = vmax.f32 %v1007, 0.0
    %v1089 = vmax.f32 %v1008, 0.0
    %v1090 = vmax.f32 %v1009, 0.0
    %v1091 = vmax.f32 %v1010, 0.0
    %v1092 = vmax.f32 %v1011, 0.0
    %v1093 = vmax.f32 %v1012, 0.0
    %v1094 = vmax.f32 %v1013, 0.0
    %v1095 = vmax.f32 %v1014, 0.0
    %v1096 = vmax.f32 %v1015, 0.0
    %v1097 = vmax.f32 %v1016, 0.0
    %v1098 = vmax.f32 %v1017, 0.0
    %v1099 = vmax.f32 %v1018, 0.0
    %v1100 = vmax.f32 %v1019, 0.0
    %v1101 = vmax.f32 %v1020, 0.0
    %v1102 = vmax.f32 %v1021, 0.0
    %v1103 = vmax.f32 %v1022, 0.0
    %v1104 = vmax.f32 %v1023, 0.0
    %v1105 = vmax.f32 %v1024, 0.0
    %v1106 = vmax.f32 %v1025, 0.0
    %v1107 = vmax.f32 %v1026, 0.0
    %v1108 = vmax.f32 %v1027, 0.0
    %v1109 = vmax.f32 %v1028, 0.0
    %v1110 = vmax.f32 %v1029, 0.0
    %v1111 = vmax.f32 %v1030, 0.0
    %v1112 = vmax.f32 %v1031, 0.0
    %v1113 = vmax.f32 %v1032, 0.0
    %v1114 = vmax.f32 %v1033, 0.0
    %v1115 = vmax.f32 %v1034, 0.0
    %v1116 = vmax.f32 %v1035, 0.0
    %v1117 = vmax.f32 %v1036, 0.0
    %v1118 = vmax.f32 %v1037, 0.0
    %v1119 = vmax.f32 %v1038, 0.0
    %v1120 = vmax.f32 %v1039, 0.0
    %v1121 = vmax.f32 %v1040, 0.0
    %v1122 = vmax.f32 %v1041, 0.0
    %v1123 = vmax.f32 %v1042, 0.0
    %v1124 = vmax.f32 %v1043, 0.0
    %v1125 = vmax.f32 %v1044, 0.0
    %v1126 = vmax.f32 %v1045, 0.0
    %v1127 = vmax.f32 %v1046, 0.0
    %v1128 = vmax.f32 %v1047, 0.0
    %v1129 = vmax.f32 %v1048, 0.0
    %v1130 = vmax.f32 %v1049, 0.0
    %v1131 = vmax.f32 %v1050, 0.0
    %v1132 = vmax.f32 %v1051, 0.0
    %v1133 = vmax.f32 %v1052, 0.0
    %v1134 = vmax.f32 %v1053, 0.0
    %v1135 = vmax.f32 %v1054, 0.0
    %v1136 = vmax.f32 %v1055, 0.0
    %v1137 = vmax.f32 %v1056, 0.0
    %v1138 = vmax.f32 %v1057, 0.0
    %v1139 = vmax.f32 %v1058, 0.0
    %v1140 = vmax.f32 %v1059, 0.0
    %v1141 = vmax.f32 %v1060, 0.0
    %v1142 = vmax.f32 %v1061, 0.0
    %v1143 = vmax.f32 %v1062, 0.0
    %v1144 = vmax.f32 %v1063, 0.0
    %v1145 = vmax.f32 %v1064, 0.0
    %v1146 = vmax.f32 %v1065, 0.0
    %v1147 = vmax.f32 %v1066, 0.0
    %v1148 = vmax.f32 %v1067, 0.0
    %v1149 = vmax.f32 %v1068, 0.0
    %v1150 = vmax.f32 %v1069, 0.0
    %v1151 = vmax.f32 %v1070, 0.0
    %v1152 = vmax.f32 %v1071, 0.0
    %v1153 = vmax.f32 %v1072, 0.0
    %v1154 = vmax.f32 %v1073, 0.0
    %v1155 = vmax.f32 %v1074, 0.0
    %v1156 = vmax.f32 %v1075, 0.0
    %1157 = vst [vmem:[#allocation2] sm:$0xff] 0.0
    %1158 = vst [vmem:[#allocation2 + $0x8] sm:$0xff] 0.0
    %1159 = vst [vmem:[#allocation2 + $0x10] sm:$0xff] 0.0
    %1160 = vst [vmem:[#allocation2 + $0x2a0] sm:$0xff] 0.0
    %1161 = vst [vmem:[#allocation2 + $0x2a8] sm:$0xff] 0.0
    %1162 = vst [vmem:[#allocation2 + $0x2b0] sm:$0xff] 0.0
    %v1163 = vld [vmem:[%s2] sm:$0xff]
    %v1164 = vld [vmem:[%s2 + $0x8] sm:$0xff]
    %v1165 = vld [vmem:[%s2 + $0x10] sm:$0xff]
    %v1166 = vld [vmem:[%s2 + $0x18] sm:$0xff]
    %v1167 = vld [vmem:[%s2 + $0x20] sm:$0xff]
    %v1168 = vld [vmem:[%s2 + $0x28] sm:$0xff]
    %v1169 = vld [vmem:[%s2 + $0x30] sm:$0xff]
    %v1170 = vld [vmem:[%s2 + $0x38] sm:$0xff]
    %v1171 = vld [vmem:[%s2 + $0x40] sm:$0xff]
    %v1172 = vld [vmem:[%s2 + $0x48] sm:$0xff]
    %v1173 = vld [vmem:[%s2 + $0x50] sm:$0xff]
    %v1174 = vld [vmem:[%s2 + $0x58] sm:$0xff]
    %v1175 = vld [vmem:[%s2 + $0x60] sm:$0xff]
    %v1176 = vld [vmem:[%s2 + $0x68] sm:$0xff]
    %v1177 = vld [vmem:[%s2 + $0x70] sm:$0xff]
    %v1178 = vld [vmem:[%s2 + $0x78] sm:$0xff]
    %v1179 = vld [vmem:[%s2 + $0x80] sm:$0xff]
    %v1180 = vld [vmem:[%s2 + $0x88] sm:$0xff]
    %v1181 = vld [vmem:[%s2 + $0x90] sm:$0xff]
    %v1182 = vld [vmem:[%s2 + $0x98] sm:$0xff]
    %v1183 = vld [vmem:[%s2 + $0xa0] sm:$0xff]
    %v1184 = vld [vmem:[%s2 + $0xa8] sm:$0xff]
    %v1185 = vld [vmem:[%s2 + $0xb0] sm:$0xff]
    %v1186 = vld [vmem:[%s2 + $0xb8] sm:$0xff]
    %v1187 = vld [vmem:[%s2 + $0xc0] sm:$0xff]
    %v1188 = vld [vmem:[%s2 + $0xc8] sm:$0xff]
    %v1189 = vld [vmem:[%s2 + $0xd0] sm:$0xff]
    %v1190 = vld [vmem:[%s2 + $0xd8] sm:$0xff]
    %v1191 = vld [vmem:[%s2 + $0xe0] sm:$0xff]
    %v1192 = vld [vmem:[%s2 + $0xe8] sm:$0xff]
    %v1193 = vld [vmem:[%s2 + $0xf0] sm:$0xff]
    %v1194 = vld [vmem:[%s2 + $0xf8] sm:$0xff]
    %v1195 = vld [vmem:[%s2 + $0x100] sm:$0xff]
    %v1196 = vld [vmem:[%s2 + $0x108] sm:$0xff]
    %v1197 = vld [vmem:[%s2 + $0x110] sm:$0xff]
    %v1198 = vld [vmem:[%s2 + $0x118] sm:$0xff]
    %v1199 = vld [vmem:[%s2 + $0x120] sm:$0xff]
    %v1200 = vld [vmem:[%s2 + $0x128] sm:$0xff]
    %v1201 = vld [vmem:[%s2 + $0x130] sm:$0xff]
    %v1202 = vld [vmem:[%s2 + $0x138] sm:$0xff]
    %v1203 = vld [vmem:[%s2 + $0x140] sm:$0xff]
    %v1204 = vld [vmem:[%s2 + $0x148] sm:$0xff]
    %v1205 = vld [vmem:[%s2 + $0x150] sm:$0xff]
    %v1206 = vld [vmem:[%s2 + $0x158] sm:$0xff]
    %v1207 = vld [vmem:[%s2 + $0x160] sm:$0xff]
    %v1208 = vld [vmem:[%s2 + $0x168] sm:$0xff]
    %v1209 = vld [vmem:[%s2 + $0x170] sm:$0xff]
    %v1210 = vld [vmem:[%s2 + $0x178] sm:$0xff]
    %v1211 = vld [vmem:[%s2 + $0x180] sm:$0xff]
    %v1212 = vld [vmem:[%s2 + $0x188] sm:$0xff]
    %v1213 = vld [vmem:[%s2 + $0x190] sm:$0xff]
    %v1214 = vld [vmem:[%s2 + $0x198] sm:$0xff]
    %v1215 = vld [vmem:[%s2 + $0x1a0] sm:$0xff]
    %v1216 = vld [vmem:[%s2 + $0x1a8] sm:$0xff]
    %v1217 = vld [vmem:[%s2 + $0x1b0] sm:$0xff]
    %v1218 = vld [vmem:[%s2 + $0x1b8] sm:$0xff]
    %v1219 = vld [vmem:[%s2 + $0x1c0] sm:$0xff]
    %v1220 = vld [vmem:[%s2 + $0x1c8] sm:$0xff]
    %v1221 = vld [vmem:[%s2 + $0x1d0] sm:$0xff]
    %v1222 = vld [vmem:[%s2 + $0x1d8] sm:$0xff]
    %v1223 = vld [vmem:[%s2 + $0x1e0] sm:$0xff]
    %v1224 = vld [vmem:[%s2 + $0x1e8] sm:$0xff]
    %v1225 = vld [vmem:[%s2 + $0x1f0] sm:$0xff]
    %v1226 = vld [vmem:[%s2 + $0x1f8] sm:$0xff]
    %v1227 = vld [vmem:[%s2 + $0x200] sm:$0xff]
    %v1228 = vld [vmem:[%s2 + $0x208] sm:$0xff]
    %v1229 = vld [vmem:[%s2 + $0x210] sm:$0xff]
    %v1230 = vld [vmem:[%s2 + $0x218] sm:$0xff]
    %v1231 = vld [vmem:[%s2 + $0x220] sm:$0xff]
    %v1232 = vld [vmem:[%s2 + $0x228] sm:$0xff]
    %v1233 = vld [vmem:[%s2 + $0x230] sm:$0xff]
    %v1234 = vld [vmem:[%s2 + $0x238] sm:$0xff]
    %v1235 = vld [vmem:[%s2 + $0x240] sm:$0xff]
    %v1236 = vld [vmem:[%s2 + $0x248] sm:$0xff]
    %v1237 = vld [vmem:[%s2 + $0x250] sm:$0xff]
    %v1238 = vld [vmem:[%s2 + $0x258] sm:$0xff]
    %v1239 = vld [vmem:[%s2 + $0x260] sm:$0xff]
    %v1240 = vld [vmem:[%s2 + $0x268] sm:$0xff]
    %v1241 = vld [vmem:[%s2 + $0x270] sm:$0xff]
    %v1242 = vld [vmem:[%s2 + $0x278] sm:$0xff]
    %v1243 = vld [vmem:[%s2 + $0x280] sm:$0xff]
    %1245 = vset.pattern.permute.xlu0 0
    %1246 = vperm.xlu0 %1245, %v1163
    %v1247 = vpop.permute.xlu0 %1246
    %1250 = vset.pattern.permute.xlu0 0
    %1251 = vperm.xlu0 %1250, %v1164
    %v1252 = vpop.permute.xlu0 %1251
    %1255 = vset.pattern.permute.xlu0 0
    %1256 = vperm.xlu0 %1255, %v1165
    %v1257 = vpop.permute.xlu0 %1256
    %1260 = vset.pattern.permute.xlu0 0
    %1261 = vperm.xlu0 %1260, %v1166
    %v1262 = vpop.permute.xlu0 %1261
    %1265 = vset.pattern.permute.xlu0 0
    %1266 = vperm.xlu0 %1265, %v1167
    %v1267 = vpop.permute.xlu0 %1266
    %1270 = vset.pattern.permute.xlu0 0
    %1271 = vperm.xlu0 %1270, %v1168
    %v1272 = vpop.permute.xlu0 %1271
    %1275 = vset.pattern.permute.xlu0 0
    %1276 = vperm.xlu0 %1275, %v1169
    %v1277 = vpop.permute.xlu0 %1276
    %1280 = vset.pattern.permute.xlu0 0
    %1281 = vperm.xlu0 %1280, %v1170
    %v1282 = vpop.permute.xlu0 %1281
    %1285 = vset.pattern.permute.xlu0 0
    %1286 = vperm.xlu0 %1285, %v1171
    %v1287 = vpop.permute.xlu0 %1286
    %1290 = vset.pattern.permute.xlu0 0
    %1291 = vperm.xlu0 %1290, %v1172
    %v1292 = vpop.permute.xlu0 %1291
    %1295 = vset.pattern.permute.xlu0 0
    %1296 = vperm.xlu0 %1295, %v1173
    %v1297 = vpop.permute.xlu0 %1296
    %1300 = vset.pattern.permute.xlu0 0
    %1301 = vperm.xlu0 %1300, %v1174
    %v1302 = vpop.permute.xlu0 %1301
    %1305 = vset.pattern.permute.xlu0 0
    %1306 = vperm.xlu0 %1305, %v1175
    %v1307 = vpop.permute.xlu0 %1306
    %1310 = vset.pattern.permute.xlu0 0
    %1311 = vperm.xlu0 %1310, %v1176
    %v1312 = vpop.permute.xlu0 %1311
    %1315 = vset.pattern.permute.xlu0 0
    %1316 = vperm.xlu0 %1315, %v1177
    %v1317 = vpop.permute.xlu0 %1316
    %1320 = vset.pattern.permute.xlu0 0
    %1321 = vperm.xlu0 %1320, %v1178
    %v1322 = vpop.permute.xlu0 %1321
    %1325 = vset.pattern.permute.xlu0 0
    %1326 = vperm.xlu0 %1325, %v1179
    %v1327 = vpop.permute.xlu0 %1326
    %1330 = vset.pattern.permute.xlu0 0
    %1331 = vperm.xlu0 %1330, %v1180
    %v1332 = vpop.permute.xlu0 %1331
    %1335 = vset.pattern.permute.xlu0 0
    %1336 = vperm.xlu0 %1335, %v1181
    %v1337 = vpop.permute.xlu0 %1336
    %1340 = vset.pattern.permute.xlu0 0
    %1341 = vperm.xlu0 %1340, %v1182
    %v1342 = vpop.permute.xlu0 %1341
    %1345 = vset.pattern.permute.xlu0 0
    %1346 = vperm.xlu0 %1345, %v1183
    %v1347 = vpop.permute.xlu0 %1346
    %1350 = vset.pattern.permute.xlu0 0
    %1351 = vperm.xlu0 %1350, %v1184
    %v1352 = vpop.permute.xlu0 %1351
    %1355 = vset.pattern.permute.xlu0 0
    %1356 = vperm.xlu0 %1355, %v1185
    %v1357 = vpop.permute.xlu0 %1356
    %1360 = vset.pattern.permute.xlu0 0
    %1361 = vperm.xlu0 %1360, %v1186
    %v1362 = vpop.permute.xlu0 %1361
    %1365 = vset.pattern.permute.xlu0 0
    %1366 = vperm.xlu0 %1365, %v1187
    %v1367 = vpop.permute.xlu0 %1366
    %1370 = vset.pattern.permute.xlu0 0
    %1371 = vperm.xlu0 %1370, %v1188
    %v1372 = vpop.permute.xlu0 %1371
    %1375 = vset.pattern.permute.xlu0 0
    %1376 = vperm.xlu0 %1375, %v1189
    %v1377 = vpop.permute.xlu0 %1376
    %1380 = vset.pattern.permute.xlu0 0
    %1381 = vperm.xlu0 %1380, %v1190
    %v1382 = vpop.permute.xlu0 %1381
    %1385 = vset.pattern.permute.xlu0 0
    %1386 = vperm.xlu0 %1385, %v1191
    %v1387 = vpop.permute.xlu0 %1386
    %1390 = vset.pattern.permute.xlu0 0
    %1391 = vperm.xlu0 %1390, %v1192
    %v1392 = vpop.permute.xlu0 %1391
    %1395 = vset.pattern.permute.xlu0 0
    %1396 = vperm.xlu0 %1395, %v1193
    %v1397 = vpop.permute.xlu0 %1396
    %1400 = vset.pattern.permute.xlu0 0
    %1401 = vperm.xlu0 %1400, %v1194
    %v1402 = vpop.permute.xlu0 %1401
    %1405 = vset.pattern.permute.xlu0 0
    %1406 = vperm.xlu0 %1405, %v1195
    %v1407 = vpop.permute.xlu0 %1406
    %1410 = vset.pattern.permute.xlu0 0
    %1411 = vperm.xlu0 %1410, %v1196
    %v1412 = vpop.permute.xlu0 %1411
    %1415 = vset.pattern.permute.xlu0 0
    %1416 = vperm.xlu0 %1415, %v1197
    %v1417 = vpop.permute.xlu0 %1416
    %1420 = vset.pattern.permute.xlu0 0
    %1421 = vperm.xlu0 %1420, %v1198
    %v1422 = vpop.permute.xlu0 %1421
    %1425 = vset.pattern.permute.xlu0 0
    %1426 = vperm.xlu0 %1425, %v1199
    %v1427 = vpop.permute.xlu0 %1426
    %1430 = vset.pattern.permute.xlu0 0
    %1431 = vperm.xlu0 %1430, %v1200
    %v1432 = vpop.permute.xlu0 %1431
    %1435 = vset.pattern.permute.xlu0 0
    %1436 = vperm.xlu0 %1435, %v1201
    %v1437 = vpop.permute.xlu0 %1436
    %1440 = vset.pattern.permute.xlu0 0
    %1441 = vperm.xlu0 %1440, %v1202
    %v1442 = vpop.permute.xlu0 %1441
    %1445 = vset.pattern.permute.xlu0 0
    %1446 = vperm.xlu0 %1445, %v1203
    %v1447 = vpop.permute.xlu0 %1446
    %1450 = vset.pattern.permute.xlu0 0
    %1451 = vperm.xlu0 %1450, %v1204
    %v1452 = vpop.permute.xlu0 %1451
    %1455 = vset.pattern.permute.xlu0 0
    %1456 = vperm.xlu0 %1455, %v1205
    %v1457 = vpop.permute.xlu0 %1456
    %1460 = vset.pattern.permute.xlu0 0
    %1461 = vperm.xlu0 %1460, %v1206
    %v1462 = vpop.permute.xlu0 %1461
    %1465 = vset.pattern.permute.xlu0 0
    %1466 = vperm.xlu0 %1465, %v1207
    %v1467 = vpop.permute.xlu0 %1466
    %1470 = vset.pattern.permute.xlu0 0
    %1471 = vperm.xlu0 %1470, %v1208
    %v1472 = vpop.permute.xlu0 %1471
    %1475 = vset.pattern.permute.xlu0 0
    %1476 = vperm.xlu0 %1475, %v1209
    %v1477 = vpop.permute.xlu0 %1476
    %1480 = vset.pattern.permute.xlu0 0
    %1481 = vperm.xlu0 %1480, %v1210
    %v1482 = vpop.permute.xlu0 %1481
    %1485 = vset.pattern.permute.xlu0 0
    %1486 = vperm.xlu0 %1485, %v1211
    %v1487 = vpop.permute.xlu0 %1486
    %1490 = vset.pattern.permute.xlu0 0
    %1491 = vperm.xlu0 %1490, %v1212
    %v1492 = vpop.permute.xlu0 %1491
    %1495 = vset.pattern.permute.xlu0 0
    %1496 = vperm.xlu0 %1495, %v1213
    %v1497 = vpop.permute.xlu0 %1496
    %1500 = vset.pattern.permute.xlu0 0
    %1501 = vperm.xlu0 %1500, %v1214
    %v1502 = vpop.permute.xlu0 %1501
    %1505 = vset.pattern.permute.xlu0 0
    %1506 = vperm.xlu0 %1505, %v1215
    %v1507 = vpop.permute.xlu0 %1506
    %1510 = vset.pattern.permute.xlu0 0
    %1511 = vperm.xlu0 %1510, %v1216
    %v1512 = vpop.permute.xlu0 %1511
    %1515 = vset.pattern.permute.xlu0 0
    %1516 = vperm.xlu0 %1515, %v1217
    %v1517 = vpop.permute.xlu0 %1516
    %1520 = vset.pattern.permute.xlu0 0
    %1521 = vperm.xlu0 %1520, %v1218
    %v1522 = vpop.permute.xlu0 %1521
    %1525 = vset.pattern.permute.xlu0 0
    %1526 = vperm.xlu0 %1525, %v1219
    %v1527 = vpop.permute.xlu0 %1526
    %1530 = vset.pattern.permute.xlu0 0
    %1531 = vperm.xlu0 %1530, %v1220
    %v1532 = vpop.permute.xlu0 %1531
    %1535 = vset.pattern.permute.xlu0 0
    %1536 = vperm.xlu0 %1535, %v1221
    %v1537 = vpop.permute.xlu0 %1536
    %1540 = vset.pattern.permute.xlu0 0
    %1541 = vperm.xlu0 %1540, %v1222
    %v1542 = vpop.permute.xlu0 %1541
    %1545 = vset.pattern.permute.xlu0 0
    %1546 = vperm.xlu0 %1545, %v1223
    %v1547 = vpop.permute.xlu0 %1546
    %1550 = vset.pattern.permute.xlu0 0
    %1551 = vperm.xlu0 %1550, %v1224
    %v1552 = vpop.permute.xlu0 %1551
    %1555 = vset.pattern.permute.xlu0 0
    %1556 = vperm.xlu0 %1555, %v1225
    %v1557 = vpop.permute.xlu0 %1556
    %1560 = vset.pattern.permute.xlu0 0
    %1561 = vperm.xlu0 %1560, %v1226
    %v1562 = vpop.permute.xlu0 %1561
    %1565 = vset.pattern.permute.xlu0 0
    %1566 = vperm.xlu0 %1565, %v1227
    %v1567 = vpop.permute.xlu0 %1566
    %1570 = vset.pattern.permute.xlu0 0
    %1571 = vperm.xlu0 %1570, %v1228
    %v1572 = vpop.permute.xlu0 %1571
    %1575 = vset.pattern.permute.xlu0 0
    %1576 = vperm.xlu0 %1575, %v1229
    %v1577 = vpop.permute.xlu0 %1576
    %1580 = vset.pattern.permute.xlu0 0
    %1581 = vperm.xlu0 %1580, %v1230
    %v1582 = vpop.permute.xlu0 %1581
    %1585 = vset.pattern.permute.xlu0 0
    %1586 = vperm.xlu0 %1585, %v1231
    %v1587 = vpop.permute.xlu0 %1586
    %1590 = vset.pattern.permute.xlu0 0
    %1591 = vperm.xlu0 %1590, %v1232
    %v1592 = vpop.permute.xlu0 %1591
    %1595 = vset.pattern.permute.xlu0 0
    %1596 = vperm.xlu0 %1595, %v1233
    %v1597 = vpop.permute.xlu0 %1596
    %1600 = vset.pattern.permute.xlu0 0
    %1601 = vperm.xlu0 %1600, %v1234
    %v1602 = vpop.permute.xlu0 %1601
    %1605 = vset.pattern.permute.xlu0 0
    %1606 = vperm.xlu0 %1605, %v1235
    %v1607 = vpop.permute.xlu0 %1606
    %1610 = vset.pattern.permute.xlu0 0
    %1611 = vperm.xlu0 %1610, %v1236
    %v1612 = vpop.permute.xlu0 %1611
    %1615 = vset.pattern.permute.xlu0 0
    %1616 = vperm.xlu0 %1615, %v1237
    %v1617 = vpop.permute.xlu0 %1616
    %1620 = vset.pattern.permute.xlu0 0
    %1621 = vperm.xlu0 %1620, %v1238
    %v1622 = vpop.permute.xlu0 %1621
    %1625 = vset.pattern.permute.xlu0 0
    %1626 = vperm.xlu0 %1625, %v1239
    %v1627 = vpop.permute.xlu0 %1626
    %1630 = vset.pattern.permute.xlu0 0
    %1631 = vperm.xlu0 %1630, %v1240
    %v1632 = vpop.permute.xlu0 %1631
    %1635 = vset.pattern.permute.xlu0 0
    %1636 = vperm.xlu0 %1635, %v1241
    %v1637 = vpop.permute.xlu0 %1636
    %1640 = vset.pattern.permute.xlu0 0
    %1641 = vperm.xlu0 %1640, %v1242
    %v1642 = vpop.permute.xlu0 %1641
    %1645 = vset.pattern.permute.xlu0 0
    %1646 = vperm.xlu0 %1645, %v1243
    %v1647 = vpop.permute.xlu0 %1646
    %v1649 = vmul.f32 %v1076, %v1247
    %v1650 = vmul.f32 %v1077, %v1252
    %v1651 = vmul.f32 %v1078, %v1257
    %v1652 = vmul.f32 %v1079, %v1262
    %v1653 = vmul.f32 %v1080, %v1267
    %v1654 = vmul.f32 %v1081, %v1272
    %v1655 = vmul.f32 %v1082, %v1277
    %v1656 = vmul.f32 %v1083, %v1282
    %v1657 = vmul.f32 %v1084, %v1287
    %v1658 = vmul.f32 %v1085, %v1292
    %v1659 = vmul.f32 %v1086, %v1297
    %v1660 = vmul.f32 %v1087, %v1302
    %v1661 = vmul.f32 %v1088, %v1307
    %v1662 = vmul.f32 %v1089, %v1312
    %v1663 = vmul.f32 %v1090, %v1317
    %v1664 = vmul.f32 %v1091, %v1322
    %v1665 = vmul.f32 %v1092, %v1327
    %v1666 = vmul.f32 %v1093, %v1332
    %v1667 = vmul.f32 %v1094, %v1337
    %v1668 = vmul.f32 %v1095, %v1342
    %v1669 = vmul.f32 %v1096, %v1347
    %v1670 = vmul.f32 %v1097, %v1352
    %v1671 = vmul.f32 %v1098, %v1357
    %v1672 = vmul.f32 %v1099, %v1362
    %v1673 = vmul.f32 %v1100, %v1367
    %v1674 = vmul.f32 %v1101, %v1372
    %v1675 = vmul.f32 %v1102, %v1377
    %v1676 = vmul.f32 %v1103, %v1382
    %v1677 = vmul.f32 %v1104, %v1387
    %v1678 = vmul.f32 %v1105, %v1392
    %v1679 = vmul.f32 %v1106, %v1397
    %v1680 = vmul.f32 %v1107, %v1402
    %v1681 = vmul.f32 %v1108, %v1407
    %v1682 = vmul.f32 %v1109, %v1412
    %v1683 = vmul.f32 %v1110, %v1417
    %v1684 = vmul.f32 %v1111, %v1422
    %v1685 = vmul.f32 %v1112, %v1427
    %v1686 = vmul.f32 %v1113, %v1432
    %v1687 = vmul.f32 %v1114, %v1437
    %v1688 = vmul.f32 %v1115, %v1442
    %v1689 = vmul.f32 %v1116, %v1447
    %v1690 = vmul.f32 %v1117, %v1452
    %v1691 = vmul.f32 %v1118, %v1457
    %v1692 = vmul.f32 %v1119, %v1462
    %v1693 = vmul.f32 %v1120, %v1467
    %v1694 = vmul.f32 %v1121, %v1472
    %v1695 = vmul.f32 %v1122, %v1477
    %v1696 = vmul.f32 %v1123, %v1482
    %v1697 = vmul.f32 %v1124, %v1487
    %v1698 = vmul.f32 %v1125, %v1492
    %v1699 = vmul.f32 %v1126, %v1497
    %v1700 = vmul.f32 %v1127, %v1502
    %v1701 = vmul.f32 %v1128, %v1507
    %v1702 = vmul.f32 %v1129, %v1512
    %v1703 = vmul.f32 %v1130, %v1517
    %v1704 = vmul.f32 %v1131, %v1522
    %v1705 = vmul.f32 %v1132, %v1527
    %v1706 = vmul.f32 %v1133, %v1532
    %v1707 = vmul.f32 %v1134, %v1537
    %v1708 = vmul.f32 %v1135, %v1542
    %v1709 = vmul.f32 %v1136, %v1547
    %v1710 = vmul.f32 %v1137, %v1552
    %v1711 = vmul.f32 %v1138, %v1557
    %v1712 = vmul.f32 %v1139, %v1562
    %v1713 = vmul.f32 %v1140, %v1567
    %v1714 = vmul.f32 %v1141, %v1572
    %v1715 = vmul.f32 %v1142, %v1577
    %v1716 = vmul.f32 %v1143, %v1582
    %v1717 = vmul.f32 %v1144, %v1587
    %v1718 = vmul.f32 %v1145, %v1592
    %v1719 = vmul.f32 %v1146, %v1597
    %v1720 = vmul.f32 %v1147, %v1602
    %v1721 = vmul.f32 %v1148, %v1607
    %v1722 = vmul.f32 %v1149, %v1612
    %v1723 = vmul.f32 %v1150, %v1617
    %v1724 = vmul.f32 %v1151, %v1622
    %v1725 = vmul.f32 %v1152, %v1627
    %v1726 = vmul.f32 %v1153, %v1632
    %v1727 = vmul.f32 %v1154, %v1637
    %v1728 = vmul.f32 %v1155, %v1642
    %v1729 = vmul.f32 %v1156, %v1647
    %1730 = vst [vmem:[#allocation2 + $0x18] sm:$0xff] %v1649
    %1731 = vst [vmem:[#allocation2 + $0x20] sm:$0xff] %v1650
    %1732 = vst [vmem:[#allocation2 + $0x28] sm:$0xff] %v1651
    %1733 = vst [vmem:[#allocation2 + $0x30] sm:$0xff] %v1652
    %1734 = vst [vmem:[#allocation2 + $0x38] sm:$0xff] %v1653
    %1735 = vst [vmem:[#allocation2 + $0x40] sm:$0xff] %v1654
    %1736 = vst [vmem:[#allocation2 + $0x48] sm:$0xff] %v1655
    %1737 = vst [vmem:[#allocation2 + $0x50] sm:$0xff] %v1656
    %1738 = vst [vmem:[#allocation2 + $0x58] sm:$0xff] %v1657
    %1739 = vst [vmem:[#allocation2 + $0x60] sm:$0xff] %v1658
    %1740 = vst [vmem:[#allocation2 + $0x68] sm:$0xff] %v1659
    %1741 = vst [vmem:[#allocation2 + $0x70] sm:$0xff] %v1660
    %1742 = vst [vmem:[#allocation2 + $0x78] sm:$0xff] %v1661
    %1743 = vst [vmem:[#allocation2 + $0x80] sm:$0xff] %v1662
    %1744 = vst [vmem:[#allocation2 + $0x88] sm:$0xff] %v1663
    %1745 = vst [vmem:[#allocation2 + $0x90] sm:$0xff] %v1664
    %1746 = vst [vmem:[#allocation2 + $0x98] sm:$0xff] %v1665
    %1747 = vst [vmem:[#allocation2 + $0xa0] sm:$0xff] %v1666
    %1748 = vst [vmem:[#allocation2 + $0xa8] sm:$0xff] %v1667
    %1749 = vst [vmem:[#allocation2 + $0xb0] sm:$0xff] %v1668
    %1750 = vst [vmem:[#allocation2 + $0xb8] sm:$0xff] %v1669
    %1751 = vst [vmem:[#allocation2 + $0xc0] sm:$0xff] %v1670
    %1752 = vst [vmem:[#allocation2 + $0xc8] sm:$0xff] %v1671
    %1753 = vst [vmem:[#allocation2 + $0xd0] sm:$0xff] %v1672
    %1754 = vst [vmem:[#allocation2 + $0xd8] sm:$0xff] %v1673
    %1755 = vst [vmem:[#allocation2 + $0xe0] sm:$0xff] %v1674
    %1756 = vst [vmem:[#allocation2 + $0xe8] sm:$0xff] %v1675
    %1757 = vst [vmem:[#allocation2 + $0xf0] sm:$0xff] %v1676
    %1758 = vst [vmem:[#allocation2 + $0xf8] sm:$0xff] %v1677
    %1759 = vst [vmem:[#allocation2 + $0x100] sm:$0xff] %v1678
    %1760 = vst [vmem:[#allocation2 + $0x108] sm:$0xff] %v1679
    %1761 = vst [vmem:[#allocation2 + $0x110] sm:$0xff] %v1680
    %1762 = vst [vmem:[#allocation2 + $0x118] sm:$0xff] %v1681
    %1763 = vst [vmem:[#allocation2 + $0x120] sm:$0xff] %v1682
    %1764 = vst [vmem:[#allocation2 + $0x128] sm:$0xff] %v1683
    %1765 = vst [vmem:[#allocation2 + $0x130] sm:$0xff] %v1684
    %1766 = vst [vmem:[#allocation2 + $0x138] sm:$0xff] %v1685
    %1767 = vst [vmem:[#allocation2 + $0x140] sm:$0xff] %v1686
    %1768 = vst [vmem:[#allocation2 + $0x148] sm:$0xff] %v1687
    %1769 = vst [vmem:[#allocation2 + $0x150] sm:$0xff] %v1688
    %1770 = vst [vmem:[#allocation2 + $0x158] sm:$0xff] %v1689
    %1771 = vst [vmem:[#allocation2 + $0x160] sm:$0xff] %v1690
    %1772 = vst [vmem:[#allocation2 + $0x168] sm:$0xff] %v1691
    %1773 = vst [vmem:[#allocation2 + $0x170] sm:$0xff] %v1692
    %1774 = vst [vmem:[#allocation2 + $0x178] sm:$0xff] %v1693
    %1775 = vst [vmem:[#allocation2 + $0x180] sm:$0xff] %v1694
    %1776 = vst [vmem:[#allocation2 + $0x188] sm:$0xff] %v1695
    %1777 = vst [vmem:[#allocation2 + $0x190] sm:$0xff] %v1696
    %1778 = vst [vmem:[#allocation2 + $0x198] sm:$0xff] %v1697
    %1779 = vst [vmem:[#allocation2 + $0x1a0] sm:$0xff] %v1698
    %1780 = vst [vmem:[#allocation2 + $0x1a8] sm:$0xff] %v1699
    %1781 = vst [vmem:[#allocation2 + $0x1b0] sm:$0xff] %v1700
    %1782 = vst [vmem:[#allocation2 + $0x1b8] sm:$0xff] %v1701
    %1783 = vst [vmem:[#allocation2 + $0x1c0] sm:$0xff] %v1702
    %1784 = vst [vmem:[#allocation2 + $0x1c8] sm:$0xff] %v1703
    %1785 = vst [vmem:[#allocation2 + $0x1d0] sm:$0xff] %v1704
    %1786 = vst [vmem:[#allocation2 + $0x1d8] sm:$0xff] %v1705
    %1787 = vst [vmem:[#allocation2 + $0x1e0] sm:$0xff] %v1706
    %1788 = vst [vmem:[#allocation2 + $0x1e8] sm:$0xff] %v1707
    %1789 = vst [vmem:[#allocation2 + $0x1f0] sm:$0xff] %v1708
    %1790 = vst [vmem:[#allocation2 + $0x1f8] sm:$0xff] %v1709
    %1791 = vst [vmem:[#allocation2 + $0x200] sm:$0xff] %v1710
    %1792 = vst [vmem:[#allocation2 + $0x208] sm:$0xff] %v1711
    %1793 = vst [vmem:[#allocation2 + $0x210] sm:$0xff] %v1712
    %1794 = vst [vmem:[#allocation2 + $0x218] sm:$0xff] %v1713
    %1795 = vst [vmem:[#allocation2 + $0x220] sm:$0xff] %v1714
    %1796 = vst [vmem:[#allocation2 + $0x228] sm:$0xff] %v1715
    %1797 = vst [vmem:[#allocation2 + $0x230] sm:$0xff] %v1716
    %1798 = vst [vmem:[#allocation2 + $0x238] sm:$0xff] %v1717
    %1799 = vst [vmem:[#allocation2 + $0x240] sm:$0xff] %v1718
    %1800 = vst [vmem:[#allocation2 + $0x248] sm:$0xff] %v1719
    %1801 = vst [vmem:[#allocation2 + $0x250] sm:$0xff] %v1720
    %1802 = vst [vmem:[#allocation2 + $0x258] sm:$0xff] %v1721
    %1803 = vst [vmem:[#allocation2 + $0x260] sm:$0xff] %v1722
    %1804 = vst [vmem:[#allocation2 + $0x268] sm:$0xff] %v1723
    %1805 = vst [vmem:[#allocation2 + $0x270] sm:$0xff] %v1724
    %1806 = vst [vmem:[#allocation2 + $0x278] sm:$0xff] %v1725
    %1807 = vst [vmem:[#allocation2 + $0x280] sm:$0xff] %v1726
    %1808 = vst [vmem:[#allocation2 + $0x288] sm:$0xff] %v1727
    %1809 = vst [vmem:[#allocation2 + $0x290] sm:$0xff] %v1728
    %1810 = vst [vmem:[#allocation2 + $0x298] sm:$0xff] %v1729
    %v1811 = vld [vmem:[#allocation2 + $0x5] sm:$0xff]
    %v1812 = vld [vmem:[#allocation2 + $0xd] sm:$0xff]
    %v1813 = vld [vmem:[#allocation2 + $0x15] sm:$0xff]
    %v1814 = vld [vmem:[#allocation2 + $0x1d] sm:$0xff]
    %v1815 = vld [vmem:[#allocation2 + $0x25] sm:$0xff]
    %v1816 = vld [vmem:[#allocation2 + $0x2d] sm:$0xff]
    %v1817 = vld [vmem:[#allocation2 + $0x35] sm:$0xff]
    %v1818 = vld [vmem:[#allocation2 + $0x3d] sm:$0xff]
    %v1819 = vld [vmem:[#allocation2 + $0x45] sm:$0xff]
    %v1820 = vld [vmem:[#allocation2 + $0x4d] sm:$0xff]
    %v1821 = vld [vmem:[#allocation2 + $0x55] sm:$0xff]
    %v1822 = vld [vmem:[#allocation2 + $0x5d] sm:$0xff]
    %v1823 = vld [vmem:[#allocation2 + $0x65] sm:$0xff]
    %v1824 = vld [vmem:[#allocation2 + $0x6d] sm:$0xff]
    %v1825 = vld [vmem:[#allocation2 + $0x75] sm:$0xff]
    %v1826 = vld [vmem:[#allocation2 + $0x7d] sm:$0xff]
    %v1827 = vld [vmem:[#allocation2 + $0x85] sm:$0xff]
    %v1828 = vld [vmem:[#allocation2 + $0x8d] sm:$0xff]
    %v1829 = vld [vmem:[#allocation2 + $0x95] sm:$0xff]
    %v1830 = vld [vmem:[#allocation2 + $0x9d] sm:$0xff]
    %v1831 = vld [vmem:[#allocation2 + $0xa5] sm:$0xff]
    %v1832 = vld [vmem:[#allocation2 + $0xad] sm:$0xff]
    %v1833 = vld [vmem:[#allocation2 + $0xb5] sm:$0xff]
    %v1834 = vld [vmem:[#allocation2 + $0xbd] sm:$0xff]
    %v1835 = vld [vmem:[#allocation2 + $0xc5] sm:$0xff]
    %v1836 = vld [vmem:[#allocation2 + $0xcd] sm:$0xff]
    %v1837 = vld [vmem:[#allocation2 + $0xd5] sm:$0xff]
    %v1838 = vld [vmem:[#allocation2 + $0xdd] sm:$0xff]
    %v1839 = vld [vmem:[#allocation2 + $0xe5] sm:$0xff]
    %v1840 = vld [vmem:[#allocation2 + $0xed] sm:$0xff]
    %v1841 = vld [vmem:[#allocation2 + $0xf5] sm:$0xff]
    %v1842 = vld [vmem:[#allocation2 + $0xfd] sm:$0xff]
    %v1843 = vld [vmem:[#allocation2 + $0x105] sm:$0xff]
    %v1844 = vld [vmem:[#allocation2 + $0x10d] sm:$0xff]
    %v1845 = vld [vmem:[#allocation2 + $0x115] sm:$0xff]
    %v1846 = vld [vmem:[#allocation2 + $0x11d] sm:$0xff]
    %v1847 = vld [vmem:[#allocation2 + $0x125] sm:$0xff]
    %v1848 = vld [vmem:[#allocation2 + $0x12d] sm:$0xff]
    %v1849 = vld [vmem:[#allocation2 + $0x135] sm:$0xff]
    %v1850 = vld [vmem:[#allocation2 + $0x13d] sm:$0xff]
    %v1851 = vld [vmem:[#allocation2 + $0x145] sm:$0xff]
    %v1852 = vld [vmem:[#allocation2 + $0x14d] sm:$0xff]
    %v1853 = vld [vmem:[#allocation2 + $0x155] sm:$0xff]
    %v1854 = vld [vmem:[#allocation2 + $0x15d] sm:$0xff]
    %v1855 = vld [vmem:[#allocation2 + $0x165] sm:$0xff]
    %v1856 = vld [vmem:[#allocation2 + $0x16d] sm:$0xff]
    %v1857 = vld [vmem:[#allocation2 + $0x175] sm:$0xff]
    %v1858 = vld [vmem:[#allocation2 + $0x17d] sm:$0xff]
    %v1859 = vld [vmem:[#allocation2 + $0x185] sm:$0xff]
    %v1860 = vld [vmem:[#allocation2 + $0x18d] sm:$0xff]
    %v1861 = vld [vmem:[#allocation2 + $0x195] sm:$0xff]
    %v1862 = vld [vmem:[#allocation2 + $0x19d] sm:$0xff]
    %v1863 = vld [vmem:[#allocation2 + $0x1a5] sm:$0xff]
    %v1864 = vld [vmem:[#allocation2 + $0x1ad] sm:$0xff]
    %v1865 = vld [vmem:[#allocation2 + $0x1b5] sm:$0xff]
    %v1866 = vld [vmem:[#allocation2 + $0x1bd] sm:$0xff]
    %v1867 = vld [vmem:[#allocation2 + $0x1c5] sm:$0xff]
    %v1868 = vld [vmem:[#allocation2 + $0x1cd] sm:$0xff]
    %v1869 = vld [vmem:[#allocation2 + $0x1d5] sm:$0xff]
    %v1870 = vld [vmem:[#allocation2 + $0x1dd] sm:$0xff]
    %v1871 = vld [vmem:[#allocation2 + $0x1e5] sm:$0xff]
    %v1872 = vld [vmem:[#allocation2 + $0x1ed] sm:$0xff]
    %v1873 = vld [vmem:[#allocation2 + $0x1f5] sm:$0xff]
    %v1874 = vld [vmem:[#allocation2 + $0x1fd] sm:$0xff]
    %v1875 = vld [vmem:[#allocation2 + $0x205] sm:$0xff]
    %v1876 = vld [vmem:[#allocation2 + $0x20d] sm:$0xff]
    %v1877 = vld [vmem:[#allocation2 + $0x215] sm:$0xff]
    %v1878 = vld [vmem:[#allocation2 + $0x21d] sm:$0xff]
    %v1879 = vld [vmem:[#allocation2 + $0x225] sm:$0xff]
    %v1880 = vld [vmem:[#allocation2 + $0x22d] sm:$0xff]
    %v1881 = vld [vmem:[#allocation2 + $0x235] sm:$0xff]
    %v1882 = vld [vmem:[#allocation2 + $0x23d] sm:$0xff]
    %v1883 = vld [vmem:[#allocation2 + $0x245] sm:$0xff]
    %v1884 = vld [vmem:[#allocation2 + $0x24d] sm:$0xff]
    %v1885 = vld [vmem:[#allocation2 + $0x255] sm:$0xff]
    %v1886 = vld [vmem:[#allocation2 + $0x25d] sm:$0xff]
    %v1887 = vld [vmem:[#allocation2 + $0x265] sm:$0xff]
    %v1888 = vld [vmem:[#allocation2 + $0x26d] sm:$0xff]
    %v1889 = vld [vmem:[#allocation2 + $0x275] sm:$0xff]
    %v1890 = vld [vmem:[#allocation2 + $0x27d] sm:$0xff]
    %v1891 = vld [vmem:[#allocation2 + $0x285] sm:$0xff]
    %v1892 = vld [vmem:[#allocation9] sm:$0xff]
    %v1893 = vld [vmem:[#allocation9 + $0x8] sm:$0xff]
    %v1894 = vld [vmem:[#allocation9 + $0x10] sm:$0xff]
    %v1895 = vld [vmem:[#allocation9 + $0x18] sm:$0xff]
    %v1896 = vld [vmem:[#allocation9 + $0x20] sm:$0xff]
    %v1897 = vld [vmem:[#allocation9 + $0x28] sm:$0xff]
    %v1898 = vld [vmem:[#allocation9 + $0x30] sm:$0xff]
    %v1899 = vld [vmem:[#allocation9 + $0x38] sm:$0xff]
    %v1900 = vld [vmem:[#allocation9 + $0x40] sm:$0xff]
    %v1901 = vld [vmem:[#allocation9 + $0x48] sm:$0xff]
    %v1902 = vld [vmem:[#allocation9 + $0x50] sm:$0xff]
    %v1903 = vld [vmem:[#allocation9 + $0x58] sm:$0xff]
    %v1904 = vld [vmem:[#allocation9 + $0x60] sm:$0xff]
    %v1905 = vld [vmem:[#allocation9 + $0x68] sm:$0xff]
    %v1906 = vld [vmem:[#allocation9 + $0x70] sm:$0xff]
    %v1907 = vld [vmem:[#allocation9 + $0x78] sm:$0xff]
    %v1908 = vld [vmem:[#allocation2 + $0x6] sm:$0xff]
    %v1909 = vld [vmem:[#allocation2 + $0xe] sm:$0xff]
    %v1910 = vld [vmem:[#allocation2 + $0x16] sm:$0xff]
    %v1911 = vld [vmem:[#allocation2 + $0x1e] sm:$0xff]
    %v1912 = vld [vmem:[#allocation2 + $0x26] sm:$0xff]
    %v1913 = vld [vmem:[#allocation2 + $0x2e] sm:$0xff]
    %v1914 = vld [vmem:[#allocation2 + $0x36] sm:$0xff]
    %v1915 = vld [vmem:[#allocation2 + $0x3e] sm:$0xff]
    %v1916 = vld [vmem:[#allocation2 + $0x46] sm:$0xff]
    %v1917 = vld [vmem:[#allocation2 + $0x4e] sm:$0xff]
    %v1918 = vld [vmem:[#allocation2 + $0x56] sm:$0xff]
    %v1919 = vld [vmem:[#allocation2 + $0x5e] sm:$0xff]
    %v1920 = vld [vmem:[#allocation2 + $0x66] sm:$0xff]
    %v1921 = vld [vmem:[#allocation2 + $0x6e] sm:$0xff]
    %v1922 = vld [vmem:[#allocation2 + $0x76] sm:$0xff]
    %v1923 = vld [vmem:[#allocation2 + $0x7e] sm:$0xff]
    %v1924 = vld [vmem:[#allocation2 + $0x86] sm:$0xff]
    %v1925 = vld [vmem:[#allocation2 + $0x8e] sm:$0xff]
    %v1926 = vld [vmem:[#allocation2 + $0x96] sm:$0xff]
    %v1927 = vld [vmem:[#allocation2 + $0x9e] sm:$0xff]
    %v1928 = vld [vmem:[#allocation2 + $0xa6] sm:$0xff]
    %v1929 = vld [vmem:[#allocation2 + $0xae] sm:$0xff]
    %v1930 = vld [vmem:[#allocation2 + $0xb6] sm:$0xff]
    %v1931 = vld [vmem:[#allocation2 + $0xbe] sm:$0xff]
    %v1932 = vld [vmem:[#allocation2 + $0xc6] sm:$0xff]
    %v1933 = vld [vmem:[#allocation2 + $0xce] sm:$0xff]
    %v1934 = vld [vmem:[#allocation2 + $0xd6] sm:$0xff]
    %v1935 = vld [vmem:[#allocation2 + $0xde] sm:$0xff]
    %v1936 = vld [vmem:[#allocation2 + $0xe6] sm:$0xff]
    %v1937 = vld [vmem:[#allocation2 + $0xee] sm:$0xff]
    %v1938 = vld [vmem:[#allocation2 + $0xf6] sm:$0xff]
    %v1939 = vld [vmem:[#allocation2 + $0xfe] sm:$0xff]
    %v1940 = vld [vmem:[#allocation2 + $0x106] sm:$0xff]
    %v1941 = vld [vmem:[#allocation2 + $0x10e] sm:$0xff]
    %v1942 = vld [vmem:[#allocation2 + $0x116] sm:$0xff]
    %v1943 = vld [vmem:[#allocation2 + $0x11e] sm:$0xff]
    %v1944 = vld [vmem:[#allocation2 + $0x126] sm:$0xff]
    %v1945 = vld [vmem:[#allocation2 + $0x12e] sm:$0xff]
    %v1946 = vld [vmem:[#allocation2 + $0x136] sm:$0xff]
    %v1947 = vld [vmem:[#allocation2 + $0x13e] sm:$0xff]
    %v1948 = vld [vmem:[#allocation2 + $0x146] sm:$0xff]
    %v1949 = vld [vmem:[#allocation2 + $0x14e] sm:$0xff]
    %v1950 = vld [vmem:[#allocation2 + $0x156] sm:$0xff]
    %v1951 = vld [vmem:[#allocation2 + $0x15e] sm:$0xff]
    %v1952 = vld [vmem:[#allocation2 + $0x166] sm:$0xff]
    %v1953 = vld [vmem:[#allocation2 + $0x16e] sm:$0xff]
    %v1954 = vld [vmem:[#allocation2 + $0x176] sm:$0xff]
    %v1955 = vld [vmem:[#allocation2 + $0x17e] sm:$0xff]
    %v1956 = vld [vmem:[#allocation2 + $0x186] sm:$0xff]
    %v1957 = vld [vmem:[#allocation2 + $0x18e] sm:$0xff]
    %v1958 = vld [vmem:[#allocation2 + $0x196] sm:$0xff]
    %v1959 = vld [vmem:[#allocation2 + $0x19e] sm:$0xff]
    %v1960 = vld [vmem:[#allocation2 + $0x1a6] sm:$0xff]
    %v1961 = vld [vmem:[#allocation2 + $0x1ae] sm:$0xff]
    %v1962 = vld [vmem:[#allocation2 + $0x1b6] sm:$0xff]
    %v1963 = vld [vmem:[#allocation2 + $0x1be] sm:$0xff]
    %v1964 = vld [vmem:[#allocation2 + $0x1c6] sm:$0xff]
    %v1965 = vld [vmem:[#allocation2 + $0x1ce] sm:$0xff]
    %v1966 = vld [vmem:[#allocation2 + $0x1d6] sm:$0xff]
    %v1967 = vld [vmem:[#allocation2 + $0x1de] sm:$0xff]
    %v1968 = vld [vmem:[#allocation2 + $0x1e6] sm:$0xff]
    %v1969 = vld [vmem:[#allocation2 + $0x1ee] sm:$0xff]
    %v1970 = vld [vmem:[#allocation2 + $0x1f6] sm:$0xff]
    %v1971 = vld [vmem:[#allocation2 + $0x1fe] sm:$0xff]
    %v1972 = vld [vmem:[#allocation2 + $0x206] sm:$0xff]
    %v1973 = vld [vmem:[#allocation2 + $0x20e] sm:$0xff]
    %v1974 = vld [vmem:[#allocation2 + $0x216] sm:$0xff]
    %v1975 = vld [vmem:[#allocation2 + $0x21e] sm:$0xff]
    %v1976 = vld [vmem:[#allocation2 + $0x226] sm:$0xff]
    %v1977 = vld [vmem:[#allocation2 + $0x22e] sm:$0xff]
    %v1978 = vld [vmem:[#allocation2 + $0x236] sm:$0xff]
    %v1979 = vld [vmem:[#allocation2 + $0x23e] sm:$0xff]
    %v1980 = vld [vmem:[#allocation2 + $0x246] sm:$0xff]
    %v1981 = vld [vmem:[#allocation2 + $0x24e] sm:$0xff]
    %v1982 = vld [vmem:[#allocation2 + $0x256] sm:$0xff]
    %v1983 = vld [vmem:[#allocation2 + $0x25e] sm:$0xff]
    %v1984 = vld [vmem:[#allocation2 + $0x266] sm:$0xff]
    %v1985 = vld [vmem:[#allocation2 + $0x26e] sm:$0xff]
    %v1986 = vld [vmem:[#allocation2 + $0x276] sm:$0xff]
    %v1987 = vld [vmem:[#allocation2 + $0x27e] sm:$0xff]
    %v1988 = vld [vmem:[#allocation2 + $0x286] sm:$0xff]
    %s1989 = scalar_lea.vmem [#allocation9], 128
    %v1990 = vld [vmem:[%s1989] sm:$0xff]
    %v1991 = vld [vmem:[%s1989 + $0x8] sm:$0xff]
    %v1992 = vld [vmem:[%s1989 + $0x10] sm:$0xff]
    %v1993 = vld [vmem:[%s1989 + $0x18] sm:$0xff]
    %v1994 = vld [vmem:[%s1989 + $0x20] sm:$0xff]
    %v1995 = vld [vmem:[%s1989 + $0x28] sm:$0xff]
    %v1996 = vld [vmem:[%s1989 + $0x30] sm:$0xff]
    %v1997 = vld [vmem:[%s1989 + $0x38] sm:$0xff]
    %v1998 = vld [vmem:[%s1989 + $0x40] sm:$0xff]
    %v1999 = vld [vmem:[%s1989 + $0x48] sm:$0xff]
    %v2000 = vld [vmem:[%s1989 + $0x50] sm:$0xff]
    %v2001 = vld [vmem:[%s1989 + $0x58] sm:$0xff]
    %v2002 = vld [vmem:[%s1989 + $0x60] sm:$0xff]
    %v2003 = vld [vmem:[%s1989 + $0x68] sm:$0xff]
    %v2004 = vld [vmem:[%s1989 + $0x70] sm:$0xff]
    %v2005 = vld [vmem:[%s1989 + $0x78] sm:$0xff]
    %2006 = vmatpush.msra.mxu0 %v2005
    %2007 = vmatpush.msra.mxu0 %v2004
    %2008 = vmatpush.msra.mxu0 %v2003
    %2009 = vmatpush.msra.mxu0 %v2002
    %2010 = vmatpush.msra.mxu0 %v2001
    %2011 = vmatpush.msra.mxu0 %v2000
    %2012 = vmatpush.msra.mxu0 %v1999
    %2013 = vmatpush.msra.mxu0 %v1998
    %2014 = vmatpush.msra.mxu0 %v1997
    %2015 = vmatpush.msra.mxu0 %v1996
    %2016 = vmatpush.msra.mxu0 %v1995
    %2017 = vmatpush.msra.mxu0 %v1994
    %2018 = vmatpush.msra.mxu0 %v1993
    %2019 = vmatpush.msra.mxu0 %v1992
    %2020 = vmatpush.msra.mxu0 %v1991
    %2021 = vmatpush.msra.mxu0 %v1990
    %2022 = vmatmul.f32.gmra.mxu0 %v1908
    %v2023 = vpop.f32.mrf.mxu0
    %v2024 = vadd.f32 0.0, %v2023
    %2025 = vmatmul.f32.gmra.mxu0 %v1909
    %v2026 = vpop.f32.mrf.mxu0
    %v2027 = vadd.f32 0.0, %v2026
    %2028 = vmatmul.f32.gmra.mxu0 %v1910
    %v2029 = vpop.f32.mrf.mxu0
    %v2030 = vadd.f32 0.0, %v2029
    %2031 = vmatmul.f32.gmra.mxu0 %v1911
    %v2032 = vpop.f32.mrf.mxu0
    %v2033 = vadd.f32 0.0, %v2032
    %2034 = vmatmul.f32.gmra.mxu0 %v1912
    %v2035 = vpop.f32.mrf.mxu0
    %v2036 = vadd.f32 0.0, %v2035
    %2037 = vmatmul.f32.gmra.mxu0 %v1913
    %v2038 = vpop.f32.mrf.mxu0
    %v2039 = vadd.f32 0.0, %v2038
    %2040 = vmatmul.f32.gmra.mxu0 %v1914
    %v2041 = vpop.f32.mrf.mxu0
    %v2042 = vadd.f32 0.0, %v2041
    %2043 = vmatmul.f32.gmra.mxu0 %v1915
    %v2044 = vpop.f32.mrf.mxu0
    %v2045 = vadd.f32 0.0, %v2044
    %2046 = vmatmul.f32.gmra.mxu0 %v1916
    %v2047 = vpop.f32.mrf.mxu0
    %v2048 = vadd.f32 0.0, %v2047
    %2049 = vmatmul.f32.gmra.mxu0 %v1917
    %v2050 = vpop.f32.mrf.mxu0
    %v2051 = vadd.f32 0.0, %v2050
    %2052 = vmatmul.f32.gmra.mxu0 %v1918
    %v2053 = vpop.f32.mrf.mxu0
    %v2054 = vadd.f32 0.0, %v2053
    %2055 = vmatmul.f32.gmra.mxu0 %v1919
    %v2056 = vpop.f32.mrf.mxu0
    %v2057 = vadd.f32 0.0, %v2056
    %2058 = vmatmul.f32.gmra.mxu0 %v1920
    %v2059 = vpop.f32.mrf.mxu0
    %v2060 = vadd.f32 0.0, %v2059
    %2061 = vmatmul.f32.gmra.mxu0 %v1921
    %v2062 = vpop.f32.mrf.mxu0
    %v2063 = vadd.f32 0.0, %v2062
    %2064 = vmatmul.f32.gmra.mxu0 %v1922
    %v2065 = vpop.f32.mrf.mxu0
    %v2066 = vadd.f32 0.0, %v2065
    %2067 = vmatmul.f32.gmra.mxu0 %v1923
    %v2068 = vpop.f32.mrf.mxu0
    %v2069 = vadd.f32 0.0, %v2068
    %2070 = vmatmul.f32.gmra.mxu0 %v1924
    %v2071 = vpop.f32.mrf.mxu0
    %v2072 = vadd.f32 0.0, %v2071
    %2073 = vmatmul.f32.gmra.mxu0 %v1925
    %v2074 = vpop.f32.mrf.mxu0
    %v2075 = vadd.f32 0.0, %v2074
    %2076 = vmatmul.f32.gmra.mxu0 %v1926
    %v2077 = vpop.f32.mrf.mxu0
    %v2078 = vadd.f32 0.0, %v2077
    %2079 = vmatmul.f32.gmra.mxu0 %v1927
    %v2080 = vpop.f32.mrf.mxu0
    %v2081 = vadd.f32 0.0, %v2080
    %2082 = vmatmul.f32.gmra.mxu0 %v1928
    %v2083 = vpop.f32.mrf.mxu0
    %v2084 = vadd.f32 0.0, %v2083
    %2085 = vmatmul.f32.gmra.mxu0 %v1929
    %v2086 = vpop.f32.mrf.mxu0
    %v2087 = vadd.f32 0.0, %v2086
    %2088 = vmatmul.f32.gmra.mxu0 %v1930
    %v2089 = vpop.f32.mrf.mxu0
    %v2090 = vadd.f32 0.0, %v2089
    %2091 = vmatmul.f32.gmra.mxu0 %v1931
    %v2092 = vpop.f32.mrf.mxu0
    %v2093 = vadd.f32 0.0, %v2092
    %2094 = vmatmul.f32.gmra.mxu0 %v1932
    %v2095 = vpop.f32.mrf.mxu0
    %v2096 = vadd.f32 0.0, %v2095
    %2097 = vmatmul.f32.gmra.mxu0 %v1933
    %v2098 = vpop.f32.mrf.mxu0
    %v2099 = vadd.f32 0.0, %v2098
    %2100 = vmatmul.f32.gmra.mxu0 %v1934
    %v2101 = vpop.f32.mrf.mxu0
    %v2102 = vadd.f32 0.0, %v2101
    %2103 = vmatmul.f32.gmra.mxu0 %v1935
    %v2104 = vpop.f32.mrf.mxu0
    %v2105 = vadd.f32 0.0, %v2104
    %2106 = vmatmul.f32.gmra.mxu0 %v1936
    %v2107 = vpop.f32.mrf.mxu0
    %v2108 = vadd.f32 0.0, %v2107
    %2109 = vmatmul.f32.gmra.mxu0 %v1937
    %v2110 = vpop.f32.mrf.mxu0
    %v2111 = vadd.f32 0.0, %v2110
    %2112 = vmatmul.f32.gmra.mxu0 %v1938
    %v2113 = vpop.f32.mrf.mxu0
    %v2114 = vadd.f32 0.0, %v2113
    %2115 = vmatmul.f32.gmra.mxu0 %v1939
    %v2116 = vpop.f32.mrf.mxu0
    %v2117 = vadd.f32 0.0, %v2116
    %2118 = vmatmul.f32.gmra.mxu0 %v1940
    %v2119 = vpop.f32.mrf.mxu0
    %v2120 = vadd.f32 0.0, %v2119
    %2121 = vmatmul.f32.gmra.mxu0 %v1941
    %v2122 = vpop.f32.mrf.mxu0
    %v2123 = vadd.f32 0.0, %v2122
    %2124 = vmatmul.f32.gmra.mxu0 %v1942
    %v2125 = vpop.f32.mrf.mxu0
    %v2126 = vadd.f32 0.0, %v2125
    %2127 = vmatmul.f32.gmra.mxu0 %v1943
    %v2128 = vpop.f32.mrf.mxu0
    %v2129 = vadd.f32 0.0, %v2128
    %2130 = vmatmul.f32.gmra.mxu0 %v1944
    %v2131 = vpop.f32.mrf.mxu0
    %v2132 = vadd.f32 0.0, %v2131
    %2133 = vmatmul.f32.gmra.mxu0 %v1945
    %v2134 = vpop.f32.mrf.mxu0
    %v2135 = vadd.f32 0.0, %v2134
    %2136 = vmatmul.f32.gmra.mxu0 %v1946
    %v2137 = vpop.f32.mrf.mxu0
    %v2138 = vadd.f32 0.0, %v2137
    %2139 = vmatmul.f32.gmra.mxu0 %v1947
    %v2140 = vpop.f32.mrf.mxu0
    %v2141 = vadd.f32 0.0, %v2140
    %2142 = vmatmul.f32.gmra.mxu0 %v1948
    %v2143 = vpop.f32.mrf.mxu0
    %v2144 = vadd.f32 0.0, %v2143
    %2145 = vmatmul.f32.gmra.mxu0 %v1949
    %v2146 = vpop.f32.mrf.mxu0
    %v2147 = vadd.f32 0.0, %v2146
    %2148 = vmatmul.f32.gmra.mxu0 %v1950
    %v2149 = vpop.f32.mrf.mxu0
    %v2150 = vadd.f32 0.0, %v2149
    %2151 = vmatmul.f32.gmra.mxu0 %v1951
    %v2152 = vpop.f32.mrf.mxu0
    %v2153 = vadd.f32 0.0, %v2152
    %2154 = vmatmul.f32.gmra.mxu0 %v1952
    %v2155 = vpop.f32.mrf.mxu0
    %v2156 = vadd.f32 0.0, %v2155
    %2157 = vmatmul.f32.gmra.mxu0 %v1953
    %v2158 = vpop.f32.mrf.mxu0
    %v2159 = vadd.f32 0.0, %v2158
    %2160 = vmatmul.f32.gmra.mxu0 %v1954
    %v2161 = vpop.f32.mrf.mxu0
    %v2162 = vadd.f32 0.0, %v2161
    %2163 = vmatmul.f32.gmra.mxu0 %v1955
    %v2164 = vpop.f32.mrf.mxu0
    %v2165 = vadd.f32 0.0, %v2164
    %2166 = vmatmul.f32.gmra.mxu0 %v1956
    %v2167 = vpop.f32.mrf.mxu0
    %v2168 = vadd.f32 0.0, %v2167
    %2169 = vmatmul.f32.gmra.mxu0 %v1957
    %v2170 = vpop.f32.mrf.mxu0
    %v2171 = vadd.f32 0.0, %v2170
    %2172 = vmatmul.f32.gmra.mxu0 %v1958
    %v2173 = vpop.f32.mrf.mxu0
    %v2174 = vadd.f32 0.0, %v2173
    %2175 = vmatmul.f32.gmra.mxu0 %v1959
    %v2176 = vpop.f32.mrf.mxu0
    %v2177 = vadd.f32 0.0, %v2176
    %2178 = vmatmul.f32.gmra.mxu0 %v1960
    %v2179 = vpop.f32.mrf.mxu0
    %v2180 = vadd.f32 0.0, %v2179
    %2181 = vmatmul.f32.gmra.mxu0 %v1961
    %v2182 = vpop.f32.mrf.mxu0
    %v2183 = vadd.f32 0.0, %v2182
    %2184 = vmatmul.f32.gmra.mxu0 %v1962
    %v2185 = vpop.f32.mrf.mxu0
    %v2186 = vadd.f32 0.0, %v2185
    %2187 = vmatmul.f32.gmra.mxu0 %v1963
    %v2188 = vpop.f32.mrf.mxu0
    %v2189 = vadd.f32 0.0, %v2188
    %2190 = vmatmul.f32.gmra.mxu0 %v1964
    %v2191 = vpop.f32.mrf.mxu0
    %v2192 = vadd.f32 0.0, %v2191
    %2193 = vmatmul.f32.gmra.mxu0 %v1965
    %v2194 = vpop.f32.mrf.mxu0
    %v2195 = vadd.f32 0.0, %v2194
    %2196 = vmatmul.f32.gmra.mxu0 %v1966
    %v2197 = vpop.f32.mrf.mxu0
    %v2198 = vadd.f32 0.0, %v2197
    %2199 = vmatmul.f32.gmra.mxu0 %v1967
    %v2200 = vpop.f32.mrf.mxu0
    %v2201 = vadd.f32 0.0, %v2200
    %2202 = vmatmul.f32.gmra.mxu0 %v1968
    %v2203 = vpop.f32.mrf.mxu0
    %v2204 = vadd.f32 0.0, %v2203
    %2205 = vmatmul.f32.gmra.mxu0 %v1969
    %v2206 = vpop.f32.mrf.mxu0
    %v2207 = vadd.f32 0.0, %v2206
    %2208 = vmatmul.f32.gmra.mxu0 %v1970
    %v2209 = vpop.f32.mrf.mxu0
    %v2210 = vadd.f32 0.0, %v2209
    %2211 = vmatmul.f32.gmra.mxu0 %v1971
    %v2212 = vpop.f32.mrf.mxu0
    %v2213 = vadd.f32 0.0, %v2212
    %2214 = vmatmul.f32.gmra.mxu0 %v1972
    %v2215 = vpop.f32.mrf.mxu0
    %v2216 = vadd.f32 0.0, %v2215
    %2217 = vmatmul.f32.gmra.mxu0 %v1973
    %v2218 = vpop.f32.mrf.mxu0
    %v2219 = vadd.f32 0.0, %v2218
    %2220 = vmatmul.f32.gmra.mxu0 %v1974
    %v2221 = vpop.f32.mrf.mxu0
    %v2222 = vadd.f32 0.0, %v2221
    %2223 = vmatmul.f32.gmra.mxu0 %v1975
    %v2224 = vpop.f32.mrf.mxu0
    %v2225 = vadd.f32 0.0, %v2224
    %2226 = vmatmul.f32.gmra.mxu0 %v1976
    %v2227 = vpop.f32.mrf.mxu0
    %v2228 = vadd.f32 0.0, %v2227
    %2229 = vmatmul.f32.gmra.mxu0 %v1977
    %v2230 = vpop.f32.mrf.mxu0
    %v2231 = vadd.f32 0.0, %v2230
    %2232 = vmatmul.f32.gmra.mxu0 %v1978
    %v2233 = vpop.f32.mrf.mxu0
    %v2234 = vadd.f32 0.0, %v2233
    %2235 = vmatmul.f32.gmra.mxu0 %v1979
    %v2236 = vpop.f32.mrf.mxu0
    %v2237 = vadd.f32 0.0, %v2236
    %2238 = vmatmul.f32.gmra.mxu0 %v1980
    %v2239 = vpop.f32.mrf.mxu0
    %v2240 = vadd.f32 0.0, %v2239
    %2241 = vmatmul.f32.gmra.mxu0 %v1981
    %v2242 = vpop.f32.mrf.mxu0
    %v2243 = vadd.f32 0.0, %v2242
    %2244 = vmatmul.f32.gmra.mxu0 %v1982
    %v2245 = vpop.f32.mrf.mxu0
    %v2246 = vadd.f32 0.0, %v2245
    %2247 = vmatmul.f32.gmra.mxu0 %v1983
    %v2248 = vpop.f32.mrf.mxu0
    %v2249 = vadd.f32 0.0, %v2248
    %2250 = vmatmul.f32.gmra.mxu0 %v1984
    %v2251 = vpop.f32.mrf.mxu0
    %v2252 = vadd.f32 0.0, %v2251
    %2253 = vmatmul.f32.gmra.mxu0 %v1985
    %v2254 = vpop.f32.mrf.mxu0
    %v2255 = vadd.f32 0.0, %v2254
    %2256 = vmatmul.f32.gmra.mxu0 %v1986
    %v2257 = vpop.f32.mrf.mxu0
    %v2258 = vadd.f32 0.0, %v2257
    %2259 = vmatmul.f32.gmra.mxu0 %v1987
    %v2260 = vpop.f32.mrf.mxu0
    %v2261 = vadd.f32 0.0, %v2260
    %2262 = vmatmul.f32.gmra.mxu0 %v1988
    %v2263 = vpop.f32.mrf.mxu0
    %v2264 = vadd.f32 0.0, %v2263
    %2265 = vdwg.mxu0
    %2266 = vmatpush.msra.mxu0 %v1907
    %2267 = vmatpush.msra.mxu0 %v1906
    %2268 = vmatpush.msra.mxu0 %v1905
    %2269 = vmatpush.msra.mxu0 %v1904
    %2270 = vmatpush.msra.mxu0 %v1903
    %2271 = vmatpush.msra.mxu0 %v1902
    %2272 = vmatpush.msra.mxu0 %v1901
    %2273 = vmatpush.msra.mxu0 %v1900
    %2274 = vmatpush.msra.mxu0 %v1899
    %2275 = vmatpush.msra.mxu0 %v1898
    %2276 = vmatpush.msra.mxu0 %v1897
    %2277 = vmatpush.msra.mxu0 %v1896
    %2278 = vmatpush.msra.mxu0 %v1895
    %2279 = vmatpush.msra.mxu0 %v1894
    %2280 = vmatpush.msra.mxu0 %v1893
    %2281 = vmatpush.msra.mxu0 %v1892
    %2282 = vmatmul.f32.gmra.mxu0 %v1811
    %v2283 = vpop.f32.mrf.mxu0
    %v2284 = vadd.f32 %v2024, %v2283
    %2285 = vmatmul.f32.gmra.mxu0 %v1812
    %v2286 = vpop.f32.mrf.mxu0
    %v2287 = vadd.f32 %v2027, %v2286
    %2288 = vmatmul.f32.gmra.mxu0 %v1813
    %v2289 = vpop.f32.mrf.mxu0
    %v2290 = vadd.f32 %v2030, %v2289
    %2291 = vmatmul.f32.gmra.mxu0 %v1814
    %v2292 = vpop.f32.mrf.mxu0
    %v2293 = vadd.f32 %v2033, %v2292
    %2294 = vmatmul.f32.gmra.mxu0 %v1815
    %v2295 = vpop.f32.mrf.mxu0
    %v2296 = vadd.f32 %v2036, %v2295
    %2297 = vmatmul.f32.gmra.mxu0 %v1816
    %v2298 = vpop.f32.mrf.mxu0
    %v2299 = vadd.f32 %v2039, %v2298
    %2300 = vmatmul.f32.gmra.mxu0 %v1817
    %v2301 = vpop.f32.mrf.mxu0
    %v2302 = vadd.f32 %v2042, %v2301
    %2303 = vmatmul.f32.gmra.mxu0 %v1818
    %v2304 = vpop.f32.mrf.mxu0
    %v2305 = vadd.f32 %v2045, %v2304
    %2306 = vmatmul.f32.gmra.mxu0 %v1819
    %v2307 = vpop.f32.mrf.mxu0
    %v2308 = vadd.f32 %v2048, %v2307
    %2309 = vmatmul.f32.gmra.mxu0 %v1820
    %v2310 = vpop.f32.mrf.mxu0
    %v2311 = vadd.f32 %v2051, %v2310
    %2312 = vmatmul.f32.gmra.mxu0 %v1821
    %v2313 = vpop.f32.mrf.mxu0
    %v2314 = vadd.f32 %v2054, %v2313
    %2315 = vmatmul.f32.gmra.mxu0 %v1822
    %v2316 = vpop.f32.mrf.mxu0
    %v2317 = vadd.f32 %v2057, %v2316
    %2318 = vmatmul.f32.gmra.mxu0 %v1823
    %v2319 = vpop.f32.mrf.mxu0
    %v2320 = vadd.f32 %v2060, %v2319
    %2321 = vmatmul.f32.gmra.mxu0 %v1824
    %v2322 = vpop.f32.mrf.mxu0
    %v2323 = vadd.f32 %v2063, %v2322
    %2324 = vmatmul.f32.gmra.mxu0 %v1825
    %v2325 = vpop.f32.mrf.mxu0
    %v2326 = vadd.f32 %v2066, %v2325
    %2327 = vmatmul.f32.gmra.mxu0 %v1826
    %v2328 = vpop.f32.mrf.mxu0
    %v2329 = vadd.f32 %v2069, %v2328
    %2330 = vmatmul.f32.gmra.mxu0 %v1827
    %v2331 = vpop.f32.mrf.mxu0
    %v2332 = vadd.f32 %v2072, %v2331
    %2333 = vmatmul.f32.gmra.mxu0 %v1828
    %v2334 = vpop.f32.mrf.mxu0
    %v2335 = vadd.f32 %v2075, %v2334
    %2336 = vmatmul.f32.gmra.mxu0 %v1829
    %v2337 = vpop.f32.mrf.mxu0
    %v2338 = vadd.f32 %v2078, %v2337
    %2339 = vmatmul.f32.gmra.mxu0 %v1830
    %v2340 = vpop.f32.mrf.mxu0
    %v2341 = vadd.f32 %v2081, %v2340
    %2342 = vmatmul.f32.gmra.mxu0 %v1831
    %v2343 = vpop.f32.mrf.mxu0
    %v2344 = vadd.f32 %v2084, %v2343
    %2345 = vmatmul.f32.gmra.mxu0 %v1832
    %v2346 = vpop.f32.mrf.mxu0
    %v2347 = vadd.f32 %v2087, %v2346
    %2348 = vmatmul.f32.gmra.mxu0 %v1833
    %v2349 = vpop.f32.mrf.mxu0
    %v2350 = vadd.f32 %v2090, %v2349
    %2351 = vmatmul.f32.gmra.mxu0 %v1834
    %v2352 = vpop.f32.mrf.mxu0
    %v2353 = vadd.f32 %v2093, %v2352
    %2354 = vmatmul.f32.gmra.mxu0 %v1835
    %v2355 = vpop.f32.mrf.mxu0
    %v2356 = vadd.f32 %v2096, %v2355
    %2357 = vmatmul.f32.gmra.mxu0 %v1836
    %v2358 = vpop.f32.mrf.mxu0
    %v2359 = vadd.f32 %v2099, %v2358
    %2360 = vmatmul.f32.gmra.mxu0 %v1837
    %v2361 = vpop.f32.mrf.mxu0
    %v2362 = vadd.f32 %v2102, %v2361
    %2363 = vmatmul.f32.gmra.mxu0 %v1838
    %v2364 = vpop.f32.mrf.mxu0
    %v2365 = vadd.f32 %v2105, %v2364
    %2366 = vmatmul.f32.gmra.mxu0 %v1839
    %v2367 = vpop.f32.mrf.mxu0
    %v2368 = vadd.f32 %v2108, %v2367
    %2369 = vmatmul.f32.gmra.mxu0 %v1840
    %v2370 = vpop.f32.mrf.mxu0
    %v2371 = vadd.f32 %v2111, %v2370
    %2372 = vmatmul.f32.gmra.mxu0 %v1841
    %v2373 = vpop.f32.mrf.mxu0
    %v2374 = vadd.f32 %v2114, %v2373
    %2375 = vmatmul.f32.gmra.mxu0 %v1842
    %v2376 = vpop.f32.mrf.mxu0
    %v2377 = vadd.f32 %v2117, %v2376
    %2378 = vmatmul.f32.gmra.mxu0 %v1843
    %v2379 = vpop.f32.mrf.mxu0
    %v2380 = vadd.f32 %v2120, %v2379
    %2381 = vmatmul.f32.gmra.mxu0 %v1844
    %v2382 = vpop.f32.mrf.mxu0
    %v2383 = vadd.f32 %v2123, %v2382
    %2384 = vmatmul.f32.gmra.mxu0 %v1845
    %v2385 = vpop.f32.mrf.mxu0
    %v2386 = vadd.f32 %v2126, %v2385
    %2387 = vmatmul.f32.gmra.mxu0 %v1846
    %v2388 = vpop.f32.mrf.mxu0
    %v2389 = vadd.f32 %v2129, %v2388
    %2390 = vmatmul.f32.gmra.mxu0 %v1847
    %v2391 = vpop.f32.mrf.mxu0
    %v2392 = vadd.f32 %v2132, %v2391
    %2393 = vmatmul.f32.gmra.mxu0 %v1848
    %v2394 = vpop.f32.mrf.mxu0
    %v2395 = vadd.f32 %v2135, %v2394
    %2396 = vmatmul.f32.gmra.mxu0 %v1849
    %v2397 = vpop.f32.mrf.mxu0
    %v2398 = vadd.f32 %v2138, %v2397
    %2399 = vmatmul.f32.gmra.mxu0 %v1850
    %v2400 = vpop.f32.mrf.mxu0
    %v2401 = vadd.f32 %v2141, %v2400
    %2402 = vmatmul.f32.gmra.mxu0 %v1851
    %v2403 = vpop.f32.mrf.mxu0
    %v2404 = vadd.f32 %v2144, %v2403
    %2405 = vmatmul.f32.gmra.mxu0 %v1852
    %v2406 = vpop.f32.mrf.mxu0
    %v2407 = vadd.f32 %v2147, %v2406
    %2408 = vmatmul.f32.gmra.mxu0 %v1853
    %v2409 = vpop.f32.mrf.mxu0
    %v2410 = vadd.f32 %v2150, %v2409
    %2411 = vmatmul.f32.gmra.mxu0 %v1854
    %v2412 = vpop.f32.mrf.mxu0
    %v2413 = vadd.f32 %v2153, %v2412
    %2414 = vmatmul.f32.gmra.mxu0 %v1855
    %v2415 = vpop.f32.mrf.mxu0
    %v2416 = vadd.f32 %v2156, %v2415
    %2417 = vmatmul.f32.gmra.mxu0 %v1856
    %v2418 = vpop.f32.mrf.mxu0
    %v2419 = vadd.f32 %v2159, %v2418
    %2420 = vmatmul.f32.gmra.mxu0 %v1857
    %v2421 = vpop.f32.mrf.mxu0
    %v2422 = vadd.f32 %v2162, %v2421
    %2423 = vmatmul.f32.gmra.mxu0 %v1858
    %v2424 = vpop.f32.mrf.mxu0
    %v2425 = vadd.f32 %v2165, %v2424
    %2426 = vmatmul.f32.gmra.mxu0 %v1859
    %v2427 = vpop.f32.mrf.mxu0
    %v2428 = vadd.f32 %v2168, %v2427
    %2429 = vmatmul.f32.gmra.mxu0 %v1860
    %v2430 = vpop.f32.mrf.mxu0
    %v2431 = vadd.f32 %v2171, %v2430
    %2432 = vmatmul.f32.gmra.mxu0 %v1861
    %v2433 = vpop.f32.mrf.mxu0
    %v2434 = vadd.f32 %v2174, %v2433
    %2435 = vmatmul.f32.gmra.mxu0 %v1862
    %v2436 = vpop.f32.mrf.mxu0
    %v2437 = vadd.f32 %v2177, %v2436
    %2438 = vmatmul.f32.gmra.mxu0 %v1863
    %v2439 = vpop.f32.mrf.mxu0
    %v2440 = vadd.f32 %v2180, %v2439
    %2441 = vmatmul.f32.gmra.mxu0 %v1864
    %v2442 = vpop.f32.mrf.mxu0
    %v2443 = vadd.f32 %v2183, %v2442
    %2444 = vmatmul.f32.gmra.mxu0 %v1865
    %v2445 = vpop.f32.mrf.mxu0
    %v2446 = vadd.f32 %v2186, %v2445
    %2447 = vmatmul.f32.gmra.mxu0 %v1866
    %v2448 = vpop.f32.mrf.mxu0
    %v2449 = vadd.f32 %v2189, %v2448
    %2450 = vmatmul.f32.gmra.mxu0 %v1867
    %v2451 = vpop.f32.mrf.mxu0
    %v2452 = vadd.f32 %v2192, %v2451
    %2453 = vmatmul.f32.gmra.mxu0 %v1868
    %v2454 = vpop.f32.mrf.mxu0
    %v2455 = vadd.f32 %v2195, %v2454
    %2456 = vmatmul.f32.gmra.mxu0 %v1869
    %v2457 = vpop.f32.mrf.mxu0
    %v2458 = vadd.f32 %v2198, %v2457
    %2459 = vmatmul.f32.gmra.mxu0 %v1870
    %v2460 = vpop.f32.mrf.mxu0
    %v2461 = vadd.f32 %v2201, %v2460
    %2462 = vmatmul.f32.gmra.mxu0 %v1871
    %v2463 = vpop.f32.mrf.mxu0
    %v2464 = vadd.f32 %v2204, %v2463
    %2465 = vmatmul.f32.gmra.mxu0 %v1872
    %v2466 = vpop.f32.mrf.mxu0
    %v2467 = vadd.f32 %v2207, %v2466
    %2468 = vmatmul.f32.gmra.mxu0 %v1873
    %v2469 = vpop.f32.mrf.mxu0
    %v2470 = vadd.f32 %v2210, %v2469
    %2471 = vmatmul.f32.gmra.mxu0 %v1874
    %v2472 = vpop.f32.mrf.mxu0
    %v2473 = vadd.f32 %v2213, %v2472
    %2474 = vmatmul.f32.gmra.mxu0 %v1875
    %v2475 = vpop.f32.mrf.mxu0
    %v2476 = vadd.f32 %v2216, %v2475
    %2477 = vmatmul.f32.gmra.mxu0 %v1876
    %v2478 = vpop.f32.mrf.mxu0
    %v2479 = vadd.f32 %v2219, %v2478
    %2480 = vmatmul.f32.gmra.mxu0 %v1877
    %v2481 = vpop.f32.mrf.mxu0
    %v2482 = vadd.f32 %v2222, %v2481
    %2483 = vmatmul.f32.gmra.mxu0 %v1878
    %v2484 = vpop.f32.mrf.mxu0
    %v2485 = vadd.f32 %v2225, %v2484
    %2486 = vmatmul.f32.gmra.mxu0 %v1879
    %v2487 = vpop.f32.mrf.mxu0
    %v2488 = vadd.f32 %v2228, %v2487
    %2489 = vmatmul.f32.gmra.mxu0 %v1880
    %v2490 = vpop.f32.mrf.mxu0
    %v2491 = vadd.f32 %v2231, %v2490
    %2492 = vmatmul.f32.gmra.mxu0 %v1881
    %v2493 = vpop.f32.mrf.mxu0
    %v2494 = vadd.f32 %v2234, %v2493
    %2495 = vmatmul.f32.gmra.mxu0 %v1882
    %v2496 = vpop.f32.mrf.mxu0
    %v2497 = vadd.f32 %v2237, %v2496
    %2498 = vmatmul.f32.gmra.mxu0 %v1883
    %v2499 = vpop.f32.mrf.mxu0
    %v2500 = vadd.f32 %v2240, %v2499
    %2501 = vmatmul.f32.gmra.mxu0 %v1884
    %v2502 = vpop.f32.mrf.mxu0
    %v2503 = vadd.f32 %v2243, %v2502
    %2504 = vmatmul.f32.gmra.mxu0 %v1885
    %v2505 = vpop.f32.mrf.mxu0
    %v2506 = vadd.f32 %v2246, %v2505
    %2507 = vmatmul.f32.gmra.mxu0 %v1886
    %v2508 = vpop.f32.mrf.mxu0
    %v2509 = vadd.f32 %v2249, %v2508
    %2510 = vmatmul.f32.gmra.mxu0 %v1887
    %v2511 = vpop.f32.mrf.mxu0
    %v2512 = vadd.f32 %v2252, %v2511
    %2513 = vmatmul.f32.gmra.mxu0 %v1888
    %v2514 = vpop.f32.mrf.mxu0
    %v2515 = vadd.f32 %v2255, %v2514
    %2516 = vmatmul.f32.gmra.mxu0 %v1889
    %v2517 = vpop.f32.mrf.mxu0
    %v2518 = vadd.f32 %v2258, %v2517
    %2519 = vmatmul.f32.gmra.mxu0 %v1890
    %v2520 = vpop.f32.mrf.mxu0
    %v2521 = vadd.f32 %v2261, %v2520
    %2522 = vmatmul.f32.gmra.mxu0 %v1891
    %v2523 = vpop.f32.mrf.mxu0
    %v2524 = vadd.f32 %v2264, %v2523
    %2525 = vdwg.mxu0
    %v2526 = vld [vmem:[#allocation2 + $0x7] sm:$0xff]
    %v2527 = vld [vmem:[#allocation2 + $0xf] sm:$0xff]
    %v2528 = vld [vmem:[#allocation2 + $0x17] sm:$0xff]
    %v2529 = vld [vmem:[#allocation2 + $0x1f] sm:$0xff]
    %v2530 = vld [vmem:[#allocation2 + $0x27] sm:$0xff]
    %v2531 = vld [vmem:[#allocation2 + $0x2f] sm:$0xff]
    %v2532 = vld [vmem:[#allocation2 + $0x37] sm:$0xff]
    %v2533 = vld [vmem:[#allocation2 + $0x3f] sm:$0xff]
    %v2534 = vld [vmem:[#allocation2 + $0x47] sm:$0xff]
    %v2535 = vld [vmem:[#allocation2 + $0x4f] sm:$0xff]
    %v2536 = vld [vmem:[#allocation2 + $0x57] sm:$0xff]
    %v2537 = vld [vmem:[#allocation2 + $0x5f] sm:$0xff]
    %v2538 = vld [vmem:[#allocation2 + $0x67] sm:$0xff]
    %v2539 = vld [vmem:[#allocation2 + $0x6f] sm:$0xff]
    %v2540 = vld [vmem:[#allocation2 + $0x77] sm:$0xff]
    %v2541 = vld [vmem:[#allocation2 + $0x7f] sm:$0xff]
    %v2542 = vld [vmem:[#allocation2 + $0x87] sm:$0xff]
    %v2543 = vld [vmem:[#allocation2 + $0x8f] sm:$0xff]
    %v2544 = vld [vmem:[#allocation2 + $0x97] sm:$0xff]
    %v2545 = vld [vmem:[#allocation2 + $0x9f] sm:$0xff]
    %v2546 = vld [vmem:[#allocation2 + $0xa7] sm:$0xff]
    %v2547 = vld [vmem:[#allocation2 + $0xaf] sm:$0xff]
    %v2548 = vld [vmem:[#allocation2 + $0xb7] sm:$0xff]
    %v2549 = vld [vmem:[#allocation2 + $0xbf] sm:$0xff]
    %v2550 = vld [vmem:[#allocation2 + $0xc7] sm:$0xff]
    %v2551 = vld [vmem:[#allocation2 + $0xcf] sm:$0xff]
    %v2552 = vld [vmem:[#allocation2 + $0xd7] sm:$0xff]
    %v2553 = vld [vmem:[#allocation2 + $0xdf] sm:$0xff]
    %v2554 = vld [vmem:[#allocation2 + $0xe7] sm:$0xff]
    %v2555 = vld [vmem:[#allocation2 + $0xef] sm:$0xff]
    %v2556 = vld [vmem:[#allocation2 + $0xf7] sm:$0xff]
    %v2557 = vld [vmem:[#allocation2 + $0xff] sm:$0xff]
    %v2558 = vld [vmem:[#allocation2 + $0x107] sm:$0xff]
    %v2559 = vld [vmem:[#allocation2 + $0x10f] sm:$0xff]
    %v2560 = vld [vmem:[#allocation2 + $0x117] sm:$0xff]
    %v2561 = vld [vmem:[#allocation2 + $0x11f] sm:$0xff]
    %v2562 = vld [vmem:[#allocation2 + $0x127] sm:$0xff]
    %v2563 = vld [vmem:[#allocation2 + $0x12f] sm:$0xff]
    %v2564 = vld [vmem:[#allocation2 + $0x137] sm:$0xff]
    %v2565 = vld [vmem:[#allocation2 + $0x13f] sm:$0xff]
    %v2566 = vld [vmem:[#allocation2 + $0x147] sm:$0xff]
    %v2567 = vld [vmem:[#allocation2 + $0x14f] sm:$0xff]
    %v2568 = vld [vmem:[#allocation2 + $0x157] sm:$0xff]
    %v2569 = vld [vmem:[#allocation2 + $0x15f] sm:$0xff]
    %v2570 = vld [vmem:[#allocation2 + $0x167] sm:$0xff]
    %v2571 = vld [vmem:[#allocation2 + $0x16f] sm:$0xff]
    %v2572 = vld [vmem:[#allocation2 + $0x177] sm:$0xff]
    %v2573 = vld [vmem:[#allocation2 + $0x17f] sm:$0xff]
    %v2574 = vld [vmem:[#allocation2 + $0x187] sm:$0xff]
    %v2575 = vld [vmem:[#allocation2 + $0x18f] sm:$0xff]
    %v2576 = vld [vmem:[#allocation2 + $0x197] sm:$0xff]
    %v2577 = vld [vmem:[#allocation2 + $0x19f] sm:$0xff]
    %v2578 = vld [vmem:[#allocation2 + $0x1a7] sm:$0xff]
    %v2579 = vld [vmem:[#allocation2 + $0x1af] sm:$0xff]
    %v2580 = vld [vmem:[#allocation2 + $0x1b7] sm:$0xff]
    %v2581 = vld [vmem:[#allocation2 + $0x1bf] sm:$0xff]
    %v2582 = vld [vmem:[#allocation2 + $0x1c7] sm:$0xff]
    %v2583 = vld [vmem:[#allocation2 + $0x1cf] sm:$0xff]
    %v2584 = vld [vmem:[#allocation2 + $0x1d7] sm:$0xff]
    %v2585 = vld [vmem:[#allocation2 + $0x1df] sm:$0xff]
    %v2586 = vld [vmem:[#allocation2 + $0x1e7] sm:$0xff]
    %v2587 = vld [vmem:[#allocation2 + $0x1ef] sm:$0xff]
    %v2588 = vld [vmem:[#allocation2 + $0x1f7] sm:$0xff]
    %v2589 = vld [vmem:[#allocation2 + $0x1ff] sm:$0xff]
    %v2590 = vld [vmem:[#allocation2 + $0x207] sm:$0xff]
    %v2591 = vld [vmem:[#allocation2 + $0x20f] sm:$0xff]
    %v2592 = vld [vmem:[#allocation2 + $0x217] sm:$0xff]
    %v2593 = vld [vmem:[#allocation2 + $0x21f] sm:$0xff]
    %v2594 = vld [vmem:[#allocation2 + $0x227] sm:$0xff]
    %v2595 = vld [vmem:[#allocation2 + $0x22f] sm:$0xff]
    %v2596 = vld [vmem:[#allocation2 + $0x237] sm:$0xff]
    %v2597 = vld [vmem:[#allocation2 + $0x23f] sm:$0xff]
    %v2598 = vld [vmem:[#allocation2 + $0x247] sm:$0xff]
    %v2599 = vld [vmem:[#allocation2 + $0x24f] sm:$0xff]
    %v2600 = vld [vmem:[#allocation2 + $0x257] sm:$0xff]
    %v2601 = vld [vmem:[#allocation2 + $0x25f] sm:$0xff]
    %v2602 = vld [vmem:[#allocation2 + $0x267] sm:$0xff]
    %v2603 = vld [vmem:[#allocation2 + $0x26f] sm:$0xff]
    %v2604 = vld [vmem:[#allocation2 + $0x277] sm:$0xff]
    %v2605 = vld [vmem:[#allocation2 + $0x27f] sm:$0xff]
    %v2606 = vld [vmem:[#allocation2 + $0x287] sm:$0xff]
    %s2607 = scalar_lea.vmem [#allocation9], 256
    %v2608 = vld [vmem:[%s2607] sm:$0xff]
    %v2609 = vld [vmem:[%s2607 + $0x8] sm:$0xff]
    %v2610 = vld [vmem:[%s2607 + $0x10] sm:$0xff]
    %v2611 = vld [vmem:[%s2607 + $0x18] sm:$0xff]
    %v2612 = vld [vmem:[%s2607 + $0x20] sm:$0xff]
    %v2613 = vld [vmem:[%s2607 + $0x28] sm:$0xff]
    %v2614 = vld [vmem:[%s2607 + $0x30] sm:$0xff]
    %v2615 = vld [vmem:[%s2607 + $0x38] sm:$0xff]
    %v2616 = vld [vmem:[%s2607 + $0x40] sm:$0xff]
    %v2617 = vld [vmem:[%s2607 + $0x48] sm:$0xff]
    %v2618 = vld [vmem:[%s2607 + $0x50] sm:$0xff]
    %v2619 = vld [vmem:[%s2607 + $0x58] sm:$0xff]
    %v2620 = vld [vmem:[%s2607 + $0x60] sm:$0xff]
    %v2621 = vld [vmem:[%s2607 + $0x68] sm:$0xff]
    %v2622 = vld [vmem:[%s2607 + $0x70] sm:$0xff]
    %v2623 = vld [vmem:[%s2607 + $0x78] sm:$0xff]
    %2624 = vmatpush.msra.mxu0 %v2623
    %2625 = vmatpush.msra.mxu0 %v2622
    %2626 = vmatpush.msra.mxu0 %v2621
    %2627 = vmatpush.msra.mxu0 %v2620
    %2628 = vmatpush.msra.mxu0 %v2619
    %2629 = vmatpush.msra.mxu0 %v2618
    %2630 = vmatpush.msra.mxu0 %v2617
    %2631 = vmatpush.msra.mxu0 %v2616
    %2632 = vmatpush.msra.mxu0 %v2615
    %2633 = vmatpush.msra.mxu0 %v2614
    %2634 = vmatpush.msra.mxu0 %v2613
    %2635 = vmatpush.msra.mxu0 %v2612
    %2636 = vmatpush.msra.mxu0 %v2611
    %2637 = vmatpush.msra.mxu0 %v2610
    %2638 = vmatpush.msra.mxu0 %v2609
    %2639 = vmatpush.msra.mxu0 %v2608
    %2640 = vmatmul.f32.gmra.mxu0 %v2526
    %v2641 = vpop.f32.mrf.mxu0
    %v2642 = vadd.f32 0.0, %v2641
    %2643 = vmatmul.f32.gmra.mxu0 %v2527
    %v2644 = vpop.f32.mrf.mxu0
    %v2645 = vadd.f32 0.0, %v2644
    %2646 = vmatmul.f32.gmra.mxu0 %v2528
    %v2647 = vpop.f32.mrf.mxu0
    %v2648 = vadd.f32 0.0, %v2647
    %2649 = vmatmul.f32.gmra.mxu0 %v2529
    %v2650 = vpop.f32.mrf.mxu0
    %v2651 = vadd.f32 0.0, %v2650
    %2652 = vmatmul.f32.gmra.mxu0 %v2530
    %v2653 = vpop.f32.mrf.mxu0
    %v2654 = vadd.f32 0.0, %v2653
    %2655 = vmatmul.f32.gmra.mxu0 %v2531
    %v2656 = vpop.f32.mrf.mxu0
    %v2657 = vadd.f32 0.0, %v2656
    %2658 = vmatmul.f32.gmra.mxu0 %v2532
    %v2659 = vpop.f32.mrf.mxu0
    %v2660 = vadd.f32 0.0, %v2659
    %2661 = vmatmul.f32.gmra.mxu0 %v2533
    %v2662 = vpop.f32.mrf.mxu0
    %v2663 = vadd.f32 0.0, %v2662
    %2664 = vmatmul.f32.gmra.mxu0 %v2534
    %v2665 = vpop.f32.mrf.mxu0
    %v2666 = vadd.f32 0.0, %v2665
    %2667 = vmatmul.f32.gmra.mxu0 %v2535
    %v2668 = vpop.f32.mrf.mxu0
    %v2669 = vadd.f32 0.0, %v2668
    %2670 = vmatmul.f32.gmra.mxu0 %v2536
    %v2671 = vpop.f32.mrf.mxu0
    %v2672 = vadd.f32 0.0, %v2671
    %2673 = vmatmul.f32.gmra.mxu0 %v2537
    %v2674 = vpop.f32.mrf.mxu0
    %v2675 = vadd.f32 0.0, %v2674
    %2676 = vmatmul.f32.gmra.mxu0 %v2538
    %v2677 = vpop.f32.mrf.mxu0
    %v2678 = vadd.f32 0.0, %v2677
    %2679 = vmatmul.f32.gmra.mxu0 %v2539
    %v2680 = vpop.f32.mrf.mxu0
    %v2681 = vadd.f32 0.0, %v2680
    %2682 = vmatmul.f32.gmra.mxu0 %v2540
    %v2683 = vpop.f32.mrf.mxu0
    %v2684 = vadd.f32 0.0, %v2683
    %2685 = vmatmul.f32.gmra.mxu0 %v2541
    %v2686 = vpop.f32.mrf.mxu0
    %v2687 = vadd.f32 0.0, %v2686
    %2688 = vmatmul.f32.gmra.mxu0 %v2542
    %v2689 = vpop.f32.mrf.mxu0
    %v2690 = vadd.f32 0.0, %v2689
    %2691 = vmatmul.f32.gmra.mxu0 %v2543
    %v2692 = vpop.f32.mrf.mxu0
    %v2693 = vadd.f32 0.0, %v2692
    %2694 = vmatmul.f32.gmra.mxu0 %v2544
    %v2695 = vpop.f32.mrf.mxu0
    %v2696 = vadd.f32 0.0, %v2695
    %2697 = vmatmul.f32.gmra.mxu0 %v2545
    %v2698 = vpop.f32.mrf.mxu0
    %v2699 = vadd.f32 0.0, %v2698
    %2700 = vmatmul.f32.gmra.mxu0 %v2546
    %v2701 = vpop.f32.mrf.mxu0
    %v2702 = vadd.f32 0.0, %v2701
    %2703 = vmatmul.f32.gmra.mxu0 %v2547
    %v2704 = vpop.f32.mrf.mxu0
    %v2705 = vadd.f32 0.0, %v2704
    %2706 = vmatmul.f32.gmra.mxu0 %v2548
    %v2707 = vpop.f32.mrf.mxu0
    %v2708 = vadd.f32 0.0, %v2707
    %2709 = vmatmul.f32.gmra.mxu0 %v2549
    %v2710 = vpop.f32.mrf.mxu0
    %v2711 = vadd.f32 0.0, %v2710
    %2712 = vmatmul.f32.gmra.mxu0 %v2550
    %v2713 = vpop.f32.mrf.mxu0
    %v2714 = vadd.f32 0.0, %v2713
    %2715 = vmatmul.f32.gmra.mxu0 %v2551
    %v2716 = vpop.f32.mrf.mxu0
    %v2717 = vadd.f32 0.0, %v2716
    %2718 = vmatmul.f32.gmra.mxu0 %v2552
    %v2719 = vpop.f32.mrf.mxu0
    %v2720 = vadd.f32 0.0, %v2719
    %2721 = vmatmul.f32.gmra.mxu0 %v2553
    %v2722 = vpop.f32.mrf.mxu0
    %v2723 = vadd.f32 0.0, %v2722
    %2724 = vmatmul.f32.gmra.mxu0 %v2554
    %v2725 = vpop.f32.mrf.mxu0
    %v2726 = vadd.f32 0.0, %v2725
    %2727 = vmatmul.f32.gmra.mxu0 %v2555
    %v2728 = vpop.f32.mrf.mxu0
    %v2729 = vadd.f32 0.0, %v2728
    %2730 = vmatmul.f32.gmra.mxu0 %v2556
    %v2731 = vpop.f32.mrf.mxu0
    %v2732 = vadd.f32 0.0, %v2731
    %2733 = vmatmul.f32.gmra.mxu0 %v2557
    %v2734 = vpop.f32.mrf.mxu0
    %v2735 = vadd.f32 0.0, %v2734
    %2736 = vmatmul.f32.gmra.mxu0 %v2558
    %v2737 = vpop.f32.mrf.mxu0
    %v2738 = vadd.f32 0.0, %v2737
    %2739 = vmatmul.f32.gmra.mxu0 %v2559
    %v2740 = vpop.f32.mrf.mxu0
    %v2741 = vadd.f32 0.0, %v2740
    %2742 = vmatmul.f32.gmra.mxu0 %v2560
    %v2743 = vpop.f32.mrf.mxu0
    %v2744 = vadd.f32 0.0, %v2743
    %2745 = vmatmul.f32.gmra.mxu0 %v2561
    %v2746 = vpop.f32.mrf.mxu0
    %v2747 = vadd.f32 0.0, %v2746
    %2748 = vmatmul.f32.gmra.mxu0 %v2562
    %v2749 = vpop.f32.mrf.mxu0
    %v2750 = vadd.f32 0.0, %v2749
    %2751 = vmatmul.f32.gmra.mxu0 %v2563
    %v2752 = vpop.f32.mrf.mxu0
    %v2753 = vadd.f32 0.0, %v2752
    %2754 = vmatmul.f32.gmra.mxu0 %v2564
    %v2755 = vpop.f32.mrf.mxu0
    %v2756 = vadd.f32 0.0, %v2755
    %2757 = vmatmul.f32.gmra.mxu0 %v2565
    %v2758 = vpop.f32.mrf.mxu0
    %v2759 = vadd.f32 0.0, %v2758
    %2760 = vmatmul.f32.gmra.mxu0 %v2566
    %v2761 = vpop.f32.mrf.mxu0
    %v2762 = vadd.f32 0.0, %v2761
    %2763 = vmatmul.f32.gmra.mxu0 %v2567
    %v2764 = vpop.f32.mrf.mxu0
    %v2765 = vadd.f32 0.0, %v2764
    %2766 = vmatmul.f32.gmra.mxu0 %v2568
    %v2767 = vpop.f32.mrf.mxu0
    %v2768 = vadd.f32 0.0, %v2767
    %2769 = vmatmul.f32.gmra.mxu0 %v2569
    %v2770 = vpop.f32.mrf.mxu0
    %v2771 = vadd.f32 0.0, %v2770
    %2772 = vmatmul.f32.gmra.mxu0 %v2570
    %v2773 = vpop.f32.mrf.mxu0
    %v2774 = vadd.f32 0.0, %v2773
    %2775 = vmatmul.f32.gmra.mxu0 %v2571
    %v2776 = vpop.f32.mrf.mxu0
    %v2777 = vadd.f32 0.0, %v2776
    %2778 = vmatmul.f32.gmra.mxu0 %v2572
    %v2779 = vpop.f32.mrf.mxu0
    %v2780 = vadd.f32 0.0, %v2779
    %2781 = vmatmul.f32.gmra.mxu0 %v2573
    %v2782 = vpop.f32.mrf.mxu0
    %v2783 = vadd.f32 0.0, %v2782
    %2784 = vmatmul.f32.gmra.mxu0 %v2574
    %v2785 = vpop.f32.mrf.mxu0
    %v2786 = vadd.f32 0.0, %v2785
    %2787 = vmatmul.f32.gmra.mxu0 %v2575
    %v2788 = vpop.f32.mrf.mxu0
    %v2789 = vadd.f32 0.0, %v2788
    %2790 = vmatmul.f32.gmra.mxu0 %v2576
    %v2791 = vpop.f32.mrf.mxu0
    %v2792 = vadd.f32 0.0, %v2791
    %2793 = vmatmul.f32.gmra.mxu0 %v2577
    %v2794 = vpop.f32.mrf.mxu0
    %v2795 = vadd.f32 0.0, %v2794
    %2796 = vmatmul.f32.gmra.mxu0 %v2578
    %v2797 = vpop.f32.mrf.mxu0
    %v2798 = vadd.f32 0.0, %v2797
    %2799 = vmatmul.f32.gmra.mxu0 %v2579
    %v2800 = vpop.f32.mrf.mxu0
    %v2801 = vadd.f32 0.0, %v2800
    %2802 = vmatmul.f32.gmra.mxu0 %v2580
    %v2803 = vpop.f32.mrf.mxu0
    %v2804 = vadd.f32 0.0, %v2803
    %2805 = vmatmul.f32.gmra.mxu0 %v2581
    %v2806 = vpop.f32.mrf.mxu0
    %v2807 = vadd.f32 0.0, %v2806
    %2808 = vmatmul.f32.gmra.mxu0 %v2582
    %v2809 = vpop.f32.mrf.mxu0
    %v2810 = vadd.f32 0.0, %v2809
    %2811 = vmatmul.f32.gmra.mxu0 %v2583
    %v2812 = vpop.f32.mrf.mxu0
    %v2813 = vadd.f32 0.0, %v2812
    %2814 = vmatmul.f32.gmra.mxu0 %v2584
    %v2815 = vpop.f32.mrf.mxu0
    %v2816 = vadd.f32 0.0, %v2815
    %2817 = vmatmul.f32.gmra.mxu0 %v2585
    %v2818 = vpop.f32.mrf.mxu0
    %v2819 = vadd.f32 0.0, %v2818
    %2820 = vmatmul.f32.gmra.mxu0 %v2586
    %v2821 = vpop.f32.mrf.mxu0
    %v2822 = vadd.f32 0.0, %v2821
    %2823 = vmatmul.f32.gmra.mxu0 %v2587
    %v2824 = vpop.f32.mrf.mxu0
    %v2825 = vadd.f32 0.0, %v2824
    %2826 = vmatmul.f32.gmra.mxu0 %v2588
    %v2827 = vpop.f32.mrf.mxu0
    %v2828 = vadd.f32 0.0, %v2827
    %2829 = vmatmul.f32.gmra.mxu0 %v2589
    %v2830 = vpop.f32.mrf.mxu0
    %v2831 = vadd.f32 0.0, %v2830
    %2832 = vmatmul.f32.gmra.mxu0 %v2590
    %v2833 = vpop.f32.mrf.mxu0
    %v2834 = vadd.f32 0.0, %v2833
    %2835 = vmatmul.f32.gmra.mxu0 %v2591
    %v2836 = vpop.f32.mrf.mxu0
    %v2837 = vadd.f32 0.0, %v2836
    %2838 = vmatmul.f32.gmra.mxu0 %v2592
    %v2839 = vpop.f32.mrf.mxu0
    %v2840 = vadd.f32 0.0, %v2839
    %2841 = vmatmul.f32.gmra.mxu0 %v2593
    %v2842 = vpop.f32.mrf.mxu0
    %v2843 = vadd.f32 0.0, %v2842
    %2844 = vmatmul.f32.gmra.mxu0 %v2594
    %v2845 = vpop.f32.mrf.mxu0
    %v2846 = vadd.f32 0.0, %v2845
    %2847 = vmatmul.f32.gmra.mxu0 %v2595
    %v2848 = vpop.f32.mrf.mxu0
    %v2849 = vadd.f32 0.0, %v2848
    %2850 = vmatmul.f32.gmra.mxu0 %v2596
    %v2851 = vpop.f32.mrf.mxu0
    %v2852 = vadd.f32 0.0, %v2851
    %2853 = vmatmul.f32.gmra.mxu0 %v2597
    %v2854 = vpop.f32.mrf.mxu0
    %v2855 = vadd.f32 0.0, %v2854
    %2856 = vmatmul.f32.gmra.mxu0 %v2598
    %v2857 = vpop.f32.mrf.mxu0
    %v2858 = vadd.f32 0.0, %v2857
    %2859 = vmatmul.f32.gmra.mxu0 %v2599
    %v2860 = vpop.f32.mrf.mxu0
    %v2861 = vadd.f32 0.0, %v2860
    %2862 = vmatmul.f32.gmra.mxu0 %v2600
    %v2863 = vpop.f32.mrf.mxu0
    %v2864 = vadd.f32 0.0, %v2863
    %2865 = vmatmul.f32.gmra.mxu0 %v2601
    %v2866 = vpop.f32.mrf.mxu0
    %v2867 = vadd.f32 0.0, %v2866
    %2868 = vmatmul.f32.gmra.mxu0 %v2602
    %v2869 = vpop.f32.mrf.mxu0
    %v2870 = vadd.f32 0.0, %v2869
    %2871 = vmatmul.f32.gmra.mxu0 %v2603
    %v2872 = vpop.f32.mrf.mxu0
    %v2873 = vadd.f32 0.0, %v2872
    %2874 = vmatmul.f32.gmra.mxu0 %v2604
    %v2875 = vpop.f32.mrf.mxu0
    %v2876 = vadd.f32 0.0, %v2875
    %2877 = vmatmul.f32.gmra.mxu0 %v2605
    %v2878 = vpop.f32.mrf.mxu0
    %v2879 = vadd.f32 0.0, %v2878
    %2880 = vmatmul.f32.gmra.mxu0 %v2606
    %v2881 = vpop.f32.mrf.mxu0
    %v2882 = vadd.f32 0.0, %v2881
    %2883 = vdwg.mxu0
    %v2884 = vadd.f32 %v2284, %v2642
    %v2885 = vadd.f32 %v2287, %v2645
    %v2886 = vadd.f32 %v2290, %v2648
    %v2887 = vadd.f32 %v2293, %v2651
    %v2888 = vadd.f32 %v2296, %v2654
    %v2889 = vadd.f32 %v2299, %v2657
    %v2890 = vadd.f32 %v2302, %v2660
    %v2891 = vadd.f32 %v2305, %v2663
    %v2892 = vadd.f32 %v2308, %v2666
    %v2893 = vadd.f32 %v2311, %v2669
    %v2894 = vadd.f32 %v2314, %v2672
    %v2895 = vadd.f32 %v2317, %v2675
    %v2896 = vadd.f32 %v2320, %v2678
    %v2897 = vadd.f32 %v2323, %v2681
    %v2898 = vadd.f32 %v2326, %v2684
    %v2899 = vadd.f32 %v2329, %v2687
    %v2900 = vadd.f32 %v2332, %v2690
    %v2901 = vadd.f32 %v2335, %v2693
    %v2902 = vadd.f32 %v2338, %v2696
    %v2903 = vadd.f32 %v2341, %v2699
    %v2904 = vadd.f32 %v2344, %v2702
    %v2905 = vadd.f32 %v2347, %v2705
    %v2906 = vadd.f32 %v2350, %v2708
    %v2907 = vadd.f32 %v2353, %v2711
    %v2908 = vadd.f32 %v2356, %v2714
    %v2909 = vadd.f32 %v2359, %v2717
    %v2910 = vadd.f32 %v2362, %v2720
    %v2911 = vadd.f32 %v2365, %v2723
    %v2912 = vadd.f32 %v2368, %v2726
    %v2913 = vadd.f32 %v2371, %v2729
    %v2914 = vadd.f32 %v2374, %v2732
    %v2915 = vadd.f32 %v2377, %v2735
    %v2916 = vadd.f32 %v2380, %v2738
    %v2917 = vadd.f32 %v2383, %v2741
    %v2918 = vadd.f32 %v2386, %v2744
    %v2919 = vadd.f32 %v2389, %v2747
    %v2920 = vadd.f32 %v2392, %v2750
    %v2921 = vadd.f32 %v2395, %v2753
    %v2922 = vadd.f32 %v2398, %v2756
    %v2923 = vadd.f32 %v2401, %v2759
    %v2924 = vadd.f32 %v2404, %v2762
    %v2925 = vadd.f32 %v2407, %v2765
    %v2926 = vadd.f32 %v2410, %v2768
    %v2927 = vadd.f32 %v2413, %v2771
    %v2928 = vadd.f32 %v2416, %v2774
    %v2929 = vadd.f32 %v2419, %v2777
    %v2930 = vadd.f32 %v2422, %v2780
    %v2931 = vadd.f32 %v2425, %v2783
    %v2932 = vadd.f32 %v2428, %v2786
    %v2933 = vadd.f32 %v2431, %v2789
    %v2934 = vadd.f32 %v2434, %v2792
    %v2935 = vadd.f32 %v2437, %v2795
    %v2936 = vadd.f32 %v2440, %v2798
    %v2937 = vadd.f32 %v2443, %v2801
    %v2938 = vadd.f32 %v2446, %v2804
    %v2939 = vadd.f32 %v2449, %v2807
    %v2940 = vadd.f32 %v2452, %v2810
    %v2941 = vadd.f32 %v2455, %v2813
    %v2942 = vadd.f32 %v2458, %v2816
    %v2943 = vadd.f32 %v2461, %v2819
    %v2944 = vadd.f32 %v2464, %v2822
    %v2945 = vadd.f32 %v2467, %v2825
    %v2946 = vadd.f32 %v2470, %v2828
    %v2947 = vadd.f32 %v2473, %v2831
    %v2948 = vadd.f32 %v2476, %v2834
    %v2949 = vadd.f32 %v2479, %v2837
    %v2950 = vadd.f32 %v2482, %v2840
    %v2951 = vadd.f32 %v2485, %v2843
    %v2952 = vadd.f32 %v2488, %v2846
    %v2953 = vadd.f32 %v2491, %v2849
    %v2954 = vadd.f32 %v2494, %v2852
    %v2955 = vadd.f32 %v2497, %v2855
    %v2956 = vadd.f32 %v2500, %v2858
    %v2957 = vadd.f32 %v2503, %v2861
    %v2958 = vadd.f32 %v2506, %v2864
    %v2959 = vadd.f32 %v2509, %v2867
    %v2960 = vadd.f32 %v2512, %v2870
    %v2961 = vadd.f32 %v2515, %v2873
    %v2962 = vadd.f32 %v2518, %v2876
    %v2963 = vadd.f32 %v2521, %v2879
    %v2964 = vadd.f32 %v2524, %v2882
    %v2965 = vld [vmem:[#allocation2 + $0x17] sm:$0xff]
    %v2966 = vld [vmem:[#allocation2 + $0x1f] sm:$0xff]
    %v2967 = vld [vmem:[#allocation2 + $0x27] sm:$0xff]
    %v2968 = vld [vmem:[#allocation2 + $0x2f] sm:$0xff]
    %v2969 = vld [vmem:[#allocation2 + $0x37] sm:$0xff]
    %v2970 = vld [vmem:[#allocation2 + $0x3f] sm:$0xff]
    %v2971 = vld [vmem:[#allocation2 + $0x47] sm:$0xff]
    %v2972 = vld [vmem:[#allocation2 + $0x4f] sm:$0xff]
    %v2973 = vld [vmem:[#allocation2 + $0x57] sm:$0xff]
    %v2974 = vld [vmem:[#allocation2 + $0x5f] sm:$0xff]
    %v2975 = vld [vmem:[#allocation2 + $0x67] sm:$0xff]
    %v2976 = vld [vmem:[#allocation2 + $0x6f] sm:$0xff]
    %v2977 = vld [vmem:[#allocation2 + $0x77] sm:$0xff]
    %v2978 = vld [vmem:[#allocation2 + $0x7f] sm:$0xff]
    %v2979 = vld [vmem:[#allocation2 + $0x87] sm:$0xff]
    %v2980 = vld [vmem:[#allocation2 + $0x8f] sm:$0xff]
    %v2981 = vld [vmem:[#allocation2 + $0x97] sm:$0xff]
    %v2982 = vld [vmem:[#allocation2 + $0x9f] sm:$0xff]
    %v2983 = vld [vmem:[#allocation2 + $0xa7] sm:$0xff]
    %v2984 = vld [vmem:[#allocation2 + $0xaf] sm:$0xff]
    %v2985 = vld [vmem:[#allocation2 + $0xb7] sm:$0xff]
    %v2986 = vld [vmem:[#allocation2 + $0xbf] sm:$0xff]
    %v2987 = vld [vmem:[#allocation2 + $0xc7] sm:$0xff]
    %v2988 = vld [vmem:[#allocation2 + $0xcf] sm:$0xff]
    %v2989 = vld [vmem:[#allocation2 + $0xd7] sm:$0xff]
    %v2990 = vld [vmem:[#allocation2 + $0xdf] sm:$0xff]
    %v2991 = vld [vmem:[#allocation2 + $0xe7] sm:$0xff]
    %v2992 = vld [vmem:[#allocation2 + $0xef] sm:$0xff]
    %v2993 = vld [vmem:[#allocation2 + $0xf7] sm:$0xff]
    %v2994 = vld [vmem:[#allocation2 + $0xff] sm:$0xff]
    %v2995 = vld [vmem:[#allocation2 + $0x107] sm:$0xff]
    %v2996 = vld [vmem:[#allocation2 + $0x10f] sm:$0xff]
    %v2997 = vld [vmem:[#allocation2 + $0x117] sm:$0xff]
    %v2998 = vld [vmem:[#allocation2 + $0x11f] sm:$0xff]
    %v2999 = vld [vmem:[#allocation2 + $0x127] sm:$0xff]
    %v3000 = vld [vmem:[#allocation2 + $0x12f] sm:$0xff]
    %v3001 = vld [vmem:[#allocation2 + $0x137] sm:$0xff]
    %v3002 = vld [vmem:[#allocation2 + $0x13f] sm:$0xff]
    %v3003 = vld [vmem:[#allocation2 + $0x147] sm:$0xff]
    %v3004 = vld [vmem:[#allocation2 + $0x14f] sm:$0xff]
    %v3005 = vld [vmem:[#allocation2 + $0x157] sm:$0xff]
    %v3006 = vld [vmem:[#allocation2 + $0x15f] sm:$0xff]
    %v3007 = vld [vmem:[#allocation2 + $0x167] sm:$0xff]
    %v3008 = vld [vmem:[#allocation2 + $0x16f] sm:$0xff]
    %v3009 = vld [vmem:[#allocation2 + $0x177] sm:$0xff]
    %v3010 = vld [vmem:[#allocation2 + $0x17f] sm:$0xff]
    %v3011 = vld [vmem:[#allocation2 + $0x187] sm:$0xff]
    %v3012 = vld [vmem:[#allocation2 + $0x18f] sm:$0xff]
    %v3013 = vld [vmem:[#allocation2 + $0x197] sm:$0xff]
    %v3014 = vld [vmem:[#allocation2 + $0x19f] sm:$0xff]
    %v3015 = vld [vmem:[#allocation2 + $0x1a7] sm:$0xff]
    %v3016 = vld [vmem:[#allocation2 + $0x1af] sm:$0xff]
    %v3017 = vld [vmem:[#allocation2 + $0x1b7] sm:$0xff]
    %v3018 = vld [vmem:[#allocation2 + $0x1bf] sm:$0xff]
    %v3019 = vld [vmem:[#allocation2 + $0x1c7] sm:$0xff]
    %v3020 = vld [vmem:[#allocation2 + $0x1cf] sm:$0xff]
    %v3021 = vld [vmem:[#allocation2 + $0x1d7] sm:$0xff]
    %v3022 = vld [vmem:[#allocation2 + $0x1df] sm:$0xff]
    %v3023 = vld [vmem:[#allocation2 + $0x1e7] sm:$0xff]
    %v3024 = vld [vmem:[#allocation2 + $0x1ef] sm:$0xff]
    %v3025 = vld [vmem:[#allocation2 + $0x1f7] sm:$0xff]
    %v3026 = vld [vmem:[#allocation2 + $0x1ff] sm:$0xff]
    %v3027 = vld [vmem:[#allocation2 + $0x207] sm:$0xff]
    %v3028 = vld [vmem:[#allocation2 + $0x20f] sm:$0xff]
    %v3029 = vld [vmem:[#allocation2 + $0x217] sm:$0xff]
    %v3030 = vld [vmem:[#allocation2 + $0x21f] sm:$0xff]
    %v3031 = vld [vmem:[#allocation2 + $0x227] sm:$0xff]
    %v3032 = vld [vmem:[#allocation2 + $0x22f] sm:$0xff]
    %v3033 = vld [vmem:[#allocation2 + $0x237] sm:$0xff]
    %v3034 = vld [vmem:[#allocation2 + $0x23f] sm:$0xff]
    %v3035 = vld [vmem:[#allocation2 + $0x247] sm:$0xff]
    %v3036 = vld [vmem:[#allocation2 + $0x24f] sm:$0xff]
    %v3037 = vld [vmem:[#allocation2 + $0x257] sm:$0xff]
    %v3038 = vld [vmem:[#allocation2 + $0x25f] sm:$0xff]
    %v3039 = vld [vmem:[#allocation2 + $0x267] sm:$0xff]
    %v3040 = vld [vmem:[#allocation2 + $0x26f] sm:$0xff]
    %v3041 = vld [vmem:[#allocation2 + $0x277] sm:$0xff]
    %v3042 = vld [vmem:[#allocation2 + $0x27f] sm:$0xff]
    %v3043 = vld [vmem:[#allocation2 + $0x287] sm:$0xff]
    %v3044 = vld [vmem:[#allocation2 + $0x28f] sm:$0xff]
    %v3045 = vld [vmem:[#allocation2 + $0x297] sm:$0xff]
    %s3046 = scalar_lea.vmem [#allocation9], 384
    %v3047 = vld [vmem:[%s3046] sm:$0xff]
    %v3048 = vld [vmem:[%s3046 + $0x8] sm:$0xff]
    %v3049 = vld [vmem:[%s3046 + $0x10] sm:$0xff]
    %v3050 = vld [vmem:[%s3046 + $0x18] sm:$0xff]
    %v3051 = vld [vmem:[%s3046 + $0x20] sm:$0xff]
    %v3052 = vld [vmem:[%s3046 + $0x28] sm:$0xff]
    %v3053 = vld [vmem:[%s3046 + $0x30] sm:$0xff]
    %v3054 = vld [vmem:[%s3046 + $0x38] sm:$0xff]
    %v3055 = vld [vmem:[%s3046 + $0x40] sm:$0xff]
    %v3056 = vld [vmem:[%s3046 + $0x48] sm:$0xff]
    %v3057 = vld [vmem:[%s3046 + $0x50] sm:$0xff]
    %v3058 = vld [vmem:[%s3046 + $0x58] sm:$0xff]
    %v3059 = vld [vmem:[%s3046 + $0x60] sm:$0xff]
    %v3060 = vld [vmem:[%s3046 + $0x68] sm:$0xff]
    %v3061 = vld [vmem:[%s3046 + $0x70] sm:$0xff]
    %v3062 = vld [vmem:[%s3046 + $0x78] sm:$0xff]
    %3063 = vmatpush.msra.mxu0 %v3062
    %3064 = vmatpush.msra.mxu0 %v3061
    %3065 = vmatpush.msra.mxu0 %v3060
    %3066 = vmatpush.msra.mxu0 %v3059
    %3067 = vmatpush.msra.mxu0 %v3058
    %3068 = vmatpush.msra.mxu0 %v3057
    %3069 = vmatpush.msra.mxu0 %v3056
    %3070 = vmatpush.msra.mxu0 %v3055
    %3071 = vmatpush.msra.mxu0 %v3054
    %3072 = vmatpush.msra.mxu0 %v3053
    %3073 = vmatpush.msra.mxu0 %v3052
    %3074 = vmatpush.msra.mxu0 %v3051
    %3075 = vmatpush.msra.mxu0 %v3050
    %3076 = vmatpush.msra.mxu0 %v3049
    %3077 = vmatpush.msra.mxu0 %v3048
    %3078 = vmatpush.msra.mxu0 %v3047
    %3079 = vmatmul.f32.gmra.mxu0 %v2965
    %v3080 = vpop.f32.mrf.mxu0
    %v3081 = vadd.f32 0.0, %v3080
    %3082 = vmatmul.f32.gmra.mxu0 %v2966
    %v3083 = vpop.f32.mrf.mxu0
    %v3084 = vadd.f32 0.0, %v3083
    %3085 = vmatmul.f32.gmra.mxu0 %v2967
    %v3086 = vpop.f32.mrf.mxu0
    %v3087 = vadd.f32 0.0, %v3086
    %3088 = vmatmul.f32.gmra.mxu0 %v2968
    %v3089 = vpop.f32.mrf.mxu0
    %v3090 = vadd.f32 0.0, %v3089
    %3091 = vmatmul.f32.gmra.mxu0 %v2969
    %v3092 = vpop.f32.mrf.mxu0
    %v3093 = vadd.f32 0.0, %v3092
    %3094 = vmatmul.f32.gmra.mxu0 %v2970
    %v3095 = vpop.f32.mrf.mxu0
    %v3096 = vadd.f32 0.0, %v3095
    %3097 = vmatmul.f32.gmra.mxu0 %v2971
    %v3098 = vpop.f32.mrf.mxu0
    %v3099 = vadd.f32 0.0, %v3098
    %3100 = vmatmul.f32.gmra.mxu0 %v2972
    %v3101 = vpop.f32.mrf.mxu0
    %v3102 = vadd.f32 0.0, %v3101
    %3103 = vmatmul.f32.gmra.mxu0 %v2973
    %v3104 = vpop.f32.mrf.mxu0
    %v3105 = vadd.f32 0.0, %v3104
    %3106 = vmatmul.f32.gmra.mxu0 %v2974
    %v3107 = vpop.f32.mrf.mxu0
    %v3108 = vadd.f32 0.0, %v3107
    %3109 = vmatmul.f32.gmra.mxu0 %v2975
    %v3110 = vpop.f32.mrf.mxu0
    %v3111 = vadd.f32 0.0, %v3110
    %3112 = vmatmul.f32.gmra.mxu0 %v2976
    %v3113 = vpop.f32.mrf.mxu0
    %v3114 = vadd.f32 0.0, %v3113
    %3115 = vmatmul.f32.gmra.mxu0 %v2977
    %v3116 = vpop.f32.mrf.mxu0
    %v3117 = vadd.f32 0.0, %v3116
    %3118 = vmatmul.f32.gmra.mxu0 %v2978
    %v3119 = vpop.f32.mrf.mxu0
    %v3120 = vadd.f32 0.0, %v3119
    %3121 = vmatmul.f32.gmra.mxu0 %v2979
    %v3122 = vpop.f32.mrf.mxu0
    %v3123 = vadd.f32 0.0, %v3122
    %3124 = vmatmul.f32.gmra.mxu0 %v2980
    %v3125 = vpop.f32.mrf.mxu0
    %v3126 = vadd.f32 0.0, %v3125
    %3127 = vmatmul.f32.gmra.mxu0 %v2981
    %v3128 = vpop.f32.mrf.mxu0
    %v3129 = vadd.f32 0.0, %v3128
    %3130 = vmatmul.f32.gmra.mxu0 %v2982
    %v3131 = vpop.f32.mrf.mxu0
    %v3132 = vadd.f32 0.0, %v3131
    %3133 = vmatmul.f32.gmra.mxu0 %v2983
    %v3134 = vpop.f32.mrf.mxu0
    %v3135 = vadd.f32 0.0, %v3134
    %3136 = vmatmul.f32.gmra.mxu0 %v2984
    %v3137 = vpop.f32.mrf.mxu0
    %v3138 = vadd.f32 0.0, %v3137
    %3139 = vmatmul.f32.gmra.mxu0 %v2985
    %v3140 = vpop.f32.mrf.mxu0
    %v3141 = vadd.f32 0.0, %v3140
    %3142 = vmatmul.f32.gmra.mxu0 %v2986
    %v3143 = vpop.f32.mrf.mxu0
    %v3144 = vadd.f32 0.0, %v3143
    %3145 = vmatmul.f32.gmra.mxu0 %v2987
    %v3146 = vpop.f32.mrf.mxu0
    %v3147 = vadd.f32 0.0, %v3146
    %3148 = vmatmul.f32.gmra.mxu0 %v2988
    %v3149 = vpop.f32.mrf.mxu0
    %v3150 = vadd.f32 0.0, %v3149
    %3151 = vmatmul.f32.gmra.mxu0 %v2989
    %v3152 = vpop.f32.mrf.mxu0
    %v3153 = vadd.f32 0.0, %v3152
    %3154 = vmatmul.f32.gmra.mxu0 %v2990
    %v3155 = vpop.f32.mrf.mxu0
    %v3156 = vadd.f32 0.0, %v3155
    %3157 = vmatmul.f32.gmra.mxu0 %v2991
    %v3158 = vpop.f32.mrf.mxu0
    %v3159 = vadd.f32 0.0, %v3158
    %3160 = vmatmul.f32.gmra.mxu0 %v2992
    %v3161 = vpop.f32.mrf.mxu0
    %v3162 = vadd.f32 0.0, %v3161
    %3163 = vmatmul.f32.gmra.mxu0 %v2993
    %v3164 = vpop.f32.mrf.mxu0
    %v3165 = vadd.f32 0.0, %v3164
    %3166 = vmatmul.f32.gmra.mxu0 %v2994
    %v3167 = vpop.f32.mrf.mxu0
    %v3168 = vadd.f32 0.0, %v3167
    %3169 = vmatmul.f32.gmra.mxu0 %v2995
    %v3170 = vpop.f32.mrf.mxu0
    %v3171 = vadd.f32 0.0, %v3170
    %3172 = vmatmul.f32.gmra.mxu0 %v2996
    %v3173 = vpop.f32.mrf.mxu0
    %v3174 = vadd.f32 0.0, %v3173
    %3175 = vmatmul.f32.gmra.mxu0 %v2997
    %v3176 = vpop.f32.mrf.mxu0
    %v3177 = vadd.f32 0.0, %v3176
    %3178 = vmatmul.f32.gmra.mxu0 %v2998
    %v3179 = vpop.f32.mrf.mxu0
    %v3180 = vadd.f32 0.0, %v3179
    %3181 = vmatmul.f32.gmra.mxu0 %v2999
    %v3182 = vpop.f32.mrf.mxu0
    %v3183 = vadd.f32 0.0, %v3182
    %3184 = vmatmul.f32.gmra.mxu0 %v3000
    %v3185 = vpop.f32.mrf.mxu0
    %v3186 = vadd.f32 0.0, %v3185
    %3187 = vmatmul.f32.gmra.mxu0 %v3001
    %v3188 = vpop.f32.mrf.mxu0
    %v3189 = vadd.f32 0.0, %v3188
    %3190 = vmatmul.f32.gmra.mxu0 %v3002
    %v3191 = vpop.f32.mrf.mxu0
    %v3192 = vadd.f32 0.0, %v3191
    %3193 = vmatmul.f32.gmra.mxu0 %v3003
    %v3194 = vpop.f32.mrf.mxu0
    %v3195 = vadd.f32 0.0, %v3194
    %3196 = vmatmul.f32.gmra.mxu0 %v3004
    %v3197 = vpop.f32.mrf.mxu0
    %v3198 = vadd.f32 0.0, %v3197
    %3199 = vmatmul.f32.gmra.mxu0 %v3005
    %v3200 = vpop.f32.mrf.mxu0
    %v3201 = vadd.f32 0.0, %v3200
    %3202 = vmatmul.f32.gmra.mxu0 %v3006
    %v3203 = vpop.f32.mrf.mxu0
    %v3204 = vadd.f32 0.0, %v3203
    %3205 = vmatmul.f32.gmra.mxu0 %v3007
    %v3206 = vpop.f32.mrf.mxu0
    %v3207 = vadd.f32 0.0, %v3206
    %3208 = vmatmul.f32.gmra.mxu0 %v3008
    %v3209 = vpop.f32.mrf.mxu0
    %v3210 = vadd.f32 0.0, %v3209
    %3211 = vmatmul.f32.gmra.mxu0 %v3009
    %v3212 = vpop.f32.mrf.mxu0
    %v3213 = vadd.f32 0.0, %v3212
    %3214 = vmatmul.f32.gmra.mxu0 %v3010
    %v3215 = vpop.f32.mrf.mxu0
    %v3216 = vadd.f32 0.0, %v3215
    %3217 = vmatmul.f32.gmra.mxu0 %v3011
    %v3218 = vpop.f32.mrf.mxu0
    %v3219 = vadd.f32 0.0, %v3218
    %3220 = vmatmul.f32.gmra.mxu0 %v3012
    %v3221 = vpop.f32.mrf.mxu0
    %v3222 = vadd.f32 0.0, %v3221
    %3223 = vmatmul.f32.gmra.mxu0 %v3013
    %v3224 = vpop.f32.mrf.mxu0
    %v3225 = vadd.f32 0.0, %v3224
    %3226 = vmatmul.f32.gmra.mxu0 %v3014
    %v3227 = vpop.f32.mrf.mxu0
    %v3228 = vadd.f32 0.0, %v3227
    %3229 = vmatmul.f32.gmra.mxu0 %v3015
    %v3230 = vpop.f32.mrf.mxu0
    %v3231 = vadd.f32 0.0, %v3230
    %3232 = vmatmul.f32.gmra.mxu0 %v3016
    %v3233 = vpop.f32.mrf.mxu0
    %v3234 = vadd.f32 0.0, %v3233
    %3235 = vmatmul.f32.gmra.mxu0 %v3017
    %v3236 = vpop.f32.mrf.mxu0
    %v3237 = vadd.f32 0.0, %v3236
    %3238 = vmatmul.f32.gmra.mxu0 %v3018
    %v3239 = vpop.f32.mrf.mxu0
    %v3240 = vadd.f32 0.0, %v3239
    %3241 = vmatmul.f32.gmra.mxu0 %v3019
    %v3242 = vpop.f32.mrf.mxu0
    %v3243 = vadd.f32 0.0, %v3242
    %3244 = vmatmul.f32.gmra.mxu0 %v3020
    %v3245 = vpop.f32.mrf.mxu0
    %v3246 = vadd.f32 0.0, %v3245
    %3247 = vmatmul.f32.gmra.mxu0 %v3021
    %v3248 = vpop.f32.mrf.mxu0
    %v3249 = vadd.f32 0.0, %v3248
    %3250 = vmatmul.f32.gmra.mxu0 %v3022
    %v3251 = vpop.f32.mrf.mxu0
    %v3252 = vadd.f32 0.0, %v3251
    %3253 = vmatmul.f32.gmra.mxu0 %v3023
    %v3254 = vpop.f32.mrf.mxu0
    %v3255 = vadd.f32 0.0, %v3254
    %3256 = vmatmul.f32.gmra.mxu0 %v3024
    %v3257 = vpop.f32.mrf.mxu0
    %v3258 = vadd.f32 0.0, %v3257
    %3259 = vmatmul.f32.gmra.mxu0 %v3025
    %v3260 = vpop.f32.mrf.mxu0
    %v3261 = vadd.f32 0.0, %v3260
    %3262 = vmatmul.f32.gmra.mxu0 %v3026
    %v3263 = vpop.f32.mrf.mxu0
    %v3264 = vadd.f32 0.0, %v3263
    %3265 = vmatmul.f32.gmra.mxu0 %v3027
    %v3266 = vpop.f32.mrf.mxu0
    %v3267 = vadd.f32 0.0, %v3266
    %3268 = vmatmul.f32.gmra.mxu0 %v3028
    %v3269 = vpop.f32.mrf.mxu0
    %v3270 = vadd.f32 0.0, %v3269
    %3271 = vmatmul.f32.gmra.mxu0 %v3029
    %v3272 = vpop.f32.mrf.mxu0
    %v3273 = vadd.f32 0.0, %v3272
    %3274 = vmatmul.f32.gmra.mxu0 %v3030
    %v3275 = vpop.f32.mrf.mxu0
    %v3276 = vadd.f32 0.0, %v3275
    %3277 = vmatmul.f32.gmra.mxu0 %v3031
    %v3278 = vpop.f32.mrf.mxu0
    %v3279 = vadd.f32 0.0, %v3278
    %3280 = vmatmul.f32.gmra.mxu0 %v3032
    %v3281 = vpop.f32.mrf.mxu0
    %v3282 = vadd.f32 0.0, %v3281
    %3283 = vmatmul.f32.gmra.mxu0 %v3033
    %v3284 = vpop.f32.mrf.mxu0
    %v3285 = vadd.f32 0.0, %v3284
    %3286 = vmatmul.f32.gmra.mxu0 %v3034
    %v3287 = vpop.f32.mrf.mxu0
    %v3288 = vadd.f32 0.0, %v3287
    %3289 = vmatmul.f32.gmra.mxu0 %v3035
    %v3290 = vpop.f32.mrf.mxu0
    %v3291 = vadd.f32 0.0, %v3290
    %3292 = vmatmul.f32.gmra.mxu0 %v3036
    %v3293 = vpop.f32.mrf.mxu0
    %v3294 = vadd.f32 0.0, %v3293
    %3295 = vmatmul.f32.gmra.mxu0 %v3037
    %v3296 = vpop.f32.mrf.mxu0
    %v3297 = vadd.f32 0.0, %v3296
    %3298 = vmatmul.f32.gmra.mxu0 %v3038
    %v3299 = vpop.f32.mrf.mxu0
    %v3300 = vadd.f32 0.0, %v3299
    %3301 = vmatmul.f32.gmra.mxu0 %v3039
    %v3302 = vpop.f32.mrf.mxu0
    %v3303 = vadd.f32 0.0, %v3302
    %3304 = vmatmul.f32.gmra.mxu0 %v3040
    %v3305 = vpop.f32.mrf.mxu0
    %v3306 = vadd.f32 0.0, %v3305
    %3307 = vmatmul.f32.gmra.mxu0 %v3041
    %v3308 = vpop.f32.mrf.mxu0
    %v3309 = vadd.f32 0.0, %v3308
    %3310 = vmatmul.f32.gmra.mxu0 %v3042
    %v3311 = vpop.f32.mrf.mxu0
    %v3312 = vadd.f32 0.0, %v3311
    %3313 = vmatmul.f32.gmra.mxu0 %v3043
    %v3314 = vpop.f32.mrf.mxu0
    %v3315 = vadd.f32 0.0, %v3314
    %3316 = vmatmul.f32.gmra.mxu0 %v3044
    %v3317 = vpop.f32.mrf.mxu0
    %v3318 = vadd.f32 0.0, %v3317
    %3319 = vmatmul.f32.gmra.mxu0 %v3045
    %v3320 = vpop.f32.mrf.mxu0
    %v3321 = vadd.f32 0.0, %v3320
    %3322 = vdwg.mxu0
    %v3323 = vadd.f32 %v2884, %v3081
    %v3324 = vadd.f32 %v2885, %v3084
    %v3325 = vadd.f32 %v2886, %v3087
    %v3326 = vadd.f32 %v2887, %v3090
    %v3327 = vadd.f32 %v2888, %v3093
    %v3328 = vadd.f32 %v2889, %v3096
    %v3329 = vadd.f32 %v2890, %v3099
    %v3330 = vadd.f32 %v2891, %v3102
    %v3331 = vadd.f32 %v2892, %v3105
    %v3332 = vadd.f32 %v2893, %v3108
    %v3333 = vadd.f32 %v2894, %v3111
    %v3334 = vadd.f32 %v2895, %v3114
    %v3335 = vadd.f32 %v2896, %v3117
    %v3336 = vadd.f32 %v2897, %v3120
    %v3337 = vadd.f32 %v2898, %v3123
    %v3338 = vadd.f32 %v2899, %v3126
    %v3339 = vadd.f32 %v2900, %v3129
    %v3340 = vadd.f32 %v2901, %v3132
    %v3341 = vadd.f32 %v2902, %v3135
    %v3342 = vadd.f32 %v2903, %v3138
    %v3343 = vadd.f32 %v2904, %v3141
    %v3344 = vadd.f32 %v2905, %v3144
    %v3345 = vadd.f32 %v2906, %v3147
    %v3346 = vadd.f32 %v2907, %v3150
    %v3347 = vadd.f32 %v2908, %v3153
    %v3348 = vadd.f32 %v2909, %v3156
    %v3349 = vadd.f32 %v2910, %v3159
    %v3350 = vadd.f32 %v2911, %v3162
    %v3351 = vadd.f32 %v2912, %v3165
    %v3352 = vadd.f32 %v2913, %v3168
    %v3353 = vadd.f32 %v2914, %v3171
    %v3354 = vadd.f32 %v2915, %v3174
    %v3355 = vadd.f32 %v2916, %v3177
    %v3356 = vadd.f32 %v2917, %v3180
    %v3357 = vadd.f32 %v2918, %v3183
    %v3358 = vadd.f32 %v2919, %v3186
    %v3359 = vadd.f32 %v2920, %v3189
    %v3360 = vadd.f32 %v2921, %v3192
    %v3361 = vadd.f32 %v2922, %v3195
    %v3362 = vadd.f32 %v2923, %v3198
    %v3363 = vadd.f32 %v2924, %v3201
    %v3364 = vadd.f32 %v2925, %v3204
    %v3365 = vadd.f32 %v2926, %v3207
    %v3366 = vadd.f32 %v2927, %v3210
    %v3367 = vadd.f32 %v2928, %v3213
    %v3368 = vadd.f32 %v2929, %v3216
    %v3369 = vadd.f32 %v2930, %v3219
    %v3370 = vadd.f32 %v2931, %v3222
    %v3371 = vadd.f32 %v2932, %v3225
    %v3372 = vadd.f32 %v2933, %v3228
    %v3373 = vadd.f32 %v2934, %v3231
    %v3374 = vadd.f32 %v2935, %v3234
    %v3375 = vadd.f32 %v2936, %v3237
    %v3376 = vadd.f32 %v2937, %v3240
    %v3377 = vadd.f32 %v2938, %v3243
    %v3378 = vadd.f32 %v2939, %v3246
    %v3379 = vadd.f32 %v2940, %v3249
    %v3380 = vadd.f32 %v2941, %v3252
    %v3381 = vadd.f32 %v2942, %v3255
    %v3382 = vadd.f32 %v2943, %v3258
    %v3383 = vadd.f32 %v2944, %v3261
    %v3384 = vadd.f32 %v2945, %v3264
    %v3385 = vadd.f32 %v2946, %v3267
    %v3386 = vadd.f32 %v2947, %v3270
    %v3387 = vadd.f32 %v2948, %v3273
    %v3388 = vadd.f32 %v2949, %v3276
    %v3389 = vadd.f32 %v2950, %v3279
    %v3390 = vadd.f32 %v2951, %v3282
    %v3391 = vadd.f32 %v2952, %v3285
    %v3392 = vadd.f32 %v2953, %v3288
    %v3393 = vadd.f32 %v2954, %v3291
    %v3394 = vadd.f32 %v2955, %v3294
    %v3395 = vadd.f32 %v2956, %v3297
    %v3396 = vadd.f32 %v2957, %v3300
    %v3397 = vadd.f32 %v2958, %v3303
    %v3398 = vadd.f32 %v2959, %v3306
    %v3399 = vadd.f32 %v2960, %v3309
    %v3400 = vadd.f32 %v2961, %v3312
    %v3401 = vadd.f32 %v2962, %v3315
    %v3402 = vadd.f32 %v2963, %v3318
    %v3403 = vadd.f32 %v2964, %v3321
    %v3404 = vld [vmem:[#allocation2 + $0x18] sm:$0xff]
    %v3405 = vld [vmem:[#allocation2 + $0x20] sm:$0xff]
    %v3406 = vld [vmem:[#allocation2 + $0x28] sm:$0xff]
    %v3407 = vld [vmem:[#allocation2 + $0x30] sm:$0xff]
    %v3408 = vld [vmem:[#allocation2 + $0x38] sm:$0xff]
    %v3409 = vld [vmem:[#allocation2 + $0x40] sm:$0xff]
    %v3410 = vld [vmem:[#allocation2 + $0x48] sm:$0xff]
    %v3411 = vld [vmem:[#allocation2 + $0x50] sm:$0xff]
    %v3412 = vld [vmem:[#allocation2 + $0x58] sm:$0xff]
    %v3413 = vld [vmem:[#allocation2 + $0x60] sm:$0xff]
    %v3414 = vld [vmem:[#allocation2 + $0x68] sm:$0xff]
    %v3415 = vld [vmem:[#allocation2 + $0x70] sm:$0xff]
    %v3416 = vld [vmem:[#allocation2 + $0x78] sm:$0xff]
    %v3417 = vld [vmem:[#allocation2 + $0x80] sm:$0xff]
    %v3418 = vld [vmem:[#allocation2 + $0x88] sm:$0xff]
    %v3419 = vld [vmem:[#allocation2 + $0x90] sm:$0xff]
    %v3420 = vld [vmem:[#allocation2 + $0x98] sm:$0xff]
    %v3421 = vld [vmem:[#allocation2 + $0xa0] sm:$0xff]
    %v3422 = vld [vmem:[#allocation2 + $0xa8] sm:$0xff]
    %v3423 = vld [vmem:[#allocation2 + $0xb0] sm:$0xff]
    %v3424 = vld [vmem:[#allocation2 + $0xb8] sm:$0xff]
    %v3425 = vld [vmem:[#allocation2 + $0xc0] sm:$0xff]
    %v3426 = vld [vmem:[#allocation2 + $0xc8] sm:$0xff]
    %v3427 = vld [vmem:[#allocation2 + $0xd0] sm:$0xff]
    %v3428 = vld [vmem:[#allocation2 + $0xd8] sm:$0xff]
    %v3429 = vld [vmem:[#allocation2 + $0xe0] sm:$0xff]
    %v3430 = vld [vmem:[#allocation2 + $0xe8] sm:$0xff]
    %v3431 = vld [vmem:[#allocation2 + $0xf0] sm:$0xff]
    %v3432 = vld [vmem:[#allocation2 + $0xf8] sm:$0xff]
    %v3433 = vld [vmem:[#allocation2 + $0x100] sm:$0xff]
    %v3434 = vld [vmem:[#allocation2 + $0x108] sm:$0xff]
    %v3435 = vld [vmem:[#allocation2 + $0x110] sm:$0xff]
    %v3436 = vld [vmem:[#allocation2 + $0x118] sm:$0xff]
    %v3437 = vld [vmem:[#allocation2 + $0x120] sm:$0xff]
    %v3438 = vld [vmem:[#allocation2 + $0x128] sm:$0xff]
    %v3439 = vld [vmem:[#allocation2 + $0x130] sm:$0xff]
    %v3440 = vld [vmem:[#allocation2 + $0x138] sm:$0xff]
    %v3441 = vld [vmem:[#allocation2 + $0x140] sm:$0xff]
    %v3442 = vld [vmem:[#allocation2 + $0x148] sm:$0xff]
    %v3443 = vld [vmem:[#allocation2 + $0x150] sm:$0xff]
    %v3444 = vld [vmem:[#allocation2 + $0x158] sm:$0xff]
    %v3445 = vld [vmem:[#allocation2 + $0x160] sm:$0xff]
    %v3446 = vld [vmem:[#allocation2 + $0x168] sm:$0xff]
    %v3447 = vld [vmem:[#allocation2 + $0x170] sm:$0xff]
    %v3448 = vld [vmem:[#allocation2 + $0x178] sm:$0xff]
    %v3449 = vld [vmem:[#allocation2 + $0x180] sm:$0xff]
    %v3450 = vld [vmem:[#allocation2 + $0x188] sm:$0xff]
    %v3451 = vld [vmem:[#allocation2 + $0x190] sm:$0xff]
    %v3452 = vld [vmem:[#allocation2 + $0x198] sm:$0xff]
    %v3453 = vld [vmem:[#allocation2 + $0x1a0] sm:$0xff]
    %v3454 = vld [vmem:[#allocation2 + $0x1a8] sm:$0xff]
    %v3455 = vld [vmem:[#allocation2 + $0x1b0] sm:$0xff]
    %v3456 = vld [vmem:[#allocation2 + $0x1b8] sm:$0xff]
    %v3457 = vld [vmem:[#allocation2 + $0x1c0] sm:$0xff]
    %v3458 = vld [vmem:[#allocation2 + $0x1c8] sm:$0xff]
    %v3459 = vld [vmem:[#allocation2 + $0x1d0] sm:$0xff]
    %v3460 = vld [vmem:[#allocation2 + $0x1d8] sm:$0xff]
    %v3461 = vld [vmem:[#allocation2 + $0x1e0] sm:$0xff]
    %v3462 = vld [vmem:[#allocation2 + $0x1e8] sm:$0xff]
    %v3463 = vld [vmem:[#allocation2 + $0x1f0] sm:$0xff]
    %v3464 = vld [vmem:[#allocation2 + $0x1f8] sm:$0xff]
    %v3465 = vld [vmem:[#allocation2 + $0x200] sm:$0xff]
    %v3466 = vld [vmem:[#allocation2 + $0x208] sm:$0xff]
    %v3467 = vld [vmem:[#allocation2 + $0x210] sm:$0xff]
    %v3468 = vld [vmem:[#allocation2 + $0x218] sm:$0xff]
    %v3469 = vld [vmem:[#allocation2 + $0x220] sm:$0xff]
    %v3470 = vld [vmem:[#allocation2 + $0x228] sm:$0xff]
    %v3471 = vld [vmem:[#allocation2 + $0x230] sm:$0xff]
    %v3472 = vld [vmem:[#allocation2 + $0x238] sm:$0xff]
    %v3473 = vld [vmem:[#allocation2 + $0x240] sm:$0xff]
    %v3474 = vld [vmem:[#allocation2 + $0x248] sm:$0xff]
    %v3475 = vld [vmem:[#allocation2 + $0x250] sm:$0xff]
    %v3476 = vld [vmem:[#allocation2 + $0x258] sm:$0xff]
    %v3477 = vld [vmem:[#allocation2 + $0x260] sm:$0xff]
    %v3478 = vld [vmem:[#allocation2 + $0x268] sm:$0xff]
    %v3479 = vld [vmem:[#allocation2 + $0x270] sm:$0xff]
    %v3480 = vld [vmem:[#allocation2 + $0x278] sm:$0xff]
    %v3481 = vld [vmem:[#allocation2 + $0x280] sm:$0xff]
    %v3482 = vld [vmem:[#allocation2 + $0x288] sm:$0xff]
    %v3483 = vld [vmem:[#allocation2 + $0x290] sm:$0xff]
    %v3484 = vld [vmem:[#allocation2 + $0x298] sm:$0xff]
    %s3485 = scalar_lea.vmem [#allocation9], 512
    %v3486 = vld [vmem:[%s3485] sm:$0xff]
    %v3487 = vld [vmem:[%s3485 + $0x8] sm:$0xff]
    %v3488 = vld [vmem:[%s3485 + $0x10] sm:$0xff]
    %v3489 = vld [vmem:[%s3485 + $0x18] sm:$0xff]
    %v3490 = vld [vmem:[%s3485 + $0x20] sm:$0xff]
    %v3491 = vld [vmem:[%s3485 + $0x28] sm:$0xff]
    %v3492 = vld [vmem:[%s3485 + $0x30] sm:$0xff]
    %v3493 = vld [vmem:[%s3485 + $0x38] sm:$0xff]
    %v3494 = vld [vmem:[%s3485 + $0x40] sm:$0xff]
    %v3495 = vld [vmem:[%s3485 + $0x48] sm:$0xff]
    %v3496 = vld [vmem:[%s3485 + $0x50] sm:$0xff]
    %v3497 = vld [vmem:[%s3485 + $0x58] sm:$0xff]
    %v3498 = vld [vmem:[%s3485 + $0x60] sm:$0xff]
    %v3499 = vld [vmem:[%s3485 + $0x68] sm:$0xff]
    %v3500 = vld [vmem:[%s3485 + $0x70] sm:$0xff]
    %v3501 = vld [vmem:[%s3485 + $0x78] sm:$0xff]
    %3502 = vmatpush.msra.mxu0 %v3501
    %3503 = vmatpush.msra.mxu0 %v3500
    %3504 = vmatpush.msra.mxu0 %v3499
    %3505 = vmatpush.msra.mxu0 %v3498
    %3506 = vmatpush.msra.mxu0 %v3497
    %3507 = vmatpush.msra.mxu0 %v3496
    %3508 = vmatpush.msra.mxu0 %v3495
    %3509 = vmatpush.msra.mxu0 %v3494
    %3510 = vmatpush.msra.mxu0 %v3493
    %3511 = vmatpush.msra.mxu0 %v3492
    %3512 = vmatpush.msra.mxu0 %v3491
    %3513 = vmatpush.msra.mxu0 %v3490
    %3514 = vmatpush.msra.mxu0 %v3489
    %3515 = vmatpush.msra.mxu0 %v3488
    %3516 = vmatpush.msra.mxu0 %v3487
    %3517 = vmatpush.msra.mxu0 %v3486
    %3518 = vmatmul.f32.gmra.mxu0 %v3404
    %v3519 = vpop.f32.mrf.mxu0
    %v3520 = vadd.f32 0.0, %v3519
    %3521 = vmatmul.f32.gmra.mxu0 %v3405
    %v3522 = vpop.f32.mrf.mxu0
    %v3523 = vadd.f32 0.0, %v3522
    %3524 = vmatmul.f32.gmra.mxu0 %v3406
    %v3525 = vpop.f32.mrf.mxu0
    %v3526 = vadd.f32 0.0, %v3525
    %3527 = vmatmul.f32.gmra.mxu0 %v3407
    %v3528 = vpop.f32.mrf.mxu0
    %v3529 = vadd.f32 0.0, %v3528
    %3530 = vmatmul.f32.gmra.mxu0 %v3408
    %v3531 = vpop.f32.mrf.mxu0
    %v3532 = vadd.f32 0.0, %v3531
    %3533 = vmatmul.f32.gmra.mxu0 %v3409
    %v3534 = vpop.f32.mrf.mxu0
    %v3535 = vadd.f32 0.0, %v3534
    %3536 = vmatmul.f32.gmra.mxu0 %v3410
    %v3537 = vpop.f32.mrf.mxu0
    %v3538 = vadd.f32 0.0, %v3537
    %3539 = vmatmul.f32.gmra.mxu0 %v3411
    %v3540 = vpop.f32.mrf.mxu0
    %v3541 = vadd.f32 0.0, %v3540
    %3542 = vmatmul.f32.gmra.mxu0 %v3412
    %v3543 = vpop.f32.mrf.mxu0
    %v3544 = vadd.f32 0.0, %v3543
    %3545 = vmatmul.f32.gmra.mxu0 %v3413
    %v3546 = vpop.f32.mrf.mxu0
    %v3547 = vadd.f32 0.0, %v3546
    %3548 = vmatmul.f32.gmra.mxu0 %v3414
    %v3549 = vpop.f32.mrf.mxu0
    %v3550 = vadd.f32 0.0, %v3549
    %3551 = vmatmul.f32.gmra.mxu0 %v3415
    %v3552 = vpop.f32.mrf.mxu0
    %v3553 = vadd.f32 0.0, %v3552
    %3554 = vmatmul.f32.gmra.mxu0 %v3416
    %v3555 = vpop.f32.mrf.mxu0
    %v3556 = vadd.f32 0.0, %v3555
    %3557 = vmatmul.f32.gmra.mxu0 %v3417
    %v3558 = vpop.f32.mrf.mxu0
    %v3559 = vadd.f32 0.0, %v3558
    %3560 = vmatmul.f32.gmra.mxu0 %v3418
    %v3561 = vpop.f32.mrf.mxu0
    %v3562 = vadd.f32 0.0, %v3561
    %3563 = vmatmul.f32.gmra.mxu0 %v3419
    %v3564 = vpop.f32.mrf.mxu0
    %v3565 = vadd.f32 0.0, %v3564
    %3566 = vmatmul.f32.gmra.mxu0 %v3420
    %v3567 = vpop.f32.mrf.mxu0
    %v3568 = vadd.f32 0.0, %v3567
    %3569 = vmatmul.f32.gmra.mxu0 %v3421
    %v3570 = vpop.f32.mrf.mxu0
    %v3571 = vadd.f32 0.0, %v3570
    %3572 = vmatmul.f32.gmra.mxu0 %v3422
    %v3573 = vpop.f32.mrf.mxu0
    %v3574 = vadd.f32 0.0, %v3573
    %3575 = vmatmul.f32.gmra.mxu0 %v3423
    %v3576 = vpop.f32.mrf.mxu0
    %v3577 = vadd.f32 0.0, %v3576
    %3578 = vmatmul.f32.gmra.mxu0 %v3424
    %v3579 = vpop.f32.mrf.mxu0
    %v3580 = vadd.f32 0.0, %v3579
    %3581 = vmatmul.f32.gmra.mxu0 %v3425
    %v3582 = vpop.f32.mrf.mxu0
    %v3583 = vadd.f32 0.0, %v3582
    %3584 = vmatmul.f32.gmra.mxu0 %v3426
    %v3585 = vpop.f32.mrf.mxu0
    %v3586 = vadd.f32 0.0, %v3585
    %3587 = vmatmul.f32.gmra.mxu0 %v3427
    %v3588 = vpop.f32.mrf.mxu0
    %v3589 = vadd.f32 0.0, %v3588
    %3590 = vmatmul.f32.gmra.mxu0 %v3428
    %v3591 = vpop.f32.mrf.mxu0
    %v3592 = vadd.f32 0.0, %v3591
    %3593 = vmatmul.f32.gmra.mxu0 %v3429
    %v3594 = vpop.f32.mrf.mxu0
    %v3595 = vadd.f32 0.0, %v3594
    %3596 = vmatmul.f32.gmra.mxu0 %v3430
    %v3597 = vpop.f32.mrf.mxu0
    %v3598 = vadd.f32 0.0, %v3597
    %3599 = vmatmul.f32.gmra.mxu0 %v3431
    %v3600 = vpop.f32.mrf.mxu0
    %v3601 = vadd.f32 0.0, %v3600
    %3602 = vmatmul.f32.gmra.mxu0 %v3432
    %v3603 = vpop.f32.mrf.mxu0
    %v3604 = vadd.f32 0.0, %v3603
    %3605 = vmatmul.f32.gmra.mxu0 %v3433
    %v3606 = vpop.f32.mrf.mxu0
    %v3607 = vadd.f32 0.0, %v3606
    %3608 = vmatmul.f32.gmra.mxu0 %v3434
    %v3609 = vpop.f32.mrf.mxu0
    %v3610 = vadd.f32 0.0, %v3609
    %3611 = vmatmul.f32.gmra.mxu0 %v3435
    %v3612 = vpop.f32.mrf.mxu0
    %v3613 = vadd.f32 0.0, %v3612
    %3614 = vmatmul.f32.gmra.mxu0 %v3436
    %v3615 = vpop.f32.mrf.mxu0
    %v3616 = vadd.f32 0.0, %v3615
    %3617 = vmatmul.f32.gmra.mxu0 %v3437
    %v3618 = vpop.f32.mrf.mxu0
    %v3619 = vadd.f32 0.0, %v3618
    %3620 = vmatmul.f32.gmra.mxu0 %v3438
    %v3621 = vpop.f32.mrf.mxu0
    %v3622 = vadd.f32 0.0, %v3621
    %3623 = vmatmul.f32.gmra.mxu0 %v3439
    %v3624 = vpop.f32.mrf.mxu0
    %v3625 = vadd.f32 0.0, %v3624
    %3626 = vmatmul.f32.gmra.mxu0 %v3440
    %v3627 = vpop.f32.mrf.mxu0
    %v3628 = vadd.f32 0.0, %v3627
    %3629 = vmatmul.f32.gmra.mxu0 %v3441
    %v3630 = vpop.f32.mrf.mxu0
    %v3631 = vadd.f32 0.0, %v3630
    %3632 = vmatmul.f32.gmra.mxu0 %v3442
    %v3633 = vpop.f32.mrf.mxu0
    %v3634 = vadd.f32 0.0, %v3633
    %3635 = vmatmul.f32.gmra.mxu0 %v3443
    %v3636 = vpop.f32.mrf.mxu0
    %v3637 = vadd.f32 0.0, %v3636
    %3638 = vmatmul.f32.gmra.mxu0 %v3444
    %v3639 = vpop.f32.mrf.mxu0
    %v3640 = vadd.f32 0.0, %v3639
    %3641 = vmatmul.f32.gmra.mxu0 %v3445
    %v3642 = vpop.f32.mrf.mxu0
    %v3643 = vadd.f32 0.0, %v3642
    %3644 = vmatmul.f32.gmra.mxu0 %v3446
    %v3645 = vpop.f32.mrf.mxu0
    %v3646 = vadd.f32 0.0, %v3645
    %3647 = vmatmul.f32.gmra.mxu0 %v3447
    %v3648 = vpop.f32.mrf.mxu0
    %v3649 = vadd.f32 0.0, %v3648
    %3650 = vmatmul.f32.gmra.mxu0 %v3448
    %v3651 = vpop.f32.mrf.mxu0
    %v3652 = vadd.f32 0.0, %v3651
    %3653 = vmatmul.f32.gmra.mxu0 %v3449
    %v3654 = vpop.f32.mrf.mxu0
    %v3655 = vadd.f32 0.0, %v3654
    %3656 = vmatmul.f32.gmra.mxu0 %v3450
    %v3657 = vpop.f32.mrf.mxu0
    %v3658 = vadd.f32 0.0, %v3657
    %3659 = vmatmul.f32.gmra.mxu0 %v3451
    %v3660 = vpop.f32.mrf.mxu0
    %v3661 = vadd.f32 0.0, %v3660
    %3662 = vmatmul.f32.gmra.mxu0 %v3452
    %v3663 = vpop.f32.mrf.mxu0
    %v3664 = vadd.f32 0.0, %v3663
    %3665 = vmatmul.f32.gmra.mxu0 %v3453
    %v3666 = vpop.f32.mrf.mxu0
    %v3667 = vadd.f32 0.0, %v3666
    %3668 = vmatmul.f32.gmra.mxu0 %v3454
    %v3669 = vpop.f32.mrf.mxu0
    %v3670 = vadd.f32 0.0, %v3669
    %3671 = vmatmul.f32.gmra.mxu0 %v3455
    %v3672 = vpop.f32.mrf.mxu0
    %v3673 = vadd.f32 0.0, %v3672
    %3674 = vmatmul.f32.gmra.mxu0 %v3456
    %v3675 = vpop.f32.mrf.mxu0
    %v3676 = vadd.f32 0.0, %v3675
    %3677 = vmatmul.f32.gmra.mxu0 %v3457
    %v3678 = vpop.f32.mrf.mxu0
    %v3679 = vadd.f32 0.0, %v3678
    %3680 = vmatmul.f32.gmra.mxu0 %v3458
    %v3681 = vpop.f32.mrf.mxu0
    %v3682 = vadd.f32 0.0, %v3681
    %3683 = vmatmul.f32.gmra.mxu0 %v3459
    %v3684 = vpop.f32.mrf.mxu0
    %v3685 = vadd.f32 0.0, %v3684
    %3686 = vmatmul.f32.gmra.mxu0 %v3460
    %v3687 = vpop.f32.mrf.mxu0
    %v3688 = vadd.f32 0.0, %v3687
    %3689 = vmatmul.f32.gmra.mxu0 %v3461
    %v3690 = vpop.f32.mrf.mxu0
    %v3691 = vadd.f32 0.0, %v3690
    %3692 = vmatmul.f32.gmra.mxu0 %v3462
    %v3693 = vpop.f32.mrf.mxu0
    %v3694 = vadd.f32 0.0, %v3693
    %3695 = vmatmul.f32.gmra.mxu0 %v3463
    %v3696 = vpop.f32.mrf.mxu0
    %v3697 = vadd.f32 0.0, %v3696
    %3698 = vmatmul.f32.gmra.mxu0 %v3464
    %v3699 = vpop.f32.mrf.mxu0
    %v3700 = vadd.f32 0.0, %v3699
    %3701 = vmatmul.f32.gmra.mxu0 %v3465
    %v3702 = vpop.f32.mrf.mxu0
    %v3703 = vadd.f32 0.0, %v3702
    %3704 = vmatmul.f32.gmra.mxu0 %v3466
    %v3705 = vpop.f32.mrf.mxu0
    %v3706 = vadd.f32 0.0, %v3705
    %3707 = vmatmul.f32.gmra.mxu0 %v3467
    %v3708 = vpop.f32.mrf.mxu0
    %v3709 = vadd.f32 0.0, %v3708
    %3710 = vmatmul.f32.gmra.mxu0 %v3468
    %v3711 = vpop.f32.mrf.mxu0
    %v3712 = vadd.f32 0.0, %v3711
    %3713 = vmatmul.f32.gmra.mxu0 %v3469
    %v3714 = vpop.f32.mrf.mxu0
    %v3715 = vadd.f32 0.0, %v3714
    %3716 = vmatmul.f32.gmra.mxu0 %v3470
    %v3717 = vpop.f32.mrf.mxu0
    %v3718 = vadd.f32 0.0, %v3717
    %3719 = vmatmul.f32.gmra.mxu0 %v3471
    %v3720 = vpop.f32.mrf.mxu0
    %v3721 = vadd.f32 0.0, %v3720
    %3722 = vmatmul.f32.gmra.mxu0 %v3472
    %v3723 = vpop.f32.mrf.mxu0
    %v3724 = vadd.f32 0.0, %v3723
    %3725 = vmatmul.f32.gmra.mxu0 %v3473
    %v3726 = vpop.f32.mrf.mxu0
    %v3727 = vadd.f32 0.0, %v3726
    %3728 = vmatmul.f32.gmra.mxu0 %v3474
    %v3729 = vpop.f32.mrf.mxu0
    %v3730 = vadd.f32 0.0, %v3729
    %3731 = vmatmul.f32.gmra.mxu0 %v3475
    %v3732 = vpop.f32.mrf.mxu0
    %v3733 = vadd.f32 0.0, %v3732
    %3734 = vmatmul.f32.gmra.mxu0 %v3476
    %v3735 = vpop.f32.mrf.mxu0
    %v3736 = vadd.f32 0.0, %v3735
    %3737 = vmatmul.f32.gmra.mxu0 %v3477
    %v3738 = vpop.f32.mrf.mxu0
    %v3739 = vadd.f32 0.0, %v3738
    %3740 = vmatmul.f32.gmra.mxu0 %v3478
    %v3741 = vpop.f32.mrf.mxu0
    %v3742 = vadd.f32 0.0, %v3741
    %3743 = vmatmul.f32.gmra.mxu0 %v3479
    %v3744 = vpop.f32.mrf.mxu0
    %v3745 = vadd.f32 0.0, %v3744
    %3746 = vmatmul.f32.gmra.mxu0 %v3480
    %v3747 = vpop.f32.mrf.mxu0
    %v3748 = vadd.f32 0.0, %v3747
    %3749 = vmatmul.f32.gmra.mxu0 %v3481
    %v3750 = vpop.f32.mrf.mxu0
    %v3751 = vadd.f32 0.0, %v3750
    %3752 = vmatmul.f32.gmra.mxu0 %v3482
    %v3753 = vpop.f32.mrf.mxu0
    %v3754 = vadd.f32 0.0, %v3753
    %3755 = vmatmul.f32.gmra.mxu0 %v3483
    %v3756 = vpop.f32.mrf.mxu0
    %v3757 = vadd.f32 0.0, %v3756
    %3758 = vmatmul.f32.gmra.mxu0 %v3484
    %v3759 = vpop.f32.mrf.mxu0
    %v3760 = vadd.f32 0.0, %v3759
    %3761 = vdwg.mxu0
    %v3762 = vadd.f32 %v3323, %v3520
    %v3763 = vadd.f32 %v3324, %v3523
    %v3764 = vadd.f32 %v3325, %v3526
    %v3765 = vadd.f32 %v3326, %v3529
    %v3766 = vadd.f32 %v3327, %v3532
    %v3767 = vadd.f32 %v3328, %v3535
    %v3768 = vadd.f32 %v3329, %v3538
    %v3769 = vadd.f32 %v3330, %v3541
    %v3770 = vadd.f32 %v3331, %v3544
    %v3771 = vadd.f32 %v3332, %v3547
    %v3772 = vadd.f32 %v3333, %v3550
    %v3773 = vadd.f32 %v3334, %v3553
    %v3774 = vadd.f32 %v3335, %v3556
    %v3775 = vadd.f32 %v3336, %v3559
    %v3776 = vadd.f32 %v3337, %v3562
    %v3777 = vadd.f32 %v3338, %v3565
    %v3778 = vadd.f32 %v3339, %v3568
    %v3779 = vadd.f32 %v3340, %v3571
    %v3780 = vadd.f32 %v3341, %v3574
    %v3781 = vadd.f32 %v3342, %v3577
    %v3782 = vadd.f32 %v3343, %v3580
    %v3783 = vadd.f32 %v3344, %v3583
    %v3784 = vadd.f32 %v3345, %v3586
    %v3785 = vadd.f32 %v3346, %v3589
    %v3786 = vadd.f32 %v3347, %v3592
    %v3787 = vadd.f32 %v3348, %v3595
    %v3788 = vadd.f32 %v3349, %v3598
    %v3789 = vadd.f32 %v3350, %v3601
    %v3790 = vadd.f32 %v3351, %v3604
    %v3791 = vadd.f32 %v3352, %v3607
    %v3792 = vadd.f32 %v3353, %v3610
    %v3793 = vadd.f32 %v3354, %v3613
    %v3794 = vadd.f32 %v3355, %v3616
    %v3795 = vadd.f32 %v3356, %v3619
    %v3796 = vadd.f32 %v3357, %v3622
    %v3797 = vadd.f32 %v3358, %v3625
    %v3798 = vadd.f32 %v3359, %v3628
    %v3799 = vadd.f32 %v3360, %v3631
    %v3800 = vadd.f32 %v3361, %v3634
    %v3801 = vadd.f32 %v3362, %v3637
    %v3802 = vadd.f32 %v3363, %v3640
    %v3803 = vadd.f32 %v3364, %v3643
    %v3804 = vadd.f32 %v3365, %v3646
    %v3805 = vadd.f32 %v3366, %v3649
    %v3806 = vadd.f32 %v3367, %v3652
    %v3807 = vadd.f32 %v3368, %v3655
    %v3808 = vadd.f32 %v3369, %v3658
    %v3809 = vadd.f32 %v3370, %v3661
    %v3810 = vadd.f32 %v3371, %v3664
    %v3811 = vadd.f32 %v3372, %v3667
    %v3812 = vadd.f32 %v3373, %v3670
    %v3813 = vadd.f32 %v3374, %v3673
    %v3814 = vadd.f32 %v3375, %v3676
    %v3815 = vadd.f32 %v3376, %v3679
    %v3816 = vadd.f32 %v3377, %v3682
    %v3817 = vadd.f32 %v3378, %v3685
    %v3818 = vadd.f32 %v3379, %v3688
    %v3819 = vadd.f32 %v3380, %v3691
    %v3820 = vadd.f32 %v3381, %v3694
    %v3821 = vadd.f32 %v3382, %v3697
    %v3822 = vadd.f32 %v3383, %v3700
    %v3823 = vadd.f32 %v3384, %v3703
    %v3824 = vadd.f32 %v3385, %v3706
    %v3825 = vadd.f32 %v3386, %v3709
    %v3826 = vadd.f32 %v3387, %v3712
    %v3827 = vadd.f32 %v3388, %v3715
    %v3828 = vadd.f32 %v3389, %v3718
    %v3829 = vadd.f32 %v3390, %v3721
    %v3830 = vadd.f32 %v3391, %v3724
    %v3831 = vadd.f32 %v3392, %v3727
    %v3832 = vadd.f32 %v3393, %v3730
    %v3833 = vadd.f32 %v3394, %v3733
    %v3834 = vadd.f32 %v3395, %v3736
    %v3835 = vadd.f32 %v3396, %v3739
    %v3836 = vadd.f32 %v3397, %v3742
    %v3837 = vadd.f32 %v3398, %v3745
    %v3838 = vadd.f32 %v3399, %v3748
    %v3839 = vadd.f32 %v3400, %v3751
    %v3840 = vadd.f32 %v3401, %v3754
    %v3841 = vadd.f32 %v3402, %v3757
    %v3842 = vadd.f32 %v3403, %v3760
    %v3843 = vld [vmem:[#allocation2 + $0x19] sm:$0xff]
    %v3844 = vld [vmem:[#allocation2 + $0x21] sm:$0xff]
    %v3845 = vld [vmem:[#allocation2 + $0x29] sm:$0xff]
    %v3846 = vld [vmem:[#allocation2 + $0x31] sm:$0xff]
    %v3847 = vld [vmem:[#allocation2 + $0x39] sm:$0xff]
    %v3848 = vld [vmem:[#allocation2 + $0x41] sm:$0xff]
    %v3849 = vld [vmem:[#allocation2 + $0x49] sm:$0xff]
    %v3850 = vld [vmem:[#allocation2 + $0x51] sm:$0xff]
    %v3851 = vld [vmem:[#allocation2 + $0x59] sm:$0xff]
    %v3852 = vld [vmem:[#allocation2 + $0x61] sm:$0xff]
    %v3853 = vld [vmem:[#allocation2 + $0x69] sm:$0xff]
    %v3854 = vld [vmem:[#allocation2 + $0x71] sm:$0xff]
    %v3855 = vld [vmem:[#allocation2 + $0x79] sm:$0xff]
    %v3856 = vld [vmem:[#allocation2 + $0x81] sm:$0xff]
    %v3857 = vld [vmem:[#allocation2 + $0x89] sm:$0xff]
    %v3858 = vld [vmem:[#allocation2 + $0x91] sm:$0xff]
    %v3859 = vld [vmem:[#allocation2 + $0x99] sm:$0xff]
    %v3860 = vld [vmem:[#allocation2 + $0xa1] sm:$0xff]
    %v3861 = vld [vmem:[#allocation2 + $0xa9] sm:$0xff]
    %v3862 = vld [vmem:[#allocation2 + $0xb1] sm:$0xff]
    %v3863 = vld [vmem:[#allocation2 + $0xb9] sm:$0xff]
    %v3864 = vld [vmem:[#allocation2 + $0xc1] sm:$0xff]
    %v3865 = vld [vmem:[#allocation2 + $0xc9] sm:$0xff]
    %v3866 = vld [vmem:[#allocation2 + $0xd1] sm:$0xff]
    %v3867 = vld [vmem:[#allocation2 + $0xd9] sm:$0xff]
    %v3868 = vld [vmem:[#allocation2 + $0xe1] sm:$0xff]
    %v3869 = vld [vmem:[#allocation2 + $0xe9] sm:$0xff]
    %v3870 = vld [vmem:[#allocation2 + $0xf1] sm:$0xff]
    %v3871 = vld [vmem:[#allocation2 + $0xf9] sm:$0xff]
    %v3872 = vld [vmem:[#allocation2 + $0x101] sm:$0xff]
    %v3873 = vld [vmem:[#allocation2 + $0x109] sm:$0xff]
    %v3874 = vld [vmem:[#allocation2 + $0x111] sm:$0xff]
    %v3875 = vld [vmem:[#allocation2 + $0x119] sm:$0xff]
    %v3876 = vld [vmem:[#allocation2 + $0x121] sm:$0xff]
    %v3877 = vld [vmem:[#allocation2 + $0x129] sm:$0xff]
    %v3878 = vld [vmem:[#allocation2 + $0x131] sm:$0xff]
    %v3879 = vld [vmem:[#allocation2 + $0x139] sm:$0xff]
    %v3880 = vld [vmem:[#allocation2 + $0x141] sm:$0xff]
    %v3881 = vld [vmem:[#allocation2 + $0x149] sm:$0xff]
    %v3882 = vld [vmem:[#allocation2 + $0x151] sm:$0xff]
    %v3883 = vld [vmem:[#allocation2 + $0x159] sm:$0xff]
    %v3884 = vld [vmem:[#allocation2 + $0x161] sm:$0xff]
    %v3885 = vld [vmem:[#allocation2 + $0x169] sm:$0xff]
    %v3886 = vld [vmem:[#allocation2 + $0x171] sm:$0xff]
    %v3887 = vld [vmem:[#allocation2 + $0x179] sm:$0xff]
    %v3888 = vld [vmem:[#allocation2 + $0x181] sm:$0xff]
    %v3889 = vld [vmem:[#allocation2 + $0x189] sm:$0xff]
    %v3890 = vld [vmem:[#allocation2 + $0x191] sm:$0xff]
    %v3891 = vld [vmem:[#allocation2 + $0x199] sm:$0xff]
    %v3892 = vld [vmem:[#allocation2 + $0x1a1] sm:$0xff]
    %v3893 = vld [vmem:[#allocation2 + $0x1a9] sm:$0xff]
    %v3894 = vld [vmem:[#allocation2 + $0x1b1] sm:$0xff]
    %v3895 = vld [vmem:[#allocation2 + $0x1b9] sm:$0xff]
    %v3896 = vld [vmem:[#allocation2 + $0x1c1] sm:$0xff]
    %v3897 = vld [vmem:[#allocation2 + $0x1c9] sm:$0xff]
    %v3898 = vld [vmem:[#allocation2 + $0x1d1] sm:$0xff]
    %v3899 = vld [vmem:[#allocation2 + $0x1d9] sm:$0xff]
    %v3900 = vld [vmem:[#allocation2 + $0x1e1] sm:$0xff]
    %v3901 = vld [vmem:[#allocation2 + $0x1e9] sm:$0xff]
    %v3902 = vld [vmem:[#allocation2 + $0x1f1] sm:$0xff]
    %v3903 = vld [vmem:[#allocation2 + $0x1f9] sm:$0xff]
    %v3904 = vld [vmem:[#allocation2 + $0x201] sm:$0xff]
    %v3905 = vld [vmem:[#allocation2 + $0x209] sm:$0xff]
    %v3906 = vld [vmem:[#allocation2 + $0x211] sm:$0xff]
    %v3907 = vld [vmem:[#allocation2 + $0x219] sm:$0xff]
    %v3908 = vld [vmem:[#allocation2 + $0x221] sm:$0xff]
    %v3909 = vld [vmem:[#allocation2 + $0x229] sm:$0xff]
    %v3910 = vld [vmem:[#allocation2 + $0x231] sm:$0xff]
    %v3911 = vld [vmem:[#allocation2 + $0x239] sm:$0xff]
    %v3912 = vld [vmem:[#allocation2 + $0x241] sm:$0xff]
    %v3913 = vld [vmem:[#allocation2 + $0x249] sm:$0xff]
    %v3914 = vld [vmem:[#allocation2 + $0x251] sm:$0xff]
    %v3915 = vld [vmem:[#allocation2 + $0x259] sm:$0xff]
    %v3916 = vld [vmem:[#allocation2 + $0x261] sm:$0xff]
    %v3917 = vld [vmem:[#allocation2 + $0x269] sm:$0xff]
    %v3918 = vld [vmem:[#allocation2 + $0x271] sm:$0xff]
    %v3919 = vld [vmem:[#allocation2 + $0x279] sm:$0xff]
    %v3920 = vld [vmem:[#allocation2 + $0x281] sm:$0xff]
    %v3921 = vld [vmem:[#allocation2 + $0x289] sm:$0xff]
    %v3922 = vld [vmem:[#allocation2 + $0x291] sm:$0xff]
    %v3923 = vld [vmem:[#allocation2 + $0x299] sm:$0xff]
    %s3924 = scalar_lea.vmem [#allocation9], 640
    %v3925 = vld [vmem:[%s3924] sm:$0xff]
    %v3926 = vld [vmem:[%s3924 + $0x8] sm:$0xff]
    %v3927 = vld [vmem:[%s3924 + $0x10] sm:$0xff]
    %v3928 = vld [vmem:[%s3924 + $0x18] sm:$0xff]
    %v3929 = vld [vmem:[%s3924 + $0x20] sm:$0xff]
    %v3930 = vld [vmem:[%s3924 + $0x28] sm:$0xff]
    %v3931 = vld [vmem:[%s3924 + $0x30] sm:$0xff]
    %v3932 = vld [vmem:[%s3924 + $0x38] sm:$0xff]
    %v3933 = vld [vmem:[%s3924 + $0x40] sm:$0xff]
    %v3934 = vld [vmem:[%s3924 + $0x48] sm:$0xff]
    %v3935 = vld [vmem:[%s3924 + $0x50] sm:$0xff]
    %v3936 = vld [vmem:[%s3924 + $0x58] sm:$0xff]
    %v3937 = vld [vmem:[%s3924 + $0x60] sm:$0xff]
    %v3938 = vld [vmem:[%s3924 + $0x68] sm:$0xff]
    %v3939 = vld [vmem:[%s3924 + $0x70] sm:$0xff]
    %v3940 = vld [vmem:[%s3924 + $0x78] sm:$0xff]
    %3941 = vmatpush.msra.mxu0 %v3940
    %3942 = vmatpush.msra.mxu0 %v3939
    %3943 = vmatpush.msra.mxu0 %v3938
    %3944 = vmatpush.msra.mxu0 %v3937
    %3945 = vmatpush.msra.mxu0 %v3936
    %3946 = vmatpush.msra.mxu0 %v3935
    %3947 = vmatpush.msra.mxu0 %v3934
    %3948 = vmatpush.msra.mxu0 %v3933
    %3949 = vmatpush.msra.mxu0 %v3932
    %3950 = vmatpush.msra.mxu0 %v3931
    %3951 = vmatpush.msra.mxu0 %v3930
    %3952 = vmatpush.msra.mxu0 %v3929
    %3953 = vmatpush.msra.mxu0 %v3928
    %3954 = vmatpush.msra.mxu0 %v3927
    %3955 = vmatpush.msra.mxu0 %v3926
    %3956 = vmatpush.msra.mxu0 %v3925
    %3957 = vmatmul.f32.gmra.mxu0 %v3843
    %v3958 = vpop.f32.mrf.mxu0
    %v3959 = vadd.f32 0.0, %v3958
    %3960 = vmatmul.f32.gmra.mxu0 %v3844
    %v3961 = vpop.f32.mrf.mxu0
    %v3962 = vadd.f32 0.0, %v3961
    %3963 = vmatmul.f32.gmra.mxu0 %v3845
    %v3964 = vpop.f32.mrf.mxu0
    %v3965 = vadd.f32 0.0, %v3964
    %3966 = vmatmul.f32.gmra.mxu0 %v3846
    %v3967 = vpop.f32.mrf.mxu0
    %v3968 = vadd.f32 0.0, %v3967
    %3969 = vmatmul.f32.gmra.mxu0 %v3847
    %v3970 = vpop.f32.mrf.mxu0
    %v3971 = vadd.f32 0.0, %v3970
    %3972 = vmatmul.f32.gmra.mxu0 %v3848
    %v3973 = vpop.f32.mrf.mxu0
    %v3974 = vadd.f32 0.0, %v3973
    %3975 = vmatmul.f32.gmra.mxu0 %v3849
    %v3976 = vpop.f32.mrf.mxu0
    %v3977 = vadd.f32 0.0, %v3976
    %3978 = vmatmul.f32.gmra.mxu0 %v3850
    %v3979 = vpop.f32.mrf.mxu0
    %v3980 = vadd.f32 0.0, %v3979
    %3981 = vmatmul.f32.gmra.mxu0 %v3851
    %v3982 = vpop.f32.mrf.mxu0
    %v3983 = vadd.f32 0.0, %v3982
    %3984 = vmatmul.f32.gmra.mxu0 %v3852
    %v3985 = vpop.f32.mrf.mxu0
    %v3986 = vadd.f32 0.0, %v3985
    %3987 = vmatmul.f32.gmra.mxu0 %v3853
    %v3988 = vpop.f32.mrf.mxu0
    %v3989 = vadd.f32 0.0, %v3988
    %3990 = vmatmul.f32.gmra.mxu0 %v3854
    %v3991 = vpop.f32.mrf.mxu0
    %v3992 = vadd.f32 0.0, %v3991
    %3993 = vmatmul.f32.gmra.mxu0 %v3855
    %v3994 = vpop.f32.mrf.mxu0
    %v3995 = vadd.f32 0.0, %v3994
    %3996 = vmatmul.f32.gmra.mxu0 %v3856
    %v3997 = vpop.f32.mrf.mxu0
    %v3998 = vadd.f32 0.0, %v3997
    %3999 = vmatmul.f32.gmra.mxu0 %v3857
    %v4000 = vpop.f32.mrf.mxu0
    %v4001 = vadd.f32 0.0, %v4000
    %4002 = vmatmul.f32.gmra.mxu0 %v3858
    %v4003 = vpop.f32.mrf.mxu0
    %v4004 = vadd.f32 0.0, %v4003
    %4005 = vmatmul.f32.gmra.mxu0 %v3859
    %v4006 = vpop.f32.mrf.mxu0
    %v4007 = vadd.f32 0.0, %v4006
    %4008 = vmatmul.f32.gmra.mxu0 %v3860
    %v4009 = vpop.f32.mrf.mxu0
    %v4010 = vadd.f32 0.0, %v4009
    %4011 = vmatmul.f32.gmra.mxu0 %v3861
    %v4012 = vpop.f32.mrf.mxu0
    %v4013 = vadd.f32 0.0, %v4012
    %4014 = vmatmul.f32.gmra.mxu0 %v3862
    %v4015 = vpop.f32.mrf.mxu0
    %v4016 = vadd.f32 0.0, %v4015
    %4017 = vmatmul.f32.gmra.mxu0 %v3863
    %v4018 = vpop.f32.mrf.mxu0
    %v4019 = vadd.f32 0.0, %v4018
    %4020 = vmatmul.f32.gmra.mxu0 %v3864
    %v4021 = vpop.f32.mrf.mxu0
    %v4022 = vadd.f32 0.0, %v4021
    %4023 = vmatmul.f32.gmra.mxu0 %v3865
    %v4024 = vpop.f32.mrf.mxu0
    %v4025 = vadd.f32 0.0, %v4024
    %4026 = vmatmul.f32.gmra.mxu0 %v3866
    %v4027 = vpop.f32.mrf.mxu0
    %v4028 = vadd.f32 0.0, %v4027
    %4029 = vmatmul.f32.gmra.mxu0 %v3867
    %v4030 = vpop.f32.mrf.mxu0
    %v4031 = vadd.f32 0.0, %v4030
    %4032 = vmatmul.f32.gmra.mxu0 %v3868
    %v4033 = vpop.f32.mrf.mxu0
    %v4034 = vadd.f32 0.0, %v4033
    %4035 = vmatmul.f32.gmra.mxu0 %v3869
    %v4036 = vpop.f32.mrf.mxu0
    %v4037 = vadd.f32 0.0, %v4036
    %4038 = vmatmul.f32.gmra.mxu0 %v3870
    %v4039 = vpop.f32.mrf.mxu0
    %v4040 = vadd.f32 0.0, %v4039
    %4041 = vmatmul.f32.gmra.mxu0 %v3871
    %v4042 = vpop.f32.mrf.mxu0
    %v4043 = vadd.f32 0.0, %v4042
    %4044 = vmatmul.f32.gmra.mxu0 %v3872
    %v4045 = vpop.f32.mrf.mxu0
    %v4046 = vadd.f32 0.0, %v4045
    %4047 = vmatmul.f32.gmra.mxu0 %v3873
    %v4048 = vpop.f32.mrf.mxu0
    %v4049 = vadd.f32 0.0, %v4048
    %4050 = vmatmul.f32.gmra.mxu0 %v3874
    %v4051 = vpop.f32.mrf.mxu0
    %v4052 = vadd.f32 0.0, %v4051
    %4053 = vmatmul.f32.gmra.mxu0 %v3875
    %v4054 = vpop.f32.mrf.mxu0
    %v4055 = vadd.f32 0.0, %v4054
    %4056 = vmatmul.f32.gmra.mxu0 %v3876
    %v4057 = vpop.f32.mrf.mxu0
    %v4058 = vadd.f32 0.0, %v4057
    %4059 = vmatmul.f32.gmra.mxu0 %v3877
    %v4060 = vpop.f32.mrf.mxu0
    %v4061 = vadd.f32 0.0, %v4060
    %4062 = vmatmul.f32.gmra.mxu0 %v3878
    %v4063 = vpop.f32.mrf.mxu0
    %v4064 = vadd.f32 0.0, %v4063
    %4065 = vmatmul.f32.gmra.mxu0 %v3879
    %v4066 = vpop.f32.mrf.mxu0
    %v4067 = vadd.f32 0.0, %v4066
    %4068 = vmatmul.f32.gmra.mxu0 %v3880
    %v4069 = vpop.f32.mrf.mxu0
    %v4070 = vadd.f32 0.0, %v4069
    %4071 = vmatmul.f32.gmra.mxu0 %v3881
    %v4072 = vpop.f32.mrf.mxu0
    %v4073 = vadd.f32 0.0, %v4072
    %4074 = vmatmul.f32.gmra.mxu0 %v3882
    %v4075 = vpop.f32.mrf.mxu0
    %v4076 = vadd.f32 0.0, %v4075
    %4077 = vmatmul.f32.gmra.mxu0 %v3883
    %v4078 = vpop.f32.mrf.mxu0
    %v4079 = vadd.f32 0.0, %v4078
    %4080 = vmatmul.f32.gmra.mxu0 %v3884
    %v4081 = vpop.f32.mrf.mxu0
    %v4082 = vadd.f32 0.0, %v4081
    %4083 = vmatmul.f32.gmra.mxu0 %v3885
    %v4084 = vpop.f32.mrf.mxu0
    %v4085 = vadd.f32 0.0, %v4084
    %4086 = vmatmul.f32.gmra.mxu0 %v3886
    %v4087 = vpop.f32.mrf.mxu0
    %v4088 = vadd.f32 0.0, %v4087
    %4089 = vmatmul.f32.gmra.mxu0 %v3887
    %v4090 = vpop.f32.mrf.mxu0
    %v4091 = vadd.f32 0.0, %v4090
    %4092 = vmatmul.f32.gmra.mxu0 %v3888
    %v4093 = vpop.f32.mrf.mxu0
    %v4094 = vadd.f32 0.0, %v4093
    %4095 = vmatmul.f32.gmra.mxu0 %v3889
    %v4096 = vpop.f32.mrf.mxu0
    %v4097 = vadd.f32 0.0, %v4096
    %4098 = vmatmul.f32.gmra.mxu0 %v3890
    %v4099 = vpop.f32.mrf.mxu0
    %v4100 = vadd.f32 0.0, %v4099
    %4101 = vmatmul.f32.gmra.mxu0 %v3891
    %v4102 = vpop.f32.mrf.mxu0
    %v4103 = vadd.f32 0.0, %v4102
    %4104 = vmatmul.f32.gmra.mxu0 %v3892
    %v4105 = vpop.f32.mrf.mxu0
    %v4106 = vadd.f32 0.0, %v4105
    %4107 = vmatmul.f32.gmra.mxu0 %v3893
    %v4108 = vpop.f32.mrf.mxu0
    %v4109 = vadd.f32 0.0, %v4108
    %4110 = vmatmul.f32.gmra.mxu0 %v3894
    %v4111 = vpop.f32.mrf.mxu0
    %v4112 = vadd.f32 0.0, %v4111
    %4113 = vmatmul.f32.gmra.mxu0 %v3895
    %v4114 = vpop.f32.mrf.mxu0
    %v4115 = vadd.f32 0.0, %v4114
    %4116 = vmatmul.f32.gmra.mxu0 %v3896
    %v4117 = vpop.f32.mrf.mxu0
    %v4118 = vadd.f32 0.0, %v4117
    %4119 = vmatmul.f32.gmra.mxu0 %v3897
    %v4120 = vpop.f32.mrf.mxu0
    %v4121 = vadd.f32 0.0, %v4120
    %4122 = vmatmul.f32.gmra.mxu0 %v3898
    %v4123 = vpop.f32.mrf.mxu0
    %v4124 = vadd.f32 0.0, %v4123
    %4125 = vmatmul.f32.gmra.mxu0 %v3899
    %v4126 = vpop.f32.mrf.mxu0
    %v4127 = vadd.f32 0.0, %v4126
    %4128 = vmatmul.f32.gmra.mxu0 %v3900
    %v4129 = vpop.f32.mrf.mxu0
    %v4130 = vadd.f32 0.0, %v4129
    %4131 = vmatmul.f32.gmra.mxu0 %v3901
    %v4132 = vpop.f32.mrf.mxu0
    %v4133 = vadd.f32 0.0, %v4132
    %4134 = vmatmul.f32.gmra.mxu0 %v3902
    %v4135 = vpop.f32.mrf.mxu0
    %v4136 = vadd.f32 0.0, %v4135
    %4137 = vmatmul.f32.gmra.mxu0 %v3903
    %v4138 = vpop.f32.mrf.mxu0
    %v4139 = vadd.f32 0.0, %v4138
    %4140 = vmatmul.f32.gmra.mxu0 %v3904
    %v4141 = vpop.f32.mrf.mxu0
    %v4142 = vadd.f32 0.0, %v4141
    %4143 = vmatmul.f32.gmra.mxu0 %v3905
    %v4144 = vpop.f32.mrf.mxu0
    %v4145 = vadd.f32 0.0, %v4144
    %4146 = vmatmul.f32.gmra.mxu0 %v3906
    %v4147 = vpop.f32.mrf.mxu0
    %v4148 = vadd.f32 0.0, %v4147
    %4149 = vmatmul.f32.gmra.mxu0 %v3907
    %v4150 = vpop.f32.mrf.mxu0
    %v4151 = vadd.f32 0.0, %v4150
    %4152 = vmatmul.f32.gmra.mxu0 %v3908
    %v4153 = vpop.f32.mrf.mxu0
    %v4154 = vadd.f32 0.0, %v4153
    %4155 = vmatmul.f32.gmra.mxu0 %v3909
    %v4156 = vpop.f32.mrf.mxu0
    %v4157 = vadd.f32 0.0, %v4156
    %4158 = vmatmul.f32.gmra.mxu0 %v3910
    %v4159 = vpop.f32.mrf.mxu0
    %v4160 = vadd.f32 0.0, %v4159
    %4161 = vmatmul.f32.gmra.mxu0 %v3911
    %v4162 = vpop.f32.mrf.mxu0
    %v4163 = vadd.f32 0.0, %v4162
    %4164 = vmatmul.f32.gmra.mxu0 %v3912
    %v4165 = vpop.f32.mrf.mxu0
    %v4166 = vadd.f32 0.0, %v4165
    %4167 = vmatmul.f32.gmra.mxu0 %v3913
    %v4168 = vpop.f32.mrf.mxu0
    %v4169 = vadd.f32 0.0, %v4168
    %4170 = vmatmul.f32.gmra.mxu0 %v3914
    %v4171 = vpop.f32.mrf.mxu0
    %v4172 = vadd.f32 0.0, %v4171
    %4173 = vmatmul.f32.gmra.mxu0 %v3915
    %v4174 = vpop.f32.mrf.mxu0
    %v4175 = vadd.f32 0.0, %v4174
    %4176 = vmatmul.f32.gmra.mxu0 %v3916
    %v4177 = vpop.f32.mrf.mxu0
    %v4178 = vadd.f32 0.0, %v4177
    %4179 = vmatmul.f32.gmra.mxu0 %v3917
    %v4180 = vpop.f32.mrf.mxu0
    %v4181 = vadd.f32 0.0, %v4180
    %4182 = vmatmul.f32.gmra.mxu0 %v3918
    %v4183 = vpop.f32.mrf.mxu0
    %v4184 = vadd.f32 0.0, %v4183
    %4185 = vmatmul.f32.gmra.mxu0 %v3919
    %v4186 = vpop.f32.mrf.mxu0
    %v4187 = vadd.f32 0.0, %v4186
    %4188 = vmatmul.f32.gmra.mxu0 %v3920
    %v4189 = vpop.f32.mrf.mxu0
    %v4190 = vadd.f32 0.0, %v4189
    %4191 = vmatmul.f32.gmra.mxu0 %v3921
    %v4192 = vpop.f32.mrf.mxu0
    %v4193 = vadd.f32 0.0, %v4192
    %4194 = vmatmul.f32.gmra.mxu0 %v3922
    %v4195 = vpop.f32.mrf.mxu0
    %v4196 = vadd.f32 0.0, %v4195
    %4197 = vmatmul.f32.gmra.mxu0 %v3923
    %v4198 = vpop.f32.mrf.mxu0
    %v4199 = vadd.f32 0.0, %v4198
    %4200 = vdwg.mxu0
    %v4201 = vadd.f32 %v3762, %v3959
    %v4202 = vadd.f32 %v3763, %v3962
    %v4203 = vadd.f32 %v3764, %v3965
    %v4204 = vadd.f32 %v3765, %v3968
    %v4205 = vadd.f32 %v3766, %v3971
    %v4206 = vadd.f32 %v3767, %v3974
    %v4207 = vadd.f32 %v3768, %v3977
    %v4208 = vadd.f32 %v3769, %v3980
    %v4209 = vadd.f32 %v3770, %v3983
    %v4210 = vadd.f32 %v3771, %v3986
    %v4211 = vadd.f32 %v3772, %v3989
    %v4212 = vadd.f32 %v3773, %v3992
    %v4213 = vadd.f32 %v3774, %v3995
    %v4214 = vadd.f32 %v3775, %v3998
    %v4215 = vadd.f32 %v3776, %v4001
    %v4216 = vadd.f32 %v3777, %v4004
    %v4217 = vadd.f32 %v3778, %v4007
    %v4218 = vadd.f32 %v3779, %v4010
    %v4219 = vadd.f32 %v3780, %v4013
    %v4220 = vadd.f32 %v3781, %v4016
    %v4221 = vadd.f32 %v3782, %v4019
    %v4222 = vadd.f32 %v3783, %v4022
    %v4223 = vadd.f32 %v3784, %v4025
    %v4224 = vadd.f32 %v3785, %v4028
    %v4225 = vadd.f32 %v3786, %v4031
    %v4226 = vadd.f32 %v3787, %v4034
    %v4227 = vadd.f32 %v3788, %v4037
    %v4228 = vadd.f32 %v3789, %v4040
    %v4229 = vadd.f32 %v3790, %v4043
    %v4230 = vadd.f32 %v3791, %v4046
    %v4231 = vadd.f32 %v3792, %v4049
    %v4232 = vadd.f32 %v3793, %v4052
    %v4233 = vadd.f32 %v3794, %v4055
    %v4234 = vadd.f32 %v3795, %v4058
    %v4235 = vadd.f32 %v3796, %v4061
    %v4236 = vadd.f32 %v3797, %v4064
    %v4237 = vadd.f32 %v3798, %v4067
    %v4238 = vadd.f32 %v3799, %v4070
    %v4239 = vadd.f32 %v3800, %v4073
    %v4240 = vadd.f32 %v3801, %v4076
    %v4241 = vadd.f32 %v3802, %v4079
    %v4242 = vadd.f32 %v3803, %v4082
    %v4243 = vadd.f32 %v3804, %v4085
    %v4244 = vadd.f32 %v3805, %v4088
    %v4245 = vadd.f32 %v3806, %v4091
    %v4246 = vadd.f32 %v3807, %v4094
    %v4247 = vadd.f32 %v3808, %v4097
    %v4248 = vadd.f32 %v3809, %v4100
    %v4249 = vadd.f32 %v3810, %v4103
    %v4250 = vadd.f32 %v3811, %v4106
    %v4251 = vadd.f32 %v3812, %v4109
    %v4252 = vadd.f32 %v3813, %v4112
    %v4253 = vadd.f32 %v3814, %v4115
    %v4254 = vadd.f32 %v3815, %v4118
    %v4255 = vadd.f32 %v3816, %v4121
    %v4256 = vadd.f32 %v3817, %v4124
    %v4257 = vadd.f32 %v3818, %v4127
    %v4258 = vadd.f32 %v3819, %v4130
    %v4259 = vadd.f32 %v3820, %v4133
    %v4260 = vadd.f32 %v3821, %v4136
    %v4261 = vadd.f32 %v3822, %v4139
    %v4262 = vadd.f32 %v3823, %v4142
    %v4263 = vadd.f32 %v3824, %v4145
    %v4264 = vadd.f32 %v3825, %v4148
    %v4265 = vadd.f32 %v3826, %v4151
    %v4266 = vadd.f32 %v3827, %v4154
    %v4267 = vadd.f32 %v3828, %v4157
    %v4268 = vadd.f32 %v3829, %v4160
    %v4269 = vadd.f32 %v3830, %v4163
    %v4270 = vadd.f32 %v3831, %v4166
    %v4271 = vadd.f32 %v3832, %v4169
    %v4272 = vadd.f32 %v3833, %v4172
    %v4273 = vadd.f32 %v3834, %v4175
    %v4274 = vadd.f32 %v3835, %v4178
    %v4275 = vadd.f32 %v3836, %v4181
    %v4276 = vadd.f32 %v3837, %v4184
    %v4277 = vadd.f32 %v3838, %v4187
    %v4278 = vadd.f32 %v3839, %v4190
    %v4279 = vadd.f32 %v3840, %v4193
    %v4280 = vadd.f32 %v3841, %v4196
    %v4281 = vadd.f32 %v3842, %v4199
    %v4282 = vld [vmem:[#allocation2 + $0x29] sm:$0xff]
    %v4283 = vld [vmem:[#allocation2 + $0x31] sm:$0xff]
    %v4284 = vld [vmem:[#allocation2 + $0x39] sm:$0xff]
    %v4285 = vld [vmem:[#allocation2 + $0x41] sm:$0xff]
    %v4286 = vld [vmem:[#allocation2 + $0x49] sm:$0xff]
    %v4287 = vld [vmem:[#allocation2 + $0x51] sm:$0xff]
    %v4288 = vld [vmem:[#allocation2 + $0x59] sm:$0xff]
    %v4289 = vld [vmem:[#allocation2 + $0x61] sm:$0xff]
    %v4290 = vld [vmem:[#allocation2 + $0x69] sm:$0xff]
    %v4291 = vld [vmem:[#allocation2 + $0x71] sm:$0xff]
    %v4292 = vld [vmem:[#allocation2 + $0x79] sm:$0xff]
    %v4293 = vld [vmem:[#allocation2 + $0x81] sm:$0xff]
    %v4294 = vld [vmem:[#allocation2 + $0x89] sm:$0xff]
    %v4295 = vld [vmem:[#allocation2 + $0x91] sm:$0xff]
    %v4296 = vld [vmem:[#allocation2 + $0x99] sm:$0xff]
    %v4297 = vld [vmem:[#allocation2 + $0xa1] sm:$0xff]
    %v4298 = vld [vmem:[#allocation2 + $0xa9] sm:$0xff]
    %v4299 = vld [vmem:[#allocation2 + $0xb1] sm:$0xff]
    %v4300 = vld [vmem:[#allocation2 + $0xb9] sm:$0xff]
    %v4301 = vld [vmem:[#allocation2 + $0xc1] sm:$0xff]
    %v4302 = vld [vmem:[#allocation2 + $0xc9] sm:$0xff]
    %v4303 = vld [vmem:[#allocation2 + $0xd1] sm:$0xff]
    %v4304 = vld [vmem:[#allocation2 + $0xd9] sm:$0xff]
    %v4305 = vld [vmem:[#allocation2 + $0xe1] sm:$0xff]
    %v4306 = vld [vmem:[#allocation2 + $0xe9] sm:$0xff]
    %v4307 = vld [vmem:[#allocation2 + $0xf1] sm:$0xff]
    %v4308 = vld [vmem:[#allocation2 + $0xf9] sm:$0xff]
    %v4309 = vld [vmem:[#allocation2 + $0x101] sm:$0xff]
    %v4310 = vld [vmem:[#allocation2 + $0x109] sm:$0xff]
    %v4311 = vld [vmem:[#allocation2 + $0x111] sm:$0xff]
    %v4312 = vld [vmem:[#allocation2 + $0x119] sm:$0xff]
    %v4313 = vld [vmem:[#allocation2 + $0x121] sm:$0xff]
    %v4314 = vld [vmem:[#allocation2 + $0x129] sm:$0xff]
    %v4315 = vld [vmem:[#allocation2 + $0x131] sm:$0xff]
    %v4316 = vld [vmem:[#allocation2 + $0x139] sm:$0xff]
    %v4317 = vld [vmem:[#allocation2 + $0x141] sm:$0xff]
    %v4318 = vld [vmem:[#allocation2 + $0x149] sm:$0xff]
    %v4319 = vld [vmem:[#allocation2 + $0x151] sm:$0xff]
    %v4320 = vld [vmem:[#allocation2 + $0x159] sm:$0xff]
    %v4321 = vld [vmem:[#allocation2 + $0x161] sm:$0xff]
    %v4322 = vld [vmem:[#allocation2 + $0x169] sm:$0xff]
    %v4323 = vld [vmem:[#allocation2 + $0x171] sm:$0xff]
    %v4324 = vld [vmem:[#allocation2 + $0x179] sm:$0xff]
    %v4325 = vld [vmem:[#allocation2 + $0x181] sm:$0xff]
    %v4326 = vld [vmem:[#allocation2 + $0x189] sm:$0xff]
    %v4327 = vld [vmem:[#allocation2 + $0x191] sm:$0xff]
    %v4328 = vld [vmem:[#allocation2 + $0x199] sm:$0xff]
    %v4329 = vld [vmem:[#allocation2 + $0x1a1] sm:$0xff]
    %v4330 = vld [vmem:[#allocation2 + $0x1a9] sm:$0xff]
    %v4331 = vld [vmem:[#allocation2 + $0x1b1] sm:$0xff]
    %v4332 = vld [vmem:[#allocation2 + $0x1b9] sm:$0xff]
    %v4333 = vld [vmem:[#allocation2 + $0x1c1] sm:$0xff]
    %v4334 = vld [vmem:[#allocation2 + $0x1c9] sm:$0xff]
    %v4335 = vld [vmem:[#allocation2 + $0x1d1] sm:$0xff]
    %v4336 = vld [vmem:[#allocation2 + $0x1d9] sm:$0xff]
    %v4337 = vld [vmem:[#allocation2 + $0x1e1] sm:$0xff]
    %v4338 = vld [vmem:[#allocation2 + $0x1e9] sm:$0xff]
    %v4339 = vld [vmem:[#allocation2 + $0x1f1] sm:$0xff]
    %v4340 = vld [vmem:[#allocation2 + $0x1f9] sm:$0xff]
    %v4341 = vld [vmem:[#allocation2 + $0x201] sm:$0xff]
    %v4342 = vld [vmem:[#allocation2 + $0x209] sm:$0xff]
    %v4343 = vld [vmem:[#allocation2 + $0x211] sm:$0xff]
    %v4344 = vld [vmem:[#allocation2 + $0x219] sm:$0xff]
    %v4345 = vld [vmem:[#allocation2 + $0x221] sm:$0xff]
    %v4346 = vld [vmem:[#allocation2 + $0x229] sm:$0xff]
    %v4347 = vld [vmem:[#allocation2 + $0x231] sm:$0xff]
    %v4348 = vld [vmem:[#allocation2 + $0x239] sm:$0xff]
    %v4349 = vld [vmem:[#allocation2 + $0x241] sm:$0xff]
    %v4350 = vld [vmem:[#allocation2 + $0x249] sm:$0xff]
    %v4351 = vld [vmem:[#allocation2 + $0x251] sm:$0xff]
    %v4352 = vld [vmem:[#allocation2 + $0x259] sm:$0xff]
    %v4353 = vld [vmem:[#allocation2 + $0x261] sm:$0xff]
    %v4354 = vld [vmem:[#allocation2 + $0x269] sm:$0xff]
    %v4355 = vld [vmem:[#allocation2 + $0x271] sm:$0xff]
    %v4356 = vld [vmem:[#allocation2 + $0x279] sm:$0xff]
    %v4357 = vld [vmem:[#allocation2 + $0x281] sm:$0xff]
    %v4358 = vld [vmem:[#allocation2 + $0x289] sm:$0xff]
    %v4359 = vld [vmem:[#allocation2 + $0x291] sm:$0xff]
    %v4360 = vld [vmem:[#allocation2 + $0x299] sm:$0xff]
    %v4361 = vld [vmem:[#allocation2 + $0x2a1] sm:$0xff]
    %v4362 = vld [vmem:[#allocation2 + $0x2a9] sm:$0xff]
    %s4363 = scalar_lea.vmem [#allocation9], 768
    %v4364 = vld [vmem:[%s4363] sm:$0xff]
    %v4365 = vld [vmem:[%s4363 + $0x8] sm:$0xff]
    %v4366 = vld [vmem:[%s4363 + $0x10] sm:$0xff]
    %v4367 = vld [vmem:[%s4363 + $0x18] sm:$0xff]
    %v4368 = vld [vmem:[%s4363 + $0x20] sm:$0xff]
    %v4369 = vld [vmem:[%s4363 + $0x28] sm:$0xff]
    %v4370 = vld [vmem:[%s4363 + $0x30] sm:$0xff]
    %v4371 = vld [vmem:[%s4363 + $0x38] sm:$0xff]
    %v4372 = vld [vmem:[%s4363 + $0x40] sm:$0xff]
    %v4373 = vld [vmem:[%s4363 + $0x48] sm:$0xff]
    %v4374 = vld [vmem:[%s4363 + $0x50] sm:$0xff]
    %v4375 = vld [vmem:[%s4363 + $0x58] sm:$0xff]
    %v4376 = vld [vmem:[%s4363 + $0x60] sm:$0xff]
    %v4377 = vld [vmem:[%s4363 + $0x68] sm:$0xff]
    %v4378 = vld [vmem:[%s4363 + $0x70] sm:$0xff]
    %v4379 = vld [vmem:[%s4363 + $0x78] sm:$0xff]
    %4380 = vmatpush.msra.mxu0 %v4379
    %4381 = vmatpush.msra.mxu0 %v4378
    %4382 = vmatpush.msra.mxu0 %v4377
    %4383 = vmatpush.msra.mxu0 %v4376
    %4384 = vmatpush.msra.mxu0 %v4375
    %4385 = vmatpush.msra.mxu0 %v4374
    %4386 = vmatpush.msra.mxu0 %v4373
    %4387 = vmatpush.msra.mxu0 %v4372
    %4388 = vmatpush.msra.mxu0 %v4371
    %4389 = vmatpush.msra.mxu0 %v4370
    %4390 = vmatpush.msra.mxu0 %v4369
    %4391 = vmatpush.msra.mxu0 %v4368
    %4392 = vmatpush.msra.mxu0 %v4367
    %4393 = vmatpush.msra.mxu0 %v4366
    %4394 = vmatpush.msra.mxu0 %v4365
    %4395 = vmatpush.msra.mxu0 %v4364
    %4396 = vmatmul.f32.gmra.mxu0 %v4282
    %v4397 = vpop.f32.mrf.mxu0
    %v4398 = vadd.f32 0.0, %v4397
    %4399 = vmatmul.f32.gmra.mxu0 %v4283
    %v4400 = vpop.f32.mrf.mxu0
    %v4401 = vadd.f32 0.0, %v4400
    %4402 = vmatmul.f32.gmra.mxu0 %v4284
    %v4403 = vpop.f32.mrf.mxu0
    %v4404 = vadd.f32 0.0, %v4403
    %4405 = vmatmul.f32.gmra.mxu0 %v4285
    %v4406 = vpop.f32.mrf.mxu0
    %v4407 = vadd.f32 0.0, %v4406
    %4408 = vmatmul.f32.gmra.mxu0 %v4286
    %v4409 = vpop.f32.mrf.mxu0
    %v4410 = vadd.f32 0.0, %v4409
    %4411 = vmatmul.f32.gmra.mxu0 %v4287
    %v4412 = vpop.f32.mrf.mxu0
    %v4413 = vadd.f32 0.0, %v4412
    %4414 = vmatmul.f32.gmra.mxu0 %v4288
    %v4415 = vpop.f32.mrf.mxu0
    %v4416 = vadd.f32 0.0, %v4415
    %4417 = vmatmul.f32.gmra.mxu0 %v4289
    %v4418 = vpop.f32.mrf.mxu0
    %v4419 = vadd.f32 0.0, %v4418
    %4420 = vmatmul.f32.gmra.mxu0 %v4290
    %v4421 = vpop.f32.mrf.mxu0
    %v4422 = vadd.f32 0.0, %v4421
    %4423 = vmatmul.f32.gmra.mxu0 %v4291
    %v4424 = vpop.f32.mrf.mxu0
    %v4425 = vadd.f32 0.0, %v4424
    %4426 = vmatmul.f32.gmra.mxu0 %v4292
    %v4427 = vpop.f32.mrf.mxu0
    %v4428 = vadd.f32 0.0, %v4427
    %4429 = vmatmul.f32.gmra.mxu0 %v4293
    %v4430 = vpop.f32.mrf.mxu0
    %v4431 = vadd.f32 0.0, %v4430
    %4432 = vmatmul.f32.gmra.mxu0 %v4294
    %v4433 = vpop.f32.mrf.mxu0
    %v4434 = vadd.f32 0.0, %v4433
    %4435 = vmatmul.f32.gmra.mxu0 %v4295
    %v4436 = vpop.f32.mrf.mxu0
    %v4437 = vadd.f32 0.0, %v4436
    %4438 = vmatmul.f32.gmra.mxu0 %v4296
    %v4439 = vpop.f32.mrf.mxu0
    %v4440 = vadd.f32 0.0, %v4439
    %4441 = vmatmul.f32.gmra.mxu0 %v4297
    %v4442 = vpop.f32.mrf.mxu0
    %v4443 = vadd.f32 0.0, %v4442
    %4444 = vmatmul.f32.gmra.mxu0 %v4298
    %v4445 = vpop.f32.mrf.mxu0
    %v4446 = vadd.f32 0.0, %v4445
    %4447 = vmatmul.f32.gmra.mxu0 %v4299
    %v4448 = vpop.f32.mrf.mxu0
    %v4449 = vadd.f32 0.0, %v4448
    %4450 = vmatmul.f32.gmra.mxu0 %v4300
    %v4451 = vpop.f32.mrf.mxu0
    %v4452 = vadd.f32 0.0, %v4451
    %4453 = vmatmul.f32.gmra.mxu0 %v4301
    %v4454 = vpop.f32.mrf.mxu0
    %v4455 = vadd.f32 0.0, %v4454
    %4456 = vmatmul.f32.gmra.mxu0 %v4302
    %v4457 = vpop.f32.mrf.mxu0
    %v4458 = vadd.f32 0.0, %v4457
    %4459 = vmatmul.f32.gmra.mxu0 %v4303
    %v4460 = vpop.f32.mrf.mxu0
    %v4461 = vadd.f32 0.0, %v4460
    %4462 = vmatmul.f32.gmra.mxu0 %v4304
    %v4463 = vpop.f32.mrf.mxu0
    %v4464 = vadd.f32 0.0, %v4463
    %4465 = vmatmul.f32.gmra.mxu0 %v4305
    %v4466 = vpop.f32.mrf.mxu0
    %v4467 = vadd.f32 0.0, %v4466
    %4468 = vmatmul.f32.gmra.mxu0 %v4306
    %v4469 = vpop.f32.mrf.mxu0
    %v4470 = vadd.f32 0.0, %v4469
    %4471 = vmatmul.f32.gmra.mxu0 %v4307
    %v4472 = vpop.f32.mrf.mxu0
    %v4473 = vadd.f32 0.0, %v4472
    %4474 = vmatmul.f32.gmra.mxu0 %v4308
    %v4475 = vpop.f32.mrf.mxu0
    %v4476 = vadd.f32 0.0, %v4475
    %4477 = vmatmul.f32.gmra.mxu0 %v4309
    %v4478 = vpop.f32.mrf.mxu0
    %v4479 = vadd.f32 0.0, %v4478
    %4480 = vmatmul.f32.gmra.mxu0 %v4310
    %v4481 = vpop.f32.mrf.mxu0
    %v4482 = vadd.f32 0.0, %v4481
    %4483 = vmatmul.f32.gmra.mxu0 %v4311
    %v4484 = vpop.f32.mrf.mxu0
    %v4485 = vadd.f32 0.0, %v4484
    %4486 = vmatmul.f32.gmra.mxu0 %v4312
    %v4487 = vpop.f32.mrf.mxu0
    %v4488 = vadd.f32 0.0, %v4487
    %4489 = vmatmul.f32.gmra.mxu0 %v4313
    %v4490 = vpop.f32.mrf.mxu0
    %v4491 = vadd.f32 0.0, %v4490
    %4492 = vmatmul.f32.gmra.mxu0 %v4314
    %v4493 = vpop.f32.mrf.mxu0
    %v4494 = vadd.f32 0.0, %v4493
    %4495 = vmatmul.f32.gmra.mxu0 %v4315
    %v4496 = vpop.f32.mrf.mxu0
    %v4497 = vadd.f32 0.0, %v4496
    %4498 = vmatmul.f32.gmra.mxu0 %v4316
    %v4499 = vpop.f32.mrf.mxu0
    %v4500 = vadd.f32 0.0, %v4499
    %4501 = vmatmul.f32.gmra.mxu0 %v4317
    %v4502 = vpop.f32.mrf.mxu0
    %v4503 = vadd.f32 0.0, %v4502
    %4504 = vmatmul.f32.gmra.mxu0 %v4318
    %v4505 = vpop.f32.mrf.mxu0
    %v4506 = vadd.f32 0.0, %v4505
    %4507 = vmatmul.f32.gmra.mxu0 %v4319
    %v4508 = vpop.f32.mrf.mxu0
    %v4509 = vadd.f32 0.0, %v4508
    %4510 = vmatmul.f32.gmra.mxu0 %v4320
    %v4511 = vpop.f32.mrf.mxu0
    %v4512 = vadd.f32 0.0, %v4511
    %4513 = vmatmul.f32.gmra.mxu0 %v4321
    %v4514 = vpop.f32.mrf.mxu0
    %v4515 = vadd.f32 0.0, %v4514
    %4516 = vmatmul.f32.gmra.mxu0 %v4322
    %v4517 = vpop.f32.mrf.mxu0
    %v4518 = vadd.f32 0.0, %v4517
    %4519 = vmatmul.f32.gmra.mxu0 %v4323
    %v4520 = vpop.f32.mrf.mxu0
    %v4521 = vadd.f32 0.0, %v4520
    %4522 = vmatmul.f32.gmra.mxu0 %v4324
    %v4523 = vpop.f32.mrf.mxu0
    %v4524 = vadd.f32 0.0, %v4523
    %4525 = vmatmul.f32.gmra.mxu0 %v4325
    %v4526 = vpop.f32.mrf.mxu0
    %v4527 = vadd.f32 0.0, %v4526
    %4528 = vmatmul.f32.gmra.mxu0 %v4326
    %v4529 = vpop.f32.mrf.mxu0
    %v4530 = vadd.f32 0.0, %v4529
    %4531 = vmatmul.f32.gmra.mxu0 %v4327
    %v4532 = vpop.f32.mrf.mxu0
    %v4533 = vadd.f32 0.0, %v4532
    %4534 = vmatmul.f32.gmra.mxu0 %v4328
    %v4535 = vpop.f32.mrf.mxu0
    %v4536 = vadd.f32 0.0, %v4535
    %4537 = vmatmul.f32.gmra.mxu0 %v4329
    %v4538 = vpop.f32.mrf.mxu0
    %v4539 = vadd.f32 0.0, %v4538
    %4540 = vmatmul.f32.gmra.mxu0 %v4330
    %v4541 = vpop.f32.mrf.mxu0
    %v4542 = vadd.f32 0.0, %v4541
    %4543 = vmatmul.f32.gmra.mxu0 %v4331
    %v4544 = vpop.f32.mrf.mxu0
    %v4545 = vadd.f32 0.0, %v4544
    %4546 = vmatmul.f32.gmra.mxu0 %v4332
    %v4547 = vpop.f32.mrf.mxu0
    %v4548 = vadd.f32 0.0, %v4547
    %4549 = vmatmul.f32.gmra.mxu0 %v4333
    %v4550 = vpop.f32.mrf.mxu0
    %v4551 = vadd.f32 0.0, %v4550
    %4552 = vmatmul.f32.gmra.mxu0 %v4334
    %v4553 = vpop.f32.mrf.mxu0
    %v4554 = vadd.f32 0.0, %v4553
    %4555 = vmatmul.f32.gmra.mxu0 %v4335
    %v4556 = vpop.f32.mrf.mxu0
    %v4557 = vadd.f32 0.0, %v4556
    %4558 = vmatmul.f32.gmra.mxu0 %v4336
    %v4559 = vpop.f32.mrf.mxu0
    %v4560 = vadd.f32 0.0, %v4559
    %4561 = vmatmul.f32.gmra.mxu0 %v4337
    %v4562 = vpop.f32.mrf.mxu0
    %v4563 = vadd.f32 0.0, %v4562
    %4564 = vmatmul.f32.gmra.mxu0 %v4338
    %v4565 = vpop.f32.mrf.mxu0
    %v4566 = vadd.f32 0.0, %v4565
    %4567 = vmatmul.f32.gmra.mxu0 %v4339
    %v4568 = vpop.f32.mrf.mxu0
    %v4569 = vadd.f32 0.0, %v4568
    %4570 = vmatmul.f32.gmra.mxu0 %v4340
    %v4571 = vpop.f32.mrf.mxu0
    %v4572 = vadd.f32 0.0, %v4571
    %4573 = vmatmul.f32.gmra.mxu0 %v4341
    %v4574 = vpop.f32.mrf.mxu0
    %v4575 = vadd.f32 0.0, %v4574
    %4576 = vmatmul.f32.gmra.mxu0 %v4342
    %v4577 = vpop.f32.mrf.mxu0
    %v4578 = vadd.f32 0.0, %v4577
    %4579 = vmatmul.f32.gmra.mxu0 %v4343
    %v4580 = vpop.f32.mrf.mxu0
    %v4581 = vadd.f32 0.0, %v4580
    %4582 = vmatmul.f32.gmra.mxu0 %v4344
    %v4583 = vpop.f32.mrf.mxu0
    %v4584 = vadd.f32 0.0, %v4583
    %4585 = vmatmul.f32.gmra.mxu0 %v4345
    %v4586 = vpop.f32.mrf.mxu0
    %v4587 = vadd.f32 0.0, %v4586
    %4588 = vmatmul.f32.gmra.mxu0 %v4346
    %v4589 = vpop.f32.mrf.mxu0
    %v4590 = vadd.f32 0.0, %v4589
    %4591 = vmatmul.f32.gmra.mxu0 %v4347
    %v4592 = vpop.f32.mrf.mxu0
    %v4593 = vadd.f32 0.0, %v4592
    %4594 = vmatmul.f32.gmra.mxu0 %v4348
    %v4595 = vpop.f32.mrf.mxu0
    %v4596 = vadd.f32 0.0, %v4595
    %4597 = vmatmul.f32.gmra.mxu0 %v4349
    %v4598 = vpop.f32.mrf.mxu0
    %v4599 = vadd.f32 0.0, %v4598
    %4600 = vmatmul.f32.gmra.mxu0 %v4350
    %v4601 = vpop.f32.mrf.mxu0
    %v4602 = vadd.f32 0.0, %v4601
    %4603 = vmatmul.f32.gmra.mxu0 %v4351
    %v4604 = vpop.f32.mrf.mxu0
    %v4605 = vadd.f32 0.0, %v4604
    %4606 = vmatmul.f32.gmra.mxu0 %v4352
    %v4607 = vpop.f32.mrf.mxu0
    %v4608 = vadd.f32 0.0, %v4607
    %4609 = vmatmul.f32.gmra.mxu0 %v4353
    %v4610 = vpop.f32.mrf.mxu0
    %v4611 = vadd.f32 0.0, %v4610
    %4612 = vmatmul.f32.gmra.mxu0 %v4354
    %v4613 = vpop.f32.mrf.mxu0
    %v4614 = vadd.f32 0.0, %v4613
    %4615 = vmatmul.f32.gmra.mxu0 %v4355
    %v4616 = vpop.f32.mrf.mxu0
    %v4617 = vadd.f32 0.0, %v4616
    %4618 = vmatmul.f32.gmra.mxu0 %v4356
    %v4619 = vpop.f32.mrf.mxu0
    %v4620 = vadd.f32 0.0, %v4619
    %4621 = vmatmul.f32.gmra.mxu0 %v4357
    %v4622 = vpop.f32.mrf.mxu0
    %v4623 = vadd.f32 0.0, %v4622
    %4624 = vmatmul.f32.gmra.mxu0 %v4358
    %v4625 = vpop.f32.mrf.mxu0
    %v4626 = vadd.f32 0.0, %v4625
    %4627 = vmatmul.f32.gmra.mxu0 %v4359
    %v4628 = vpop.f32.mrf.mxu0
    %v4629 = vadd.f32 0.0, %v4628
    %4630 = vmatmul.f32.gmra.mxu0 %v4360
    %v4631 = vpop.f32.mrf.mxu0
    %v4632 = vadd.f32 0.0, %v4631
    %4633 = vmatmul.f32.gmra.mxu0 %v4361
    %v4634 = vpop.f32.mrf.mxu0
    %v4635 = vadd.f32 0.0, %v4634
    %4636 = vmatmul.f32.gmra.mxu0 %v4362
    %v4637 = vpop.f32.mrf.mxu0
    %v4638 = vadd.f32 0.0, %v4637
    %4639 = vdwg.mxu0
    %v4640 = vadd.f32 %v4201, %v4398
    %v4641 = vadd.f32 %v4202, %v4401
    %v4642 = vadd.f32 %v4203, %v4404
    %v4643 = vadd.f32 %v4204, %v4407
    %v4644 = vadd.f32 %v4205, %v4410
    %v4645 = vadd.f32 %v4206, %v4413
    %v4646 = vadd.f32 %v4207, %v4416
    %v4647 = vadd.f32 %v4208, %v4419
    %v4648 = vadd.f32 %v4209, %v4422
    %v4649 = vadd.f32 %v4210, %v4425
    %v4650 = vadd.f32 %v4211, %v4428
    %v4651 = vadd.f32 %v4212, %v4431
    %v4652 = vadd.f32 %v4213, %v4434
    %v4653 = vadd.f32 %v4214, %v4437
    %v4654 = vadd.f32 %v4215, %v4440
    %v4655 = vadd.f32 %v4216, %v4443
    %v4656 = vadd.f32 %v4217, %v4446
    %v4657 = vadd.f32 %v4218, %v4449
    %v4658 = vadd.f32 %v4219, %v4452
    %v4659 = vadd.f32 %v4220, %v4455
    %v4660 = vadd.f32 %v4221, %v4458
    %v4661 = vadd.f32 %v4222, %v4461
    %v4662 = vadd.f32 %v4223, %v4464
    %v4663 = vadd.f32 %v4224, %v4467
    %v4664 = vadd.f32 %v4225, %v4470
    %v4665 = vadd.f32 %v4226, %v4473
    %v4666 = vadd.f32 %v4227, %v4476
    %v4667 = vadd.f32 %v4228, %v4479
    %v4668 = vadd.f32 %v4229, %v4482
    %v4669 = vadd.f32 %v4230, %v4485
    %v4670 = vadd.f32 %v4231, %v4488
    %v4671 = vadd.f32 %v4232, %v4491
    %v4672 = vadd.f32 %v4233, %v4494
    %v4673 = vadd.f32 %v4234, %v4497
    %v4674 = vadd.f32 %v4235, %v4500
    %v4675 = vadd.f32 %v4236, %v4503
    %v4676 = vadd.f32 %v4237, %v4506
    %v4677 = vadd.f32 %v4238, %v4509
    %v4678 = vadd.f32 %v4239, %v4512
    %v4679 = vadd.f32 %v4240, %v4515
    %v4680 = vadd.f32 %v4241, %v4518
    %v4681 = vadd.f32 %v4242, %v4521
    %v4682 = vadd.f32 %v4243, %v4524
    %v4683 = vadd.f32 %v4244, %v4527
    %v4684 = vadd.f32 %v4245, %v4530
    %v4685 = vadd.f32 %v4246, %v4533
    %v4686 = vadd.f32 %v4247, %v4536
    %v4687 = vadd.f32 %v4248, %v4539
    %v4688 = vadd.f32 %v4249, %v4542
    %v4689 = vadd.f32 %v4250, %v4545
    %v4690 = vadd.f32 %v4251, %v4548
    %v4691 = vadd.f32 %v4252, %v4551
    %v4692 = vadd.f32 %v4253, %v4554
    %v4693 = vadd.f32 %v4254, %v4557
    %v4694 = vadd.f32 %v4255, %v4560
    %v4695 = vadd.f32 %v4256, %v4563
    %v4696 = vadd.f32 %v4257, %v4566
    %v4697 = vadd.f32 %v4258, %v4569
    %v4698 = vadd.f32 %v4259, %v4572
    %v4699 = vadd.f32 %v4260, %v4575
    %v4700 = vadd.f32 %v4261, %v4578
    %v4701 = vadd.f32 %v4262, %v4581
    %v4702 = vadd.f32 %v4263, %v4584
    %v4703 = vadd.f32 %v4264, %v4587
    %v4704 = vadd.f32 %v4265, %v4590
    %v4705 = vadd.f32 %v4266, %v4593
    %v4706 = vadd.f32 %v4267, %v4596
    %v4707 = vadd.f32 %v4268, %v4599
    %v4708 = vadd.f32 %v4269, %v4602
    %v4709 = vadd.f32 %v4270, %v4605
    %v4710 = vadd.f32 %v4271, %v4608
    %v4711 = vadd.f32 %v4272, %v4611
    %v4712 = vadd.f32 %v4273, %v4614
    %v4713 = vadd.f32 %v4274, %v4617
    %v4714 = vadd.f32 %v4275, %v4620
    %v4715 = vadd.f32 %v4276, %v4623
    %v4716 = vadd.f32 %v4277, %v4626
    %v4717 = vadd.f32 %v4278, %v4629
    %v4718 = vadd.f32 %v4279, %v4632
    %v4719 = vadd.f32 %v4280, %v4635
    %v4720 = vadd.f32 %v4281, %v4638
    %v4721 = vld [vmem:[#allocation2 + $0x2a] sm:$0xff]
    %v4722 = vld [vmem:[#allocation2 + $0x32] sm:$0xff]
    %v4723 = vld [vmem:[#allocation2 + $0x3a] sm:$0xff]
    %v4724 = vld [vmem:[#allocation2 + $0x42] sm:$0xff]
    %v4725 = vld [vmem:[#allocation2 + $0x4a] sm:$0xff]
    %v4726 = vld [vmem:[#allocation2 + $0x52] sm:$0xff]
    %v4727 = vld [vmem:[#allocation2 + $0x5a] sm:$0xff]
    %v4728 = vld [vmem:[#allocation2 + $0x62] sm:$0xff]
    %v4729 = vld [vmem:[#allocation2 + $0x6a] sm:$0xff]
    %v4730 = vld [vmem:[#allocation2 + $0x72] sm:$0xff]
    %v4731 = vld [vmem:[#allocation2 + $0x7a] sm:$0xff]
    %v4732 = vld [vmem:[#allocation2 + $0x82] sm:$0xff]
    %v4733 = vld [vmem:[#allocation2 + $0x8a] sm:$0xff]
    %v4734 = vld [vmem:[#allocation2 + $0x92] sm:$0xff]
    %v4735 = vld [vmem:[#allocation2 + $0x9a] sm:$0xff]
    %v4736 = vld [vmem:[#allocation2 + $0xa2] sm:$0xff]
    %v4737 = vld [vmem:[#allocation2 + $0xaa] sm:$0xff]
    %v4738 = vld [vmem:[#allocation2 + $0xb2] sm:$0xff]
    %v4739 = vld [vmem:[#allocation2 + $0xba] sm:$0xff]
    %v4740 = vld [vmem:[#allocation2 + $0xc2] sm:$0xff]
    %v4741 = vld [vmem:[#allocation2 + $0xca] sm:$0xff]
    %v4742 = vld [vmem:[#allocation2 + $0xd2] sm:$0xff]
    %v4743 = vld [vmem:[#allocation2 + $0xda] sm:$0xff]
    %v4744 = vld [vmem:[#allocation2 + $0xe2] sm:$0xff]
    %v4745 = vld [vmem:[#allocation2 + $0xea] sm:$0xff]
    %v4746 = vld [vmem:[#allocation2 + $0xf2] sm:$0xff]
    %v4747 = vld [vmem:[#allocation2 + $0xfa] sm:$0xff]
    %v4748 = vld [vmem:[#allocation2 + $0x102] sm:$0xff]
    %v4749 = vld [vmem:[#allocation2 + $0x10a] sm:$0xff]
    %v4750 = vld [vmem:[#allocation2 + $0x112] sm:$0xff]
    %v4751 = vld [vmem:[#allocation2 + $0x11a] sm:$0xff]
    %v4752 = vld [vmem:[#allocation2 + $0x122] sm:$0xff]
    %v4753 = vld [vmem:[#allocation2 + $0x12a] sm:$0xff]
    %v4754 = vld [vmem:[#allocation2 + $0x132] sm:$0xff]
    %v4755 = vld [vmem:[#allocation2 + $0x13a] sm:$0xff]
    %v4756 = vld [vmem:[#allocation2 + $0x142] sm:$0xff]
    %v4757 = vld [vmem:[#allocation2 + $0x14a] sm:$0xff]
    %v4758 = vld [vmem:[#allocation2 + $0x152] sm:$0xff]
    %v4759 = vld [vmem:[#allocation2 + $0x15a] sm:$0xff]
    %v4760 = vld [vmem:[#allocation2 + $0x162] sm:$0xff]
    %v4761 = vld [vmem:[#allocation2 + $0x16a] sm:$0xff]
    %v4762 = vld [vmem:[#allocation2 + $0x172] sm:$0xff]
    %v4763 = vld [vmem:[#allocation2 + $0x17a] sm:$0xff]
    %v4764 = vld [vmem:[#allocation2 + $0x182] sm:$0xff]
    %v4765 = vld [vmem:[#allocation2 + $0x18a] sm:$0xff]
    %v4766 = vld [vmem:[#allocation2 + $0x192] sm:$0xff]
    %v4767 = vld [vmem:[#allocation2 + $0x19a] sm:$0xff]
    %v4768 = vld [vmem:[#allocation2 + $0x1a2] sm:$0xff]
    %v4769 = vld [vmem:[#allocation2 + $0x1aa] sm:$0xff]
    %v4770 = vld [vmem:[#allocation2 + $0x1b2] sm:$0xff]
    %v4771 = vld [vmem:[#allocation2 + $0x1ba] sm:$0xff]
    %v4772 = vld [vmem:[#allocation2 + $0x1c2] sm:$0xff]
    %v4773 = vld [vmem:[#allocation2 + $0x1ca] sm:$0xff]
    %v4774 = vld [vmem:[#allocation2 + $0x1d2] sm:$0xff]
    %v4775 = vld [vmem:[#allocation2 + $0x1da] sm:$0xff]
    %v4776 = vld [vmem:[#allocation2 + $0x1e2] sm:$0xff]
    %v4777 = vld [vmem:[#allocation2 + $0x1ea] sm:$0xff]
    %v4778 = vld [vmem:[#allocation2 + $0x1f2] sm:$0xff]
    %v4779 = vld [vmem:[#allocation2 + $0x1fa] sm:$0xff]
    %v4780 = vld [vmem:[#allocation2 + $0x202] sm:$0xff]
    %v4781 = vld [vmem:[#allocation2 + $0x20a] sm:$0xff]
    %v4782 = vld [vmem:[#allocation2 + $0x212] sm:$0xff]
    %v4783 = vld [vmem:[#allocation2 + $0x21a] sm:$0xff]
    %v4784 = vld [vmem:[#allocation2 + $0x222] sm:$0xff]
    %v4785 = vld [vmem:[#allocation2 + $0x22a] sm:$0xff]
    %v4786 = vld [vmem:[#allocation2 + $0x232] sm:$0xff]
    %v4787 = vld [vmem:[#allocation2 + $0x23a] sm:$0xff]
    %v4788 = vld [vmem:[#allocation2 + $0x242] sm:$0xff]
    %v4789 = vld [vmem:[#allocation2 + $0x24a] sm:$0xff]
    %v4790 = vld [vmem:[#allocation2 + $0x252] sm:$0xff]
    %v4791 = vld [vmem:[#allocation2 + $0x25a] sm:$0xff]
    %v4792 = vld [vmem:[#allocation2 + $0x262] sm:$0xff]
    %v4793 = vld [vmem:[#allocation2 + $0x26a] sm:$0xff]
    %v4794 = vld [vmem:[#allocation2 + $0x272] sm:$0xff]
    %v4795 = vld [vmem:[#allocation2 + $0x27a] sm:$0xff]
    %v4796 = vld [vmem:[#allocation2 + $0x282] sm:$0xff]
    %v4797 = vld [vmem:[#allocation2 + $0x28a] sm:$0xff]
    %v4798 = vld [vmem:[#allocation2 + $0x292] sm:$0xff]
    %v4799 = vld [vmem:[#allocation2 + $0x29a] sm:$0xff]
    %v4800 = vld [vmem:[#allocation2 + $0x2a2] sm:$0xff]
    %v4801 = vld [vmem:[#allocation2 + $0x2aa] sm:$0xff]
    %s4802 = scalar_lea.vmem [#allocation9], 896
    %v4803 = vld [vmem:[%s4802] sm:$0xff]
    %v4804 = vld [vmem:[%s4802 + $0x8] sm:$0xff]
    %v4805 = vld [vmem:[%s4802 + $0x10] sm:$0xff]
    %v4806 = vld [vmem:[%s4802 + $0x18] sm:$0xff]
    %v4807 = vld [vmem:[%s4802 + $0x20] sm:$0xff]
    %v4808 = vld [vmem:[%s4802 + $0x28] sm:$0xff]
    %v4809 = vld [vmem:[%s4802 + $0x30] sm:$0xff]
    %v4810 = vld [vmem:[%s4802 + $0x38] sm:$0xff]
    %v4811 = vld [vmem:[%s4802 + $0x40] sm:$0xff]
    %v4812 = vld [vmem:[%s4802 + $0x48] sm:$0xff]
    %v4813 = vld [vmem:[%s4802 + $0x50] sm:$0xff]
    %v4814 = vld [vmem:[%s4802 + $0x58] sm:$0xff]
    %v4815 = vld [vmem:[%s4802 + $0x60] sm:$0xff]
    %v4816 = vld [vmem:[%s4802 + $0x68] sm:$0xff]
    %v4817 = vld [vmem:[%s4802 + $0x70] sm:$0xff]
    %v4818 = vld [vmem:[%s4802 + $0x78] sm:$0xff]
    %4819 = vmatpush.msra.mxu0 %v4818
    %4820 = vmatpush.msra.mxu0 %v4817
    %4821 = vmatpush.msra.mxu0 %v4816
    %4822 = vmatpush.msra.mxu0 %v4815
    %4823 = vmatpush.msra.mxu0 %v4814
    %4824 = vmatpush.msra.mxu0 %v4813
    %4825 = vmatpush.msra.mxu0 %v4812
    %4826 = vmatpush.msra.mxu0 %v4811
    %4827 = vmatpush.msra.mxu0 %v4810
    %4828 = vmatpush.msra.mxu0 %v4809
    %4829 = vmatpush.msra.mxu0 %v4808
    %4830 = vmatpush.msra.mxu0 %v4807
    %4831 = vmatpush.msra.mxu0 %v4806
    %4832 = vmatpush.msra.mxu0 %v4805
    %4833 = vmatpush.msra.mxu0 %v4804
    %4834 = vmatpush.msra.mxu0 %v4803
    %4835 = vmatmul.f32.gmra.mxu0 %v4721
    %v4836 = vpop.f32.mrf.mxu0
    %v4837 = vadd.f32 0.0, %v4836
    %4838 = vmatmul.f32.gmra.mxu0 %v4722
    %v4839 = vpop.f32.mrf.mxu0
    %v4840 = vadd.f32 0.0, %v4839
    %4841 = vmatmul.f32.gmra.mxu0 %v4723
    %v4842 = vpop.f32.mrf.mxu0
    %v4843 = vadd.f32 0.0, %v4842
    %4844 = vmatmul.f32.gmra.mxu0 %v4724
    %v4845 = vpop.f32.mrf.mxu0
    %v4846 = vadd.f32 0.0, %v4845
    %4847 = vmatmul.f32.gmra.mxu0 %v4725
    %v4848 = vpop.f32.mrf.mxu0
    %v4849 = vadd.f32 0.0, %v4848
    %4850 = vmatmul.f32.gmra.mxu0 %v4726
    %v4851 = vpop.f32.mrf.mxu0
    %v4852 = vadd.f32 0.0, %v4851
    %4853 = vmatmul.f32.gmra.mxu0 %v4727
    %v4854 = vpop.f32.mrf.mxu0
    %v4855 = vadd.f32 0.0, %v4854
    %4856 = vmatmul.f32.gmra.mxu0 %v4728
    %v4857 = vpop.f32.mrf.mxu0
    %v4858 = vadd.f32 0.0, %v4857
    %4859 = vmatmul.f32.gmra.mxu0 %v4729
    %v4860 = vpop.f32.mrf.mxu0
    %v4861 = vadd.f32 0.0, %v4860
    %4862 = vmatmul.f32.gmra.mxu0 %v4730
    %v4863 = vpop.f32.mrf.mxu0
    %v4864 = vadd.f32 0.0, %v4863
    %4865 = vmatmul.f32.gmra.mxu0 %v4731
    %v4866 = vpop.f32.mrf.mxu0
    %v4867 = vadd.f32 0.0, %v4866
    %4868 = vmatmul.f32.gmra.mxu0 %v4732
    %v4869 = vpop.f32.mrf.mxu0
    %v4870 = vadd.f32 0.0, %v4869
    %4871 = vmatmul.f32.gmra.mxu0 %v4733
    %v4872 = vpop.f32.mrf.mxu0
    %v4873 = vadd.f32 0.0, %v4872
    %4874 = vmatmul.f32.gmra.mxu0 %v4734
    %v4875 = vpop.f32.mrf.mxu0
    %v4876 = vadd.f32 0.0, %v4875
    %4877 = vmatmul.f32.gmra.mxu0 %v4735
    %v4878 = vpop.f32.mrf.mxu0
    %v4879 = vadd.f32 0.0, %v4878
    %4880 = vmatmul.f32.gmra.mxu0 %v4736
    %v4881 = vpop.f32.mrf.mxu0
    %v4882 = vadd.f32 0.0, %v4881
    %4883 = vmatmul.f32.gmra.mxu0 %v4737
    %v4884 = vpop.f32.mrf.mxu0
    %v4885 = vadd.f32 0.0, %v4884
    %4886 = vmatmul.f32.gmra.mxu0 %v4738
    %v4887 = vpop.f32.mrf.mxu0
    %v4888 = vadd.f32 0.0, %v4887
    %4889 = vmatmul.f32.gmra.mxu0 %v4739
    %v4890 = vpop.f32.mrf.mxu0
    %v4891 = vadd.f32 0.0, %v4890
    %4892 = vmatmul.f32.gmra.mxu0 %v4740
    %v4893 = vpop.f32.mrf.mxu0
    %v4894 = vadd.f32 0.0, %v4893
    %4895 = vmatmul.f32.gmra.mxu0 %v4741
    %v4896 = vpop.f32.mrf.mxu0
    %v4897 = vadd.f32 0.0, %v4896
    %4898 = vmatmul.f32.gmra.mxu0 %v4742
    %v4899 = vpop.f32.mrf.mxu0
    %v4900 = vadd.f32 0.0, %v4899
    %4901 = vmatmul.f32.gmra.mxu0 %v4743
    %v4902 = vpop.f32.mrf.mxu0
    %v4903 = vadd.f32 0.0, %v4902
    %4904 = vmatmul.f32.gmra.mxu0 %v4744
    %v4905 = vpop.f32.mrf.mxu0
    %v4906 = vadd.f32 0.0, %v4905
    %4907 = vmatmul.f32.gmra.mxu0 %v4745
    %v4908 = vpop.f32.mrf.mxu0
    %v4909 = vadd.f32 0.0, %v4908
    %4910 = vmatmul.f32.gmra.mxu0 %v4746
    %v4911 = vpop.f32.mrf.mxu0
    %v4912 = vadd.f32 0.0, %v4911
    %4913 = vmatmul.f32.gmra.mxu0 %v4747
    %v4914 = vpop.f32.mrf.mxu0
    %v4915 = vadd.f32 0.0, %v4914
    %4916 = vmatmul.f32.gmra.mxu0 %v4748
    %v4917 = vpop.f32.mrf.mxu0
    %v4918 = vadd.f32 0.0, %v4917
    %4919 = vmatmul.f32.gmra.mxu0 %v4749
    %v4920 = vpop.f32.mrf.mxu0
    %v4921 = vadd.f32 0.0, %v4920
    %4922 = vmatmul.f32.gmra.mxu0 %v4750
    %v4923 = vpop.f32.mrf.mxu0
    %v4924 = vadd.f32 0.0, %v4923
    %4925 = vmatmul.f32.gmra.mxu0 %v4751
    %v4926 = vpop.f32.mrf.mxu0
    %v4927 = vadd.f32 0.0, %v4926
    %4928 = vmatmul.f32.gmra.mxu0 %v4752
    %v4929 = vpop.f32.mrf.mxu0
    %v4930 = vadd.f32 0.0, %v4929
    %4931 = vmatmul.f32.gmra.mxu0 %v4753
    %v4932 = vpop.f32.mrf.mxu0
    %v4933 = vadd.f32 0.0, %v4932
    %4934 = vmatmul.f32.gmra.mxu0 %v4754
    %v4935 = vpop.f32.mrf.mxu0
    %v4936 = vadd.f32 0.0, %v4935
    %4937 = vmatmul.f32.gmra.mxu0 %v4755
    %v4938 = vpop.f32.mrf.mxu0
    %v4939 = vadd.f32 0.0, %v4938
    %4940 = vmatmul.f32.gmra.mxu0 %v4756
    %v4941 = vpop.f32.mrf.mxu0
    %v4942 = vadd.f32 0.0, %v4941
    %4943 = vmatmul.f32.gmra.mxu0 %v4757
    %v4944 = vpop.f32.mrf.mxu0
    %v4945 = vadd.f32 0.0, %v4944
    %4946 = vmatmul.f32.gmra.mxu0 %v4758
    %v4947 = vpop.f32.mrf.mxu0
    %v4948 = vadd.f32 0.0, %v4947
    %4949 = vmatmul.f32.gmra.mxu0 %v4759
    %v4950 = vpop.f32.mrf.mxu0
    %v4951 = vadd.f32 0.0, %v4950
    %4952 = vmatmul.f32.gmra.mxu0 %v4760
    %v4953 = vpop.f32.mrf.mxu0
    %v4954 = vadd.f32 0.0, %v4953
    %4955 = vmatmul.f32.gmra.mxu0 %v4761
    %v4956 = vpop.f32.mrf.mxu0
    %v4957 = vadd.f32 0.0, %v4956
    %4958 = vmatmul.f32.gmra.mxu0 %v4762
    %v4959 = vpop.f32.mrf.mxu0
    %v4960 = vadd.f32 0.0, %v4959
    %4961 = vmatmul.f32.gmra.mxu0 %v4763
    %v4962 = vpop.f32.mrf.mxu0
    %v4963 = vadd.f32 0.0, %v4962
    %4964 = vmatmul.f32.gmra.mxu0 %v4764
    %v4965 = vpop.f32.mrf.mxu0
    %v4966 = vadd.f32 0.0, %v4965
    %4967 = vmatmul.f32.gmra.mxu0 %v4765
    %v4968 = vpop.f32.mrf.mxu0
    %v4969 = vadd.f32 0.0, %v4968
    %4970 = vmatmul.f32.gmra.mxu0 %v4766
    %v4971 = vpop.f32.mrf.mxu0
    %v4972 = vadd.f32 0.0, %v4971
    %4973 = vmatmul.f32.gmra.mxu0 %v4767
    %v4974 = vpop.f32.mrf.mxu0
    %v4975 = vadd.f32 0.0, %v4974
    %4976 = vmatmul.f32.gmra.mxu0 %v4768
    %v4977 = vpop.f32.mrf.mxu0
    %v4978 = vadd.f32 0.0, %v4977
    %4979 = vmatmul.f32.gmra.mxu0 %v4769
    %v4980 = vpop.f32.mrf.mxu0
    %v4981 = vadd.f32 0.0, %v4980
    %4982 = vmatmul.f32.gmra.mxu0 %v4770
    %v4983 = vpop.f32.mrf.mxu0
    %v4984 = vadd.f32 0.0, %v4983
    %4985 = vmatmul.f32.gmra.mxu0 %v4771
    %v4986 = vpop.f32.mrf.mxu0
    %v4987 = vadd.f32 0.0, %v4986
    %4988 = vmatmul.f32.gmra.mxu0 %v4772
    %v4989 = vpop.f32.mrf.mxu0
    %v4990 = vadd.f32 0.0, %v4989
    %4991 = vmatmul.f32.gmra.mxu0 %v4773
    %v4992 = vpop.f32.mrf.mxu0
    %v4993 = vadd.f32 0.0, %v4992
    %4994 = vmatmul.f32.gmra.mxu0 %v4774
    %v4995 = vpop.f32.mrf.mxu0
    %v4996 = vadd.f32 0.0, %v4995
    %4997 = vmatmul.f32.gmra.mxu0 %v4775
    %v4998 = vpop.f32.mrf.mxu0
    %v4999 = vadd.f32 0.0, %v4998
    %5000 = vmatmul.f32.gmra.mxu0 %v4776
    %v5001 = vpop.f32.mrf.mxu0
    %v5002 = vadd.f32 0.0, %v5001
    %5003 = vmatmul.f32.gmra.mxu0 %v4777
    %v5004 = vpop.f32.mrf.mxu0
    %v5005 = vadd.f32 0.0, %v5004
    %5006 = vmatmul.f32.gmra.mxu0 %v4778
    %v5007 = vpop.f32.mrf.mxu0
    %v5008 = vadd.f32 0.0, %v5007
    %5009 = vmatmul.f32.gmra.mxu0 %v4779
    %v5010 = vpop.f32.mrf.mxu0
    %v5011 = vadd.f32 0.0, %v5010
    %5012 = vmatmul.f32.gmra.mxu0 %v4780
    %v5013 = vpop.f32.mrf.mxu0
    %v5014 = vadd.f32 0.0, %v5013
    %5015 = vmatmul.f32.gmra.mxu0 %v4781
    %v5016 = vpop.f32.mrf.mxu0
    %v5017 = vadd.f32 0.0, %v5016
    %5018 = vmatmul.f32.gmra.mxu0 %v4782
    %v5019 = vpop.f32.mrf.mxu0
    %v5020 = vadd.f32 0.0, %v5019
    %5021 = vmatmul.f32.gmra.mxu0 %v4783
    %v5022 = vpop.f32.mrf.mxu0
    %v5023 = vadd.f32 0.0, %v5022
    %5024 = vmatmul.f32.gmra.mxu0 %v4784
    %v5025 = vpop.f32.mrf.mxu0
    %v5026 = vadd.f32 0.0, %v5025
    %5027 = vmatmul.f32.gmra.mxu0 %v4785
    %v5028 = vpop.f32.mrf.mxu0
    %v5029 = vadd.f32 0.0, %v5028
    %5030 = vmatmul.f32.gmra.mxu0 %v4786
    %v5031 = vpop.f32.mrf.mxu0
    %v5032 = vadd.f32 0.0, %v5031
    %5033 = vmatmul.f32.gmra.mxu0 %v4787
    %v5034 = vpop.f32.mrf.mxu0
    %v5035 = vadd.f32 0.0, %v5034
    %5036 = vmatmul.f32.gmra.mxu0 %v4788
    %v5037 = vpop.f32.mrf.mxu0
    %v5038 = vadd.f32 0.0, %v5037
    %5039 = vmatmul.f32.gmra.mxu0 %v4789
    %v5040 = vpop.f32.mrf.mxu0
    %v5041 = vadd.f32 0.0, %v5040
    %5042 = vmatmul.f32.gmra.mxu0 %v4790
    %v5043 = vpop.f32.mrf.mxu0
    %v5044 = vadd.f32 0.0, %v5043
    %5045 = vmatmul.f32.gmra.mxu0 %v4791
    %v5046 = vpop.f32.mrf.mxu0
    %v5047 = vadd.f32 0.0, %v5046
    %5048 = vmatmul.f32.gmra.mxu0 %v4792
    %v5049 = vpop.f32.mrf.mxu0
    %v5050 = vadd.f32 0.0, %v5049
    %5051 = vmatmul.f32.gmra.mxu0 %v4793
    %v5052 = vpop.f32.mrf.mxu0
    %v5053 = vadd.f32 0.0, %v5052
    %5054 = vmatmul.f32.gmra.mxu0 %v4794
    %v5055 = vpop.f32.mrf.mxu0
    %v5056 = vadd.f32 0.0, %v5055
    %5057 = vmatmul.f32.gmra.mxu0 %v4795
    %v5058 = vpop.f32.mrf.mxu0
    %v5059 = vadd.f32 0.0, %v5058
    %5060 = vmatmul.f32.gmra.mxu0 %v4796
    %v5061 = vpop.f32.mrf.mxu0
    %v5062 = vadd.f32 0.0, %v5061
    %5063 = vmatmul.f32.gmra.mxu0 %v4797
    %v5064 = vpop.f32.mrf.mxu0
    %v5065 = vadd.f32 0.0, %v5064
    %5066 = vmatmul.f32.gmra.mxu0 %v4798
    %v5067 = vpop.f32.mrf.mxu0
    %v5068 = vadd.f32 0.0, %v5067
    %5069 = vmatmul.f32.gmra.mxu0 %v4799
    %v5070 = vpop.f32.mrf.mxu0
    %v5071 = vadd.f32 0.0, %v5070
    %5072 = vmatmul.f32.gmra.mxu0 %v4800
    %v5073 = vpop.f32.mrf.mxu0
    %v5074 = vadd.f32 0.0, %v5073
    %5075 = vmatmul.f32.gmra.mxu0 %v4801
    %v5076 = vpop.f32.mrf.mxu0
    %v5077 = vadd.f32 0.0, %v5076
    %5078 = vdwg.mxu0
    %v5079 = vadd.f32 %v4640, %v4837
    %v5080 = vadd.f32 %v4641, %v4840
    %v5081 = vadd.f32 %v4642, %v4843
    %v5082 = vadd.f32 %v4643, %v4846
    %v5083 = vadd.f32 %v4644, %v4849
    %v5084 = vadd.f32 %v4645, %v4852
    %v5085 = vadd.f32 %v4646, %v4855
    %v5086 = vadd.f32 %v4647, %v4858
    %v5087 = vadd.f32 %v4648, %v4861
    %v5088 = vadd.f32 %v4649, %v4864
    %v5089 = vadd.f32 %v4650, %v4867
    %v5090 = vadd.f32 %v4651, %v4870
    %v5091 = vadd.f32 %v4652, %v4873
    %v5092 = vadd.f32 %v4653, %v4876
    %v5093 = vadd.f32 %v4654, %v4879
    %v5094 = vadd.f32 %v4655, %v4882
    %v5095 = vadd.f32 %v4656, %v4885
    %v5096 = vadd.f32 %v4657, %v4888
    %v5097 = vadd.f32 %v4658, %v4891
    %v5098 = vadd.f32 %v4659, %v4894
    %v5099 = vadd.f32 %v4660, %v4897
    %v5100 = vadd.f32 %v4661, %v4900
    %v5101 = vadd.f32 %v4662, %v4903
    %v5102 = vadd.f32 %v4663, %v4906
    %v5103 = vadd.f32 %v4664, %v4909
    %v5104 = vadd.f32 %v4665, %v4912
    %v5105 = vadd.f32 %v4666, %v4915
    %v5106 = vadd.f32 %v4667, %v4918
    %v5107 = vadd.f32 %v4668, %v4921
    %v5108 = vadd.f32 %v4669, %v4924
    %v5109 = vadd.f32 %v4670, %v4927
    %v5110 = vadd.f32 %v4671, %v4930
    %v5111 = vadd.f32 %v4672, %v4933
    %v5112 = vadd.f32 %v4673, %v4936
    %v5113 = vadd.f32 %v4674, %v4939
    %v5114 = vadd.f32 %v4675, %v4942
    %v5115 = vadd.f32 %v4676, %v4945
    %v5116 = vadd.f32 %v4677, %v4948
    %v5117 = vadd.f32 %v4678, %v4951
    %v5118 = vadd.f32 %v4679, %v4954
    %v5119 = vadd.f32 %v4680, %v4957
    %v5120 = vadd.f32 %v4681, %v4960
    %v5121 = vadd.f32 %v4682, %v4963
    %v5122 = vadd.f32 %v4683, %v4966
    %v5123 = vadd.f32 %v4684, %v4969
    %v5124 = vadd.f32 %v4685, %v4972
    %v5125 = vadd.f32 %v4686, %v4975
    %v5126 = vadd.f32 %v4687, %v4978
    %v5127 = vadd.f32 %v4688, %v4981
    %v5128 = vadd.f32 %v4689, %v4984
    %v5129 = vadd.f32 %v4690, %v4987
    %v5130 = vadd.f32 %v4691, %v4990
    %v5131 = vadd.f32 %v4692, %v4993
    %v5132 = vadd.f32 %v4693, %v4996
    %v5133 = vadd.f32 %v4694, %v4999
    %v5134 = vadd.f32 %v4695, %v5002
    %v5135 = vadd.f32 %v4696, %v5005
    %v5136 = vadd.f32 %v4697, %v5008
    %v5137 = vadd.f32 %v4698, %v5011
    %v5138 = vadd.f32 %v4699, %v5014
    %v5139 = vadd.f32 %v4700, %v5017
    %v5140 = vadd.f32 %v4701, %v5020
    %v5141 = vadd.f32 %v4702, %v5023
    %v5142 = vadd.f32 %v4703, %v5026
    %v5143 = vadd.f32 %v4704, %v5029
    %v5144 = vadd.f32 %v4705, %v5032
    %v5145 = vadd.f32 %v4706, %v5035
    %v5146 = vadd.f32 %v4707, %v5038
    %v5147 = vadd.f32 %v4708, %v5041
    %v5148 = vadd.f32 %v4709, %v5044
    %v5149 = vadd.f32 %v4710, %v5047
    %v5150 = vadd.f32 %v4711, %v5050
    %v5151 = vadd.f32 %v4712, %v5053
    %v5152 = vadd.f32 %v4713, %v5056
    %v5153 = vadd.f32 %v4714, %v5059
    %v5154 = vadd.f32 %v4715, %v5062
    %v5155 = vadd.f32 %v4716, %v5065
    %v5156 = vadd.f32 %v4717, %v5068
    %v5157 = vadd.f32 %v4718, %v5071
    %v5158 = vadd.f32 %v4719, %v5074
    %v5159 = vadd.f32 %v4720, %v5077
    %v5160 = vld [vmem:[#allocation2 + $0x2b] sm:$0xff]
    %v5161 = vld [vmem:[#allocation2 + $0x33] sm:$0xff]
    %v5162 = vld [vmem:[#allocation2 + $0x3b] sm:$0xff]
    %v5163 = vld [vmem:[#allocation2 + $0x43] sm:$0xff]
    %v5164 = vld [vmem:[#allocation2 + $0x4b] sm:$0xff]
    %v5165 = vld [vmem:[#allocation2 + $0x53] sm:$0xff]
    %v5166 = vld [vmem:[#allocation2 + $0x5b] sm:$0xff]
    %v5167 = vld [vmem:[#allocation2 + $0x63] sm:$0xff]
    %v5168 = vld [vmem:[#allocation2 + $0x6b] sm:$0xff]
    %v5169 = vld [vmem:[#allocation2 + $0x73] sm:$0xff]
    %v5170 = vld [vmem:[#allocation2 + $0x7b] sm:$0xff]
    %v5171 = vld [vmem:[#allocation2 + $0x83] sm:$0xff]
    %v5172 = vld [vmem:[#allocation2 + $0x8b] sm:$0xff]
    %v5173 = vld [vmem:[#allocation2 + $0x93] sm:$0xff]
    %v5174 = vld [vmem:[#allocation2 + $0x9b] sm:$0xff]
    %v5175 = vld [vmem:[#allocation2 + $0xa3] sm:$0xff]
    %v5176 = vld [vmem:[#allocation2 + $0xab] sm:$0xff]
    %v5177 = vld [vmem:[#allocation2 + $0xb3] sm:$0xff]
    %v5178 = vld [vmem:[#allocation2 + $0xbb] sm:$0xff]
    %v5179 = vld [vmem:[#allocation2 + $0xc3] sm:$0xff]
    %v5180 = vld [vmem:[#allocation2 + $0xcb] sm:$0xff]
    %v5181 = vld [vmem:[#allocation2 + $0xd3] sm:$0xff]
    %v5182 = vld [vmem:[#allocation2 + $0xdb] sm:$0xff]
    %v5183 = vld [vmem:[#allocation2 + $0xe3] sm:$0xff]
    %v5184 = vld [vmem:[#allocation2 + $0xeb] sm:$0xff]
    %v5185 = vld [vmem:[#allocation2 + $0xf3] sm:$0xff]
    %v5186 = vld [vmem:[#allocation2 + $0xfb] sm:$0xff]
    %v5187 = vld [vmem:[#allocation2 + $0x103] sm:$0xff]
    %v5188 = vld [vmem:[#allocation2 + $0x10b] sm:$0xff]
    %v5189 = vld [vmem:[#allocation2 + $0x113] sm:$0xff]
    %v5190 = vld [vmem:[#allocation2 + $0x11b] sm:$0xff]
    %v5191 = vld [vmem:[#allocation2 + $0x123] sm:$0xff]
    %v5192 = vld [vmem:[#allocation2 + $0x12b] sm:$0xff]
    %v5193 = vld [vmem:[#allocation2 + $0x133] sm:$0xff]
    %v5194 = vld [vmem:[#allocation2 + $0x13b] sm:$0xff]
    %v5195 = vld [vmem:[#allocation2 + $0x143] sm:$0xff]
    %v5196 = vld [vmem:[#allocation2 + $0x14b] sm:$0xff]
    %v5197 = vld [vmem:[#allocation2 + $0x153] sm:$0xff]
    %v5198 = vld [vmem:[#allocation2 + $0x15b] sm:$0xff]
    %v5199 = vld [vmem:[#allocation2 + $0x163] sm:$0xff]
    %v5200 = vld [vmem:[#allocation2 + $0x16b] sm:$0xff]
    %v5201 = vld [vmem:[#allocation2 + $0x173] sm:$0xff]
    %v5202 = vld [vmem:[#allocation2 + $0x17b] sm:$0xff]
    %v5203 = vld [vmem:[#allocation2 + $0x183] sm:$0xff]
    %v5204 = vld [vmem:[#allocation2 + $0x18b] sm:$0xff]
    %v5205 = vld [vmem:[#allocation2 + $0x193] sm:$0xff]
    %v5206 = vld [vmem:[#allocation2 + $0x19b] sm:$0xff]
    %v5207 = vld [vmem:[#allocation2 + $0x1a3] sm:$0xff]
    %v5208 = vld [vmem:[#allocation2 + $0x1ab] sm:$0xff]
    %v5209 = vld [vmem:[#allocation2 + $0x1b3] sm:$0xff]
    %v5210 = vld [vmem:[#allocation2 + $0x1bb] sm:$0xff]
    %v5211 = vld [vmem:[#allocation2 + $0x1c3] sm:$0xff]
    %v5212 = vld [vmem:[#allocation2 + $0x1cb] sm:$0xff]
    %v5213 = vld [vmem:[#allocation2 + $0x1d3] sm:$0xff]
    %v5214 = vld [vmem:[#allocation2 + $0x1db] sm:$0xff]
    %v5215 = vld [vmem:[#allocation2 + $0x1e3] sm:$0xff]
    %v5216 = vld [vmem:[#allocation2 + $0x1eb] sm:$0xff]
    %v5217 = vld [vmem:[#allocation2 + $0x1f3] sm:$0xff]
    %v5218 = vld [vmem:[#allocation2 + $0x1fb] sm:$0xff]
    %v5219 = vld [vmem:[#allocation2 + $0x203] sm:$0xff]
    %v5220 = vld [vmem:[#allocation2 + $0x20b] sm:$0xff]
    %v5221 = vld [vmem:[#allocation2 + $0x213] sm:$0xff]
    %v5222 = vld [vmem:[#allocation2 + $0x21b] sm:$0xff]
    %v5223 = vld [vmem:[#allocation2 + $0x223] sm:$0xff]
    %v5224 = vld [vmem:[#allocation2 + $0x22b] sm:$0xff]
    %v5225 = vld [vmem:[#allocation2 + $0x233] sm:$0xff]
    %v5226 = vld [vmem:[#allocation2 + $0x23b] sm:$0xff]
    %v5227 = vld [vmem:[#allocation2 + $0x243] sm:$0xff]
    %v5228 = vld [vmem:[#allocation2 + $0x24b] sm:$0xff]
    %v5229 = vld [vmem:[#allocation2 + $0x253] sm:$0xff]
    %v5230 = vld [vmem:[#allocation2 + $0x25b] sm:$0xff]
    %v5231 = vld [vmem:[#allocation2 + $0x263] sm:$0xff]
    %v5232 = vld [vmem:[#allocation2 + $0x26b] sm:$0xff]
    %v5233 = vld [vmem:[#allocation2 + $0x273] sm:$0xff]
    %v5234 = vld [vmem:[#allocation2 + $0x27b] sm:$0xff]
    %v5235 = vld [vmem:[#allocation2 + $0x283] sm:$0xff]
    %v5236 = vld [vmem:[#allocation2 + $0x28b] sm:$0xff]
    %v5237 = vld [vmem:[#allocation2 + $0x293] sm:$0xff]
    %v5238 = vld [vmem:[#allocation2 + $0x29b] sm:$0xff]
    %v5239 = vld [vmem:[#allocation2 + $0x2a3] sm:$0xff]
    %v5240 = vld [vmem:[#allocation2 + $0x2ab] sm:$0xff]
    %s5241 = scalar_lea.vmem [#allocation9], 1024
    %v5242 = vld [vmem:[%s5241] sm:$0xff]
    %v5243 = vld [vmem:[%s5241 + $0x8] sm:$0xff]
    %v5244 = vld [vmem:[%s5241 + $0x10] sm:$0xff]
    %v5245 = vld [vmem:[%s5241 + $0x18] sm:$0xff]
    %v5246 = vld [vmem:[%s5241 + $0x20] sm:$0xff]
    %v5247 = vld [vmem:[%s5241 + $0x28] sm:$0xff]
    %v5248 = vld [vmem:[%s5241 + $0x30] sm:$0xff]
    %v5249 = vld [vmem:[%s5241 + $0x38] sm:$0xff]
    %v5250 = vld [vmem:[%s5241 + $0x40] sm:$0xff]
    %v5251 = vld [vmem:[%s5241 + $0x48] sm:$0xff]
    %v5252 = vld [vmem:[%s5241 + $0x50] sm:$0xff]
    %v5253 = vld [vmem:[%s5241 + $0x58] sm:$0xff]
    %v5254 = vld [vmem:[%s5241 + $0x60] sm:$0xff]
    %v5255 = vld [vmem:[%s5241 + $0x68] sm:$0xff]
    %v5256 = vld [vmem:[%s5241 + $0x70] sm:$0xff]
    %v5257 = vld [vmem:[%s5241 + $0x78] sm:$0xff]
    %5258 = vmatpush.msra.mxu0 %v5257
    %5259 = vmatpush.msra.mxu0 %v5256
    %5260 = vmatpush.msra.mxu0 %v5255
    %5261 = vmatpush.msra.mxu0 %v5254
    %5262 = vmatpush.msra.mxu0 %v5253
    %5263 = vmatpush.msra.mxu0 %v5252
    %5264 = vmatpush.msra.mxu0 %v5251
    %5265 = vmatpush.msra.mxu0 %v5250
    %5266 = vmatpush.msra.mxu0 %v5249
    %5267 = vmatpush.msra.mxu0 %v5248
    %5268 = vmatpush.msra.mxu0 %v5247
    %5269 = vmatpush.msra.mxu0 %v5246
    %5270 = vmatpush.msra.mxu0 %v5245
    %5271 = vmatpush.msra.mxu0 %v5244
    %5272 = vmatpush.msra.mxu0 %v5243
    %5273 = vmatpush.msra.mxu0 %v5242
    %5274 = vmatmul.f32.gmra.mxu0 %v5160
    %v5275 = vpop.f32.mrf.mxu0
    %v5276 = vadd.f32 0.0, %v5275
    %5277 = vmatmul.f32.gmra.mxu0 %v5161
    %v5278 = vpop.f32.mrf.mxu0
    %v5279 = vadd.f32 0.0, %v5278
    %5280 = vmatmul.f32.gmra.mxu0 %v5162
    %v5281 = vpop.f32.mrf.mxu0
    %v5282 = vadd.f32 0.0, %v5281
    %5283 = vmatmul.f32.gmra.mxu0 %v5163
    %v5284 = vpop.f32.mrf.mxu0
    %v5285 = vadd.f32 0.0, %v5284
    %5286 = vmatmul.f32.gmra.mxu0 %v5164
    %v5287 = vpop.f32.mrf.mxu0
    %v5288 = vadd.f32 0.0, %v5287
    %5289 = vmatmul.f32.gmra.mxu0 %v5165
    %v5290 = vpop.f32.mrf.mxu0
    %v5291 = vadd.f32 0.0, %v5290
    %5292 = vmatmul.f32.gmra.mxu0 %v5166
    %v5293 = vpop.f32.mrf.mxu0
    %v5294 = vadd.f32 0.0, %v5293
    %5295 = vmatmul.f32.gmra.mxu0 %v5167
    %v5296 = vpop.f32.mrf.mxu0
    %v5297 = vadd.f32 0.0, %v5296
    %5298 = vmatmul.f32.gmra.mxu0 %v5168
    %v5299 = vpop.f32.mrf.mxu0
    %v5300 = vadd.f32 0.0, %v5299
    %5301 = vmatmul.f32.gmra.mxu0 %v5169
    %v5302 = vpop.f32.mrf.mxu0
    %v5303 = vadd.f32 0.0, %v5302
    %5304 = vmatmul.f32.gmra.mxu0 %v5170
    %v5305 = vpop.f32.mrf.mxu0
    %v5306 = vadd.f32 0.0, %v5305
    %5307 = vmatmul.f32.gmra.mxu0 %v5171
    %v5308 = vpop.f32.mrf.mxu0
    %v5309 = vadd.f32 0.0, %v5308
    %5310 = vmatmul.f32.gmra.mxu0 %v5172
    %v5311 = vpop.f32.mrf.mxu0
    %v5312 = vadd.f32 0.0, %v5311
    %5313 = vmatmul.f32.gmra.mxu0 %v5173
    %v5314 = vpop.f32.mrf.mxu0
    %v5315 = vadd.f32 0.0, %v5314
    %5316 = vmatmul.f32.gmra.mxu0 %v5174
    %v5317 = vpop.f32.mrf.mxu0
    %v5318 = vadd.f32 0.0, %v5317
    %5319 = vmatmul.f32.gmra.mxu0 %v5175
    %v5320 = vpop.f32.mrf.mxu0
    %v5321 = vadd.f32 0.0, %v5320
    %5322 = vmatmul.f32.gmra.mxu0 %v5176
    %v5323 = vpop.f32.mrf.mxu0
    %v5324 = vadd.f32 0.0, %v5323
    %5325 = vmatmul.f32.gmra.mxu0 %v5177
    %v5326 = vpop.f32.mrf.mxu0
    %v5327 = vadd.f32 0.0, %v5326
    %5328 = vmatmul.f32.gmra.mxu0 %v5178
    %v5329 = vpop.f32.mrf.mxu0
    %v5330 = vadd.f32 0.0, %v5329
    %5331 = vmatmul.f32.gmra.mxu0 %v5179
    %v5332 = vpop.f32.mrf.mxu0
    %v5333 = vadd.f32 0.0, %v5332
    %5334 = vmatmul.f32.gmra.mxu0 %v5180
    %v5335 = vpop.f32.mrf.mxu0
    %v5336 = vadd.f32 0.0, %v5335
    %5337 = vmatmul.f32.gmra.mxu0 %v5181
    %v5338 = vpop.f32.mrf.mxu0
    %v5339 = vadd.f32 0.0, %v5338
    %5340 = vmatmul.f32.gmra.mxu0 %v5182
    %v5341 = vpop.f32.mrf.mxu0
    %v5342 = vadd.f32 0.0, %v5341
    %5343 = vmatmul.f32.gmra.mxu0 %v5183
    %v5344 = vpop.f32.mrf.mxu0
    %v5345 = vadd.f32 0.0, %v5344
    %5346 = vmatmul.f32.gmra.mxu0 %v5184
    %v5347 = vpop.f32.mrf.mxu0
    %v5348 = vadd.f32 0.0, %v5347
    %5349 = vmatmul.f32.gmra.mxu0 %v5185
    %v5350 = vpop.f32.mrf.mxu0
    %v5351 = vadd.f32 0.0, %v5350
    %5352 = vmatmul.f32.gmra.mxu0 %v5186
    %v5353 = vpop.f32.mrf.mxu0
    %v5354 = vadd.f32 0.0, %v5353
    %5355 = vmatmul.f32.gmra.mxu0 %v5187
    %v5356 = vpop.f32.mrf.mxu0
    %v5357 = vadd.f32 0.0, %v5356
    %5358 = vmatmul.f32.gmra.mxu0 %v5188
    %v5359 = vpop.f32.mrf.mxu0
    %v5360 = vadd.f32 0.0, %v5359
    %5361 = vmatmul.f32.gmra.mxu0 %v5189
    %v5362 = vpop.f32.mrf.mxu0
    %v5363 = vadd.f32 0.0, %v5362
    %5364 = vmatmul.f32.gmra.mxu0 %v5190
    %v5365 = vpop.f32.mrf.mxu0
    %v5366 = vadd.f32 0.0, %v5365
    %5367 = vmatmul.f32.gmra.mxu0 %v5191
    %v5368 = vpop.f32.mrf.mxu0
    %v5369 = vadd.f32 0.0, %v5368
    %5370 = vmatmul.f32.gmra.mxu0 %v5192
    %v5371 = vpop.f32.mrf.mxu0
    %v5372 = vadd.f32 0.0, %v5371
    %5373 = vmatmul.f32.gmra.mxu0 %v5193
    %v5374 = vpop.f32.mrf.mxu0
    %v5375 = vadd.f32 0.0, %v5374
    %5376 = vmatmul.f32.gmra.mxu0 %v5194
    %v5377 = vpop.f32.mrf.mxu0
    %v5378 = vadd.f32 0.0, %v5377
    %5379 = vmatmul.f32.gmra.mxu0 %v5195
    %v5380 = vpop.f32.mrf.mxu0
    %v5381 = vadd.f32 0.0, %v5380
    %5382 = vmatmul.f32.gmra.mxu0 %v5196
    %v5383 = vpop.f32.mrf.mxu0
    %v5384 = vadd.f32 0.0, %v5383
    %5385 = vmatmul.f32.gmra.mxu0 %v5197
    %v5386 = vpop.f32.mrf.mxu0
    %v5387 = vadd.f32 0.0, %v5386
    %5388 = vmatmul.f32.gmra.mxu0 %v5198
    %v5389 = vpop.f32.mrf.mxu0
    %v5390 = vadd.f32 0.0, %v5389
    %5391 = vmatmul.f32.gmra.mxu0 %v5199
    %v5392 = vpop.f32.mrf.mxu0
    %v5393 = vadd.f32 0.0, %v5392
    %5394 = vmatmul.f32.gmra.mxu0 %v5200
    %v5395 = vpop.f32.mrf.mxu0
    %v5396 = vadd.f32 0.0, %v5395
    %5397 = vmatmul.f32.gmra.mxu0 %v5201
    %v5398 = vpop.f32.mrf.mxu0
    %v5399 = vadd.f32 0.0, %v5398
    %5400 = vmatmul.f32.gmra.mxu0 %v5202
    %v5401 = vpop.f32.mrf.mxu0
    %v5402 = vadd.f32 0.0, %v5401
    %5403 = vmatmul.f32.gmra.mxu0 %v5203
    %v5404 = vpop.f32.mrf.mxu0
    %v5405 = vadd.f32 0.0, %v5404
    %5406 = vmatmul.f32.gmra.mxu0 %v5204
    %v5407 = vpop.f32.mrf.mxu0
    %v5408 = vadd.f32 0.0, %v5407
    %5409 = vmatmul.f32.gmra.mxu0 %v5205
    %v5410 = vpop.f32.mrf.mxu0
    %v5411 = vadd.f32 0.0, %v5410
    %5412 = vmatmul.f32.gmra.mxu0 %v5206
    %v5413 = vpop.f32.mrf.mxu0
    %v5414 = vadd.f32 0.0, %v5413
    %5415 = vmatmul.f32.gmra.mxu0 %v5207
    %v5416 = vpop.f32.mrf.mxu0
    %v5417 = vadd.f32 0.0, %v5416
    %5418 = vmatmul.f32.gmra.mxu0 %v5208
    %v5419 = vpop.f32.mrf.mxu0
    %v5420 = vadd.f32 0.0, %v5419
    %5421 = vmatmul.f32.gmra.mxu0 %v5209
    %v5422 = vpop.f32.mrf.mxu0
    %v5423 = vadd.f32 0.0, %v5422
    %5424 = vmatmul.f32.gmra.mxu0 %v5210
    %v5425 = vpop.f32.mrf.mxu0
    %v5426 = vadd.f32 0.0, %v5425
    %5427 = vmatmul.f32.gmra.mxu0 %v5211
    %v5428 = vpop.f32.mrf.mxu0
    %v5429 = vadd.f32 0.0, %v5428
    %5430 = vmatmul.f32.gmra.mxu0 %v5212
    %v5431 = vpop.f32.mrf.mxu0
    %v5432 = vadd.f32 0.0, %v5431
    %5433 = vmatmul.f32.gmra.mxu0 %v5213
    %v5434 = vpop.f32.mrf.mxu0
    %v5435 = vadd.f32 0.0, %v5434
    %5436 = vmatmul.f32.gmra.mxu0 %v5214
    %v5437 = vpop.f32.mrf.mxu0
    %v5438 = vadd.f32 0.0, %v5437
    %5439 = vmatmul.f32.gmra.mxu0 %v5215
    %v5440 = vpop.f32.mrf.mxu0
    %v5441 = vadd.f32 0.0, %v5440
    %5442 = vmatmul.f32.gmra.mxu0 %v5216
    %v5443 = vpop.f32.mrf.mxu0
    %v5444 = vadd.f32 0.0, %v5443
    %5445 = vmatmul.f32.gmra.mxu0 %v5217
    %v5446 = vpop.f32.mrf.mxu0
    %v5447 = vadd.f32 0.0, %v5446
    %5448 = vmatmul.f32.gmra.mxu0 %v5218
    %v5449 = vpop.f32.mrf.mxu0
    %v5450 = vadd.f32 0.0, %v5449
    %5451 = vmatmul.f32.gmra.mxu0 %v5219
    %v5452 = vpop.f32.mrf.mxu0
    %v5453 = vadd.f32 0.0, %v5452
    %5454 = vmatmul.f32.gmra.mxu0 %v5220
    %v5455 = vpop.f32.mrf.mxu0
    %v5456 = vadd.f32 0.0, %v5455
    %5457 = vmatmul.f32.gmra.mxu0 %v5221
    %v5458 = vpop.f32.mrf.mxu0
    %v5459 = vadd.f32 0.0, %v5458
    %5460 = vmatmul.f32.gmra.mxu0 %v5222
    %v5461 = vpop.f32.mrf.mxu0
    %v5462 = vadd.f32 0.0, %v5461
    %5463 = vmatmul.f32.gmra.mxu0 %v5223
    %v5464 = vpop.f32.mrf.mxu0
    %v5465 = vadd.f32 0.0, %v5464
    %5466 = vmatmul.f32.gmra.mxu0 %v5224
    %v5467 = vpop.f32.mrf.mxu0
    %v5468 = vadd.f32 0.0, %v5467
    %5469 = vmatmul.f32.gmra.mxu0 %v5225
    %v5470 = vpop.f32.mrf.mxu0
    %v5471 = vadd.f32 0.0, %v5470
    %5472 = vmatmul.f32.gmra.mxu0 %v5226
    %v5473 = vpop.f32.mrf.mxu0
    %v5474 = vadd.f32 0.0, %v5473
    %5475 = vmatmul.f32.gmra.mxu0 %v5227
    %v5476 = vpop.f32.mrf.mxu0
    %v5477 = vadd.f32 0.0, %v5476
    %5478 = vmatmul.f32.gmra.mxu0 %v5228
    %v5479 = vpop.f32.mrf.mxu0
    %v5480 = vadd.f32 0.0, %v5479
    %5481 = vmatmul.f32.gmra.mxu0 %v5229
    %v5482 = vpop.f32.mrf.mxu0
    %v5483 = vadd.f32 0.0, %v5482
    %5484 = vmatmul.f32.gmra.mxu0 %v5230
    %v5485 = vpop.f32.mrf.mxu0
    %v5486 = vadd.f32 0.0, %v5485
    %5487 = vmatmul.f32.gmra.mxu0 %v5231
    %v5488 = vpop.f32.mrf.mxu0
    %v5489 = vadd.f32 0.0, %v5488
    %5490 = vmatmul.f32.gmra.mxu0 %v5232
    %v5491 = vpop.f32.mrf.mxu0
    %v5492 = vadd.f32 0.0, %v5491
    %5493 = vmatmul.f32.gmra.mxu0 %v5233
    %v5494 = vpop.f32.mrf.mxu0
    %v5495 = vadd.f32 0.0, %v5494
    %5496 = vmatmul.f32.gmra.mxu0 %v5234
    %v5497 = vpop.f32.mrf.mxu0
    %v5498 = vadd.f32 0.0, %v5497
    %5499 = vmatmul.f32.gmra.mxu0 %v5235
    %v5500 = vpop.f32.mrf.mxu0
    %v5501 = vadd.f32 0.0, %v5500
    %5502 = vmatmul.f32.gmra.mxu0 %v5236
    %v5503 = vpop.f32.mrf.mxu0
    %v5504 = vadd.f32 0.0, %v5503
    %5505 = vmatmul.f32.gmra.mxu0 %v5237
    %v5506 = vpop.f32.mrf.mxu0
    %v5507 = vadd.f32 0.0, %v5506
    %5508 = vmatmul.f32.gmra.mxu0 %v5238
    %v5509 = vpop.f32.mrf.mxu0
    %v5510 = vadd.f32 0.0, %v5509
    %5511 = vmatmul.f32.gmra.mxu0 %v5239
    %v5512 = vpop.f32.mrf.mxu0
    %v5513 = vadd.f32 0.0, %v5512
    %5514 = vmatmul.f32.gmra.mxu0 %v5240
    %v5515 = vpop.f32.mrf.mxu0
    %v5516 = vadd.f32 0.0, %v5515
    %5517 = vdwg.mxu0
    %v5518 = vadd.f32 %v5079, %v5276
    %v5519 = vadd.f32 %v5080, %v5279
    %v5520 = vadd.f32 %v5081, %v5282
    %v5521 = vadd.f32 %v5082, %v5285
    %v5522 = vadd.f32 %v5083, %v5288
    %v5523 = vadd.f32 %v5084, %v5291
    %v5524 = vadd.f32 %v5085, %v5294
    %v5525 = vadd.f32 %v5086, %v5297
    %v5526 = vadd.f32 %v5087, %v5300
    %v5527 = vadd.f32 %v5088, %v5303
    %v5528 = vadd.f32 %v5089, %v5306
    %v5529 = vadd.f32 %v5090, %v5309
    %v5530 = vadd.f32 %v5091, %v5312
    %v5531 = vadd.f32 %v5092, %v5315
    %v5532 = vadd.f32 %v5093, %v5318
    %v5533 = vadd.f32 %v5094, %v5321
    %v5534 = vadd.f32 %v5095, %v5324
    %v5535 = vadd.f32 %v5096, %v5327
    %v5536 = vadd.f32 %v5097, %v5330
    %v5537 = vadd.f32 %v5098, %v5333
    %v5538 = vadd.f32 %v5099, %v5336
    %v5539 = vadd.f32 %v5100, %v5339
    %v5540 = vadd.f32 %v5101, %v5342
    %v5541 = vadd.f32 %v5102, %v5345
    %v5542 = vadd.f32 %v5103, %v5348
    %v5543 = vadd.f32 %v5104, %v5351
    %v5544 = vadd.f32 %v5105, %v5354
    %v5545 = vadd.f32 %v5106, %v5357
    %v5546 = vadd.f32 %v5107, %v5360
    %v5547 = vadd.f32 %v5108, %v5363
    %v5548 = vadd.f32 %v5109, %v5366
    %v5549 = vadd.f32 %v5110, %v5369
    %v5550 = vadd.f32 %v5111, %v5372
    %v5551 = vadd.f32 %v5112, %v5375
    %v5552 = vadd.f32 %v5113, %v5378
    %v5553 = vadd.f32 %v5114, %v5381
    %v5554 = vadd.f32 %v5115, %v5384
    %v5555 = vadd.f32 %v5116, %v5387
    %v5556 = vadd.f32 %v5117, %v5390
    %v5557 = vadd.f32 %v5118, %v5393
    %v5558 = vadd.f32 %v5119, %v5396
    %v5559 = vadd.f32 %v5120, %v5399
    %v5560 = vadd.f32 %v5121, %v5402
    %v5561 = vadd.f32 %v5122, %v5405
    %v5562 = vadd.f32 %v5123, %v5408
    %v5563 = vadd.f32 %v5124, %v5411
    %v5564 = vadd.f32 %v5125, %v5414
    %v5565 = vadd.f32 %v5126, %v5417
    %v5566 = vadd.f32 %v5127, %v5420
    %v5567 = vadd.f32 %v5128, %v5423
    %v5568 = vadd.f32 %v5129, %v5426
    %v5569 = vadd.f32 %v5130, %v5429
    %v5570 = vadd.f32 %v5131, %v5432
    %v5571 = vadd.f32 %v5132, %v5435
    %v5572 = vadd.f32 %v5133, %v5438
    %v5573 = vadd.f32 %v5134, %v5441
    %v5574 = vadd.f32 %v5135, %v5444
    %v5575 = vadd.f32 %v5136, %v5447
    %v5576 = vadd.f32 %v5137, %v5450
    %v5577 = vadd.f32 %v5138, %v5453
    %v5578 = vadd.f32 %v5139, %v5456
    %v5579 = vadd.f32 %v5140, %v5459
    %v5580 = vadd.f32 %v5141, %v5462
    %v5581 = vadd.f32 %v5142, %v5465
    %v5582 = vadd.f32 %v5143, %v5468
    %v5583 = vadd.f32 %v5144, %v5471
    %v5584 = vadd.f32 %v5145, %v5474
    %v5585 = vadd.f32 %v5146, %v5477
    %v5586 = vadd.f32 %v5147, %v5480
    %v5587 = vadd.f32 %v5148, %v5483
    %v5588 = vadd.f32 %v5149, %v5486
    %v5589 = vadd.f32 %v5150, %v5489
    %v5590 = vadd.f32 %v5151, %v5492
    %v5591 = vadd.f32 %v5152, %v5495
    %v5592 = vadd.f32 %v5153, %v5498
    %v5593 = vadd.f32 %v5154, %v5501
    %v5594 = vadd.f32 %v5155, %v5504
    %v5595 = vadd.f32 %v5156, %v5507
    %v5596 = vadd.f32 %v5157, %v5510
    %v5597 = vadd.f32 %v5158, %v5513
    %v5598 = vadd.f32 %v5159, %v5516
    %5599 = vmatpush.msra.mxu0 %v5533
    %5600 = vmatpush.msra.mxu0 %v5532
    %5601 = vmatpush.msra.mxu0 %v5531
    %5602 = vmatpush.msra.mxu0 %v5530
    %5603 = vmatpush.msra.mxu0 %v5529
    %5604 = vmatpush.msra.mxu0 %v5528
    %5605 = vmatpush.msra.mxu0 %v5527
    %5606 = vmatpush.msra.mxu0 %v5526
    %5607 = vmatpush.msra.mxu0 %v5525
    %5608 = vmatpush.msra.mxu0 %v5524
    %5609 = vmatpush.msra.mxu0 %v5523
    %5610 = vmatpush.msra.mxu0 %v5522
    %5611 = vmatpush.msra.mxu0 %v5521
    %5612 = vmatpush.msra.mxu0 %v5520
    %5613 = vmatpush.msra.mxu0 %v5519
    %5614 = vmatpush.msra.mxu0 %v5518
    %5615 = vmatmul.f32.gmra.mxu0 %v475
    %v5616 = vpop.f32.mrf.mxu0
    %v5617 = vadd.f32 0.0, %v5616
    %5618 = vdwg.mxu0
    %5619 = vmatpush.msra.mxu0 %v5549
    %5620 = vmatpush.msra.mxu0 %v5548
    %5621 = vmatpush.msra.mxu0 %v5547
    %5622 = vmatpush.msra.mxu0 %v5546
    %5623 = vmatpush.msra.mxu0 %v5545
    %5624 = vmatpush.msra.mxu0 %v5544
    %5625 = vmatpush.msra.mxu0 %v5543
    %5626 = vmatpush.msra.mxu0 %v5542
    %5627 = vmatpush.msra.mxu0 %v5541
    %5628 = vmatpush.msra.mxu0 %v5540
    %5629 = vmatpush.msra.mxu0 %v5539
    %5630 = vmatpush.msra.mxu0 %v5538
    %5631 = vmatpush.msra.mxu0 %v5537
    %5632 = vmatpush.msra.mxu0 %v5536
    %5633 = vmatpush.msra.mxu0 %v5535
    %5634 = vmatpush.msra.mxu0 %v5534
    %5635 = vmatmul.f32.gmra.mxu0 %v476
    %v5636 = vpop.f32.mrf.mxu0
    %v5637 = vadd.f32 %v5617, %v5636
    %5638 = vdwg.mxu0
    %5639 = vmatpush.msra.mxu0 %v5565
    %5640 = vmatpush.msra.mxu0 %v5564
    %5641 = vmatpush.msra.mxu0 %v5563
    %5642 = vmatpush.msra.mxu0 %v5562
    %5643 = vmatpush.msra.mxu0 %v5561
    %5644 = vmatpush.msra.mxu0 %v5560
    %5645 = vmatpush.msra.mxu0 %v5559
    %5646 = vmatpush.msra.mxu0 %v5558
    %5647 = vmatpush.msra.mxu0 %v5557
    %5648 = vmatpush.msra.mxu0 %v5556
    %5649 = vmatpush.msra.mxu0 %v5555
    %5650 = vmatpush.msra.mxu0 %v5554
    %5651 = vmatpush.msra.mxu0 %v5553
    %5652 = vmatpush.msra.mxu0 %v5552
    %5653 = vmatpush.msra.mxu0 %v5551
    %5654 = vmatpush.msra.mxu0 %v5550
    %5655 = vmatmul.f32.gmra.mxu0 %v477
    %v5656 = vpop.f32.mrf.mxu0
    %v5657 = vadd.f32 %v5637, %v5656
    %5658 = vdwg.mxu0
    %5659 = vmatpush.msra.mxu0 %v5581
    %5660 = vmatpush.msra.mxu0 %v5580
    %5661 = vmatpush.msra.mxu0 %v5579
    %5662 = vmatpush.msra.mxu0 %v5578
    %5663 = vmatpush.msra.mxu0 %v5577
    %5664 = vmatpush.msra.mxu0 %v5576
    %5665 = vmatpush.msra.mxu0 %v5575
    %5666 = vmatpush.msra.mxu0 %v5574
    %5667 = vmatpush.msra.mxu0 %v5573
    %5668 = vmatpush.msra.mxu0 %v5572
    %5669 = vmatpush.msra.mxu0 %v5571
    %5670 = vmatpush.msra.mxu0 %v5570
    %5671 = vmatpush.msra.mxu0 %v5569
    %5672 = vmatpush.msra.mxu0 %v5568
    %5673 = vmatpush.msra.mxu0 %v5567
    %5674 = vmatpush.msra.mxu0 %v5566
    %5675 = vmatmul.f32.gmra.mxu0 %v478
    %v5676 = vpop.f32.mrf.mxu0
    %v5677 = vadd.f32 %v5657, %v5676
    %5678 = vdwg.mxu0
    %5679 = vmatpush.msra.mxu0 %v5597
    %5680 = vmatpush.msra.mxu0 %v5596
    %5681 = vmatpush.msra.mxu0 %v5595
    %5682 = vmatpush.msra.mxu0 %v5594
    %5683 = vmatpush.msra.mxu0 %v5593
    %5684 = vmatpush.msra.mxu0 %v5592
    %5685 = vmatpush.msra.mxu0 %v5591
    %5686 = vmatpush.msra.mxu0 %v5590
    %5687 = vmatpush.msra.mxu0 %v5589
    %5688 = vmatpush.msra.mxu0 %v5588
    %5689 = vmatpush.msra.mxu0 %v5587
    %5690 = vmatpush.msra.mxu0 %v5586
    %5691 = vmatpush.msra.mxu0 %v5585
    %5692 = vmatpush.msra.mxu0 %v5584
    %5693 = vmatpush.msra.mxu0 %v5583
    %5694 = vmatpush.msra.mxu0 %v5582
    %5695 = vmatmul.f32.gmra.mxu0 %v479
    %v5696 = vpop.f32.mrf.mxu0
    %v5697 = vadd.f32 %v5677, %v5696
    %5698 = vdwg.mxu0
    %5699 = vmatpush.msra.mxu0 0.0
    %5700 = vmatpush.msra.mxu0 0.0
    %5701 = vmatpush.msra.mxu0 0.0
    %5702 = vmatpush.msra.mxu0 0.0
    %5703 = vmatpush.msra.mxu0 0.0
    %5704 = vmatpush.msra.mxu0 0.0
    %5705 = vmatpush.msra.mxu0 0.0
    %5706 = vmatpush.msra.mxu0 0.0
    %5707 = vmatpush.msra.mxu0 0.0
    %5708 = vmatpush.msra.mxu0 0.0
    %5709 = vmatpush.msra.mxu0 0.0
    %5710 = vmatpush.msra.mxu0 0.0
    %5711 = vmatpush.msra.mxu0 0.0
    %5712 = vmatpush.msra.mxu0 0.0
    %5713 = vmatpush.msra.mxu0 0.0
    %5714 = vmatpush.msra.mxu0 %v5598
    %5715 = vmatmul.f32.gmra.mxu0 %v487
    %v5716 = vpop.f32.mrf.mxu0
    %v5717 = vadd.f32 %v5697, %v5716
    %5718 = vdwg.mxu0
    %v5719 = vmul.f32 %v5717, 0.001953125
    %v5720 = vperm.slane %v5719, 0
    %v5721 = vsub.f32 %v5518, %v5720
    %v5722 = vsub.f32 %v5519, %v5720
    %v5723 = vsub.f32 %v5520, %v5720
    %v5724 = vsub.f32 %v5521, %v5720
    %v5725 = vsub.f32 %v5522, %v5720
    %v5726 = vsub.f32 %v5523, %v5720
    %v5727 = vsub.f32 %v5524, %v5720
    %v5728 = vsub.f32 %v5525, %v5720
    %v5729 = vsub.f32 %v5526, %v5720
    %v5730 = vsub.f32 %v5527, %v5720
    %v5731 = vsub.f32 %v5528, %v5720
    %v5732 = vsub.f32 %v5529, %v5720
    %v5733 = vsub.f32 %v5530, %v5720
    %v5734 = vsub.f32 %v5531, %v5720
    %v5735 = vsub.f32 %v5532, %v5720
    %v5736 = vsub.f32 %v5533, %v5720
    %v5737 = vsub.f32 %v5534, %v5720
    %v5738 = vsub.f32 %v5535, %v5720
    %v5739 = vsub.f32 %v5536, %v5720
    %v5740 = vsub.f32 %v5537, %v5720
    %v5741 = vsub.f32 %v5538, %v5720
    %v5742 = vsub.f32 %v5539, %v5720
    %v5743 = vsub.f32 %v5540, %v5720
    %v5744 = vsub.f32 %v5541, %v5720
    %v5745 = vsub.f32 %v5542, %v5720
    %v5746 = vsub.f32 %v5543, %v5720
    %v5747 = vsub.f32 %v5544, %v5720
    %v5748 = vsub.f32 %v5545, %v5720
    %v5749 = vsub.f32 %v5546, %v5720
    %v5750 = vsub.f32 %v5547, %v5720
    %v5751 = vsub.f32 %v5548, %v5720
    %v5752 = vsub.f32 %v5549, %v5720
    %v5753 = vsub.f32 %v5550, %v5720
    %v5754 = vsub.f32 %v5551, %v5720
    %v5755 = vsub.f32 %v5552, %v5720
    %v5756 = vsub.f32 %v5553, %v5720
    %v5757 = vsub.f32 %v5554, %v5720
    %v5758 = vsub.f32 %v5555, %v5720
    %v5759 = vsub.f32 %v5556, %v5720
    %v5760 = vsub.f32 %v5557, %v5720
    %v5761 = vsub.f32 %v5558, %v5720
    %v5762 = vsub.f32 %v5559, %v5720
    %v5763 = vsub.f32 %v5560, %v5720
    %v5764 = vsub.f32 %v5561, %v5720
    %v5765 = vsub.f32 %v5562, %v5720
    %v5766 = vsub.f32 %v5563, %v5720
    %v5767 = vsub.f32 %v5564, %v5720
    %v5768 = vsub.f32 %v5565, %v5720
    %v5769 = vsub.f32 %v5566, %v5720
    %v5770 = vsub.f32 %v5567, %v5720
    %v5771 = vsub.f32 %v5568, %v5720
    %v5772 = vsub.f32 %v5569, %v5720
    %v5773 = vsub.f32 %v5570, %v5720
    %v5774 = vsub.f32 %v5571, %v5720
    %v5775 = vsub.f32 %v5572, %v5720
    %v5776 = vsub.f32 %v5573, %v5720
    %v5777 = vsub.f32 %v5574, %v5720
    %v5778 = vsub.f32 %v5575, %v5720
    %v5779 = vsub.f32 %v5576, %v5720
    %v5780 = vsub.f32 %v5577, %v5720
    %v5781 = vsub.f32 %v5578, %v5720
    %v5782 = vsub.f32 %v5579, %v5720
    %v5783 = vsub.f32 %v5580, %v5720
    %v5784 = vsub.f32 %v5581, %v5720
    %v5785 = vsub.f32 %v5582, %v5720
    %v5786 = vsub.f32 %v5583, %v5720
    %v5787 = vsub.f32 %v5584, %v5720
    %v5788 = vsub.f32 %v5585, %v5720
    %v5789 = vsub.f32 %v5586, %v5720
    %v5790 = vsub.f32 %v5587, %v5720
    %v5791 = vsub.f32 %v5588, %v5720
    %v5792 = vsub.f32 %v5589, %v5720
    %v5793 = vsub.f32 %v5590, %v5720
    %v5794 = vsub.f32 %v5591, %v5720
    %v5795 = vsub.f32 %v5592, %v5720
    %v5796 = vsub.f32 %v5593, %v5720
    %v5797 = vsub.f32 %v5594, %v5720
    %v5798 = vsub.f32 %v5595, %v5720
    %v5799 = vsub.f32 %v5596, %v5720
    %v5800 = vsub.f32 %v5597, %v5720
    %v5801 = vsub.f32 %v5598, %v5720
    %v5802 = vmul.f32 %v5721, %v5721
    %v5803 = vmul.f32 %v5722, %v5722
    %v5804 = vmul.f32 %v5723, %v5723
    %v5805 = vmul.f32 %v5724, %v5724
    %v5806 = vmul.f32 %v5725, %v5725
    %v5807 = vmul.f32 %v5726, %v5726
    %v5808 = vmul.f32 %v5727, %v5727
    %v5809 = vmul.f32 %v5728, %v5728
    %v5810 = vmul.f32 %v5729, %v5729
    %v5811 = vmul.f32 %v5730, %v5730
    %v5812 = vmul.f32 %v5731, %v5731
    %v5813 = vmul.f32 %v5732, %v5732
    %v5814 = vmul.f32 %v5733, %v5733
    %v5815 = vmul.f32 %v5734, %v5734
    %v5816 = vmul.f32 %v5735, %v5735
    %v5817 = vmul.f32 %v5736, %v5736
    %v5818 = vmul.f32 %v5737, %v5737
    %v5819 = vmul.f32 %v5738, %v5738
    %v5820 = vmul.f32 %v5739, %v5739
    %v5821 = vmul.f32 %v5740, %v5740
    %v5822 = vmul.f32 %v5741, %v5741
    %v5823 = vmul.f32 %v5742, %v5742
    %v5824 = vmul.f32 %v5743, %v5743
    %v5825 = vmul.f32 %v5744, %v5744
    %v5826 = vmul.f32 %v5745, %v5745
    %v5827 = vmul.f32 %v5746, %v5746
    %v5828 = vmul.f32 %v5747, %v5747
    %v5829 = vmul.f32 %v5748, %v5748
    %v5830 = vmul.f32 %v5749, %v5749
    %v5831 = vmul.f32 %v5750, %v5750
    %v5832 = vmul.f32 %v5751, %v5751
    %v5833 = vmul.f32 %v5752, %v5752
    %v5834 = vmul.f32 %v5753, %v5753
    %v5835 = vmul.f32 %v5754, %v5754
    %v5836 = vmul.f32 %v5755, %v5755
    %v5837 = vmul.f32 %v5756, %v5756
    %v5838 = vmul.f32 %v5757, %v5757
    %v5839 = vmul.f32 %v5758, %v5758
    %v5840 = vmul.f32 %v5759, %v5759
    %v5841 = vmul.f32 %v5760, %v5760
    %v5842 = vmul.f32 %v5761, %v5761
    %v5843 = vmul.f32 %v5762, %v5762
    %v5844 = vmul.f32 %v5763, %v5763
    %v5845 = vmul.f32 %v5764, %v5764
    %v5846 = vmul.f32 %v5765, %v5765
    %v5847 = vmul.f32 %v5766, %v5766
    %v5848 = vmul.f32 %v5767, %v5767
    %v5849 = vmul.f32 %v5768, %v5768
    %v5850 = vmul.f32 %v5769, %v5769
    %v5851 = vmul.f32 %v5770, %v5770
    %v5852 = vmul.f32 %v5771, %v5771
    %v5853 = vmul.f32 %v5772, %v5772
    %v5854 = vmul.f32 %v5773, %v5773
    %v5855 = vmul.f32 %v5774, %v5774
    %v5856 = vmul.f32 %v5775, %v5775
    %v5857 = vmul.f32 %v5776, %v5776
    %v5858 = vmul.f32 %v5777, %v5777
    %v5859 = vmul.f32 %v5778, %v5778
    %v5860 = vmul.f32 %v5779, %v5779
    %v5861 = vmul.f32 %v5780, %v5780
    %v5862 = vmul.f32 %v5781, %v5781
    %v5863 = vmul.f32 %v5782, %v5782
    %v5864 = vmul.f32 %v5783, %v5783
    %v5865 = vmul.f32 %v5784, %v5784
    %v5866 = vmul.f32 %v5785, %v5785
    %v5867 = vmul.f32 %v5786, %v5786
    %v5868 = vmul.f32 %v5787, %v5787
    %v5869 = vmul.f32 %v5788, %v5788
    %v5870 = vmul.f32 %v5789, %v5789
    %v5871 = vmul.f32 %v5790, %v5790
    %v5872 = vmul.f32 %v5791, %v5791
    %v5873 = vmul.f32 %v5792, %v5792
    %v5874 = vmul.f32 %v5793, %v5793
    %v5875 = vmul.f32 %v5794, %v5794
    %v5876 = vmul.f32 %v5795, %v5795
    %v5877 = vmul.f32 %v5796, %v5796
    %v5878 = vmul.f32 %v5797, %v5797
    %v5879 = vmul.f32 %v5798, %v5798
    %v5880 = vmul.f32 %v5799, %v5799
    %v5881 = vmul.f32 %v5800, %v5800
    %v5882 = vmul.f32 %v5801, %v5801
    %5883 = vmatpush.msra.mxu0 %v5817
    %5884 = vmatpush.msra.mxu0 %v5816
    %5885 = vmatpush.msra.mxu0 %v5815
    %5886 = vmatpush.msra.mxu0 %v5814
    %5887 = vmatpush.msra.mxu0 %v5813
    %5888 = vmatpush.msra.mxu0 %v5812
    %5889 = vmatpush.msra.mxu0 %v5811
    %5890 = vmatpush.msra.mxu0 %v5810
    %5891 = vmatpush.msra.mxu0 %v5809
    %5892 = vmatpush.msra.mxu0 %v5808
    %5893 = vmatpush.msra.mxu0 %v5807
    %5894 = vmatpush.msra.mxu0 %v5806
    %5895 = vmatpush.msra.mxu0 %v5805
    %5896 = vmatpush.msra.mxu0 %v5804
    %5897 = vmatpush.msra.mxu0 %v5803
    %5898 = vmatpush.msra.mxu0 %v5802
    %5899 = vmatmul.f32.gmra.mxu0 %v475
    %v5900 = vpop.f32.mrf.mxu0
    %v5901 = vadd.f32 0.0, %v5900
    %5902 = vdwg.mxu0
    %5903 = vmatpush.msra.mxu0 %v5833
    %5904 = vmatpush.msra.mxu0 %v5832
    %5905 = vmatpush.msra.mxu0 %v5831
    %5906 = vmatpush.msra.mxu0 %v5830
    %5907 = vmatpush.msra.mxu0 %v5829
    %5908 = vmatpush.msra.mxu0 %v5828
    %5909 = vmatpush.msra.mxu0 %v5827
    %5910 = vmatpush.msra.mxu0 %v5826
    %5911 = vmatpush.msra.mxu0 %v5825
    %5912 = vmatpush.msra.mxu0 %v5824
    %5913 = vmatpush.msra.mxu0 %v5823
    %5914 = vmatpush.msra.mxu0 %v5822
    %5915 = vmatpush.msra.mxu0 %v5821
    %5916 = vmatpush.msra.mxu0 %v5820
    %5917 = vmatpush.msra.mxu0 %v5819
    %5918 = vmatpush.msra.mxu0 %v5818
    %5919 = vmatmul.f32.gmra.mxu0 %v476
    %v5920 = vpop.f32.mrf.mxu0
    %v5921 = vadd.f32 %v5901, %v5920
    %5922 = vdwg.mxu0
    %5923 = vmatpush.msra.mxu0 %v5849
    %5924 = vmatpush.msra.mxu0 %v5848
    %5925 = vmatpush.msra.mxu0 %v5847
    %5926 = vmatpush.msra.mxu0 %v5846
    %5927 = vmatpush.msra.mxu0 %v5845
    %5928 = vmatpush.msra.mxu0 %v5844
    %5929 = vmatpush.msra.mxu0 %v5843
    %5930 = vmatpush.msra.mxu0 %v5842
    %5931 = vmatpush.msra.mxu0 %v5841
    %5932 = vmatpush.msra.mxu0 %v5840
    %5933 = vmatpush.msra.mxu0 %v5839
    %5934 = vmatpush.msra.mxu0 %v5838
    %5935 = vmatpush.msra.mxu0 %v5837
    %5936 = vmatpush.msra.mxu0 %v5836
    %5937 = vmatpush.msra.mxu0 %v5835
    %5938 = vmatpush.msra.mxu0 %v5834
    %5939 = vmatmul.f32.gmra.mxu0 %v477
    %v5940 = vpop.f32.mrf.mxu0
    %v5941 = vadd.f32 %v5921, %v5940
    %5942 = vdwg.mxu0
    %5943 = vmatpush.msra.mxu0 %v5865
    %5944 = vmatpush.msra.mxu0 %v5864
    %5945 = vmatpush.msra.mxu0 %v5863
    %5946 = vmatpush.msra.mxu0 %v5862
    %5947 = vmatpush.msra.mxu0 %v5861
    %5948 = vmatpush.msra.mxu0 %v5860
    %5949 = vmatpush.msra.mxu0 %v5859
    %5950 = vmatpush.msra.mxu0 %v5858
    %5951 = vmatpush.msra.mxu0 %v5857
    %5952 = vmatpush.msra.mxu0 %v5856
    %5953 = vmatpush.msra.mxu0 %v5855
    %5954 = vmatpush.msra.mxu0 %v5854
    %5955 = vmatpush.msra.mxu0 %v5853
    %5956 = vmatpush.msra.mxu0 %v5852
    %5957 = vmatpush.msra.mxu0 %v5851
    %5958 = vmatpush.msra.mxu0 %v5850
    %5959 = vmatmul.f32.gmra.mxu0 %v478
    %v5960 = vpop.f32.mrf.mxu0
    %v5961 = vadd.f32 %v5941, %v5960
    %5962 = vdwg.mxu0
    %5963 = vmatpush.msra.mxu0 %v5881
    %5964 = vmatpush.msra.mxu0 %v5880
    %5965 = vmatpush.msra.mxu0 %v5879
    %5966 = vmatpush.msra.mxu0 %v5878
    %5967 = vmatpush.msra.mxu0 %v5877
    %5968 = vmatpush.msra.mxu0 %v5876
    %5969 = vmatpush.msra.mxu0 %v5875
    %5970 = vmatpush.msra.mxu0 %v5874
    %5971 = vmatpush.msra.mxu0 %v5873
    %5972 = vmatpush.msra.mxu0 %v5872
    %5973 = vmatpush.msra.mxu0 %v5871
    %5974 = vmatpush.msra.mxu0 %v5870
    %5975 = vmatpush.msra.mxu0 %v5869
    %5976 = vmatpush.msra.mxu0 %v5868
    %5977 = vmatpush.msra.mxu0 %v5867
    %5978 = vmatpush.msra.mxu0 %v5866
    %5979 = vmatmul.f32.gmra.mxu0 %v479
    %v5980 = vpop.f32.mrf.mxu0
    %v5981 = vadd.f32 %v5961, %v5980
    %5982 = vdwg.mxu0
    %5983 = vmatpush.msra.mxu0 0.0
    %5984 = vmatpush.msra.mxu0 0.0
    %5985 = vmatpush.msra.mxu0 0.0
    %5986 = vmatpush.msra.mxu0 0.0
    %5987 = vmatpush.msra.mxu0 0.0
    %5988 = vmatpush.msra.mxu0 0.0
    %5989 = vmatpush.msra.mxu0 0.0
    %5990 = vmatpush.msra.mxu0 0.0
    %5991 = vmatpush.msra.mxu0 0.0
    %5992 = vmatpush.msra.mxu0 0.0
    %5993 = vmatpush.msra.mxu0 0.0
    %5994 = vmatpush.msra.mxu0 0.0
    %5995 = vmatpush.msra.mxu0 0.0
    %5996 = vmatpush.msra.mxu0 0.0
    %5997 = vmatpush.msra.mxu0 0.0
    %5998 = vmatpush.msra.mxu0 %v5882
    %5999 = vmatmul.f32.gmra.mxu0 %v487
    %v6000 = vpop.f32.mrf.mxu0
    %v6001 = vadd.f32 %v5981, %v6000
    %6002 = vdwg.mxu0
    %v6003 = vmul.f32 %v6001, 0.001953125
    %v6004 = vld [vmem:[%s7] sm:$0x1]
    %v6005 = vadd.f32 %v6003, 1e-05
    %v6006 = vrsqrt.pop %v6005
    %v6007 = vmul.f32 %v6006, %v6005
    %v6008 = vmul.f32 %v6007, %v6006
    %v6009 = vmul.f32 0.5, %v6008
    %v6010 = vsub.f32 1.5, %v6009
    %v6011 = vmul.f32 %v6006, %v6010
    %vm6012 = vweird.f32 %v6005
    %vm6013 = vweird.f32 %v6006
    %vm6014 = vmor %vm6012, %vm6013
    %v6015 = vsel %vm6014, %v6006, %v6011
    %v6016 = vmul.f32 %v6004, %v6015
    %v6018 = vperm.slane %v6016, 0
    %v6020 = vmul.f32 %v5721, %v6018
    %v6021 = vmul.f32 %v5722, %v6018
    %v6022 = vmul.f32 %v5723, %v6018
    %v6023 = vmul.f32 %v5724, %v6018
    %v6024 = vmul.f32 %v5725, %v6018
    %v6025 = vmul.f32 %v5726, %v6018
    %v6026 = vmul.f32 %v5727, %v6018
    %v6027 = vmul.f32 %v5728, %v6018
    %v6028 = vmul.f32 %v5729, %v6018
    %v6029 = vmul.f32 %v5730, %v6018
    %v6030 = vmul.f32 %v5731, %v6018
    %v6031 = vmul.f32 %v5732, %v6018
    %v6032 = vmul.f32 %v5733, %v6018
    %v6033 = vmul.f32 %v5734, %v6018
    %v6034 = vmul.f32 %v5735, %v6018
    %v6035 = vmul.f32 %v5736, %v6018
    %v6036 = vmul.f32 %v5737, %v6018
    %v6037 = vmul.f32 %v5738, %v6018
    %v6038 = vmul.f32 %v5739, %v6018
    %v6039 = vmul.f32 %v5740, %v6018
    %v6040 = vmul.f32 %v5741, %v6018
    %v6041 = vmul.f32 %v5742, %v6018
    %v6042 = vmul.f32 %v5743, %v6018
    %v6043 = vmul.f32 %v5744, %v6018
    %v6044 = vmul.f32 %v5745, %v6018
    %v6045 = vmul.f32 %v5746, %v6018
    %v6046 = vmul.f32 %v5747, %v6018
    %v6047 = vmul.f32 %v5748, %v6018
    %v6048 = vmul.f32 %v5749, %v6018
    %v6049 = vmul.f32 %v5750, %v6018
    %v6050 = vmul.f32 %v5751, %v6018
    %v6051 = vmul.f32 %v5752, %v6018
    %v6052 = vmul.f32 %v5753, %v6018
    %v6053 = vmul.f32 %v5754, %v6018
    %v6054 = vmul.f32 %v5755, %v6018
    %v6055 = vmul.f32 %v5756, %v6018
    %v6056 = vmul.f32 %v5757, %v6018
    %v6057 = vmul.f32 %v5758, %v6018
    %v6058 = vmul.f32 %v5759, %v6018
    %v6059 = vmul.f32 %v5760, %v6018
    %v6060 = vmul.f32 %v5761, %v6018
    %v6061 = vmul.f32 %v5762, %v6018
    %v6062 = vmul.f32 %v5763, %v6018
    %v6063 = vmul.f32 %v5764, %v6018
    %v6064 = vmul.f32 %v5765, %v6018
    %v6065 = vmul.f32 %v5766, %v6018
    %v6066 = vmul.f32 %v5767, %v6018
    %v6067 = vmul.f32 %v5768, %v6018
    %v6068 = vmul.f32 %v5769, %v6018
    %v6069 = vmul.f32 %v5770, %v6018
    %v6070 = vmul.f32 %v5771, %v6018
    %v6071 = vmul.f32 %v5772, %v6018
    %v6072 = vmul.f32 %v5773, %v6018
    %v6073 = vmul.f32 %v5774, %v6018
    %v6074 = vmul.f32 %v5775, %v6018
    %v6075 = vmul.f32 %v5776, %v6018
    %v6076 = vmul.f32 %v5777, %v6018
    %v6077 = vmul.f32 %v5778, %v6018
    %v6078 = vmul.f32 %v5779, %v6018
    %v6079 = vmul.f32 %v5780, %v6018
    %v6080 = vmul.f32 %v5781, %v6018
    %v6081 = vmul.f32 %v5782, %v6018
    %v6082 = vmul.f32 %v5783, %v6018
    %v6083 = vmul.f32 %v5784, %v6018
    %v6084 = vmul.f32 %v5785, %v6018
    %v6085 = vmul.f32 %v5786, %v6018
    %v6086 = vmul.f32 %v5787, %v6018
    %v6087 = vmul.f32 %v5788, %v6018
    %v6088 = vmul.f32 %v5789, %v6018
    %v6089 = vmul.f32 %v5790, %v6018
    %v6090 = vmul.f32 %v5791, %v6018
    %v6091 = vmul.f32 %v5792, %v6018
    %v6092 = vmul.f32 %v5793, %v6018
    %v6093 = vmul.f32 %v5794, %v6018
    %v6094 = vmul.f32 %v5795, %v6018
    %v6095 = vmul.f32 %v5796, %v6018
    %v6096 = vmul.f32 %v5797, %v6018
    %v6097 = vmul.f32 %v5798, %v6018
    %v6098 = vmul.f32 %v5799, %v6018
    %v6099 = vmul.f32 %v5800, %v6018
    %v6100 = vmul.f32 %v5801, %v6018
    %v6101 = vld [vmem:[%s8] sm:$0x1]
    %v6103 = vperm.slane %v6101, 0
    %v6105 = vadd.f32 %v6020, %v6103
    %v6106 = vadd.f32 %v6021, %v6103
    %v6107 = vadd.f32 %v6022, %v6103
    %v6108 = vadd.f32 %v6023, %v6103
    %v6109 = vadd.f32 %v6024, %v6103
    %v6110 = vadd.f32 %v6025, %v6103
    %v6111 = vadd.f32 %v6026, %v6103
    %v6112 = vadd.f32 %v6027, %v6103
    %v6113 = vadd.f32 %v6028, %v6103
    %v6114 = vadd.f32 %v6029, %v6103
    %v6115 = vadd.f32 %v6030, %v6103
    %v6116 = vadd.f32 %v6031, %v6103
    %v6117 = vadd.f32 %v6032, %v6103
    %v6118 = vadd.f32 %v6033, %v6103
    %v6119 = vadd.f32 %v6034, %v6103
    %v6120 = vadd.f32 %v6035, %v6103
    %v6121 = vadd.f32 %v6036, %v6103
    %v6122 = vadd.f32 %v6037, %v6103
    %v6123 = vadd.f32 %v6038, %v6103
    %v6124 = vadd.f32 %v6039, %v6103
    %v6125 = vadd.f32 %v6040, %v6103
    %v6126 = vadd.f32 %v6041, %v6103
    %v6127 = vadd.f32 %v6042, %v6103
    %v6128 = vadd.f32 %v6043, %v6103
    %v6129 = vadd.f32 %v6044, %v6103
    %v6130 = vadd.f32 %v6045, %v6103
    %v6131 = vadd.f32 %v6046, %v6103
    %v6132 = vadd.f32 %v6047, %v6103
    %v6133 = vadd.f32 %v6048, %v6103
    %v6134 = vadd.f32 %v6049, %v6103
    %v6135 = vadd.f32 %v6050, %v6103
    %v6136 = vadd.f32 %v6051, %v6103
    %v6137 = vadd.f32 %v6052, %v6103
    %v6138 = vadd.f32 %v6053, %v6103
    %v6139 = vadd.f32 %v6054, %v6103
    %v6140 = vadd.f32 %v6055, %v6103
    %v6141 = vadd.f32 %v6056, %v6103
    %v6142 = vadd.f32 %v6057, %v6103
    %v6143 = vadd.f32 %v6058, %v6103
    %v6144 = vadd.f32 %v6059, %v6103
    %v6145 = vadd.f32 %v6060, %v6103
    %v6146 = vadd.f32 %v6061, %v6103
    %v6147 = vadd.f32 %v6062, %v6103
    %v6148 = vadd.f32 %v6063, %v6103
    %v6149 = vadd.f32 %v6064, %v6103
    %v6150 = vadd.f32 %v6065, %v6103
    %v6151 = vadd.f32 %v6066, %v6103
    %v6152 = vadd.f32 %v6067, %v6103
    %v6153 = vadd.f32 %v6068, %v6103
    %v6154 = vadd.f32 %v6069, %v6103
    %v6155 = vadd.f32 %v6070, %v6103
    %v6156 = vadd.f32 %v6071, %v6103
    %v6157 = vadd.f32 %v6072, %v6103
    %v6158 = vadd.f32 %v6073, %v6103
    %v6159 = vadd.f32 %v6074, %v6103
    %v6160 = vadd.f32 %v6075, %v6103
    %v6161 = vadd.f32 %v6076, %v6103
    %v6162 = vadd.f32 %v6077, %v6103
    %v6163 = vadd.f32 %v6078, %v6103
    %v6164 = vadd.f32 %v6079, %v6103
    %v6165 = vadd.f32 %v6080, %v6103
    %v6166 = vadd.f32 %v6081, %v6103
    %v6167 = vadd.f32 %v6082, %v6103
    %v6168 = vadd.f32 %v6083, %v6103
    %v6169 = vadd.f32 %v6084, %v6103
    %v6170 = vadd.f32 %v6085, %v6103
    %v6171 = vadd.f32 %v6086, %v6103
    %v6172 = vadd.f32 %v6087, %v6103
    %v6173 = vadd.f32 %v6088, %v6103
    %v6174 = vadd.f32 %v6089, %v6103
    %v6175 = vadd.f32 %v6090, %v6103
    %v6176 = vadd.f32 %v6091, %v6103
    %v6177 = vadd.f32 %v6092, %v6103
    %v6178 = vadd.f32 %v6093, %v6103
    %v6179 = vadd.f32 %v6094, %v6103
    %v6180 = vadd.f32 %v6095, %v6103
    %v6181 = vadd.f32 %v6096, %v6103
    %v6182 = vadd.f32 %v6097, %v6103
    %v6183 = vadd.f32 %v6098, %v6103
    %v6184 = vadd.f32 %v6099, %v6103
    %v6185 = vadd.f32 %v6100, %v6103
    %v6186 = vmax.f32 %v6105, 0.0
    %v6187 = vmax.f32 %v6106, 0.0
    %v6188 = vmax.f32 %v6107, 0.0
    %v6189 = vmax.f32 %v6108, 0.0
    %v6190 = vmax.f32 %v6109, 0.0
    %v6191 = vmax.f32 %v6110, 0.0
    %v6192 = vmax.f32 %v6111, 0.0
    %v6193 = vmax.f32 %v6112, 0.0
    %v6194 = vmax.f32 %v6113, 0.0
    %v6195 = vmax.f32 %v6114, 0.0
    %v6196 = vmax.f32 %v6115, 0.0
    %v6197 = vmax.f32 %v6116, 0.0
    %v6198 = vmax.f32 %v6117, 0.0
    %v6199 = vmax.f32 %v6118, 0.0
    %v6200 = vmax.f32 %v6119, 0.0
    %v6201 = vmax.f32 %v6120, 0.0
    %v6202 = vmax.f32 %v6121, 0.0
    %v6203 = vmax.f32 %v6122, 0.0
    %v6204 = vmax.f32 %v6123, 0.0
    %v6205 = vmax.f32 %v6124, 0.0
    %v6206 = vmax.f32 %v6125, 0.0
    %v6207 = vmax.f32 %v6126, 0.0
    %v6208 = vmax.f32 %v6127, 0.0
    %v6209 = vmax.f32 %v6128, 0.0
    %v6210 = vmax.f32 %v6129, 0.0
    %v6211 = vmax.f32 %v6130, 0.0
    %v6212 = vmax.f32 %v6131, 0.0
    %v6213 = vmax.f32 %v6132, 0.0
    %v6214 = vmax.f32 %v6133, 0.0
    %v6215 = vmax.f32 %v6134, 0.0
    %v6216 = vmax.f32 %v6135, 0.0
    %v6217 = vmax.f32 %v6136, 0.0
    %v6218 = vmax.f32 %v6137, 0.0
    %v6219 = vmax.f32 %v6138, 0.0
    %v6220 = vmax.f32 %v6139, 0.0
    %v6221 = vmax.f32 %v6140, 0.0
    %v6222 = vmax.f32 %v6141, 0.0
    %v6223 = vmax.f32 %v6142, 0.0
    %v6224 = vmax.f32 %v6143, 0.0
    %v6225 = vmax.f32 %v6144, 0.0
    %v6226 = vmax.f32 %v6145, 0.0
    %v6227 = vmax.f32 %v6146, 0.0
    %v6228 = vmax.f32 %v6147, 0.0
    %v6229 = vmax.f32 %v6148, 0.0
    %v6230 = vmax.f32 %v6149, 0.0
    %v6231 = vmax.f32 %v6150, 0.0
    %v6232 = vmax.f32 %v6151, 0.0
    %v6233 = vmax.f32 %v6152, 0.0
    %v6234 = vmax.f32 %v6153, 0.0
    %v6235 = vmax.f32 %v6154, 0.0
    %v6236 = vmax.f32 %v6155, 0.0
    %v6237 = vmax.f32 %v6156, 0.0
    %v6238 = vmax.f32 %v6157, 0.0
    %v6239 = vmax.f32 %v6158, 0.0
    %v6240 = vmax.f32 %v6159, 0.0
    %v6241 = vmax.f32 %v6160, 0.0
    %v6242 = vmax.f32 %v6161, 0.0
    %v6243 = vmax.f32 %v6162, 0.0
    %v6244 = vmax.f32 %v6163, 0.0
    %v6245 = vmax.f32 %v6164, 0.0
    %v6246 = vmax.f32 %v6165, 0.0
    %v6247 = vmax.f32 %v6166, 0.0
    %v6248 = vmax.f32 %v6167, 0.0
    %v6249 = vmax.f32 %v6168, 0.0
    %v6250 = vmax.f32 %v6169, 0.0
    %v6251 = vmax.f32 %v6170, 0.0
    %v6252 = vmax.f32 %v6171, 0.0
    %v6253 = vmax.f32 %v6172, 0.0
    %v6254 = vmax.f32 %v6173, 0.0
    %v6255 = vmax.f32 %v6174, 0.0
    %v6256 = vmax.f32 %v6175, 0.0
    %v6257 = vmax.f32 %v6176, 0.0
    %v6258 = vmax.f32 %v6177, 0.0
    %v6259 = vmax.f32 %v6178, 0.0
    %v6260 = vmax.f32 %v6179, 0.0
    %v6261 = vmax.f32 %v6180, 0.0
    %v6262 = vmax.f32 %v6181, 0.0
    %v6263 = vmax.f32 %v6182, 0.0
    %v6264 = vmax.f32 %v6183, 0.0
    %v6265 = vmax.f32 %v6184, 0.0
    %v6266 = vmax.f32 %v6185, 0.0
    %v6267 = vld [vmem:[#allocation11] sm:$0xff]
    %v6268 = vld [vmem:[#allocation11 + $0x8] sm:$0xff]
    %v6269 = vld [vmem:[#allocation11 + $0x10] sm:$0xff]
    %v6270 = vld [vmem:[#allocation11 + $0x18] sm:$0xff]
    %v6271 = vld [vmem:[#allocation11 + $0x20] sm:$0xff]
    %v6272 = vld [vmem:[#allocation11 + $0x28] sm:$0xff]
    %v6273 = vld [vmem:[#allocation11 + $0x30] sm:$0xff]
    %v6274 = vld [vmem:[#allocation11 + $0x38] sm:$0xff]
    %v6275 = vld [vmem:[#allocation11 + $0x40] sm:$0xff]
    %v6276 = vld [vmem:[#allocation11 + $0x48] sm:$0xff]
    %v6277 = vld [vmem:[#allocation11 + $0x50] sm:$0xff]
    %v6278 = vld [vmem:[#allocation11 + $0x58] sm:$0xff]
    %v6279 = vld [vmem:[#allocation11 + $0x60] sm:$0xff]
    %v6280 = vld [vmem:[#allocation11 + $0x68] sm:$0xff]
    %v6281 = vld [vmem:[#allocation11 + $0x70] sm:$0xff]
    %v6282 = vld [vmem:[#allocation11 + $0x78] sm:$0xff]
    %6283 = vmatpush.msra.mxu0 %v6282
    %6284 = vmatpush.msra.mxu0 %v6281
    %6285 = vmatpush.msra.mxu0 %v6280
    %6286 = vmatpush.msra.mxu0 %v6279
    %6287 = vmatpush.msra.mxu0 %v6278
    %6288 = vmatpush.msra.mxu0 %v6277
    %6289 = vmatpush.msra.mxu0 %v6276
    %6290 = vmatpush.msra.mxu0 %v6275
    %6291 = vmatpush.msra.mxu0 %v6274
    %6292 = vmatpush.msra.mxu0 %v6273
    %6293 = vmatpush.msra.mxu0 %v6272
    %6294 = vmatpush.msra.mxu0 %v6271
    %6295 = vmatpush.msra.mxu0 %v6270
    %6296 = vmatpush.msra.mxu0 %v6269
    %6297 = vmatpush.msra.mxu0 %v6268
    %6298 = vmatpush.msra.mxu0 %v6267
    %6299 = vmatmul.f32.gmra.mxu0 %v6186
    %v6300 = vpop.f32.mrf.mxu0
    %v6301 = vadd.f32 0.0, %v6300
    %6302 = vmatmul.f32.gmra.mxu0 %v6187
    %v6303 = vpop.f32.mrf.mxu0
    %v6304 = vadd.f32 0.0, %v6303
    %6305 = vmatmul.f32.gmra.mxu0 %v6188
    %v6306 = vpop.f32.mrf.mxu0
    %v6307 = vadd.f32 0.0, %v6306
    %6308 = vmatmul.f32.gmra.mxu0 %v6189
    %v6309 = vpop.f32.mrf.mxu0
    %v6310 = vadd.f32 0.0, %v6309
    %6311 = vmatmul.f32.gmra.mxu0 %v6190
    %v6312 = vpop.f32.mrf.mxu0
    %v6313 = vadd.f32 0.0, %v6312
    %6314 = vmatmul.f32.gmra.mxu0 %v6191
    %v6315 = vpop.f32.mrf.mxu0
    %v6316 = vadd.f32 0.0, %v6315
    %6317 = vmatmul.f32.gmra.mxu0 %v6192
    %v6318 = vpop.f32.mrf.mxu0
    %v6319 = vadd.f32 0.0, %v6318
    %6320 = vmatmul.f32.gmra.mxu0 %v6193
    %v6321 = vpop.f32.mrf.mxu0
    %v6322 = vadd.f32 0.0, %v6321
    %6323 = vmatmul.f32.gmra.mxu0 %v6194
    %v6324 = vpop.f32.mrf.mxu0
    %v6325 = vadd.f32 0.0, %v6324
    %6326 = vmatmul.f32.gmra.mxu0 %v6195
    %v6327 = vpop.f32.mrf.mxu0
    %v6328 = vadd.f32 0.0, %v6327
    %6329 = vmatmul.f32.gmra.mxu0 %v6196
    %v6330 = vpop.f32.mrf.mxu0
    %v6331 = vadd.f32 0.0, %v6330
    %6332 = vmatmul.f32.gmra.mxu0 %v6197
    %v6333 = vpop.f32.mrf.mxu0
    %v6334 = vadd.f32 0.0, %v6333
    %6335 = vmatmul.f32.gmra.mxu0 %v6198
    %v6336 = vpop.f32.mrf.mxu0
    %v6337 = vadd.f32 0.0, %v6336
    %6338 = vmatmul.f32.gmra.mxu0 %v6199
    %v6339 = vpop.f32.mrf.mxu0
    %v6340 = vadd.f32 0.0, %v6339
    %6341 = vmatmul.f32.gmra.mxu0 %v6200
    %v6342 = vpop.f32.mrf.mxu0
    %v6343 = vadd.f32 0.0, %v6342
    %6344 = vmatmul.f32.gmra.mxu0 %v6201
    %v6345 = vpop.f32.mrf.mxu0
    %v6346 = vadd.f32 0.0, %v6345
    %6347 = vmatmul.f32.gmra.mxu0 %v6202
    %v6348 = vpop.f32.mrf.mxu0
    %v6349 = vadd.f32 0.0, %v6348
    %6350 = vmatmul.f32.gmra.mxu0 %v6203
    %v6351 = vpop.f32.mrf.mxu0
    %v6352 = vadd.f32 0.0, %v6351
    %6353 = vmatmul.f32.gmra.mxu0 %v6204
    %v6354 = vpop.f32.mrf.mxu0
    %v6355 = vadd.f32 0.0, %v6354
    %6356 = vmatmul.f32.gmra.mxu0 %v6205
    %v6357 = vpop.f32.mrf.mxu0
    %v6358 = vadd.f32 0.0, %v6357
    %6359 = vmatmul.f32.gmra.mxu0 %v6206
    %v6360 = vpop.f32.mrf.mxu0
    %v6361 = vadd.f32 0.0, %v6360
    %6362 = vmatmul.f32.gmra.mxu0 %v6207
    %v6363 = vpop.f32.mrf.mxu0
    %v6364 = vadd.f32 0.0, %v6363
    %6365 = vmatmul.f32.gmra.mxu0 %v6208
    %v6366 = vpop.f32.mrf.mxu0
    %v6367 = vadd.f32 0.0, %v6366
    %6368 = vmatmul.f32.gmra.mxu0 %v6209
    %v6369 = vpop.f32.mrf.mxu0
    %v6370 = vadd.f32 0.0, %v6369
    %6371 = vmatmul.f32.gmra.mxu0 %v6210
    %v6372 = vpop.f32.mrf.mxu0
    %v6373 = vadd.f32 0.0, %v6372
    %6374 = vmatmul.f32.gmra.mxu0 %v6211
    %v6375 = vpop.f32.mrf.mxu0
    %v6376 = vadd.f32 0.0, %v6375
    %6377 = vmatmul.f32.gmra.mxu0 %v6212
    %v6378 = vpop.f32.mrf.mxu0
    %v6379 = vadd.f32 0.0, %v6378
    %6380 = vmatmul.f32.gmra.mxu0 %v6213
    %v6381 = vpop.f32.mrf.mxu0
    %v6382 = vadd.f32 0.0, %v6381
    %6383 = vmatmul.f32.gmra.mxu0 %v6214
    %v6384 = vpop.f32.mrf.mxu0
    %v6385 = vadd.f32 0.0, %v6384
    %6386 = vmatmul.f32.gmra.mxu0 %v6215
    %v6387 = vpop.f32.mrf.mxu0
    %v6388 = vadd.f32 0.0, %v6387
    %6389 = vmatmul.f32.gmra.mxu0 %v6216
    %v6390 = vpop.f32.mrf.mxu0
    %v6391 = vadd.f32 0.0, %v6390
    %6392 = vmatmul.f32.gmra.mxu0 %v6217
    %v6393 = vpop.f32.mrf.mxu0
    %v6394 = vadd.f32 0.0, %v6393
    %6395 = vmatmul.f32.gmra.mxu0 %v6218
    %v6396 = vpop.f32.mrf.mxu0
    %v6397 = vadd.f32 0.0, %v6396
    %6398 = vmatmul.f32.gmra.mxu0 %v6219
    %v6399 = vpop.f32.mrf.mxu0
    %v6400 = vadd.f32 0.0, %v6399
    %6401 = vmatmul.f32.gmra.mxu0 %v6220
    %v6402 = vpop.f32.mrf.mxu0
    %v6403 = vadd.f32 0.0, %v6402
    %6404 = vmatmul.f32.gmra.mxu0 %v6221
    %v6405 = vpop.f32.mrf.mxu0
    %v6406 = vadd.f32 0.0, %v6405
    %6407 = vmatmul.f32.gmra.mxu0 %v6222
    %v6408 = vpop.f32.mrf.mxu0
    %v6409 = vadd.f32 0.0, %v6408
    %6410 = vmatmul.f32.gmra.mxu0 %v6223
    %v6411 = vpop.f32.mrf.mxu0
    %v6412 = vadd.f32 0.0, %v6411
    %6413 = vmatmul.f32.gmra.mxu0 %v6224
    %v6414 = vpop.f32.mrf.mxu0
    %v6415 = vadd.f32 0.0, %v6414
    %6416 = vmatmul.f32.gmra.mxu0 %v6225
    %v6417 = vpop.f32.mrf.mxu0
    %v6418 = vadd.f32 0.0, %v6417
    %6419 = vmatmul.f32.gmra.mxu0 %v6226
    %v6420 = vpop.f32.mrf.mxu0
    %v6421 = vadd.f32 0.0, %v6420
    %6422 = vmatmul.f32.gmra.mxu0 %v6227
    %v6423 = vpop.f32.mrf.mxu0
    %v6424 = vadd.f32 0.0, %v6423
    %6425 = vmatmul.f32.gmra.mxu0 %v6228
    %v6426 = vpop.f32.mrf.mxu0
    %v6427 = vadd.f32 0.0, %v6426
    %6428 = vmatmul.f32.gmra.mxu0 %v6229
    %v6429 = vpop.f32.mrf.mxu0
    %v6430 = vadd.f32 0.0, %v6429
    %6431 = vmatmul.f32.gmra.mxu0 %v6230
    %v6432 = vpop.f32.mrf.mxu0
    %v6433 = vadd.f32 0.0, %v6432
    %6434 = vmatmul.f32.gmra.mxu0 %v6231
    %v6435 = vpop.f32.mrf.mxu0
    %v6436 = vadd.f32 0.0, %v6435
    %6437 = vmatmul.f32.gmra.mxu0 %v6232
    %v6438 = vpop.f32.mrf.mxu0
    %v6439 = vadd.f32 0.0, %v6438
    %6440 = vmatmul.f32.gmra.mxu0 %v6233
    %v6441 = vpop.f32.mrf.mxu0
    %v6442 = vadd.f32 0.0, %v6441
    %6443 = vmatmul.f32.gmra.mxu0 %v6234
    %v6444 = vpop.f32.mrf.mxu0
    %v6445 = vadd.f32 0.0, %v6444
    %6446 = vmatmul.f32.gmra.mxu0 %v6235
    %v6447 = vpop.f32.mrf.mxu0
    %v6448 = vadd.f32 0.0, %v6447
    %6449 = vmatmul.f32.gmra.mxu0 %v6236
    %v6450 = vpop.f32.mrf.mxu0
    %v6451 = vadd.f32 0.0, %v6450
    %6452 = vmatmul.f32.gmra.mxu0 %v6237
    %v6453 = vpop.f32.mrf.mxu0
    %v6454 = vadd.f32 0.0, %v6453
    %6455 = vmatmul.f32.gmra.mxu0 %v6238
    %v6456 = vpop.f32.mrf.mxu0
    %v6457 = vadd.f32 0.0, %v6456
    %6458 = vmatmul.f32.gmra.mxu0 %v6239
    %v6459 = vpop.f32.mrf.mxu0
    %v6460 = vadd.f32 0.0, %v6459
    %6461 = vmatmul.f32.gmra.mxu0 %v6240
    %v6462 = vpop.f32.mrf.mxu0
    %v6463 = vadd.f32 0.0, %v6462
    %6464 = vmatmul.f32.gmra.mxu0 %v6241
    %v6465 = vpop.f32.mrf.mxu0
    %v6466 = vadd.f32 0.0, %v6465
    %6467 = vmatmul.f32.gmra.mxu0 %v6242
    %v6468 = vpop.f32.mrf.mxu0
    %v6469 = vadd.f32 0.0, %v6468
    %6470 = vmatmul.f32.gmra.mxu0 %v6243
    %v6471 = vpop.f32.mrf.mxu0
    %v6472 = vadd.f32 0.0, %v6471
    %6473 = vmatmul.f32.gmra.mxu0 %v6244
    %v6474 = vpop.f32.mrf.mxu0
    %v6475 = vadd.f32 0.0, %v6474
    %6476 = vmatmul.f32.gmra.mxu0 %v6245
    %v6477 = vpop.f32.mrf.mxu0
    %v6478 = vadd.f32 0.0, %v6477
    %6479 = vmatmul.f32.gmra.mxu0 %v6246
    %v6480 = vpop.f32.mrf.mxu0
    %v6481 = vadd.f32 0.0, %v6480
    %6482 = vmatmul.f32.gmra.mxu0 %v6247
    %v6483 = vpop.f32.mrf.mxu0
    %v6484 = vadd.f32 0.0, %v6483
    %6485 = vmatmul.f32.gmra.mxu0 %v6248
    %v6486 = vpop.f32.mrf.mxu0
    %v6487 = vadd.f32 0.0, %v6486
    %6488 = vmatmul.f32.gmra.mxu0 %v6249
    %v6489 = vpop.f32.mrf.mxu0
    %v6490 = vadd.f32 0.0, %v6489
    %6491 = vmatmul.f32.gmra.mxu0 %v6250
    %v6492 = vpop.f32.mrf.mxu0
    %v6493 = vadd.f32 0.0, %v6492
    %6494 = vmatmul.f32.gmra.mxu0 %v6251
    %v6495 = vpop.f32.mrf.mxu0
    %v6496 = vadd.f32 0.0, %v6495
    %6497 = vmatmul.f32.gmra.mxu0 %v6252
    %v6498 = vpop.f32.mrf.mxu0
    %v6499 = vadd.f32 0.0, %v6498
    %6500 = vmatmul.f32.gmra.mxu0 %v6253
    %v6501 = vpop.f32.mrf.mxu0
    %v6502 = vadd.f32 0.0, %v6501
    %6503 = vmatmul.f32.gmra.mxu0 %v6254
    %v6504 = vpop.f32.mrf.mxu0
    %v6505 = vadd.f32 0.0, %v6504
    %6506 = vmatmul.f32.gmra.mxu0 %v6255
    %v6507 = vpop.f32.mrf.mxu0
    %v6508 = vadd.f32 0.0, %v6507
    %6509 = vmatmul.f32.gmra.mxu0 %v6256
    %v6510 = vpop.f32.mrf.mxu0
    %v6511 = vadd.f32 0.0, %v6510
    %6512 = vmatmul.f32.gmra.mxu0 %v6257
    %v6513 = vpop.f32.mrf.mxu0
    %v6514 = vadd.f32 0.0, %v6513
    %6515 = vmatmul.f32.gmra.mxu0 %v6258
    %v6516 = vpop.f32.mrf.mxu0
    %v6517 = vadd.f32 0.0, %v6516
    %6518 = vmatmul.f32.gmra.mxu0 %v6259
    %v6519 = vpop.f32.mrf.mxu0
    %v6520 = vadd.f32 0.0, %v6519
    %6521 = vmatmul.f32.gmra.mxu0 %v6260
    %v6522 = vpop.f32.mrf.mxu0
    %v6523 = vadd.f32 0.0, %v6522
    %6524 = vmatmul.f32.gmra.mxu0 %v6261
    %v6525 = vpop.f32.mrf.mxu0
    %v6526 = vadd.f32 0.0, %v6525
    %6527 = vmatmul.f32.gmra.mxu0 %v6262
    %v6528 = vpop.f32.mrf.mxu0
    %v6529 = vadd.f32 0.0, %v6528
    %6530 = vmatmul.f32.gmra.mxu0 %v6263
    %v6531 = vpop.f32.mrf.mxu0
    %v6532 = vadd.f32 0.0, %v6531
    %6533 = vmatmul.f32.gmra.mxu0 %v6264
    %v6534 = vpop.f32.mrf.mxu0
    %v6535 = vadd.f32 0.0, %v6534
    %6536 = vmatmul.f32.gmra.mxu0 %v6265
    %v6537 = vpop.f32.mrf.mxu0
    %v6538 = vadd.f32 0.0, %v6537
    %6539 = vmatmul.f32.gmra.mxu0 %v6266
    %v6540 = vpop.f32.mrf.mxu0
    %v6541 = vadd.f32 0.0, %v6540
    %6542 = vdwg.mxu0
    %6543 = vmatpush.msra.mxu0 %v6346
    %6544 = vmatpush.msra.mxu0 %v6343
    %6545 = vmatpush.msra.mxu0 %v6340
    %6546 = vmatpush.msra.mxu0 %v6337
    %6547 = vmatpush.msra.mxu0 %v6334
    %6548 = vmatpush.msra.mxu0 %v6331
    %6549 = vmatpush.msra.mxu0 %v6328
    %6550 = vmatpush.msra.mxu0 %v6325
    %6551 = vmatpush.msra.mxu0 %v6322
    %6552 = vmatpush.msra.mxu0 %v6319
    %6553 = vmatpush.msra.mxu0 %v6316
    %6554 = vmatpush.msra.mxu0 %v6313
    %6555 = vmatpush.msra.mxu0 %v6310
    %6556 = vmatpush.msra.mxu0 %v6307
    %6557 = vmatpush.msra.mxu0 %v6304
    %6558 = vmatpush.msra.mxu0 %v6301
    %6559 = vmatmul.f32.gmra.mxu0 %v475
    %v6560 = vpop.f32.mrf.mxu0
    %v6561 = vadd.f32 0.0, %v6560
    %6562 = vdwg.mxu0
    %6563 = vmatpush.msra.mxu0 %v6394
    %6564 = vmatpush.msra.mxu0 %v6391
    %6565 = vmatpush.msra.mxu0 %v6388
    %6566 = vmatpush.msra.mxu0 %v6385
    %6567 = vmatpush.msra.mxu0 %v6382
    %6568 = vmatpush.msra.mxu0 %v6379
    %6569 = vmatpush.msra.mxu0 %v6376
    %6570 = vmatpush.msra.mxu0 %v6373
    %6571 = vmatpush.msra.mxu0 %v6370
    %6572 = vmatpush.msra.mxu0 %v6367
    %6573 = vmatpush.msra.mxu0 %v6364
    %6574 = vmatpush.msra.mxu0 %v6361
    %6575 = vmatpush.msra.mxu0 %v6358
    %6576 = vmatpush.msra.mxu0 %v6355
    %6577 = vmatpush.msra.mxu0 %v6352
    %6578 = vmatpush.msra.mxu0 %v6349
    %6579 = vmatmul.f32.gmra.mxu0 %v476
    %v6580 = vpop.f32.mrf.mxu0
    %v6581 = vadd.f32 %v6561, %v6580
    %6582 = vdwg.mxu0
    %6583 = vmatpush.msra.mxu0 %v6442
    %6584 = vmatpush.msra.mxu0 %v6439
    %6585 = vmatpush.msra.mxu0 %v6436
    %6586 = vmatpush.msra.mxu0 %v6433
    %6587 = vmatpush.msra.mxu0 %v6430
    %6588 = vmatpush.msra.mxu0 %v6427
    %6589 = vmatpush.msra.mxu0 %v6424
    %6590 = vmatpush.msra.mxu0 %v6421
    %6591 = vmatpush.msra.mxu0 %v6418
    %6592 = vmatpush.msra.mxu0 %v6415
    %6593 = vmatpush.msra.mxu0 %v6412
    %6594 = vmatpush.msra.mxu0 %v6409
    %6595 = vmatpush.msra.mxu0 %v6406
    %6596 = vmatpush.msra.mxu0 %v6403
    %6597 = vmatpush.msra.mxu0 %v6400
    %6598 = vmatpush.msra.mxu0 %v6397
    %6599 = vmatmul.f32.gmra.mxu0 %v477
    %v6600 = vpop.f32.mrf.mxu0
    %v6601 = vadd.f32 %v6581, %v6600
    %6602 = vdwg.mxu0
    %6603 = vmatpush.msra.mxu0 %v6490
    %6604 = vmatpush.msra.mxu0 %v6487
    %6605 = vmatpush.msra.mxu0 %v6484
    %6606 = vmatpush.msra.mxu0 %v6481
    %6607 = vmatpush.msra.mxu0 %v6478
    %6608 = vmatpush.msra.mxu0 %v6475
    %6609 = vmatpush.msra.mxu0 %v6472
    %6610 = vmatpush.msra.mxu0 %v6469
    %6611 = vmatpush.msra.mxu0 %v6466
    %6612 = vmatpush.msra.mxu0 %v6463
    %6613 = vmatpush.msra.mxu0 %v6460
    %6614 = vmatpush.msra.mxu0 %v6457
    %6615 = vmatpush.msra.mxu0 %v6454
    %6616 = vmatpush.msra.mxu0 %v6451
    %6617 = vmatpush.msra.mxu0 %v6448
    %6618 = vmatpush.msra.mxu0 %v6445
    %6619 = vmatmul.f32.gmra.mxu0 %v478
    %v6620 = vpop.f32.mrf.mxu0
    %v6621 = vadd.f32 %v6601, %v6620
    %6622 = vdwg.mxu0
    %6623 = vmatpush.msra.mxu0 %v6538
    %6624 = vmatpush.msra.mxu0 %v6535
    %6625 = vmatpush.msra.mxu0 %v6532
    %6626 = vmatpush.msra.mxu0 %v6529
    %6627 = vmatpush.msra.mxu0 %v6526
    %6628 = vmatpush.msra.mxu0 %v6523
    %6629 = vmatpush.msra.mxu0 %v6520
    %6630 = vmatpush.msra.mxu0 %v6517
    %6631 = vmatpush.msra.mxu0 %v6514
    %6632 = vmatpush.msra.mxu0 %v6511
    %6633 = vmatpush.msra.mxu0 %v6508
    %6634 = vmatpush.msra.mxu0 %v6505
    %6635 = vmatpush.msra.mxu0 %v6502
    %6636 = vmatpush.msra.mxu0 %v6499
    %6637 = vmatpush.msra.mxu0 %v6496
    %6638 = vmatpush.msra.mxu0 %v6493
    %6639 = vmatmul.f32.gmra.mxu0 %v479
    %v6640 = vpop.f32.mrf.mxu0
    %v6641 = vadd.f32 %v6621, %v6640
    %6642 = vdwg.mxu0
    %6643 = vmatpush.msra.mxu0 0.0
    %6644 = vmatpush.msra.mxu0 0.0
    %6645 = vmatpush.msra.mxu0 0.0
    %6646 = vmatpush.msra.mxu0 0.0
    %6647 = vmatpush.msra.mxu0 0.0
    %6648 = vmatpush.msra.mxu0 0.0
    %6649 = vmatpush.msra.mxu0 0.0
    %6650 = vmatpush.msra.mxu0 0.0
    %6651 = vmatpush.msra.mxu0 0.0
    %6652 = vmatpush.msra.mxu0 0.0
    %6653 = vmatpush.msra.mxu0 0.0
    %6654 = vmatpush.msra.mxu0 0.0
    %6655 = vmatpush.msra.mxu0 0.0
    %6656 = vmatpush.msra.mxu0 0.0
    %6657 = vmatpush.msra.mxu0 0.0
    %6658 = vmatpush.msra.mxu0 %v6541
    %6659 = vmatmul.f32.gmra.mxu0 %v487
    %v6660 = vpop.f32.mrf.mxu0
    %v6661 = vadd.f32 %v6641, %v6660
    %6662 = vdwg.mxu0
    %v6663 = vmul.f32 %v6661, 0.001953125
    %v6664 = vperm.slane %v6663, 0
    %v6665 = vsub.f32 %v6301, %v6664
    %v6666 = vsub.f32 %v6304, %v6664
    %v6667 = vsub.f32 %v6307, %v6664
    %v6668 = vsub.f32 %v6310, %v6664
    %v6669 = vsub.f32 %v6313, %v6664
    %v6670 = vsub.f32 %v6316, %v6664
    %v6671 = vsub.f32 %v6319, %v6664
    %v6672 = vsub.f32 %v6322, %v6664
    %v6673 = vsub.f32 %v6325, %v6664
    %v6674 = vsub.f32 %v6328, %v6664
    %v6675 = vsub.f32 %v6331, %v6664
    %v6676 = vsub.f32 %v6334, %v6664
    %v6677 = vsub.f32 %v6337, %v6664
    %v6678 = vsub.f32 %v6340, %v6664
    %v6679 = vsub.f32 %v6343, %v6664
    %v6680 = vsub.f32 %v6346, %v6664
    %v6681 = vsub.f32 %v6349, %v6664
    %v6682 = vsub.f32 %v6352, %v6664
    %v6683 = vsub.f32 %v6355, %v6664
    %v6684 = vsub.f32 %v6358, %v6664
    %v6685 = vsub.f32 %v6361, %v6664
    %v6686 = vsub.f32 %v6364, %v6664
    %v6687 = vsub.f32 %v6367, %v6664
    %v6688 = vsub.f32 %v6370, %v6664
    %v6689 = vsub.f32 %v6373, %v6664
    %v6690 = vsub.f32 %v6376, %v6664
    %v6691 = vsub.f32 %v6379, %v6664
    %v6692 = vsub.f32 %v6382, %v6664
    %v6693 = vsub.f32 %v6385, %v6664
    %v6694 = vsub.f32 %v6388, %v6664
    %v6695 = vsub.f32 %v6391, %v6664
    %v6696 = vsub.f32 %v6394, %v6664
    %v6697 = vsub.f32 %v6397, %v6664
    %v6698 = vsub.f32 %v6400, %v6664
    %v6699 = vsub.f32 %v6403, %v6664
    %v6700 = vsub.f32 %v6406, %v6664
    %v6701 = vsub.f32 %v6409, %v6664
    %v6702 = vsub.f32 %v6412, %v6664
    %v6703 = vsub.f32 %v6415, %v6664
    %v6704 = vsub.f32 %v6418, %v6664
    %v6705 = vsub.f32 %v6421, %v6664
    %v6706 = vsub.f32 %v6424, %v6664
    %v6707 = vsub.f32 %v6427, %v6664
    %v6708 = vsub.f32 %v6430, %v6664
    %v6709 = vsub.f32 %v6433, %v6664
    %v6710 = vsub.f32 %v6436, %v6664
    %v6711 = vsub.f32 %v6439, %v6664
    %v6712 = vsub.f32 %v6442, %v6664
    %v6713 = vsub.f32 %v6445, %v6664
    %v6714 = vsub.f32 %v6448, %v6664
    %v6715 = vsub.f32 %v6451, %v6664
    %v6716 = vsub.f32 %v6454, %v6664
    %v6717 = vsub.f32 %v6457, %v6664
    %v6718 = vsub.f32 %v6460, %v6664
    %v6719 = vsub.f32 %v6463, %v6664
    %v6720 = vsub.f32 %v6466, %v6664
    %v6721 = vsub.f32 %v6469, %v6664
    %v6722 = vsub.f32 %v6472, %v6664
    %v6723 = vsub.f32 %v6475, %v6664
    %v6724 = vsub.f32 %v6478, %v6664
    %v6725 = vsub.f32 %v6481, %v6664
    %v6726 = vsub.f32 %v6484, %v6664
    %v6727 = vsub.f32 %v6487, %v6664
    %v6728 = vsub.f32 %v6490, %v6664
    %v6729 = vsub.f32 %v6493, %v6664
    %v6730 = vsub.f32 %v6496, %v6664
    %v6731 = vsub.f32 %v6499, %v6664
    %v6732 = vsub.f32 %v6502, %v6664
    %v6733 = vsub.f32 %v6505, %v6664
    %v6734 = vsub.f32 %v6508, %v6664
    %v6735 = vsub.f32 %v6511, %v6664
    %v6736 = vsub.f32 %v6514, %v6664
    %v6737 = vsub.f32 %v6517, %v6664
    %v6738 = vsub.f32 %v6520, %v6664
    %v6739 = vsub.f32 %v6523, %v6664
    %v6740 = vsub.f32 %v6526, %v6664
    %v6741 = vsub.f32 %v6529, %v6664
    %v6742 = vsub.f32 %v6532, %v6664
    %v6743 = vsub.f32 %v6535, %v6664
    %v6744 = vsub.f32 %v6538, %v6664
    %v6745 = vsub.f32 %v6541, %v6664
    %v6746 = vmul.f32 %v6665, %v6665
    %v6747 = vmul.f32 %v6666, %v6666
    %v6748 = vmul.f32 %v6667, %v6667
    %v6749 = vmul.f32 %v6668, %v6668
    %v6750 = vmul.f32 %v6669, %v6669
    %v6751 = vmul.f32 %v6670, %v6670
    %v6752 = vmul.f32 %v6671, %v6671
    %v6753 = vmul.f32 %v6672, %v6672
    %v6754 = vmul.f32 %v6673, %v6673
    %v6755 = vmul.f32 %v6674, %v6674
    %v6756 = vmul.f32 %v6675, %v6675
    %v6757 = vmul.f32 %v6676, %v6676
    %v6758 = vmul.f32 %v6677, %v6677
    %v6759 = vmul.f32 %v6678, %v6678
    %v6760 = vmul.f32 %v6679, %v6679
    %v6761 = vmul.f32 %v6680, %v6680
    %v6762 = vmul.f32 %v6681, %v6681
    %v6763 = vmul.f32 %v6682, %v6682
    %v6764 = vmul.f32 %v6683, %v6683
    %v6765 = vmul.f32 %v6684, %v6684
    %v6766 = vmul.f32 %v6685, %v6685
    %v6767 = vmul.f32 %v6686, %v6686
    %v6768 = vmul.f32 %v6687, %v6687
    %v6769 = vmul.f32 %v6688, %v6688
    %v6770 = vmul.f32 %v6689, %v6689
    %v6771 = vmul.f32 %v6690, %v6690
    %v6772 = vmul.f32 %v6691, %v6691
    %v6773 = vmul.f32 %v6692, %v6692
    %v6774 = vmul.f32 %v6693, %v6693
    %v6775 = vmul.f32 %v6694, %v6694
    %v6776 = vmul.f32 %v6695, %v6695
    %v6777 = vmul.f32 %v6696, %v6696
    %v6778 = vmul.f32 %v6697, %v6697
    %v6779 = vmul.f32 %v6698, %v6698
    %v6780 = vmul.f32 %v6699, %v6699
    %v6781 = vmul.f32 %v6700, %v6700
    %v6782 = vmul.f32 %v6701, %v6701
    %v6783 = vmul.f32 %v6702, %v6702
    %v6784 = vmul.f32 %v6703, %v6703
    %v6785 = vmul.f32 %v6704, %v6704
    %v6786 = vmul.f32 %v6705, %v6705
    %v6787 = vmul.f32 %v6706, %v6706
    %v6788 = vmul.f32 %v6707, %v6707
    %v6789 = vmul.f32 %v6708, %v6708
    %v6790 = vmul.f32 %v6709, %v6709
    %v6791 = vmul.f32 %v6710, %v6710
    %v6792 = vmul.f32 %v6711, %v6711
    %v6793 = vmul.f32 %v6712, %v6712
    %v6794 = vmul.f32 %v6713, %v6713
    %v6795 = vmul.f32 %v6714, %v6714
    %v6796 = vmul.f32 %v6715, %v6715
    %v6797 = vmul.f32 %v6716, %v6716
    %v6798 = vmul.f32 %v6717, %v6717
    %v6799 = vmul.f32 %v6718, %v6718
    %v6800 = vmul.f32 %v6719, %v6719
    %v6801 = vmul.f32 %v6720, %v6720
    %v6802 = vmul.f32 %v6721, %v6721
    %v6803 = vmul.f32 %v6722, %v6722
    %v6804 = vmul.f32 %v6723, %v6723
    %v6805 = vmul.f32 %v6724, %v6724
    %v6806 = vmul.f32 %v6725, %v6725
    %v6807 = vmul.f32 %v6726, %v6726
    %v6808 = vmul.f32 %v6727, %v6727
    %v6809 = vmul.f32 %v6728, %v6728
    %v6810 = vmul.f32 %v6729, %v6729
    %v6811 = vmul.f32 %v6730, %v6730
    %v6812 = vmul.f32 %v6731, %v6731
    %v6813 = vmul.f32 %v6732, %v6732
    %v6814 = vmul.f32 %v6733, %v6733
    %v6815 = vmul.f32 %v6734, %v6734
    %v6816 = vmul.f32 %v6735, %v6735
    %v6817 = vmul.f32 %v6736, %v6736
    %v6818 = vmul.f32 %v6737, %v6737
    %v6819 = vmul.f32 %v6738, %v6738
    %v6820 = vmul.f32 %v6739, %v6739
    %v6821 = vmul.f32 %v6740, %v6740
    %v6822 = vmul.f32 %v6741, %v6741
    %v6823 = vmul.f32 %v6742, %v6742
    %v6824 = vmul.f32 %v6743, %v6743
    %v6825 = vmul.f32 %v6744, %v6744
    %v6826 = vmul.f32 %v6745, %v6745
    %6827 = vmatpush.msra.mxu0 %v6761
    %6828 = vmatpush.msra.mxu0 %v6760
    %6829 = vmatpush.msra.mxu0 %v6759
    %6830 = vmatpush.msra.mxu0 %v6758
    %6831 = vmatpush.msra.mxu0 %v6757
    %6832 = vmatpush.msra.mxu0 %v6756
    %6833 = vmatpush.msra.mxu0 %v6755
    %6834 = vmatpush.msra.mxu0 %v6754
    %6835 = vmatpush.msra.mxu0 %v6753
    %6836 = vmatpush.msra.mxu0 %v6752
    %6837 = vmatpush.msra.mxu0 %v6751
    %6838 = vmatpush.msra.mxu0 %v6750
    %6839 = vmatpush.msra.mxu0 %v6749
    %6840 = vmatpush.msra.mxu0 %v6748
    %6841 = vmatpush.msra.mxu0 %v6747
    %6842 = vmatpush.msra.mxu0 %v6746
    %6843 = vmatmul.f32.gmra.mxu0 %v475
    %v6844 = vpop.f32.mrf.mxu0
    %v6845 = vadd.f32 0.0, %v6844
    %6846 = vdwg.mxu0
    %6847 = vmatpush.msra.mxu0 %v6777
    %6848 = vmatpush.msra.mxu0 %v6776
    %6849 = vmatpush.msra.mxu0 %v6775
    %6850 = vmatpush.msra.mxu0 %v6774
    %6851 = vmatpush.msra.mxu0 %v6773
    %6852 = vmatpush.msra.mxu0 %v6772
    %6853 = vmatpush.msra.mxu0 %v6771
    %6854 = vmatpush.msra.mxu0 %v6770
    %6855 = vmatpush.msra.mxu0 %v6769
    %6856 = vmatpush.msra.mxu0 %v6768
    %6857 = vmatpush.msra.mxu0 %v6767
    %6858 = vmatpush.msra.mxu0 %v6766
    %6859 = vmatpush.msra.mxu0 %v6765
    %6860 = vmatpush.msra.mxu0 %v6764
    %6861 = vmatpush.msra.mxu0 %v6763
    %6862 = vmatpush.msra.mxu0 %v6762
    %6863 = vmatmul.f32.gmra.mxu0 %v476
    %v6864 = vpop.f32.mrf.mxu0
    %v6865 = vadd.f32 %v6845, %v6864
    %6866 = vdwg.mxu0
    %6867 = vmatpush.msra.mxu0 %v6793
    %6868 = vmatpush.msra.mxu0 %v6792
    %6869 = vmatpush.msra.mxu0 %v6791
    %6870 = vmatpush.msra.mxu0 %v6790
    %6871 = vmatpush.msra.mxu0 %v6789
    %6872 = vmatpush.msra.mxu0 %v6788
    %6873 = vmatpush.msra.mxu0 %v6787
    %6874 = vmatpush.msra.mxu0 %v6786
    %6875 = vmatpush.msra.mxu0 %v6785
    %6876 = vmatpush.msra.mxu0 %v6784
    %6877 = vmatpush.msra.mxu0 %v6783
    %6878 = vmatpush.msra.mxu0 %v6782
    %6879 = vmatpush.msra.mxu0 %v6781
    %6880 = vmatpush.msra.mxu0 %v6780
    %6881 = vmatpush.msra.mxu0 %v6779
    %6882 = vmatpush.msra.mxu0 %v6778
    %6883 = vmatmul.f32.gmra.mxu0 %v477
    %v6884 = vpop.f32.mrf.mxu0
    %v6885 = vadd.f32 %v6865, %v6884
    %6886 = vdwg.mxu0
    %6887 = vmatpush.msra.mxu0 %v6809
    %6888 = vmatpush.msra.mxu0 %v6808
    %6889 = vmatpush.msra.mxu0 %v6807
    %6890 = vmatpush.msra.mxu0 %v6806
    %6891 = vmatpush.msra.mxu0 %v6805
    %6892 = vmatpush.msra.mxu0 %v6804
    %6893 = vmatpush.msra.mxu0 %v6803
    %6894 = vmatpush.msra.mxu0 %v6802
    %6895 = vmatpush.msra.mxu0 %v6801
    %6896 = vmatpush.msra.mxu0 %v6800
    %6897 = vmatpush.msra.mxu0 %v6799
    %6898 = vmatpush.msra.mxu0 %v6798
    %6899 = vmatpush.msra.mxu0 %v6797
    %6900 = vmatpush.msra.mxu0 %v6796
    %6901 = vmatpush.msra.mxu0 %v6795
    %6902 = vmatpush.msra.mxu0 %v6794
    %6903 = vmatmul.f32.gmra.mxu0 %v478
    %v6904 = vpop.f32.mrf.mxu0
    %v6905 = vadd.f32 %v6885, %v6904
    %6906 = vdwg.mxu0
    %6907 = vmatpush.msra.mxu0 %v6825
    %6908 = vmatpush.msra.mxu0 %v6824
    %6909 = vmatpush.msra.mxu0 %v6823
    %6910 = vmatpush.msra.mxu0 %v6822
    %6911 = vmatpush.msra.mxu0 %v6821
    %6912 = vmatpush.msra.mxu0 %v6820
    %6913 = vmatpush.msra.mxu0 %v6819
    %6914 = vmatpush.msra.mxu0 %v6818
    %6915 = vmatpush.msra.mxu0 %v6817
    %6916 = vmatpush.msra.mxu0 %v6816
    %6917 = vmatpush.msra.mxu0 %v6815
    %6918 = vmatpush.msra.mxu0 %v6814
    %6919 = vmatpush.msra.mxu0 %v6813
    %6920 = vmatpush.msra.mxu0 %v6812
    %6921 = vmatpush.msra.mxu0 %v6811
    %6922 = vmatpush.msra.mxu0 %v6810
    %6923 = vmatmul.f32.gmra.mxu0 %v479
    %v6924 = vpop.f32.mrf.mxu0
    %v6925 = vadd.f32 %v6905, %v6924
    %6926 = vdwg.mxu0
    %6927 = vmatpush.msra.mxu0 0.0
    %6928 = vmatpush.msra.mxu0 0.0
    %6929 = vmatpush.msra.mxu0 0.0
    %6930 = vmatpush.msra.mxu0 0.0
    %6931 = vmatpush.msra.mxu0 0.0
    %6932 = vmatpush.msra.mxu0 0.0
    %6933 = vmatpush.msra.mxu0 0.0
    %6934 = vmatpush.msra.mxu0 0.0
    %6935 = vmatpush.msra.mxu0 0.0
    %6936 = vmatpush.msra.mxu0 0.0
    %6937 = vmatpush.msra.mxu0 0.0
    %6938 = vmatpush.msra.mxu0 0.0
    %6939 = vmatpush.msra.mxu0 0.0
    %6940 = vmatpush.msra.mxu0 0.0
    %6941 = vmatpush.msra.mxu0 0.0
    %6942 = vmatpush.msra.mxu0 %v6826
    %6943 = vmatmul.f32.gmra.mxu0 %v487
    %v6944 = vpop.f32.mrf.mxu0
    %v6945 = vadd.f32 %v6925, %v6944
    %6946 = vdwg.mxu0
    %v6947 = vmul.f32 %v6945, 0.001953125
    %v6948 = vld [vmem:[%s10] sm:$0x1]
    %v6949 = vadd.f32 %v6947, 1e-05
    %v6950 = vrsqrt.pop %v6949
    %v6951 = vmul.f32 %v6950, %v6949
    %v6952 = vmul.f32 %v6951, %v6950
    %v6953 = vmul.f32 0.5, %v6952
    %v6954 = vsub.f32 1.5, %v6953
    %v6955 = vmul.f32 %v6950, %v6954
    %vm6956 = vweird.f32 %v6949
    %vm6957 = vweird.f32 %v6950
    %vm6958 = vmor %vm6956, %vm6957
    %v6959 = vsel %vm6958, %v6950, %v6955
    %v6960 = vmul.f32 %v6948, %v6959
    %v6962 = vperm.slane %v6960, 0
    %v6964 = vmul.f32 %v6665, %v6962
    %v6965 = vmul.f32 %v6666, %v6962
    %v6966 = vmul.f32 %v6667, %v6962
    %v6967 = vmul.f32 %v6668, %v6962
    %v6968 = vmul.f32 %v6669, %v6962
    %v6969 = vmul.f32 %v6670, %v6962
    %v6970 = vmul.f32 %v6671, %v6962
    %v6971 = vmul.f32 %v6672, %v6962
    %v6972 = vmul.f32 %v6673, %v6962
    %v6973 = vmul.f32 %v6674, %v6962
    %v6974 = vmul.f32 %v6675, %v6962
    %v6975 = vmul.f32 %v6676, %v6962
    %v6976 = vmul.f32 %v6677, %v6962
    %v6977 = vmul.f32 %v6678, %v6962
    %v6978 = vmul.f32 %v6679, %v6962
    %v6979 = vmul.f32 %v6680, %v6962
    %v6980 = vmul.f32 %v6681, %v6962
    %v6981 = vmul.f32 %v6682, %v6962
    %v6982 = vmul.f32 %v6683, %v6962
    %v6983 = vmul.f32 %v6684, %v6962
    %v6984 = vmul.f32 %v6685, %v6962
    %v6985 = vmul.f32 %v6686, %v6962
    %v6986 = vmul.f32 %v6687, %v6962
    %v6987 = vmul.f32 %v6688, %v6962
    %v6988 = vmul.f32 %v6689, %v6962
    %v6989 = vmul.f32 %v6690, %v6962
    %v6990 = vmul.f32 %v6691, %v6962
    %v6991 = vmul.f32 %v6692, %v6962
    %v6992 = vmul.f32 %v6693, %v6962
    %v6993 = vmul.f32 %v6694, %v6962
    %v6994 = vmul.f32 %v6695, %v6962
    %v6995 = vmul.f32 %v6696, %v6962
    %v6996 = vmul.f32 %v6697, %v6962
    %v6997 = vmul.f32 %v6698, %v6962
    %v6998 = vmul.f32 %v6699, %v6962
    %v6999 = vmul.f32 %v6700, %v6962
    %v7000 = vmul.f32 %v6701, %v6962
    %v7001 = vmul.f32 %v6702, %v6962
    %v7002 = vmul.f32 %v6703, %v6962
    %v7003 = vmul.f32 %v6704, %v6962
    %v7004 = vmul.f32 %v6705, %v6962
    %v7005 = vmul.f32 %v6706, %v6962
    %v7006 = vmul.f32 %v6707, %v6962
    %v7007 = vmul.f32 %v6708, %v6962
    %v7008 = vmul.f32 %v6709, %v6962
    %v7009 = vmul.f32 %v6710, %v6962
    %v7010 = vmul.f32 %v6711, %v6962
    %v7011 = vmul.f32 %v6712, %v6962
    %v7012 = vmul.f32 %v6713, %v6962
    %v7013 = vmul.f32 %v6714, %v6962
    %v7014 = vmul.f32 %v6715, %v6962
    %v7015 = vmul.f32 %v6716, %v6962
    %v7016 = vmul.f32 %v6717, %v6962
    %v7017 = vmul.f32 %v6718, %v6962
    %v7018 = vmul.f32 %v6719, %v6962
    %v7019 = vmul.f32 %v6720, %v6962
    %v7020 = vmul.f32 %v6721, %v6962
    %v7021 = vmul.f32 %v6722, %v6962
    %v7022 = vmul.f32 %v6723, %v6962
    %v7023 = vmul.f32 %v6724, %v6962
    %v7024 = vmul.f32 %v6725, %v6962
    %v7025 = vmul.f32 %v6726, %v6962
    %v7026 = vmul.f32 %v6727, %v6962
    %v7027 = vmul.f32 %v6728, %v6962
    %v7028 = vmul.f32 %v6729, %v6962
    %v7029 = vmul.f32 %v6730, %v6962
    %v7030 = vmul.f32 %v6731, %v6962
    %v7031 = vmul.f32 %v6732, %v6962
    %v7032 = vmul.f32 %v6733, %v6962
    %v7033 = vmul.f32 %v6734, %v6962
    %v7034 = vmul.f32 %v6735, %v6962
    %v7035 = vmul.f32 %v6736, %v6962
    %v7036 = vmul.f32 %v6737, %v6962
    %v7037 = vmul.f32 %v6738, %v6962
    %v7038 = vmul.f32 %v6739, %v6962
    %v7039 = vmul.f32 %v6740, %v6962
    %v7040 = vmul.f32 %v6741, %v6962
    %v7041 = vmul.f32 %v6742, %v6962
    %v7042 = vmul.f32 %v6743, %v6962
    %v7043 = vmul.f32 %v6744, %v6962
    %v7044 = vmul.f32 %v6745, %v6962
    %v7045 = vld [vmem:[%s11] sm:$0x1]
    %v7047 = vperm.slane %v7045, 0
    %v7049 = vadd.f32 %v6964, %v7047
    %v7050 = vadd.f32 %v6965, %v7047
    %v7051 = vadd.f32 %v6966, %v7047
    %v7052 = vadd.f32 %v6967, %v7047
    %v7053 = vadd.f32 %v6968, %v7047
    %v7054 = vadd.f32 %v6969, %v7047
    %v7055 = vadd.f32 %v6970, %v7047
    %v7056 = vadd.f32 %v6971, %v7047
    %v7057 = vadd.f32 %v6972, %v7047
    %v7058 = vadd.f32 %v6973, %v7047
    %v7059 = vadd.f32 %v6974, %v7047
    %v7060 = vadd.f32 %v6975, %v7047
    %v7061 = vadd.f32 %v6976, %v7047
    %v7062 = vadd.f32 %v6977, %v7047
    %v7063 = vadd.f32 %v6978, %v7047
    %v7064 = vadd.f32 %v6979, %v7047
    %v7065 = vadd.f32 %v6980, %v7047
    %v7066 = vadd.f32 %v6981, %v7047
    %v7067 = vadd.f32 %v6982, %v7047
    %v7068 = vadd.f32 %v6983, %v7047
    %v7069 = vadd.f32 %v6984, %v7047
    %v7070 = vadd.f32 %v6985, %v7047
    %v7071 = vadd.f32 %v6986, %v7047
    %v7072 = vadd.f32 %v6987, %v7047
    %v7073 = vadd.f32 %v6988, %v7047
    %v7074 = vadd.f32 %v6989, %v7047
    %v7075 = vadd.f32 %v6990, %v7047
    %v7076 = vadd.f32 %v6991, %v7047
    %v7077 = vadd.f32 %v6992, %v7047
    %v7078 = vadd.f32 %v6993, %v7047
    %v7079 = vadd.f32 %v6994, %v7047
    %v7080 = vadd.f32 %v6995, %v7047
    %v7081 = vadd.f32 %v6996, %v7047
    %v7082 = vadd.f32 %v6997, %v7047
    %v7083 = vadd.f32 %v6998, %v7047
    %v7084 = vadd.f32 %v6999, %v7047
    %v7085 = vadd.f32 %v7000, %v7047
    %v7086 = vadd.f32 %v7001, %v7047
    %v7087 = vadd.f32 %v7002, %v7047
    %v7088 = vadd.f32 %v7003, %v7047
    %v7089 = vadd.f32 %v7004, %v7047
    %v7090 = vadd.f32 %v7005, %v7047
    %v7091 = vadd.f32 %v7006, %v7047
    %v7092 = vadd.f32 %v7007, %v7047
    %v7093 = vadd.f32 %v7008, %v7047
    %v7094 = vadd.f32 %v7009, %v7047
    %v7095 = vadd.f32 %v7010, %v7047
    %v7096 = vadd.f32 %v7011, %v7047
    %v7097 = vadd.f32 %v7012, %v7047
    %v7098 = vadd.f32 %v7013, %v7047
    %v7099 = vadd.f32 %v7014, %v7047
    %v7100 = vadd.f32 %v7015, %v7047
    %v7101 = vadd.f32 %v7016, %v7047
    %v7102 = vadd.f32 %v7017, %v7047
    %v7103 = vadd.f32 %v7018, %v7047
    %v7104 = vadd.f32 %v7019, %v7047
    %v7105 = vadd.f32 %v7020, %v7047
    %v7106 = vadd.f32 %v7021, %v7047
    %v7107 = vadd.f32 %v7022, %v7047
    %v7108 = vadd.f32 %v7023, %v7047
    %v7109 = vadd.f32 %v7024, %v7047
    %v7110 = vadd.f32 %v7025, %v7047
    %v7111 = vadd.f32 %v7026, %v7047
    %v7112 = vadd.f32 %v7027, %v7047
    %v7113 = vadd.f32 %v7028, %v7047
    %v7114 = vadd.f32 %v7029, %v7047
    %v7115 = vadd.f32 %v7030, %v7047
    %v7116 = vadd.f32 %v7031, %v7047
    %v7117 = vadd.f32 %v7032, %v7047
    %v7118 = vadd.f32 %v7033, %v7047
    %v7119 = vadd.f32 %v7034, %v7047
    %v7120 = vadd.f32 %v7035, %v7047
    %v7121 = vadd.f32 %v7036, %v7047
    %v7122 = vadd.f32 %v7037, %v7047
    %v7123 = vadd.f32 %v7038, %v7047
    %v7124 = vadd.f32 %v7039, %v7047
    %v7125 = vadd.f32 %v7040, %v7047
    %v7126 = vadd.f32 %v7041, %v7047
    %v7127 = vadd.f32 %v7042, %v7047
    %v7128 = vadd.f32 %v7043, %v7047
    %v7129 = vadd.f32 %v7044, %v7047
    %v7130 = vld [vmem:[%s0] sm:$0xff]
    %v7131 = vld [vmem:[%s0 + $0x8] sm:$0xff]
    %v7132 = vld [vmem:[%s0 + $0x10] sm:$0xff]
    %v7133 = vld [vmem:[%s0 + $0x18] sm:$0xff]
    %v7134 = vld [vmem:[%s0 + $0x20] sm:$0xff]
    %v7135 = vld [vmem:[%s0 + $0x28] sm:$0xff]
    %v7136 = vld [vmem:[%s0 + $0x30] sm:$0xff]
    %v7137 = vld [vmem:[%s0 + $0x38] sm:$0xff]
    %v7138 = vld [vmem:[%s0 + $0x40] sm:$0xff]
    %v7139 = vld [vmem:[%s0 + $0x48] sm:$0xff]
    %v7140 = vld [vmem:[%s0 + $0x50] sm:$0xff]
    %v7141 = vld [vmem:[%s0 + $0x58] sm:$0xff]
    %v7142 = vld [vmem:[%s0 + $0x60] sm:$0xff]
    %v7143 = vld [vmem:[%s0 + $0x68] sm:$0xff]
    %v7144 = vld [vmem:[%s0 + $0x70] sm:$0xff]
    %v7145 = vld [vmem:[%s0 + $0x78] sm:$0xff]
    %v7146 = vld [vmem:[%s0 + $0x80] sm:$0xff]
    %v7147 = vld [vmem:[%s0 + $0x88] sm:$0xff]
    %v7148 = vld [vmem:[%s0 + $0x90] sm:$0xff]
    %v7149 = vld [vmem:[%s0 + $0x98] sm:$0xff]
    %v7150 = vld [vmem:[%s0 + $0xa0] sm:$0xff]
    %v7151 = vld [vmem:[%s0 + $0xa8] sm:$0xff]
    %v7152 = vld [vmem:[%s0 + $0xb0] sm:$0xff]
    %v7153 = vld [vmem:[%s0 + $0xb8] sm:$0xff]
    %v7154 = vld [vmem:[%s0 + $0xc0] sm:$0xff]
    %v7155 = vld [vmem:[%s0 + $0xc8] sm:$0xff]
    %v7156 = vld [vmem:[%s0 + $0xd0] sm:$0xff]
    %v7157 = vld [vmem:[%s0 + $0xd8] sm:$0xff]
    %v7158 = vld [vmem:[%s0 + $0xe0] sm:$0xff]
    %v7159 = vld [vmem:[%s0 + $0xe8] sm:$0xff]
    %v7160 = vld [vmem:[%s0 + $0xf0] sm:$0xff]
    %v7161 = vld [vmem:[%s0 + $0xf8] sm:$0xff]
    %v7162 = vld [vmem:[%s0 + $0x100] sm:$0xff]
    %v7163 = vld [vmem:[%s0 + $0x108] sm:$0xff]
    %v7164 = vld [vmem:[%s0 + $0x110] sm:$0xff]
    %v7165 = vld [vmem:[%s0 + $0x118] sm:$0xff]
    %v7166 = vld [vmem:[%s0 + $0x120] sm:$0xff]
    %v7167 = vld [vmem:[%s0 + $0x128] sm:$0xff]
    %v7168 = vld [vmem:[%s0 + $0x130] sm:$0xff]
    %v7169 = vld [vmem:[%s0 + $0x138] sm:$0xff]
    %v7170 = vld [vmem:[%s0 + $0x140] sm:$0xff]
    %v7171 = vld [vmem:[%s0 + $0x148] sm:$0xff]
    %v7172 = vld [vmem:[%s0 + $0x150] sm:$0xff]
    %v7173 = vld [vmem:[%s0 + $0x158] sm:$0xff]
    %v7174 = vld [vmem:[%s0 + $0x160] sm:$0xff]
    %v7175 = vld [vmem:[%s0 + $0x168] sm:$0xff]
    %v7176 = vld [vmem:[%s0 + $0x170] sm:$0xff]
    %v7177 = vld [vmem:[%s0 + $0x178] sm:$0xff]
    %v7178 = vld [vmem:[%s0 + $0x180] sm:$0xff]
    %v7179 = vld [vmem:[%s0 + $0x188] sm:$0xff]
    %v7180 = vld [vmem:[%s0 + $0x190] sm:$0xff]
    %v7181 = vld [vmem:[%s0 + $0x198] sm:$0xff]
    %v7182 = vld [vmem:[%s0 + $0x1a0] sm:$0xff]
    %v7183 = vld [vmem:[%s0 + $0x1a8] sm:$0xff]
    %v7184 = vld [vmem:[%s0 + $0x1b0] sm:$0xff]
    %v7185 = vld [vmem:[%s0 + $0x1b8] sm:$0xff]
    %v7186 = vld [vmem:[%s0 + $0x1c0] sm:$0xff]
    %v7187 = vld [vmem:[%s0 + $0x1c8] sm:$0xff]
    %v7188 = vld [vmem:[%s0 + $0x1d0] sm:$0xff]
    %v7189 = vld [vmem:[%s0 + $0x1d8] sm:$0xff]
    %v7190 = vld [vmem:[%s0 + $0x1e0] sm:$0xff]
    %v7191 = vld [vmem:[%s0 + $0x1e8] sm:$0xff]
    %v7192 = vld [vmem:[%s0 + $0x1f0] sm:$0xff]
    %v7193 = vld [vmem:[%s0 + $0x1f8] sm:$0xff]
    %v7194 = vld [vmem:[%s0 + $0x200] sm:$0xff]
    %v7195 = vld [vmem:[%s0 + $0x208] sm:$0xff]
    %v7196 = vld [vmem:[%s0 + $0x210] sm:$0xff]
    %v7197 = vld [vmem:[%s0 + $0x218] sm:$0xff]
    %v7198 = vld [vmem:[%s0 + $0x220] sm:$0xff]
    %v7199 = vld [vmem:[%s0 + $0x228] sm:$0xff]
    %v7200 = vld [vmem:[%s0 + $0x230] sm:$0xff]
    %v7201 = vld [vmem:[%s0 + $0x238] sm:$0xff]
    %v7202 = vld [vmem:[%s0 + $0x240] sm:$0xff]
    %v7203 = vld [vmem:[%s0 + $0x248] sm:$0xff]
    %v7204 = vld [vmem:[%s0 + $0x250] sm:$0xff]
    %v7205 = vld [vmem:[%s0 + $0x258] sm:$0xff]
    %v7206 = vld [vmem:[%s0 + $0x260] sm:$0xff]
    %v7207 = vld [vmem:[%s0 + $0x268] sm:$0xff]
    %v7208 = vld [vmem:[%s0 + $0x270] sm:$0xff]
    %v7209 = vld [vmem:[%s0 + $0x278] sm:$0xff]
    %v7210 = vld [vmem:[%s0 + $0x280] sm:$0xff]
    %v7211 = vadd.f32 %v7049, %v7130
    %v7212 = vadd.f32 %v7050, %v7131
    %v7213 = vadd.f32 %v7051, %v7132
    %v7214 = vadd.f32 %v7052, %v7133
    %v7215 = vadd.f32 %v7053, %v7134
    %v7216 = vadd.f32 %v7054, %v7135
    %v7217 = vadd.f32 %v7055, %v7136
    %v7218 = vadd.f32 %v7056, %v7137
    %v7219 = vadd.f32 %v7057, %v7138
    %v7220 = vadd.f32 %v7058, %v7139
    %v7221 = vadd.f32 %v7059, %v7140
    %v7222 = vadd.f32 %v7060, %v7141
    %v7223 = vadd.f32 %v7061, %v7142
    %v7224 = vadd.f32 %v7062, %v7143
    %v7225 = vadd.f32 %v7063, %v7144
    %v7226 = vadd.f32 %v7064, %v7145
    %v7227 = vadd.f32 %v7065, %v7146
    %v7228 = vadd.f32 %v7066, %v7147
    %v7229 = vadd.f32 %v7067, %v7148
    %v7230 = vadd.f32 %v7068, %v7149
    %v7231 = vadd.f32 %v7069, %v7150
    %v7232 = vadd.f32 %v7070, %v7151
    %v7233 = vadd.f32 %v7071, %v7152
    %v7234 = vadd.f32 %v7072, %v7153
    %v7235 = vadd.f32 %v7073, %v7154
    %v7236 = vadd.f32 %v7074, %v7155
    %v7237 = vadd.f32 %v7075, %v7156
    %v7238 = vadd.f32 %v7076, %v7157
    %v7239 = vadd.f32 %v7077, %v7158
    %v7240 = vadd.f32 %v7078, %v7159
    %v7241 = vadd.f32 %v7079, %v7160
    %v7242 = vadd.f32 %v7080, %v7161
    %v7243 = vadd.f32 %v7081, %v7162
    %v7244 = vadd.f32 %v7082, %v7163
    %v7245 = vadd.f32 %v7083, %v7164
    %v7246 = vadd.f32 %v7084, %v7165
    %v7247 = vadd.f32 %v7085, %v7166
    %v7248 = vadd.f32 %v7086, %v7167
    %v7249 = vadd.f32 %v7087, %v7168
    %v7250 = vadd.f32 %v7088, %v7169
    %v7251 = vadd.f32 %v7089, %v7170
    %v7252 = vadd.f32 %v7090, %v7171
    %v7253 = vadd.f32 %v7091, %v7172
    %v7254 = vadd.f32 %v7092, %v7173
    %v7255 = vadd.f32 %v7093, %v7174
    %v7256 = vadd.f32 %v7094, %v7175
    %v7257 = vadd.f32 %v7095, %v7176
    %v7258 = vadd.f32 %v7096, %v7177
    %v7259 = vadd.f32 %v7097, %v7178
    %v7260 = vadd.f32 %v7098, %v7179
    %v7261 = vadd.f32 %v7099, %v7180
    %v7262 = vadd.f32 %v7100, %v7181
    %v7263 = vadd.f32 %v7101, %v7182
    %v7264 = vadd.f32 %v7102, %v7183
    %v7265 = vadd.f32 %v7103, %v7184
    %v7266 = vadd.f32 %v7104, %v7185
    %v7267 = vadd.f32 %v7105, %v7186
    %v7268 = vadd.f32 %v7106, %v7187
    %v7269 = vadd.f32 %v7107, %v7188
    %v7270 = vadd.f32 %v7108, %v7189
    %v7271 = vadd.f32 %v7109, %v7190
    %v7272 = vadd.f32 %v7110, %v7191
    %v7273 = vadd.f32 %v7111, %v7192
    %v7274 = vadd.f32 %v7112, %v7193
    %v7275 = vadd.f32 %v7113, %v7194
    %v7276 = vadd.f32 %v7114, %v7195
    %v7277 = vadd.f32 %v7115, %v7196
    %v7278 = vadd.f32 %v7116, %v7197
    %v7279 = vadd.f32 %v7117, %v7198
    %v7280 = vadd.f32 %v7118, %v7199
    %v7281 = vadd.f32 %v7119, %v7200
    %v7282 = vadd.f32 %v7120, %v7201
    %v7283 = vadd.f32 %v7121, %v7202
    %v7284 = vadd.f32 %v7122, %v7203
    %v7285 = vadd.f32 %v7123, %v7204
    %v7286 = vadd.f32 %v7124, %v7205
    %v7287 = vadd.f32 %v7125, %v7206
    %v7288 = vadd.f32 %v7126, %v7207
    %v7289 = vadd.f32 %v7127, %v7208
    %v7290 = vadd.f32 %v7128, %v7209
    %v7291 = vadd.f32 %v7129, %v7210
    %v7292 = vmax.f32 %v7211, 0.0
    %v7293 = vmax.f32 %v7212, 0.0
    %v7294 = vmax.f32 %v7213, 0.0
    %v7295 = vmax.f32 %v7214, 0.0
    %v7296 = vmax.f32 %v7215, 0.0
    %v7297 = vmax.f32 %v7216, 0.0
    %v7298 = vmax.f32 %v7217, 0.0
    %v7299 = vmax.f32 %v7218, 0.0
    %v7300 = vmax.f32 %v7219, 0.0
    %v7301 = vmax.f32 %v7220, 0.0
    %v7302 = vmax.f32 %v7221, 0.0
    %v7303 = vmax.f32 %v7222, 0.0
    %v7304 = vmax.f32 %v7223, 0.0
    %v7305 = vmax.f32 %v7224, 0.0
    %v7306 = vmax.f32 %v7225, 0.0
    %v7307 = vmax.f32 %v7226, 0.0
    %v7308 = vmax.f32 %v7227, 0.0
    %v7309 = vmax.f32 %v7228, 0.0
    %v7310 = vmax.f32 %v7229, 0.0
    %v7311 = vmax.f32 %v7230, 0.0
    %v7312 = vmax.f32 %v7231, 0.0
    %v7313 = vmax.f32 %v7232, 0.0
    %v7314 = vmax.f32 %v7233, 0.0
    %v7315 = vmax.f32 %v7234, 0.0
    %v7316 = vmax.f32 %v7235, 0.0
    %v7317 = vmax.f32 %v7236, 0.0
    %v7318 = vmax.f32 %v7237, 0.0
    %v7319 = vmax.f32 %v7238, 0.0
    %v7320 = vmax.f32 %v7239, 0.0
    %v7321 = vmax.f32 %v7240, 0.0
    %v7322 = vmax.f32 %v7241, 0.0
    %v7323 = vmax.f32 %v7242, 0.0
    %v7324 = vmax.f32 %v7243, 0.0
    %v7325 = vmax.f32 %v7244, 0.0
    %v7326 = vmax.f32 %v7245, 0.0
    %v7327 = vmax.f32 %v7246, 0.0
    %v7328 = vmax.f32 %v7247, 0.0
    %v7329 = vmax.f32 %v7248, 0.0
    %v7330 = vmax.f32 %v7249, 0.0
    %v7331 = vmax.f32 %v7250, 0.0
    %v7332 = vmax.f32 %v7251, 0.0
    %v7333 = vmax.f32 %v7252, 0.0
    %v7334 = vmax.f32 %v7253, 0.0
    %v7335 = vmax.f32 %v7254, 0.0
    %v7336 = vmax.f32 %v7255, 0.0
    %v7337 = vmax.f32 %v7256, 0.0
    %v7338 = vmax.f32 %v7257, 0.0
    %v7339 = vmax.f32 %v7258, 0.0
    %v7340 = vmax.f32 %v7259, 0.0
    %v7341 = vmax.f32 %v7260, 0.0
    %v7342 = vmax.f32 %v7261, 0.0
    %v7343 = vmax.f32 %v7262, 0.0
    %v7344 = vmax.f32 %v7263, 0.0
    %v7345 = vmax.f32 %v7264, 0.0
    %v7346 = vmax.f32 %v7265, 0.0
    %v7347 = vmax.f32 %v7266, 0.0
    %v7348 = vmax.f32 %v7267, 0.0
    %v7349 = vmax.f32 %v7268, 0.0
    %v7350 = vmax.f32 %v7269, 0.0
    %v7351 = vmax.f32 %v7270, 0.0
    %v7352 = vmax.f32 %v7271, 0.0
    %v7353 = vmax.f32 %v7272, 0.0
    %v7354 = vmax.f32 %v7273, 0.0
    %v7355 = vmax.f32 %v7274, 0.0
    %v7356 = vmax.f32 %v7275, 0.0
    %v7357 = vmax.f32 %v7276, 0.0
    %v7358 = vmax.f32 %v7277, 0.0
    %v7359 = vmax.f32 %v7278, 0.0
    %v7360 = vmax.f32 %v7279, 0.0
    %v7361 = vmax.f32 %v7280, 0.0
    %v7362 = vmax.f32 %v7281, 0.0
    %v7363 = vmax.f32 %v7282, 0.0
    %v7364 = vmax.f32 %v7283, 0.0
    %v7365 = vmax.f32 %v7284, 0.0
    %v7366 = vmax.f32 %v7285, 0.0
    %v7367 = vmax.f32 %v7286, 0.0
    %v7368 = vmax.f32 %v7287, 0.0
    %v7369 = vmax.f32 %v7288, 0.0
    %v7370 = vmax.f32 %v7289, 0.0
    %v7371 = vmax.f32 %v7290, 0.0
    %v7372 = vmax.f32 %v7291, 0.0
    %7373 = vst [vmem:[#allocation12] sm:$0xff] %v7292
    %7374 = vst [vmem:[#allocation12 + $0x8] sm:$0xff] %v7293
    %7375 = vst [vmem:[#allocation12 + $0x10] sm:$0xff] %v7294
    %7376 = vst [vmem:[#allocation12 + $0x18] sm:$0xff] %v7295
    %7377 = vst [vmem:[#allocation12 + $0x20] sm:$0xff] %v7296
    %7378 = vst [vmem:[#allocation12 + $0x28] sm:$0xff] %v7297
    %7379 = vst [vmem:[#allocation12 + $0x30] sm:$0xff] %v7298
    %7380 = vst [vmem:[#allocation12 + $0x38] sm:$0xff] %v7299
    %7381 = vst [vmem:[#allocation12 + $0x40] sm:$0xff] %v7300
    %7382 = vst [vmem:[#allocation12 + $0x48] sm:$0xff] %v7301
    %7383 = vst [vmem:[#allocation12 + $0x50] sm:$0xff] %v7302
    %7384 = vst [vmem:[#allocation12 + $0x58] sm:$0xff] %v7303
    %7385 = vst [vmem:[#allocation12 + $0x60] sm:$0xff] %v7304
    %7386 = vst [vmem:[#allocation12 + $0x68] sm:$0xff] %v7305
    %7387 = vst [vmem:[#allocation12 + $0x70] sm:$0xff] %v7306
    %7388 = vst [vmem:[#allocation12 + $0x78] sm:$0xff] %v7307
    %7389 = vst [vmem:[#allocation12 + $0x80] sm:$0xff] %v7308
    %7390 = vst [vmem:[#allocation12 + $0x88] sm:$0xff] %v7309
    %7391 = vst [vmem:[#allocation12 + $0x90] sm:$0xff] %v7310
    %7392 = vst [vmem:[#allocation12 + $0x98] sm:$0xff] %v7311
    %7393 = vst [vmem:[#allocation12 + $0xa0] sm:$0xff] %v7312
    %7394 = vst [vmem:[#allocation12 + $0xa8] sm:$0xff] %v7313
    %7395 = vst [vmem:[#allocation12 + $0xb0] sm:$0xff] %v7314
    %7396 = vst [vmem:[#allocation12 + $0xb8] sm:$0xff] %v7315
    %7397 = vst [vmem:[#allocation12 + $0xc0] sm:$0xff] %v7316
    %7398 = vst [vmem:[#allocation12 + $0xc8] sm:$0xff] %v7317
    %7399 = vst [vmem:[#allocation12 + $0xd0] sm:$0xff] %v7318
    %7400 = vst [vmem:[#allocation12 + $0xd8] sm:$0xff] %v7319
    %7401 = vst [vmem:[#allocation12 + $0xe0] sm:$0xff] %v7320
    %7402 = vst [vmem:[#allocation12 + $0xe8] sm:$0xff] %v7321
    %7403 = vst [vmem:[#allocation12 + $0xf0] sm:$0xff] %v7322
    %7404 = vst [vmem:[#allocation12 + $0xf8] sm:$0xff] %v7323
    %7405 = vst [vmem:[#allocation12 + $0x100] sm:$0xff] %v7324
    %7406 = vst [vmem:[#allocation12 + $0x108] sm:$0xff] %v7325
    %7407 = vst [vmem:[#allocation12 + $0x110] sm:$0xff] %v7326
    %7408 = vst [vmem:[#allocation12 + $0x118] sm:$0xff] %v7327
    %7409 = vst [vmem:[#allocation12 + $0x120] sm:$0xff] %v7328
    %7410 = vst [vmem:[#allocation12 + $0x128] sm:$0xff] %v7329
    %7411 = vst [vmem:[#allocation12 + $0x130] sm:$0xff] %v7330
    %7412 = vst [vmem:[#allocation12 + $0x138] sm:$0xff] %v7331
    %7413 = vst [vmem:[#allocation12 + $0x140] sm:$0xff] %v7332
    %7414 = vst [vmem:[#allocation12 + $0x148] sm:$0xff] %v7333
    %7415 = vst [vmem:[#allocation12 + $0x150] sm:$0xff] %v7334
    %7416 = vst [vmem:[#allocation12 + $0x158] sm:$0xff] %v7335
    %7417 = vst [vmem:[#allocation12 + $0x160] sm:$0xff] %v7336
    %7418 = vst [vmem:[#allocation12 + $0x168] sm:$0xff] %v7337
    %7419 = vst [vmem:[#allocation12 + $0x170] sm:$0xff] %v7338
    %7420 = vst [vmem:[#allocation12 + $0x178] sm:$0xff] %v7339
    %7421 = vst [vmem:[#allocation12 + $0x180] sm:$0xff] %v7340
    %7422 = vst [vmem:[#allocation12 + $0x188] sm:$0xff] %v7341
    %7423 = vst [vmem:[#allocation12 + $0x190] sm:$0xff] %v7342
    %7424 = vst [vmem:[#allocation12 + $0x198] sm:$0xff] %v7343
    %7425 = vst [vmem:[#allocation12 + $0x1a0] sm:$0xff] %v7344
    %7426 = vst [vmem:[#allocation12 + $0x1a8] sm:$0xff] %v7345
    %7427 = vst [vmem:[#allocation12 + $0x1b0] sm:$0xff] %v7346
    %7428 = vst [vmem:[#allocation12 + $0x1b8] sm:$0xff] %v7347
    %7429 = vst [vmem:[#allocation12 + $0x1c0] sm:$0xff] %v7348
    %7430 = vst [vmem:[#allocation12 + $0x1c8] sm:$0xff] %v7349
    %7431 = vst [vmem:[#allocation12 + $0x1d0] sm:$0xff] %v7350
    %7432 = vst [vmem:[#allocation12 + $0x1d8] sm:$0xff] %v7351
    %7433 = vst [vmem:[#allocation12 + $0x1e0] sm:$0xff] %v7352
    %7434 = vst [vmem:[#allocation12 + $0x1e8] sm:$0xff] %v7353
    %7435 = vst [vmem:[#allocation12 + $0x1f0] sm:$0xff] %v7354
    %7436 = vst [vmem:[#allocation12 + $0x1f8] sm:$0xff] %v7355
    %7437 = vst [vmem:[#allocation12 + $0x200] sm:$0xff] %v7356
    %7438 = vst [vmem:[#allocation12 + $0x208] sm:$0xff] %v7357
    %7439 = vst [vmem:[#allocation12 + $0x210] sm:$0xff] %v7358
    %7440 = vst [vmem:[#allocation12 + $0x218] sm:$0xff] %v7359
    %7441 = vst [vmem:[#allocation12 + $0x220] sm:$0xff] %v7360
    %7442 = vst [vmem:[#allocation12 + $0x228] sm:$0xff] %v7361
    %7443 = vst [vmem:[#allocation12 + $0x230] sm:$0xff] %v7362
    %7444 = vst [vmem:[#allocation12 + $0x238] sm:$0xff] %v7363
    %7445 = vst [vmem:[#allocation12 + $0x240] sm:$0xff] %v7364
    %7446 = vst [vmem:[#allocation12 + $0x248] sm:$0xff] %v7365
    %7447 = vst [vmem:[#allocation12 + $0x250] sm:$0xff] %v7366
    %7448 = vst [vmem:[#allocation12 + $0x258] sm:$0xff] %v7367
    %7449 = vst [vmem:[#allocation12 + $0x260] sm:$0xff] %v7368
    %7450 = vst [vmem:[#allocation12 + $0x268] sm:$0xff] %v7369
    %7451 = vst [vmem:[#allocation12 + $0x270] sm:$0xff] %v7370
    %7452 = vst [vmem:[#allocation12 + $0x278] sm:$0xff] %v7371
    %7453 = vst [vmem:[#allocation12 + $0x280] sm:$0xff] %v7372
    // Predicated region
    $region70: #{tpu_custom_call.1} parent=1 // pred_check
      _
    $region71: #{tpu_custom_call.1} parent=1 // pred_check_branch
      %7455 = sbr.rel (0) target = $region73
    $region72: #{tpu_custom_call.1} parent=1 // pred_region
      %7457 = vsyncadd [#allocation5], 0
      %s7458 = sshll.u32 [#allocation12], 4
      %s7459 = int_to_ptr.vmem [resolvable:$true] %s7458
      %s7460 = sshll.u32 %s12, 4
      %s7461 = int_to_ptr.hbm [resolvable:$true] %s7460
      %7466 = dma.vmem_to_hbm [thread:$0]  %s7459, 10368, %s7461, [#allocation5], 128, 128, 8
    $region73: #{tpu_custom_call.1} parent=1 // pred_fallthru
      _
    // Predicated region
    $region74: #{tpu_custom_call.1} parent=1 // pred_check
      _
    $region75: #{tpu_custom_call.1} parent=1 // pred_check_branch
      %7468 = sbr.rel (0) target = $region77
    $region76: #{tpu_custom_call.1} parent=1 // pred_region
      %7470 = dma.done [#allocation5], 10368
    $region77: #{tpu_custom_call.1} parent=1 // pred_fallthru
      _
    %7471 = vsyncpa [#allocation4], 1
    %7472 = vsyncpa [#allocation7], 1
    %7473 = vsyncpa [#allocation10], 1
    %7474 = vsyncpa [#allocation5], 1

</llo_original>
